<compile_context>
chip_gen: v7x
topology: tpu7x:2x2x1
jax: 0.10.0
libtpu: 0.0.40
codegen_flags: <defaults>
</compile_context>

<pallas_src>
import functools
from math import sqrt, log2

import jax
import jax.numpy as jnp
from jax.experimental import pallas as pl
from jax.experimental.pallas import tpu as pltpu

SQRT2 = sqrt(2.0)


def _round_up(x, m):
    return (x + m - 1) // m * m


def _pick_tile(n, candidates):
    for c in candidates:
        if n % c == 0:
            return c
    return n


# ---------------------------------------------------------------------------
# Style kernel: normalize + embed FC + 8 mapping FCs + all affine FCs, one launch
# ---------------------------------------------------------------------------

def _style_kernel(z_ref, c_ref, ew_ref, eb_ref, w0a_ref, w0b_ref,
                  mw_ref, mb_ref, aw_ref, ab_ref, o_ref, *, dim, n_fc):
    inv_dim = 1.0 / dim
    z = z_ref[...]
    zn = z * jax.lax.rsqrt(jnp.sum(z * z, axis=1, keepdims=True) * inv_dim + 1e-8)
    c = c_ref[...]
    e = jnp.dot(c.astype(jnp.bfloat16), ew_ref[...],
                preferred_element_type=jnp.float32) + eb_ref[...]
    en = e * jax.lax.rsqrt(jnp.sum(e * e, axis=1, keepdims=True) * inv_dim + 1e-8)
    # fc0 on cat([zn, en]) done as two half-matmuls (avoids in-kernel concat)
    h = (jnp.dot(zn.astype(jnp.bfloat16), w0a_ref[...], preferred_element_type=jnp.float32)
         + jnp.dot(en.astype(jnp.bfloat16), w0b_ref[...], preferred_element_type=jnp.float32)
         + mb_ref[0])
    h = jnp.where(h >= 0.0, h, 0.2 * h) * SQRT2
    for i in range(1, n_fc):
        h = jnp.dot(h.astype(jnp.bfloat16), mw_ref[i - 1],
                    preferred_element_type=jnp.float32) + mb_ref[i]
        h = jnp.where(h >= 0.0, h, 0.2 * h) * SQRT2
    # all per-layer affine FCs collapsed into one concatenated matmul
    o_ref[...] = jnp.dot(h.astype(jnp.bfloat16), aw_ref[...],
                         preferred_element_type=jnp.float32) + ab_ref[...]


def pallas_style(z, c, sp):
    """z, c: (B, dim) f32.  Returns padded (Bp, A) f32 concatenated styles (rows >= B valid)."""
    B = z.shape[0]
    dim, dp = sp["dim"], sp["dp"]
    A = sp["aw"].shape[1]
    Bp = _round_up(B, 8)
    zp = jnp.zeros((Bp, dp), jnp.float32).at[:B, :dim].set(z.astype(jnp.float32))
    cp = jnp.zeros((Bp, dp), jnp.float32).at[:B, :dim].set(c.astype(jnp.float32))
    kernel = functools.partial(_style_kernel, dim=dim, n_fc=sp["n_fc"])
    return pl.pallas_call(
        kernel,
        out_shape=jax.ShapeDtypeStruct((Bp, A), jnp.float32),
    )(zp, cp, sp["ew"], sp["eb"], sp["w0a"], sp["w0b"],
      sp["mw"], sp["mb"], sp["aw"], sp["ab"])


# ---------------------------------------------------------------------------
# Fused modulated 3x3 conv (+ optional fused ToRGB + skip add)
#   grid = (Cout_tiles,): each weight tile streamed exactly once; batch folded into M.
# ---------------------------------------------------------------------------

def _modconv_kernel(x_ref, w_ref, wsq_ref, s_ref, b_ref, m_ref, *rest,
                    B, HW, W, gain, clamp, has_rgb):
    if has_rgb:
        rw_ref, rs_ref, rb_ref, skip_ref, o_ref, rgb_ref, slab_ref, racc_ref = rest
    else:
        o_ref, slab_ref = rest

    j = pl.program_id(0)
    N = B * HW
    Cip = x_ref.shape[2]
    tn = o_ref.shape[2]

    s_all = s_ref[...]                                   # (Bp, Cip) f32, first B rows valid

    @pl.when(j == 0)
    def _():
        # per-input prep done ONCE per layer: modulation + 9 shifted/masked taps -> bf16 slab
        xm = (x_ref[...].astype(jnp.float32) * s_all[:B][:, None, :]).reshape(N, Cip)
        for t in range(9):                               # unrolled taps, t = dy*3 + dx
            dy, dx = t // 3, t % 3
            off = (dy - 1) * W + (dx - 1)
            if off == 0:
                xs = xm
            else:
                # shift the flattened rows; mask zeroes padding=1 / cross-sample positions
                xs = pltpu.roll(xm, shift=(-off) % N, axis=0) * m_ref[t]
            slab_ref[:, t * Cip:(t + 1) * Cip] = xs.astype(jnp.bfloat16)
        if has_rgb:
            racc_ref[...] = jnp.zeros_like(racc_ref)

    # demodulation coefficients for this Cout tile (algebraic, in-kernel)
    d = jax.lax.rsqrt(
        jnp.dot(jnp.square(s_all), wsq_ref[...], preferred_element_type=jnp.float32) + 1e-8)

    # one long-K MXU dot: (B*HW, 9*Cip) @ (9*Cip, tn), f32 accumulation
    acc = jnp.dot(slab_ref[...], w_ref[...], preferred_element_type=jnp.float32)
    y = acc.reshape(B, HW, tn) * d[:B][:, None, :] + b_ref[...]
    y = jnp.where(y >= 0.0, y, 0.2 * y) * gain
    y = jnp.clip(y, -clamp, clamp)
    o_ref[...] = y.astype(o_ref.dtype)

    if has_rgb:
        Tp = rgb_ref.shape[2]
        # fused ToRGB: modulated 1x1 conv accumulated over Cout tiles
        ym = (y * rs_ref[...][:B][:, None, :]).astype(jnp.bfloat16).reshape(N, tn)
        racc_ref[...] += jnp.dot(ym, rw_ref[...],
                                 preferred_element_type=jnp.float32).reshape(B, HW, Tp)

        @pl.when(j == pl.num_programs(0) - 1)
        def _():
            rgb_ref[...] = jnp.clip(racc_ref[...] + rb_ref[...], -clamp, clamp) + skip_ref[...]


def _tap_masks(H, W, B):
    """(9, B*H*W, 1) f32 validity masks of a padding=1 3x3 correlation, tiled over batch."""
    hh = jnp.arange(H * W, dtype=jnp.int32) // W
    ww = jnp.arange(H * W, dtype=jnp.int32) % W
    ms = []
    for t in range(9):
        dy, dx = t // 3, t % 3
        valid = ((hh + dy - 1 >= 0) & (hh + dy - 1 < H) &
                 (ww + dx - 1 >= 0) & (ww + dx - 1 < W))
        ms.append(valid)
    m = jnp.stack(ms, 0).astype(jnp.float32).reshape(9, H * W, 1)
    return jnp.tile(m, (1, B, 1))


def pallas_modconv3x3(x, wcat, wsq, styles, bias, *, H, W, gain, clamp, rgb=None):
    """x:(B,HW,Cip) bf16; wcat:(9*Cip,Cop) bf16; wsq:(Cip,Cop) f32; styles:(Bp,Cip) f32;
    bias:(1,Cop) f32.  rgb: dict(w:(Cop,Tp) bf16, s:(Bp,Cop) f32, b:(1,Tp) f32,
    skip:(B,HW,Tp) f32) or None.  Returns y (B,HW,Cop) bf16 [, rgb (B,HW,Tp) f32]."""
    B, HW, Cip = x.shape
    Bp = styles.shape[0]
    Cop = wcat.shape[1]
    N = B * HW
    tn = _pick_tile(Cop, (256, 128))                 # cap tile so it fits v7x / v5e VMEM
    masks = _tap_masks(H, W, B)
    has_rgb = rgb is not None

    in_specs = [
        pl.BlockSpec((B, HW, Cip), lambda j: (0, 0, 0)),
        pl.BlockSpec((9 * Cip, tn), lambda j: (0, j)),
        pl.BlockSpec((Cip, tn), lambda j: (0, j)),
        pl.BlockSpec((Bp, Cip), lambda j: (0, 0)),
        pl.BlockSpec((1, tn), lambda j: (0, j)),
        pl.BlockSpec((9, N, 1), lambda j: (0, 0, 0)),
    ]
    inputs = [x, wcat, wsq, styles, bias, masks]
    y_shape = jax.ShapeDtypeStruct((B, HW, Cop), jnp.bfloat16)
    y_spec = pl.BlockSpec((B, HW, tn), lambda j: (0, 0, j))
    scratch = [pltpu.VMEM((N, 9 * Cip), jnp.bfloat16)]

    est = (2 * 9 * Cip * tn * 2 + 2 * Cip * tn * 4 + 2 * B * HW * Cip * 2
           + N * 9 * Cip * 2 + 9 * N * 128 * 4 + 2 * B * HW * tn * 2
           + 3 * B * HW * tn * 4)

    if has_rgb:
        Tp = rgb["w"].shape[1]
        in_specs += [
            pl.BlockSpec((tn, Tp), lambda j: (j, 0)),
            pl.BlockSpec((Bp, tn), lambda j: (0, j)),
            pl.BlockSpec((1, Tp), lambda j: (0, 0)),
            pl.BlockSpec((B, HW, Tp), lambda j: (0, 0, 0)),
        ]
        inputs += [rgb["w"], rgb["s"], rgb["b"], rgb["skip"]]
        out_shape = (y_shape, jax.ShapeDtypeStruct((B, HW, Tp), jnp.float32))
        out_specs = (y_spec, pl.BlockSpec((B, HW, Tp), lambda j: (0, 0, 0)))
        scratch.append(pltpu.VMEM((B, HW, Tp), jnp.float32))
        est += 2 * tn * Tp * 2 + 2 * Bp * tn * 4 + 4 * B * HW * Tp * 4
    else:
        out_shape = y_shape
        out_specs = y_spec

    vmem_limit = int(min(max(2 * est, 32 * 1024 * 1024), 64 * 1024 * 1024))

    kernel = functools.partial(_modconv_kernel, B=B, HW=HW, W=W,
                               gain=gain, clamp=clamp, has_rgb=has_rgb)
    return pl.pallas_call(
        kernel,
        out_shape=out_shape,
        grid_spec=pltpu.PrefetchScalarGridSpec(
            num_scalar_prefetch=0,
            grid=(Cop // tn,),
            in_specs=in_specs,
            out_specs=out_specs,
            scratch_shapes=scratch),
        compiler_params=pltpu.CompilerParams(
            # sequential: the slab scratch built at step 0 is reused by later Cout tiles
            dimension_semantics=("arbitrary",),
            vmem_limit_bytes=vmem_limit),
    )(*inputs)


# ---------------------------------------------------------------------------
# Forward pass glue
# ---------------------------------------------------------------------------

def _upsample2x(x, B, H, W):
    """Nearest-neighbour 2x upsample of a flattened (B, H*W, C) activation.
    TODO(synk): exact StyleGAN2 uses upfirdn2d FIR [1,3,3,1]; nearest-neighbour approximation."""
    C = x.shape[-1]
    x = x.reshape(B, H, W, C)
    x = jnp.repeat(jnp.repeat(x, 2, axis=1), 2, axis=2)
    return x.reshape(B, 4 * H * W, C)


def generator_forward(prep, z, c):
    B = z.shape[0]

    # mapping + embed + all affine FCs fused into a single Pallas launch
    styles_pad = pallas_style(z, c, prep["style"])                  # (Bp, A) f32

    def lsty(lp):
        o = lp["off"]
        return styles_pad[:, o:o + lp["cip"]]                       # (Bp, Cip) f32

    img = None
    xact = None
    H = W = 4
    for pb in prep["blocks"]:
        if "const" in pb:
            cst = pb["const"]                                       # (16, Cp) bf16
            xact = jnp.broadcast_to(cst[None], (B,) + cst.shape)
        else:
            xact = _upsample2x(xact, B, H, W)
            H, W = 2 * H, 2 * W
            lp = pb["conv0"]
            xact = pallas_modconv3x3(xact, lp["wcat"], lp["wsq"], lsty(lp), lp["bias"],
                                     H=H, W=W, gain=SQRT2, clamp=256.0)

        lp = pb["conv1"]
        rp = pb["torgb"]
        Tp = rp["tp"]
        if img is None:
            skip = jnp.zeros((B, H * W, Tp), jnp.float32)
        else:
            skip = _upsample2x(img, B, H // 2, W // 2)              # TODO(synk): FIR upsample
        # conv1 with fused ToRGB + skip add (noise injection is a no-op: strength inits to 0)
        xact, img = pallas_modconv3x3(
            xact, lp["wcat"], lp["wsq"], lsty(lp), lp["bias"],
            H=H, W=W, gain=SQRT2, clamp=256.0,
            rgb=dict(w=rp["w"], s=lsty(rp), b=rp["bias"], skip=skip))

    T = prep["num_image_tokens"]
    out = img[:, :, :T].reshape(B, H, W, T)
    return jnp.transpose(out, (0, 3, 1, 2))                         # NCHW


def stylegan_generator_forward(prep, video_indices, frame_indices):
    """StyleGANGenerator.forward(return_loss=False), eval mode."""
    # RegularizedEmbedding adds gaussian noise only in training; eval -> plain lookup.
    content_code = jnp.take(prep["per_frame_emb"], frame_indices, axis=0)
    class_code = jnp.take(prep["per_video_emb"], video_indices, axis=0)
    return generator_forward(prep["generator"], content_code, class_code)
    # TODO(synk): return_loss branch (vae.get_codebook_indices + cross_entropy + frame_emb_loss)
    # depends on an external VAE and is not part of the inference hot path; not implemented.


# ---------------------------------------------------------------------------
# Parameter init (PyTorch-like) + one-time preparation (padding/transpose/bf16)
# ---------------------------------------------------------------------------

def _init_fc_eff(key, in_f, out_f, lr_mult=1.0, bias_init=0.0):
    # torch: weight = randn(out,in)/lr ; forward scale = lr/sqrt(in) => effective randn/sqrt(in)
    w = jax.random.normal(key, (out_f, in_f), jnp.float32) * (1.0 / sqrt(in_f))
    b = jnp.full((out_f,), float(bias_init), jnp.float32)
    return {"w": w.T, "b": b}


def _init_synth_layer(key, in_ch, out_ch, w_dim):
    k0, k1 = jax.random.split(key)
    return {"affine": _init_fc_eff(k0, w_dim, in_ch, bias_init=1.0),
            "weight": jax.random.normal(k1, (out_ch, in_ch, 3, 3), jnp.float32),
            "bias": jnp.zeros((out_ch,), jnp.float32)}


def _init_torgb_layer(key, in_ch, out_ch, w_dim):
    k0, k1 = jax.random.split(key)
    return {"affine": _init_fc_eff(k0, w_dim, in_ch, bias_init=1.0),
            "weight": jax.random.normal(k1, (out_ch, in_ch, 1, 1), jnp.float32),
            "bias": jnp.zeros((out_ch,), jnp.float32)}


def init_generator_params(key, *, dim, img_resolution, img_channels_out,
                          channel_base=32768, channel_max=1024, num_mapping_layers=8):
    keys = iter(jax.random.split(key, 64))
    mp = {"embed": _init_fc_eff(next(keys), dim, dim)}
    feats = [2 * dim] + [dim] * num_mapping_layers
    for i in range(num_mapping_layers):
        mp[f"fc{i}"] = _init_fc_eff(next(keys), feats[i], feats[i + 1], lr_mult=0.01)
    resolutions = [2 ** i for i in range(2, int(log2(img_resolution)) + 1)]
    channels = {r: min(channel_base // r, channel_max) for r in resolutions}
    blocks = []
    for i, res in enumerate(resolutions):
        out_ch = channels[res]
        blk = {}
        if i == 0:
            blk["const"] = jax.random.normal(next(keys), (out_ch, 4, 4), jnp.float32)
        else:
            blk["conv0"] = _init_synth_layer(next(keys), channels[resolutions[i - 1]], out_ch, dim)
        blk["conv1"] = _init_synth_layer(next(keys), out_ch, out_ch, dim)
        blk["torgb"] = _init_torgb_layer(next(keys), out_ch, img_channels_out, dim)
        blocks.append(blk)
    return {"mapping": mp, "synthesis": blocks}


def prepare_generator_params(gp, *, dim):
    """Pre-pad / pre-transpose / bf16-cast all static parameters once (outside jit)."""
    dp = _round_up(dim, 128)
    mp = gp["mapping"]
    n_fc = sum(1 for k in mp if k.startswith("fc"))

    def pad2(w, r, c):
        return jnp.zeros((r, c), jnp.float32).at[:w.shape[0], :w.shape[1]].set(w)

    ew = pad2(mp["embed"]["w"], dp, dp)
    eb = jnp.zeros((1, dp), jnp.float32).at[0, :dim].set(mp["embed"]["b"])
    w0 = mp["fc0"]["w"]                                              # (2*dim, dim)
    w0a = pad2(w0[:dim], dp, dp)
    w0b = pad2(w0[dim:2 * dim], dp, dp)
    mw = jnp.zeros((max(n_fc - 1, 1), dp, dp), jnp.float32)
    mb = jnp.zeros((n_fc, 1, dp), jnp.float32)
    mb = mb.at[0, 0, :dim].set(mp["fc0"]["b"])
    for i in range(1, n_fc):
        wi, bi = mp[f"fc{i}"]["w"], mp[f"fc{i}"]["b"]
        mw = mw.at[i - 1, :wi.shape[0], :wi.shape[1]].set(wi)
        mb = mb.at[i, 0, :bi.shape[0]].set(bi)

    aff_w, aff_b = [], []
    offset = 0

    def add_affine(ap, cin, cip, scale=1.0):
        nonlocal offset
        aff_w.append(jnp.zeros((dp, cip), jnp.float32).at[:dim, :cin].set(ap["w"] * scale))
        aff_b.append(jnp.zeros((1, cip), jnp.float32).at[0, :cin].set(ap["b"] * scale))
        o = offset
        offset += cip
        return o

    blocks = []
    num_image_tokens = None
    for blk in gp["synthesis"]:
        pb = {}
        if "const" in blk:
            cst = blk["const"]                                       # (C, 4, 4)
            C = cst.shape[0]
            Cp = _round_up(C, 128)
            cf = jnp.transpose(cst, (1, 2, 0)).reshape(16, C)
            pb["const"] = jnp.zeros((16, Cp), jnp.bfloat16).at[:, :C].set(cf.astype(jnp.bfloat16))
        for name in ("conv0", "conv1"):
            if name not in blk:
                continue
            lp = blk[name]
            weight = lp["weight"]                                    # (Cout, Cin, 3, 3)
            Cout, Cin = weight.shape[0], weight.shape[1]
            Cip, Cop = _round_up(Cin, 128), _round_up(Cout, 128)
            wt = jnp.transpose(weight, (2, 3, 1, 0)).reshape(9, Cin, Cout)   # tap = dy*3+dx
            w9 = jnp.zeros((9, Cip, Cop), jnp.float32).at[:, :Cin, :Cout].set(wt)
            pb[name] = {
                "wcat": w9.reshape(9 * Cip, Cop).astype(jnp.bfloat16),
                "wsq": jnp.sum(jnp.square(w9), axis=0),              # (Cip, Cop) f32
                "bias": jnp.zeros((1, Cop), jnp.float32).at[0, :Cout].set(lp["bias"]),
                "cip": Cip, "cop": Cop,
                "off": add_affine(lp["affine"], Cin, Cip),
            }
        lp = blk["torgb"]
        wrgb = lp["weight"][:, :, 0, 0]                              # (T, Cin)
        T, Cin = wrgb.shape
        num_image_tokens = T
        Cip, Tp = _round_up(Cin, 128), _round_up(T, 128)
        pb["torgb"] = {
            "w": jnp.zeros((Cip, Tp), jnp.bfloat16).at[:Cin, :T].set(wrgb.T.astype(jnp.bfloat16)),
            "bias": jnp.zeros((1, Tp), jnp.float32).at[0, :T].set(lp["bias"]),
            "cip": Cip, "tp": Tp,
            # ToRGB weight_gain (1/sqrt(Cin)) baked into the affine weight & bias
            "off": add_affine(lp["affine"], Cin, Cip, scale=1.0 / sqrt(Cin)),
        }
        blocks.append(pb)

    style = {
        "dim": dim, "dp": dp, "n_fc": n_fc,
        "ew": ew.astype(jnp.bfloat16), "eb": eb,
        "w0a": w0a.astype(jnp.bfloat16), "w0b": w0b.astype(jnp.bfloat16),
        "mw": mw.astype(jnp.bfloat16), "mb": mb,
        "aw": jnp.concatenate(aff_w, axis=1).astype(jnp.bfloat16),
        "ab": jnp.concatenate(aff_b, axis=1),
    }
    return {"style": style, "blocks": blocks, "num_image_tokens": num_image_tokens}


# ---------------------------------------------------------------------------
# Demo
# ---------------------------------------------------------------------------

if __name__ == "__main__":
    key = jax.random.PRNGKey(0)

    # Small config implied by the module:
    #   dim (style dim), vae.num_tokens -> num_image_tokens,
    #   image_fmap_size = vae.image_size // 2**vae.num_layers  (e.g. 32 // 2**2 = 8)
    dim = 64
    image_fmap_size = 8
    num_image_tokens = 128
    num_frames = 64
    num_videos = 8
    batch = 2
    channel_max = 64   # module hard-codes 1024; kept small for this demo

    k_emb_f, k_emb_v, k_gen, k_fi, k_vi = jax.random.split(key, 5)
    raw_gen = init_generator_params(
        k_gen, dim=dim, img_resolution=image_fmap_size,
        img_channels_out=num_image_tokens, channel_max=channel_max)
    prep = {
        "per_frame_emb": jax.random.normal(k_emb_f, (num_frames, dim), jnp.float32),
        "per_video_emb": jax.random.normal(k_emb_v, (num_videos, dim), jnp.float32),
        "generator": prepare_generator_params(raw_gen, dim=dim),
    }
    frame_indices = jax.random.randint(k_fi, (batch,), 0, num_frames)
    video_indices = jax.random.randint(k_vi, (batch,), 0, num_videos)

    fwd = jax.jit(lambda vi, fi: stylegan_generator_forward(prep, vi, fi))
    logits = fwd(video_indices, frame_indices)
    jax.block_until_ready(logits)

    assert logits.shape == (batch, num_image_tokens, image_fmap_size, image_fmap_size)
    assert logits.dtype == jnp.float32
    print("KERNEL_OK")
</pallas_src>

<mosaic_0001>
module attributes {stable_mosaic.version = 11 : i64} {
  func.func @_style_kernel(%arg0: memref<8x128xf32, #tpu.memory_space<vmem>>, %arg1: memref<8x128xf32, #tpu.memory_space<vmem>>, %arg2: memref<128x128xbf16, #tpu.memory_space<vmem>>, %arg3: memref<1x128xf32, #tpu.memory_space<vmem>>, %arg4: memref<128x128xbf16, #tpu.memory_space<vmem>>, %arg5: memref<128x128xbf16, #tpu.memory_space<vmem>>, %arg6: memref<7x128x128xbf16, #tpu.memory_space<vmem>>, %arg7: memref<8x1x128xf32, #tpu.memory_space<vmem>>, %arg8: memref<128x640xbf16, #tpu.memory_space<vmem>>, %arg9: memref<1x640xf32, #tpu.memory_space<vmem>>, %arg10: memref<8x640xf32, #tpu.memory_space<vmem>>) attributes {dimension_semantics = [], scalar_prefetch = 0 : i64, scratch_operands = 0 : i64, tpu.core_type = #tpu.core_type<tc>} {
    %c0 = arith.constant 0 : index
    %c0_0 = arith.constant 0 : index
    %0 = vector.load %arg0[%c0, %c0_0] : memref<8x128xf32, #tpu.memory_space<vmem>>, vector<8x128xf32>
    %1 = arith.mulf %0, %0 : vector<8x128xf32>
    %cst = arith.constant dense<0.000000e+00> : vector<8xf32>
    %2 = vector.multi_reduction <add>, %1, %cst [1] : vector<8x128xf32> to vector<8xf32>
    %3 = vector.shape_cast %2 : vector<8xf32> to vector<8x1xf32>
    %cst_1 = arith.constant 1.562500e-02 : f32
    %4 = vector.broadcast %cst_1 : f32 to vector<8x1xf32>
    %5 = arith.mulf %3, %4 : vector<8x1xf32>
    %cst_2 = arith.constant 9.99999993E-9 : f32
    %6 = vector.broadcast %cst_2 : f32 to vector<8x1xf32>
    %7 = arith.addf %5, %6 : vector<8x1xf32>
    %8 = math.rsqrt %7 : vector<8x1xf32>
    %9 = vector.broadcast %8 : vector<8x1xf32> to vector<8x128xf32>
    %10 = arith.mulf %0, %9 : vector<8x128xf32>
    %c0_3 = arith.constant 0 : index
    %c0_4 = arith.constant 0 : index
    %11 = vector.load %arg1[%c0_3, %c0_4] : memref<8x128xf32, #tpu.memory_space<vmem>>, vector<8x128xf32>
    %12 = arith.truncf %11 : vector<8x128xf32> to vector<8x128xbf16>
    %c0_5 = arith.constant 0 : index
    %c0_6 = arith.constant 0 : index
    %13 = vector.load %arg2[%c0_5, %c0_6] : memref<128x128xbf16, #tpu.memory_space<vmem>>, vector<128x128xbf16>
    %cst_7 = arith.constant dense<0.000000e+00> : vector<8x128xf32>
    %14 = tpu.matmul %12, %13, %cst_7 {dimension_numbers = #tpu.dot_dimension_numbers<[1], [0], [0], [1], [0, 0, 1, 1], [], []>} : vector<8x128xbf16>, vector<128x128xbf16>, vector<8x128xf32> -> vector<8x128xf32>
    %c0_8 = arith.constant 0 : index
    %c0_9 = arith.constant 0 : index
    %15 = vector.load %arg3[%c0_8, %c0_9] : memref<1x128xf32, #tpu.memory_space<vmem>>, vector<1x128xf32>
    %16 = vector.broadcast %15 : vector<1x128xf32> to vector<8x128xf32>
    %17 = arith.addf %14, %16 : vector<8x128xf32>
    %18 = arith.mulf %17, %17 : vector<8x128xf32>
    %cst_10 = arith.constant dense<0.000000e+00> : vector<8xf32>
    %19 = vector.multi_reduction <add>, %18, %cst_10 [1] : vector<8x128xf32> to vector<8xf32>
    %20 = vector.shape_cast %19 : vector<8xf32> to vector<8x1xf32>
    %cst_11 = arith.constant 1.562500e-02 : f32
    %21 = vector.broadcast %cst_11 : f32 to vector<8x1xf32>
    %22 = arith.mulf %20, %21 : vector<8x1xf32>
    %cst_12 = arith.constant 9.99999993E-9 : f32
    %23 = vector.broadcast %cst_12 : f32 to vector<8x1xf32>
    %24 = arith.addf %22, %23 : vector<8x1xf32>
    %25 = math.rsqrt %24 : vector<8x1xf32>
    %26 = vector.broadcast %25 : vector<8x1xf32> to vector<8x128xf32>
    %27 = arith.mulf %17, %26 : vector<8x128xf32>
    %28 = arith.truncf %10 : vector<8x128xf32> to vector<8x128xbf16>
    %c0_13 = arith.constant 0 : index
    %c0_14 = arith.constant 0 : index
    %29 = vector.load %arg4[%c0_13, %c0_14] : memref<128x128xbf16, #tpu.memory_space<vmem>>, vector<128x128xbf16>
    %cst_15 = arith.constant dense<0.000000e+00> : vector<8x128xf32>
    %30 = tpu.matmul %28, %29, %cst_15 {dimension_numbers = #tpu.dot_dimension_numbers<[1], [0], [0], [1], [0, 0, 1, 1], [], []>} : vector<8x128xbf16>, vector<128x128xbf16>, vector<8x128xf32> -> vector<8x128xf32>
    %31 = arith.truncf %27 : vector<8x128xf32> to vector<8x128xbf16>
    %c0_16 = arith.constant 0 : index
    %c0_17 = arith.constant 0 : index
    %32 = vector.load %arg5[%c0_16, %c0_17] : memref<128x128xbf16, #tpu.memory_space<vmem>>, vector<128x128xbf16>
    %cst_18 = arith.constant dense<0.000000e+00> : vector<8x128xf32>
    %33 = tpu.matmul %31, %32, %cst_18 {dimension_numbers = #tpu.dot_dimension_numbers<[1], [0], [0], [1], [0, 0, 1, 1], [], []>} : vector<8x128xbf16>, vector<128x128xbf16>, vector<8x128xf32> -> vector<8x128xf32>
    %34 = arith.addf %30, %33 : vector<8x128xf32>
    %c0_19 = arith.constant 0 : index
    %c0_20 = arith.constant 0 : index
    %c0_21 = arith.constant 0 : index
    %35 = vector.load %arg7[%c0_19, %c0_20, %c0_21] : memref<8x1x128xf32, #tpu.memory_space<vmem>>, vector<1x1x128xf32>
    %36 = vector.shape_cast %35 : vector<1x1x128xf32> to vector<1x128xf32>
    %37 = vector.broadcast %36 : vector<1x128xf32> to vector<8x128xf32>
    %38 = arith.addf %34, %37 : vector<8x128xf32>
    %cst_22 = arith.constant 0.000000e+00 : f32
    %39 = vector.broadcast %cst_22 : f32 to vector<8x128xf32>
    %40 = arith.cmpf oge, %38, %39 : vector<8x128xf32>
    %cst_23 = arith.constant 2.000000e-01 : f32
    %41 = vector.broadcast %cst_23 : f32 to vector<8x128xf32>
    %42 = arith.mulf %41, %38 : vector<8x128xf32>
    %43 = arith.select %40, %38, %42 : vector<8x128xi1>, vector<8x128xf32>
    %cst_24 = arith.constant 1.41421354 : f32
    %44 = vector.broadcast %cst_24 : f32 to vector<8x128xf32>
    %45 = arith.mulf %43, %44 : vector<8x128xf32>
    %46 = arith.truncf %45 : vector<8x128xf32> to vector<8x128xbf16>
    %c0_25 = arith.constant 0 : index
    %c0_26 = arith.constant 0 : index
    %c0_27 = arith.constant 0 : index
    %47 = vector.load %arg6[%c0_25, %c0_26, %c0_27] : memref<7x128x128xbf16, #tpu.memory_space<vmem>>, vector<1x128x128xbf16>
    %48 = vector.shape_cast %47 : vector<1x128x128xbf16> to vector<128x128xbf16>
    %cst_28 = arith.constant dense<0.000000e+00> : vector<8x128xf32>
    %49 = tpu.matmul %46, %48, %cst_28 {dimension_numbers = #tpu.dot_dimension_numbers<[1], [0], [0], [1], [0, 0, 1, 1], [], []>} : vector<8x128xbf16>, vector<128x128xbf16>, vector<8x128xf32> -> vector<8x128xf32>
    %c1 = arith.constant 1 : index
    %c0_29 = arith.constant 0 : index
    %c0_30 = arith.constant 0 : index
    %50 = vector.load %arg7[%c1, %c0_29, %c0_30] : memref<8x1x128xf32, #tpu.memory_space<vmem>>, vector<1x1x128xf32>
    %51 = vector.shape_cast %50 : vector<1x1x128xf32> to vector<1x128xf32>
    %52 = vector.broadcast %51 : vector<1x128xf32> to vector<8x128xf32>
    %53 = arith.addf %49, %52 : vector<8x128xf32>
    %cst_31 = arith.constant 0.000000e+00 : f32
    %54 = vector.broadcast %cst_31 : f32 to vector<8x128xf32>
    %55 = arith.cmpf oge, %53, %54 : vector<8x128xf32>
    %cst_32 = arith.constant 2.000000e-01 : f32
    %56 = vector.broadcast %cst_32 : f32 to vector<8x128xf32>
    %57 = arith.mulf %56, %53 : vector<8x128xf32>
    %58 = arith.select %55, %53, %57 : vector<8x128xi1>, vector<8x128xf32>
    %cst_33 = arith.constant 1.41421354 : f32
    %59 = vector.broadcast %cst_33 : f32 to vector<8x128xf32>
    %60 = arith.mulf %58, %59 : vector<8x128xf32>
    %61 = arith.truncf %60 : vector<8x128xf32> to vector<8x128xbf16>
    %c1_34 = arith.constant 1 : index
    %c0_35 = arith.constant 0 : index
    %c0_36 = arith.constant 0 : index
    %62 = vector.load %arg6[%c1_34, %c0_35, %c0_36] : memref<7x128x128xbf16, #tpu.memory_space<vmem>>, vector<1x128x128xbf16>
    %63 = vector.shape_cast %62 : vector<1x128x128xbf16> to vector<128x128xbf16>
    %cst_37 = arith.constant dense<0.000000e+00> : vector<8x128xf32>
    %64 = tpu.matmul %61, %63, %cst_37 {dimension_numbers = #tpu.dot_dimension_numbers<[1], [0], [0], [1], [0, 0, 1, 1], [], []>} : vector<8x128xbf16>, vector<128x128xbf16>, vector<8x128xf32> -> vector<8x128xf32>
    %c2 = arith.constant 2 : index
    %c0_38 = arith.constant 0 : index
    %c0_39 = arith.constant 0 : index
    %65 = vector.load %arg7[%c2, %c0_38, %c0_39] : memref<8x1x128xf32, #tpu.memory_space<vmem>>, vector<1x1x128xf32>
    %66 = vector.shape_cast %65 : vector<1x1x128xf32> to vector<1x128xf32>
    %67 = vector.broadcast %66 : vector<1x128xf32> to vector<8x128xf32>
    %68 = arith.addf %64, %67 : vector<8x128xf32>
    %cst_40 = arith.constant 0.000000e+00 : f32
    %69 = vector.broadcast %cst_40 : f32 to vector<8x128xf32>
    %70 = arith.cmpf oge, %68, %69 : vector<8x128xf32>
    %cst_41 = arith.constant 2.000000e-01 : f32
    %71 = vector.broadcast %cst_41 : f32 to vector<8x128xf32>
    %72 = arith.mulf %71, %68 : vector<8x128xf32>
    %73 = arith.select %70, %68, %72 : vector<8x128xi1>, vector<8x128xf32>
    %cst_42 = arith.constant 1.41421354 : f32
    %74 = vector.broadcast %cst_42 : f32 to vector<8x128xf32>
    %75 = arith.mulf %73, %74 : vector<8x128xf32>
    %76 = arith.truncf %75 : vector<8x128xf32> to vector<8x128xbf16>
    %c2_43 = arith.constant 2 : index
    %c0_44 = arith.constant 0 : index
    %c0_45 = arith.constant 0 : index
    %77 = vector.load %arg6[%c2_43, %c0_44, %c0_45] : memref<7x128x128xbf16, #tpu.memory_space<vmem>>, vector<1x128x128xbf16>
    %78 = vector.shape_cast %77 : vector<1x128x128xbf16> to vector<128x128xbf16>
    %cst_46 = arith.constant dense<0.000000e+00> : vector<8x128xf32>
    %79 = tpu.matmul %76, %78, %cst_46 {dimension_numbers = #tpu.dot_dimension_numbers<[1], [0], [0], [1], [0, 0, 1, 1], [], []>} : vector<8x128xbf16>, vector<128x128xbf16>, vector<8x128xf32> -> vector<8x128xf32>
    %c3 = arith.constant 3 : index
    %c0_47 = arith.constant 0 : index
    %c0_48 = arith.constant 0 : index
    %80 = vector.load %arg7[%c3, %c0_47, %c0_48] : memref<8x1x128xf32, #tpu.memory_space<vmem>>, vector<1x1x128xf32>
    %81 = vector.shape_cast %80 : vector<1x1x128xf32> to vector<1x128xf32>
    %82 = vector.broadcast %81 : vector<1x128xf32> to vector<8x128xf32>
    %83 = arith.addf %79, %82 : vector<8x128xf32>
    %cst_49 = arith.constant 0.000000e+00 : f32
    %84 = vector.broadcast %cst_49 : f32 to vector<8x128xf32>
    %85 = arith.cmpf oge, %83, %84 : vector<8x128xf32>
    %cst_50 = arith.constant 2.000000e-01 : f32
    %86 = vector.broadcast %cst_50 : f32 to vector<8x128xf32>
    %87 = arith.mulf %86, %83 : vector<8x128xf32>
    %88 = arith.select %85, %83, %87 : vector<8x128xi1>, vector<8x128xf32>
    %cst_51 = arith.constant 1.41421354 : f32
    %89 = vector.broadcast %cst_51 : f32 to vector<8x128xf32>
    %90 = arith.mulf %88, %89 : vector<8x128xf32>
    %91 = arith.truncf %90 : vector<8x128xf32> to vector<8x128xbf16>
    %c3_52 = arith.constant 3 : index
    %c0_53 = arith.constant 0 : index
    %c0_54 = arith.constant 0 : index
    %92 = vector.load %arg6[%c3_52, %c0_53, %c0_54] : memref<7x128x128xbf16, #tpu.memory_space<vmem>>, vector<1x128x128xbf16>
    %93 = vector.shape_cast %92 : vector<1x128x128xbf16> to vector<128x128xbf16>
    %cst_55 = arith.constant dense<0.000000e+00> : vector<8x128xf32>
    %94 = tpu.matmul %91, %93, %cst_55 {dimension_numbers = #tpu.dot_dimension_numbers<[1], [0], [0], [1], [0, 0, 1, 1], [], []>} : vector<8x128xbf16>, vector<128x128xbf16>, vector<8x128xf32> -> vector<8x128xf32>
    %c4 = arith.constant 4 : index
    %c0_56 = arith.constant 0 : index
    %c0_57 = arith.constant 0 : index
    %95 = vector.load %arg7[%c4, %c0_56, %c0_57] : memref<8x1x128xf32, #tpu.memory_space<vmem>>, vector<1x1x128xf32>
    %96 = vector.shape_cast %95 : vector<1x1x128xf32> to vector<1x128xf32>
    %97 = vector.broadcast %96 : vector<1x128xf32> to vector<8x128xf32>
    %98 = arith.addf %94, %97 : vector<8x128xf32>
    %cst_58 = arith.constant 0.000000e+00 : f32
    %99 = vector.broadcast %cst_58 : f32 to vector<8x128xf32>
    %100 = arith.cmpf oge, %98, %99 : vector<8x128xf32>
    %cst_59 = arith.constant 2.000000e-01 : f32
    %101 = vector.broadcast %cst_59 : f32 to vector<8x128xf32>
    %102 = arith.mulf %101, %98 : vector<8x128xf32>
    %103 = arith.select %100, %98, %102 : vector<8x128xi1>, vector<8x128xf32>
    %cst_60 = arith.constant 1.41421354 : f32
    %104 = vector.broadcast %cst_60 : f32 to vector<8x128xf32>
    %105 = arith.mulf %103, %104 : vector<8x128xf32>
    %106 = arith.truncf %105 : vector<8x128xf32> to vector<8x128xbf16>
    %c4_61 = arith.constant 4 : index
    %c0_62 = arith.constant 0 : index
    %c0_63 = arith.constant 0 : index
    %107 = vector.load %arg6[%c4_61, %c0_62, %c0_63] : memref<7x128x128xbf16, #tpu.memory_space<vmem>>, vector<1x128x128xbf16>
    %108 = vector.shape_cast %107 : vector<1x128x128xbf16> to vector<128x128xbf16>
    %cst_64 = arith.constant dense<0.000000e+00> : vector<8x128xf32>
    %109 = tpu.matmul %106, %108, %cst_64 {dimension_numbers = #tpu.dot_dimension_numbers<[1], [0], [0], [1], [0, 0, 1, 1], [], []>} : vector<8x128xbf16>, vector<128x128xbf16>, vector<8x128xf32> -> vector<8x128xf32>
    %c5 = arith.constant 5 : index
    %c0_65 = arith.constant 0 : index
    %c0_66 = arith.constant 0 : index
    %110 = vector.load %arg7[%c5, %c0_65, %c0_66] : memref<8x1x128xf32, #tpu.memory_space<vmem>>, vector<1x1x128xf32>
    %111 = vector.shape_cast %110 : vector<1x1x128xf32> to vector<1x128xf32>
    %112 = vector.broadcast %111 : vector<1x128xf32> to vector<8x128xf32>
    %113 = arith.addf %109, %112 : vector<8x128xf32>
    %cst_67 = arith.constant 0.000000e+00 : f32
    %114 = vector.broadcast %cst_67 : f32 to vector<8x128xf32>
    %115 = arith.cmpf oge, %113, %114 : vector<8x128xf32>
    %cst_68 = arith.constant 2.000000e-01 : f32
    %116 = vector.broadcast %cst_68 : f32 to vector<8x128xf32>
    %117 = arith.mulf %116, %113 : vector<8x128xf32>
    %118 = arith.select %115, %113, %117 : vector<8x128xi1>, vector<8x128xf32>
    %cst_69 = arith.constant 1.41421354 : f32
    %119 = vector.broadcast %cst_69 : f32 to vector<8x128xf32>
    %120 = arith.mulf %118, %119 : vector<8x128xf32>
    %121 = arith.truncf %120 : vector<8x128xf32> to vector<8x128xbf16>
    %c5_70 = arith.constant 5 : index
    %c0_71 = arith.constant 0 : index
    %c0_72 = arith.constant 0 : index
    %122 = vector.load %arg6[%c5_70, %c0_71, %c0_72] : memref<7x128x128xbf16, #tpu.memory_space<vmem>>, vector<1x128x128xbf16>
    %123 = vector.shape_cast %122 : vector<1x128x128xbf16> to vector<128x128xbf16>
    %cst_73 = arith.constant dense<0.000000e+00> : vector<8x128xf32>
    %124 = tpu.matmul %121, %123, %cst_73 {dimension_numbers = #tpu.dot_dimension_numbers<[1], [0], [0], [1], [0, 0, 1, 1], [], []>} : vector<8x128xbf16>, vector<128x128xbf16>, vector<8x128xf32> -> vector<8x128xf32>
    %c6 = arith.constant 6 : index
    %c0_74 = arith.constant 0 : index
    %c0_75 = arith.constant 0 : index
    %125 = vector.load %arg7[%c6, %c0_74, %c0_75] : memref<8x1x128xf32, #tpu.memory_space<vmem>>, vector<1x1x128xf32>
    %126 = vector.shape_cast %125 : vector<1x1x128xf32> to vector<1x128xf32>
    %127 = vector.broadcast %126 : vector<1x128xf32> to vector<8x128xf32>
    %128 = arith.addf %124, %127 : vector<8x128xf32>
    %cst_76 = arith.constant 0.000000e+00 : f32
    %129 = vector.broadcast %cst_76 : f32 to vector<8x128xf32>
    %130 = arith.cmpf oge, %128, %129 : vector<8x128xf32>
    %cst_77 = arith.constant 2.000000e-01 : f32
    %131 = vector.broadcast %cst_77 : f32 to vector<8x128xf32>
    %132 = arith.mulf %131, %128 : vector<8x128xf32>
    %133 = arith.select %130, %128, %132 : vector<8x128xi1>, vector<8x128xf32>
    %cst_78 = arith.constant 1.41421354 : f32
    %134 = vector.broadcast %cst_78 : f32 to vector<8x128xf32>
    %135 = arith.mulf %133, %134 : vector<8x128xf32>
    %136 = arith.truncf %135 : vector<8x128xf32> to vector<8x128xbf16>
    %c6_79 = arith.constant 6 : index
    %c0_80 = arith.constant 0 : index
    %c0_81 = arith.constant 0 : index
    %137 = vector.load %arg6[%c6_79, %c0_80, %c0_81] : memref<7x128x128xbf16, #tpu.memory_space<vmem>>, vector<1x128x128xbf16>
    %138 = vector.shape_cast %137 : vector<1x128x128xbf16> to vector<128x128xbf16>
    %cst_82 = arith.constant dense<0.000000e+00> : vector<8x128xf32>
    %139 = tpu.matmul %136, %138, %cst_82 {dimension_numbers = #tpu.dot_dimension_numbers<[1], [0], [0], [1], [0, 0, 1, 1], [], []>} : vector<8x128xbf16>, vector<128x128xbf16>, vector<8x128xf32> -> vector<8x128xf32>
    %c7 = arith.constant 7 : index
    %c0_83 = arith.constant 0 : index
    %c0_84 = arith.constant 0 : index
    %140 = vector.load %arg7[%c7, %c0_83, %c0_84] : memref<8x1x128xf32, #tpu.memory_space<vmem>>, vector<1x1x128xf32>
    %141 = vector.shape_cast %140 : vector<1x1x128xf32> to vector<1x128xf32>
    %142 = vector.broadcast %141 : vector<1x128xf32> to vector<8x128xf32>
    %143 = arith.addf %139, %142 : vector<8x128xf32>
    %cst_85 = arith.constant 0.000000e+00 : f32
    %144 = vector.broadcast %cst_85 : f32 to vector<8x128xf32>
    %145 = arith.cmpf oge, %143, %144 : vector<8x128xf32>
    %cst_86 = arith.constant 2.000000e-01 : f32
    %146 = vector.broadcast %cst_86 : f32 to vector<8x128xf32>
    %147 = arith.mulf %146, %143 : vector<8x128xf32>
    %148 = arith.select %145, %143, %147 : vector<8x128xi1>, vector<8x128xf32>
    %cst_87 = arith.constant 1.41421354 : f32
    %149 = vector.broadcast %cst_87 : f32 to vector<8x128xf32>
    %150 = arith.mulf %148, %149 : vector<8x128xf32>
    %151 = arith.truncf %150 : vector<8x128xf32> to vector<8x128xbf16>
    %c0_88 = arith.constant 0 : index
    %c0_89 = arith.constant 0 : index
    %152 = vector.load %arg8[%c0_88, %c0_89] : memref<128x640xbf16, #tpu.memory_space<vmem>>, vector<128x640xbf16>
    %cst_90 = arith.constant dense<0.000000e+00> : vector<8x640xf32>
    %153 = tpu.matmul %151, %152, %cst_90 {dimension_numbers = #tpu.dot_dimension_numbers<[1], [0], [0], [1], [0, 0, 1, 1], [], []>} : vector<8x128xbf16>, vector<128x640xbf16>, vector<8x640xf32> -> vector<8x640xf32>
    %c0_91 = arith.constant 0 : index
    %c0_92 = arith.constant 0 : index
    %154 = vector.load %arg9[%c0_91, %c0_92] : memref<1x640xf32, #tpu.memory_space<vmem>>, vector<1x640xf32>
    %155 = vector.broadcast %154 : vector<1x640xf32> to vector<8x640xf32>
    %156 = arith.addf %153, %155 : vector<8x640xf32>
    %c0_93 = arith.constant 0 : index
    %c0_94 = arith.constant 0 : index
    %157 = vector.load %arg10[%c0_93, %c0_94] : memref<8x640xf32, #tpu.memory_space<vmem>>, vector<8x640xf32>
    tpu.vector_store %arg10[%c0_93, %c0_94], %156 {strides = array<i32>} : memref<8x640xf32, #tpu.memory_space<vmem>>, vector<8x640xf32>,
    return
  }
}

module attributes {stable_mosaic.version = 11 : i64} {
  func.func @_modconv_kernel(%arg0: i32, %arg1: memref<2x16x128xbf16, #tpu.memory_space<vmem>>, %arg2: memref<1152x128xbf16, #tpu.memory_space<vmem>>, %arg3: memref<128x128xf32, #tpu.memory_space<vmem>>, %arg4: memref<8x128xf32, #tpu.memory_space<vmem>>, %arg5: memref<1x128xf32, #tpu.memory_space<vmem>>, %arg6: memref<9x32x1xf32, #tpu.memory_space<vmem>>, %arg7: memref<128x128xbf16, #tpu.memory_space<vmem>>, %arg8: memref<8x128xf32, #tpu.memory_space<vmem>>, %arg9: memref<1x128xf32, #tpu.memory_space<vmem>>, %arg10: memref<2x16x128xf32, #tpu.memory_space<vmem>>, %arg11: memref<2x16x128xbf16, #tpu.memory_space<vmem>>, %arg12: memref<2x16x128xf32, #tpu.memory_space<vmem>>, %arg13: memref<32x1152xbf16, #tpu.memory_space<vmem>>, %arg14: memref<2x16x128xf32, #tpu.memory_space<vmem>>) attributes {dimension_semantics = [#tpu.dimension_semantics<arbitrary>], iteration_bounds = array<i64: 1>, scalar_prefetch = 0 : i64, scratch_operands = 2 : i64, tpu.core_type = #tpu.core_type<tc>, window_params = [{pipeline_mode = #tpu.pipeline_mode<synchronous>, transform_indices = @transform_0, window_bounds = array<i64: 2, 16, 128>}, {transform_indices = @transform_1, window_bounds = array<i64: 1152, 128>}, {transform_indices = @transform_2, window_bounds = array<i64: 128, 128>}, {pipeline_mode = #tpu.pipeline_mode<synchronous>, transform_indices = @transform_3, window_bounds = array<i64: 8, 128>}, {transform_indices = @transform_4, window_bounds = array<i64: 1, 128>}, {pipeline_mode = #tpu.pipeline_mode<synchronous>, transform_indices = @transform_5, window_bounds = array<i64: 9, 32, 1>}, {transform_indices = @transform_6, window_bounds = array<i64: 128, 128>}, {transform_indices = @transform_7, window_bounds = array<i64: 8, 128>}, {pipeline_mode = #tpu.pipeline_mode<synchronous>, transform_indices = @transform_8, window_bounds = array<i64: 1, 128>}, {pipeline_mode = #tpu.pipeline_mode<synchronous>, transform_indices = @transform_9, window_bounds = array<i64: 2, 16, 128>}, {transform_indices = @transform_10, window_bounds = array<i64: 2, 16, 128>}, {pipeline_mode = #tpu.pipeline_mode<synchronous>, transform_indices = @transform_11, window_bounds = array<i64: 2, 16, 128>}]} {
    %c0 = arith.constant 0 : index
    %c0_0 = arith.constant 0 : index
    %0 = vector.load %arg4[%c0, %c0_0] : memref<8x128xf32, #tpu.memory_space<vmem>>, vector<8x128xf32>
    %c0_i32 = arith.constant 0 : i32
    %1 = arith.cmpi eq, %arg0, %c0_i32 : i32
    %2 = arith.extui %1 : i1 to i32
    %c0_i32_1 = arith.constant 0 : i32
    %3 = arith.cmpi ne, %2, %c0_i32_1 : i32
    scf.if %3 {
      %c0_33 = arith.constant 0 : index
      %c0_34 = arith.constant 0 : index
      %c0_35 = arith.constant 0 : index
      %51 = vector.load %arg1[%c0_33, %c0_34, %c0_35] : memref<2x16x128xbf16, #tpu.memory_space<vmem>>, vector<2x16x128xbf16>
      %52 = arith.extf %51 : vector<2x16x128xbf16> to vector<2x16x128xf32>
      %53 = vector.extract_strided_slice %0 {offsets = [0, 0], sizes = [2, 128], strides = [1, 1]} : vector<8x128xf32> to vector<2x128xf32>
      %54 = vector.shape_cast %53 : vector<2x128xf32> to vector<2x1x128xf32>
      %55 = vector.broadcast %54 : vector<2x1x128xf32> to vector<2x16x128xf32>
      %56 = arith.mulf %52, %55 : vector<2x16x128xf32>
      %57 = vector.shape_cast %56 : vector<2x16x128xf32> to vector<32x128xf32>
      %c5_i32 = arith.constant 5 : i32
      %58 = tpu.dynamic_rotate %57 by %c5_i32 dim 0 : vector<32x128xf32>, i32 -> vector<32x128xf32>
      %c0_36 = arith.constant 0 : index
      %c0_37 = arith.constant 0 : index
      %c0_38 = arith.constant 0 : index
      %59 = vector.load %arg6[%c0_36, %c0_37, %c0_38] : memref<9x32x1xf32, #tpu.memory_space<vmem>>, vector<1x32x1xf32>
      %60 = vector.shape_cast %59 : vector<1x32x1xf32> to vector<32x1xf32>
      %61 = vector.broadcast %60 : vector<32x1xf32> to vector<32x128xf32>
      %62 = arith.mulf %58, %61 : vector<32x128xf32>
      %63 = arith.truncf %62 : vector<32x128xf32> to vector<32x128xbf16>
      %c0_39 = arith.constant 0 : index
      %c0_40 = arith.constant 0 : index
      %64 = vector.load %arg13[%c0_39, %c0_40] : memref<32x1152xbf16, #tpu.memory_space<vmem>>, vector<32x128xbf16>
      tpu.vector_store %arg13[%c0_39, %c0_40], %63 {strides = array<i32>} : memref<32x1152xbf16, #tpu.memory_space<vmem>>, vector<32x128xbf16>,
      %c4_i32 = arith.constant 4 : i32
      %65 = tpu.dynamic_rotate %57 by %c4_i32 dim 0 : vector<32x128xf32>, i32 -> vector<32x128xf32>
      %c1 = arith.constant 1 : index
      %c0_41 = arith.constant 0 : index
      %c0_42 = arith.constant 0 : index
      %66 = vector.load %arg6[%c1, %c0_41, %c0_42] : memref<9x32x1xf32, #tpu.memory_space<vmem>>, vector<1x32x1xf32>
      %67 = vector.shape_cast %66 : vector<1x32x1xf32> to vector<32x1xf32>
      %68 = vector.broadcast %67 : vector<32x1xf32> to vector<32x128xf32>
      %69 = arith.mulf %65, %68 : vector<32x128xf32>
      %70 = arith.truncf %69 : vector<32x128xf32> to vector<32x128xbf16>
      %c0_43 = arith.constant 0 : index
      %c128 = arith.constant 128 : index
      %71 = vector.load %arg13[%c0_43, %c128] : memref<32x1152xbf16, #tpu.memory_space<vmem>>, vector<32x128xbf16>
      tpu.vector_store %arg13[%c0_43, %c128], %70 {strides = array<i32>} : memref<32x1152xbf16, #tpu.memory_space<vmem>>, vector<32x128xbf16>,
      %c3_i32 = arith.constant 3 : i32
      %72 = tpu.dynamic_rotate %57 by %c3_i32 dim 0 : vector<32x128xf32>, i32 -> vector<32x128xf32>
      %c2 = arith.constant 2 : index
      %c0_44 = arith.constant 0 : index
      %c0_45 = arith.constant 0 : index
      %73 = vector.load %arg6[%c2, %c0_44, %c0_45] : memref<9x32x1xf32, #tpu.memory_space<vmem>>, vector<1x32x1xf32>
      %74 = vector.shape_cast %73 : vector<1x32x1xf32> to vector<32x1xf32>
      %75 = vector.broadcast %74 : vector<32x1xf32> to vector<32x128xf32>
      %76 = arith.mulf %72, %75 : vector<32x128xf32>
      %77 = arith.truncf %76 : vector<32x128xf32> to vector<32x128xbf16>
      %c0_46 = arith.constant 0 : index
      %c256 = arith.constant 256 : index
      %78 = vector.load %arg13[%c0_46, %c256] : memref<32x1152xbf16, #tpu.memory_space<vmem>>, vector<32x128xbf16>
      tpu.vector_store %arg13[%c0_46, %c256], %77 {strides = array<i32>} : memref<32x1152xbf16, #tpu.memory_space<vmem>>, vector<32x128xbf16>,
      %c1_i32 = arith.constant 1 : i32
      %79 = tpu.dynamic_rotate %57 by %c1_i32 dim 0 : vector<32x128xf32>, i32 -> vector<32x128xf32>
      %c3 = arith.constant 3 : index
      %c0_47 = arith.constant 0 : index
      %c0_48 = arith.constant 0 : index
      %80 = vector.load %arg6[%c3, %c0_47, %c0_48] : memref<9x32x1xf32, #tpu.memory_space<vmem>>, vector<1x32x1xf32>
      %81 = vector.shape_cast %80 : vector<1x32x1xf32> to vector<32x1xf32>
      %82 = vector.broadcast %81 : vector<32x1xf32> to vector<32x128xf32>
      %83 = arith.mulf %79, %82 : vector<32x128xf32>
      %84 = arith.truncf %83 : vector<32x128xf32> to vector<32x128xbf16>
      %c0_49 = arith.constant 0 : index
      %c384 = arith.constant 384 : index
      %85 = vector.load %arg13[%c0_49, %c384] : memref<32x1152xbf16, #tpu.memory_space<vmem>>, vector<32x128xbf16>
      tpu.vector_store %arg13[%c0_49, %c384], %84 {strides = array<i32>} : memref<32x1152xbf16, #tpu.memory_space<vmem>>, vector<32x128xbf16>,
      %86 = arith.truncf %57 : vector<32x128xf32> to vector<32x128xbf16>
      %c0_50 = arith.constant 0 : index
      %c512 = arith.constant 512 : index
      %87 = vector.load %arg13[%c0_50, %c512] : memref<32x1152xbf16, #tpu.memory_space<vmem>>, vector<32x128xbf16>
      tpu.vector_store %arg13[%c0_50, %c512], %86 {strides = array<i32>} : memref<32x1152xbf16, #tpu.memory_space<vmem>>, vector<32x128xbf16>,
      %c31_i32 = arith.constant 31 : i32
      %88 = tpu.dynamic_rotate %57 by %c31_i32 dim 0 : vector<32x128xf32>, i32 -> vector<32x128xf32>
      %c5 = arith.constant 5 : index
      %c0_51 = arith.constant 0 : index
      %c0_52 = arith.constant 0 : index
      %89 = vector.load %arg6[%c5, %c0_51, %c0_52] : memref<9x32x1xf32, #tpu.memory_space<vmem>>, vector<1x32x1xf32>
      %90 = vector.shape_cast %89 : vector<1x32x1xf32> to vector<32x1xf32>
      %91 = vector.broadcast %90 : vector<32x1xf32> to vector<32x128xf32>
      %92 = arith.mulf %88, %91 : vector<32x128xf32>
      %93 = arith.truncf %92 : vector<32x128xf32> to vector<32x128xbf16>
      %c0_53 = arith.constant 0 : index
      %c640 = arith.constant 640 : index
      %94 = vector.load %arg13[%c0_53, %c640] : memref<32x1152xbf16, #tpu.memory_space<vmem>>, vector<32x128xbf16>
      tpu.vector_store %arg13[%c0_53, %c640], %93 {strides = array<i32>} : memref<32x1152xbf16, #tpu.memory_space<vmem>>, vector<32x128xbf16>,
      %c29_i32 = arith.constant 29 : i32
      %95 = tpu.dynamic_rotate %57 by %c29_i32 dim 0 : vector<32x128xf32>, i32 -> vector<32x128xf32>
      %c6 = arith.constant 6 : index
      %c0_54 = arith.constant 0 : index
      %c0_55 = arith.constant 0 : index
      %96 = vector.load %arg6[%c6, %c0_54, %c0_55] : memref<9x32x1xf32, #tpu.memory_space<vmem>>, vector<1x32x1xf32>
      %97 = vector.shape_cast %96 : vector<1x32x1xf32> to vector<32x1xf32>
      %98 = vector.broadcast %97 : vector<32x1xf32> to vector<32x128xf32>
      %99 = arith.mulf %95, %98 : vector<32x128xf32>
      %100 = arith.truncf %99 : vector<32x128xf32> to vector<32x128xbf16>
      %c0_56 = arith.constant 0 : index
      %c768 = arith.constant 768 : index
      %101 = vector.load %arg13[%c0_56, %c768] : memref<32x1152xbf16, #tpu.memory_space<vmem>>, vector<32x128xbf16>
      tpu.vector_store %arg13[%c0_56, %c768], %100 {strides = array<i32>} : memref<32x1152xbf16, #tpu.memory_space<vmem>>, vector<32x128xbf16>,
      %c28_i32 = arith.constant 28 : i32
      %102 = tpu.dynamic_rotate %57 by %c28_i32 dim 0 : vector<32x128xf32>, i32 -> vector<32x128xf32>
      %c7 = arith.constant 7 : index
      %c0_57 = arith.constant 0 : index
      %c0_58 = arith.constant 0 : index
      %103 = vector.load %arg6[%c7, %c0_57, %c0_58] : memref<9x32x1xf32, #tpu.memory_space<vmem>>, vector<1x32x1xf32>
      %104 = vector.shape_cast %103 : vector<1x32x1xf32> to vector<32x1xf32>
      %105 = vector.broadcast %104 : vector<32x1xf32> to vector<32x128xf32>
      %106 = arith.mulf %102, %105 : vector<32x128xf32>
      %107 = arith.truncf %106 : vector<32x128xf32> to vector<32x128xbf16>
      %c0_59 = arith.constant 0 : index
      %c896 = arith.constant 896 : index
      %108 = vector.load %arg13[%c0_59, %c896] : memref<32x1152xbf16, #tpu.memory_space<vmem>>, vector<32x128xbf16>
      tpu.vector_store %arg13[%c0_59, %c896], %107 {strides = array<i32>} : memref<32x1152xbf16, #tpu.memory_space<vmem>>, vector<32x128xbf16>,
      %c27_i32 = arith.constant 27 : i32
      %109 = tpu.dynamic_rotate %57 by %c27_i32 dim 0 : vector<32x128xf32>, i32 -> vector<32x128xf32>
      %c8 = arith.constant 8 : index
      %c0_60 = arith.constant 0 : index
      %c0_61 = arith.constant 0 : index
      %110 = vector.load %arg6[%c8, %c0_60, %c0_61] : memref<9x32x1xf32, #tpu.memory_space<vmem>>, vector<1x32x1xf32>
      %111 = vector.shape_cast %110 : vector<1x32x1xf32> to vector<32x1xf32>
      %112 = vector.broadcast %111 : vector<32x1xf32> to vector<32x128xf32>
      %113 = arith.mulf %109, %112 : vector<32x128xf32>
      %114 = arith.truncf %113 : vector<32x128xf32> to vector<32x128xbf16>
      %c0_62 = arith.constant 0 : index
      %c1024 = arith.constant 1024 : index
      %115 = vector.load %arg13[%c0_62, %c1024] : memref<32x1152xbf16, #tpu.memory_space<vmem>>, vector<32x128xbf16>
      tpu.vector_store %arg13[%c0_62, %c1024], %114 {strides = array<i32>} : memref<32x1152xbf16, #tpu.memory_space<vmem>>, vector<32x128xbf16>,
      %cst_63 = arith.constant 0.000000e+00 : f32
      %116 = vector.broadcast %cst_63 : f32 to vector<2x16x128xf32>
      %c0_64 = arith.constant 0 : index
      %c0_65 = arith.constant 0 : index
      %c0_66 = arith.constant 0 : index
      %117 = vector.load %arg14[%c0_64, %c0_65, %c0_66] : memref<2x16x128xf32, #tpu.memory_space<vmem>>, vector<2x16x128xf32>
      tpu.vector_store %arg14[%c0_64, %c0_65, %c0_66], %116 {strides = array<i32>} : memref<2x16x128xf32, #tpu.memory_space<vmem>>, vector<2x16x128xf32>,
    } else {
    }
    %4 = arith.mulf %0, %0 : vector<8x128xf32>
    %c0_2 = arith.constant 0 : index
    %c0_3 = arith.constant 0 : index
    %5 = vector.load %arg3[%c0_2, %c0_3] : memref<128x128xf32, #tpu.memory_space<vmem>>, vector<128x128xf32>
    %cst = arith.constant dense<0.000000e+00> : vector<8x128xf32>
    %6 = tpu.matmul %4, %5, %cst {dimension_numbers = #tpu.dot_dimension_numbers<[1], [0], [0], [1], [0, 0, 1, 1], [], []>} : vector<8x128xf32>, vector<128x128xf32>, vector<8x128xf32> -> vector<8x128xf32>
    %cst_4 = arith.constant 9.99999993E-9 : f32
    %7 = vector.broadcast %cst_4 : f32 to vector<8x128xf32>
    %8 = arith.addf %6, %7 : vector<8x128xf32>
    %9 = math.rsqrt %8 : vector<8x128xf32>
    %c0_5 = arith.constant 0 : index
    %c0_6 = arith.constant 0 : index
    %10 = vector.load %arg13[%c0_5, %c0_6] : memref<32x1152xbf16, #tpu.memory_space<vmem>>, vector<32x1152xbf16>
    %c0_7 = arith.constant 0 : index
    %c0_8 = arith.constant 0 : index
    %11 = vector.load %arg2[%c0_7, %c0_8] : memref<1152x128xbf16, #tpu.memory_space<vmem>>, vector<1152x128xbf16>
    %cst_9 = arith.constant dense<0.000000e+00> : vector<32x128xf32>
    %12 = tpu.matmul %10, %11, %cst_9 {dimension_numbers = #tpu.dot_dimension_numbers<[1], [0], [0], [1], [0, 0, 1, 1], [], []>} : vector<32x1152xbf16>, vector<1152x128xbf16>, vector<32x128xf32> -> vector<32x128xf32>
    %13 = vector.shape_cast %12 : vector<32x128xf32> to vector<2x16x128xf32>
    %14 = vector.extract_strided_slice %9 {offsets = [0, 0], sizes = [2, 128], strides = [1, 1]} : vector<8x128xf32> to vector<2x128xf32>
    %15 = vector.shape_cast %14 : vector<2x128xf32> to vector<2x1x128xf32>
    %16 = vector.broadcast %15 : vector<2x1x128xf32> to vector<2x16x128xf32>
    %17 = arith.mulf %13, %16 : vector<2x16x128xf32>
    %c0_10 = arith.constant 0 : index
    %c0_11 = arith.constant 0 : index
    %18 = vector.load %arg5[%c0_10, %c0_11] : memref<1x128xf32, #tpu.memory_space<vmem>>, vector<1x128xf32>
    %19 = vector.shape_cast %18 : vector<1x128xf32> to vector<1x1x128xf32>
    %20 = vector.broadcast %19 : vector<1x1x128xf32> to vector<2x16x128xf32>
    %21 = arith.addf %17, %20 : vector<2x16x128xf32>
    %cst_12 = arith.constant 0.000000e+00 : f32
    %22 = vector.broadcast %cst_12 : f32 to vector<2x16x128xf32>
    %23 = arith.cmpf oge, %21, %22 : vector<2x16x128xf32>
    %cst_13 = arith.constant 2.000000e-01 : f32
    %24 = vector.broadcast %cst_13 : f32 to vector<2x16x128xf32>
    %25 = arith.mulf %24, %21 : vector<2x16x128xf32>
    %26 = arith.select %23, %21, %25 : vector<2x16x128xi1>, vector<2x16x128xf32>
    %cst_14 = arith.constant 1.41421354 : f32
    %27 = vector.broadcast %cst_14 : f32 to vector<2x16x128xf32>
    %28 = arith.mulf %26, %27 : vector<2x16x128xf32>
    %cst_15 = arith.constant -2.560000e+02 : f32
    %cst_16 = arith.constant 2.560000e+02 : f32
    %29 = vector.broadcast %cst_15 : f32 to vector<2x16x128xf32>
    %30 = arith.maximumf %29, %28 : vector<2x16x128xf32>
    %31 = vector.broadcast %cst_16 : f32 to vector<2x16x128xf32>
    %32 = arith.minimumf %31, %30 : vector<2x16x128xf32>
    %33 = arith.truncf %32 : vector<2x16x128xf32> to vector<2x16x128xbf16>
    %c0_17 = arith.constant 0 : index
    %c0_18 = arith.constant 0 : index
    %c0_19 = arith.constant 0 : index
    %34 = vector.load %arg11[%c0_17, %c0_18, %c0_19] : memref<2x16x128xbf16, #tpu.memory_space<vmem>>, vector<2x16x128xbf16>
    tpu.vector_store %arg11[%c0_17, %c0_18, %c0_19], %33 {strides = array<i32>} : memref<2x16x128xbf16, #tpu.memory_space<vmem>>, vector<2x16x128xbf16>,
    %c0_20 = arith.constant 0 : index
    %c0_21 = arith.constant 0 : index
    %35 = vector.load %arg8[%c0_20, %c0_21] : memref<8x128xf32, #tpu.memory_space<vmem>>, vector<8x128xf32>
    %36 = vector.extract_strided_slice %35 {offsets = [0, 0], sizes = [2, 128], strides = [1, 1]} : vector<8x128xf32> to vector<2x128xf32>
    %37 = vector.shape_cast %36 : vector<2x128xf32> to vector<2x1x128xf32>
    %38 = vector.broadcast %37 : vector<2x1x128xf32> to vector<2x16x128xf32>
    %39 = arith.mulf %32, %38 : vector<2x16x128xf32>
    %40 = arith.truncf %39 : vector<2x16x128xf32> to vector<2x16x128xbf16>
    %41 = vector.shape_cast %40 : vector<2x16x128xbf16> to vector<32x128xbf16>
    %c0_22 = arith.constant 0 : index
    %c0_23 = arith.constant 0 : index
    %c0_24 = arith.constant 0 : index
    %42 = vector.load %arg14[%c0_22, %c0_23, %c0_24] : memref<2x16x128xf32, #tpu.memory_space<vmem>>, vector<2x16x128xf32>
    %c0_25 = arith.constant 0 : index
    %c0_26 = arith.constant 0 : index
    %43 = vector.load %arg7[%c0_25, %c0_26] : memref<128x128xbf16, #tpu.memory_space<vmem>>, vector<128x128xbf16>
    %cst_27 = arith.constant dense<0.000000e+00> : vector<32x128xf32>
    %44 = tpu.matmul %41, %43, %cst_27 {dimension_numbers = #tpu.dot_dimension_numbers<[1], [0], [0], [1], [0, 0, 1, 1], [], []>} : vector<32x128xbf16>, vector<128x128xbf16>, vector<32x128xf32> -> vector<32x128xf32>
    %45 = vector.shape_cast %44 : vector<32x128xf32> to vector<2x16x128xf32>
    %46 = arith.addf %42, %45 : vector<2x16x128xf32>
    %c0_28 = arith.constant 0 : index
    %c0_29 = arith.constant 0 : index
    %c0_30 = arith.constant 0 : index
    %47 = vector.load %arg14[%c0_28, %c0_29, %c0_30] : memref<2x16x128xf32, #tpu.memory_space<vmem>>, vector<2x16x128xf32>
    tpu.vector_store %arg14[%c0_28, %c0_29, %c0_30], %46 {strides = array<i32>} : memref<2x16x128xf32, #tpu.memory_space<vmem>>, vector<2x16x128xf32>,
    %c0_i32_31 = arith.constant 0 : i32
    %48 = arith.cmpi eq, %arg0, %c0_i32_31 : i32
    %49 = arith.extui %48 : i1 to i32
    %c0_i32_32 = arith.constant 0 : i32
    %50 = arith.cmpi ne, %49, %c0_i32_32 : i32
    scf.if %50 {
      %c0_33 = arith.constant 0 : index
      %c0_34 = arith.constant 0 : index
      %c0_35 = arith.constant 0 : index
      %51 = vector.load %arg14[%c0_33, %c0_34, %c0_35] : memref<2x16x128xf32, #tpu.memory_space<vmem>>, vector<2x16x128xf32>
      %c0_36 = arith.constant 0 : index
      %c0_37 = arith.constant 0 : index
      %52 = vector.load %arg9[%c0_36, %c0_37] : memref<1x128xf32, #tpu.memory_space<vmem>>, vector<1x128xf32>
      %53 = vector.shape_cast %52 : vector<1x128xf32> to vector<1x1x128xf32>
      %54 = vector.broadcast %53 : vector<1x1x128xf32> to vector<2x16x128xf32>
      %55 = arith.addf %51, %54 : vector<2x16x128xf32>
      %cst_38 = arith.constant -2.560000e+02 : f32
      %cst_39 = arith.constant 2.560000e+02 : f32
      %56 = vector.broadcast %cst_38 : f32 to vector<2x16x128xf32>
      %57 = arith.maximumf %56, %55 : vector<2x16x128xf32>
      %58 = vector.broadcast %cst_39 : f32 to vector<2x16x128xf32>
      %59 = arith.minimumf %58, %57 : vector<2x16x128xf32>
      %c0_40 = arith.constant 0 : index
      %c0_41 = arith.constant 0 : index
      %c0_42 = arith.constant 0 : index
      %60 = vector.load %arg10[%c0_40, %c0_41, %c0_42] : memref<2x16x128xf32, #tpu.memory_space<vmem>>, vector<2x16x128xf32>
      %61 = arith.addf %59, %60 : vector<2x16x128xf32>
      %c0_43 = arith.constant 0 : index
      %c0_44 = arith.constant 0 : index
      %c0_45 = arith.constant 0 : index
      %62 = vector.load %arg12[%c0_43, %c0_44, %c0_45] : memref<2x16x128xf32, #tpu.memory_space<vmem>>, vector<2x16x128xf32>
      tpu.vector_store %arg12[%c0_43, %c0_44, %c0_45], %61 {strides = array<i32>} : memref<2x16x128xf32, #tpu.memory_space<vmem>>, vector<2x16x128xf32>,
    } else {
    }
    return
  }
  func.func @transform_0(%arg0: i32) -> (i32, i32, i32) {
    %c0_i32 = arith.constant 0 : i32
    %c0_i32_0 = arith.constant 0 : i32
    %c0_i32_1 = arith.constant 0 : i32
    %c0_i32_2 = arith.constant 0 : i32
    return %c0_i32, %c0_i32_0, %c0_i32_1 : i32, i32, i32
  }
  func.func @transform_1(%arg0: i32) -> (i32, i32) {
    %c0_i32 = arith.constant 0 : i32
    %c0_i32_0 = arith.constant 0 : i32
    return %c0_i32, %arg0 : i32, i32
  }
  func.func @transform_2(%arg0: i32) -> (i32, i32) {
    %c0_i32 = arith.constant 0 : i32
    %c0_i32_0 = arith.constant 0 : i32
    return %c0_i32, %arg0 : i32, i32
  }
  func.func @transform_3(%arg0: i32) -> (i32, i32) {
    %c0_i32 = arith.constant 0 : i32
    %c0_i32_0 = arith.constant 0 : i32
    %c0_i32_1 = arith.constant 0 : i32
    return %c0_i32, %c0_i32_0 : i32, i32
  }
  func.func @transform_4(%arg0: i32) -> (i32, i32) {
    %c0_i32 = arith.constant 0 : i32
    %c0_i32_0 = arith.constant 0 : i32
    return %c0_i32, %arg0 : i32, i32
  }
  func.func @transform_5(%arg0: i32) -> (i32, i32, i32) {
    %c0_i32 = arith.constant 0 : i32
    %c0_i32_0 = arith.constant 0 : i32
    %c0_i32_1 = arith.constant 0 : i32
    %c0_i32_2 = arith.constant 0 : i32
    return %c0_i32, %c0_i32_0, %c0_i32_1 : i32, i32, i32
  }
  func.func @transform_6(%arg0: i32) -> (i32, i32) {
    %c0_i32 = arith.constant 0 : i32
    %c0_i32_0 = arith.constant 0 : i32
    return %arg0, %c0_i32 : i32, i32
  }
  func.func @transform_7(%arg0: i32) -> (i32, i32) {
    %c0_i32 = arith.constant 0 : i32
    %c0_i32_0 = arith.constant 0 : i32
    return %c0_i32, %arg0 : i32, i32
  }
  func.func @transform_8(%arg0: i32) -> (i32, i32) {
    %c0_i32 = arith.constant 0 : i32
    %c0_i32_0 = arith.constant 0 : i32
    %c0_i32_1 = arith.constant 0 : i32
    return %c0_i32, %c0_i32_0 : i32, i32
  }
  func.func @transform_9(%arg0: i32) -> (i32, i32, i32) {
    %c0_i32 = arith.constant 0 : i32
    %c0_i32_0 = arith.constant 0 : i32
    %c0_i32_1 = arith.constant 0 : i32
    %c0_i32_2 = arith.constant 0 : i32
    return %c0_i32, %c0_i32_0, %c0_i32_1 : i32, i32, i32
  }
  func.func @transform_10(%arg0: i32) -> (i32, i32, i32) {
    %c0_i32 = arith.constant 0 : i32
    %c0_i32_0 = arith.constant 0 : i32
    %c0_i32_1 = arith.constant 0 : i32
    return %c0_i32, %c0_i32_0, %arg0 : i32, i32, i32
  }
  func.func @transform_11(%arg0: i32) -> (i32, i32, i32) {
    %c0_i32 = arith.constant 0 : i32
    %c0_i32_0 = arith.constant 0 : i32
    %c0_i32_1 = arith.constant 0 : i32
    %c0_i32_2 = arith.constant 0 : i32
    return %c0_i32, %c0_i32_0, %c0_i32_1 : i32, i32, i32
  }
}

module attributes {stable_mosaic.version = 11 : i64} {
  func.func @_modconv_kernel(%arg0: i32, %arg1: memref<2x64x128xbf16, #tpu.memory_space<vmem>>, %arg2: memref<1152x128xbf16, #tpu.memory_space<vmem>>, %arg3: memref<128x128xf32, #tpu.memory_space<vmem>>, %arg4: memref<8x128xf32, #tpu.memory_space<vmem>>, %arg5: memref<1x128xf32, #tpu.memory_space<vmem>>, %arg6: memref<9x128x1xf32, #tpu.memory_space<vmem>>, %arg7: memref<2x64x128xbf16, #tpu.memory_space<vmem>>, %arg8: memref<128x1152xbf16, #tpu.memory_space<vmem>>) attributes {dimension_semantics = [#tpu.dimension_semantics<arbitrary>], iteration_bounds = array<i64: 1>, scalar_prefetch = 0 : i64, scratch_operands = 1 : i64, tpu.core_type = #tpu.core_type<tc>, window_params = [{pipeline_mode = #tpu.pipeline_mode<synchronous>, transform_indices = @transform_0, window_bounds = array<i64: 2, 64, 128>}, {transform_indices = @transform_1, window_bounds = array<i64: 1152, 128>}, {transform_indices = @transform_2, window_bounds = array<i64: 128, 128>}, {pipeline_mode = #tpu.pipeline_mode<synchronous>, transform_indices = @transform_3, window_bounds = array<i64: 8, 128>}, {transform_indices = @transform_4, window_bounds = array<i64: 1, 128>}, {pipeline_mode = #tpu.pipeline_mode<synchronous>, transform_indices = @transform_5, window_bounds = array<i64: 9, 128, 1>}, {transform_indices = @transform_6, window_bounds = array<i64: 2, 64, 128>}]} {
    %c0 = arith.constant 0 : index
    %c0_0 = arith.constant 0 : index
    %0 = vector.load %arg4[%c0, %c0_0] : memref<8x128xf32, #tpu.memory_space<vmem>>, vector<8x128xf32>
    %c0_i32 = arith.constant 0 : i32
    %1 = arith.cmpi eq, %arg0, %c0_i32 : i32
    %2 = arith.extui %1 : i1 to i32
    %c0_i32_1 = arith.constant 0 : i32
    %3 = arith.cmpi ne, %2, %c0_i32_1 : i32
    scf.if %3 {
      %c0_20 = arith.constant 0 : index
      %c0_21 = arith.constant 0 : index
      %c0_22 = arith.constant 0 : index
      %35 = vector.load %arg1[%c0_20, %c0_21, %c0_22] : memref<2x64x128xbf16, #tpu.memory_space<vmem>>, vector<2x64x128xbf16>
      %36 = arith.extf %35 : vector<2x64x128xbf16> to vector<2x64x128xf32>
      %37 = vector.extract_strided_slice %0 {offsets = [0, 0], sizes = [2, 128], strides = [1, 1]} : vector<8x128xf32> to vector<2x128xf32>
      %38 = vector.shape_cast %37 : vector<2x128xf32> to vector<2x1x128xf32>
      %39 = vector.broadcast %38 : vector<2x1x128xf32> to vector<2x64x128xf32>
      %40 = arith.mulf %36, %39 : vector<2x64x128xf32>
      %41 = vector.shape_cast %40 : vector<2x64x128xf32> to vector<128x128xf32>
      %c9_i32 = arith.constant 9 : i32
      %42 = tpu.dynamic_rotate %41 by %c9_i32 dim 0 : vector<128x128xf32>, i32 -> vector<128x128xf32>
      %c0_23 = arith.constant 0 : index
      %c0_24 = arith.constant 0 : index
      %c0_25 = arith.constant 0 : index
      %43 = vector.load %arg6[%c0_23, %c0_24, %c0_25] : memref<9x128x1xf32, #tpu.memory_space<vmem>>, vector<1x128x1xf32>
      %44 = vector.shape_cast %43 : vector<1x128x1xf32> to vector<128x1xf32>
      %45 = vector.broadcast %44 : vector<128x1xf32> to vector<128x128xf32>
      %46 = arith.mulf %42, %45 : vector<128x128xf32>
      %47 = arith.truncf %46 : vector<128x128xf32> to vector<128x128xbf16>
      %c0_26 = arith.constant 0 : index
      %c0_27 = arith.constant 0 : index
      %48 = vector.load %arg8[%c0_26, %c0_27] : memref<128x1152xbf16, #tpu.memory_space<vmem>>, vector<128x128xbf16>
      tpu.vector_store %arg8[%c0_26, %c0_27], %47 {strides = array<i32>} : memref<128x1152xbf16, #tpu.memory_space<vmem>>, vector<128x128xbf16>,
      %c8_i32 = arith.constant 8 : i32
      %49 = tpu.dynamic_rotate %41 by %c8_i32 dim 0 : vector<128x128xf32>, i32 -> vector<128x128xf32>
      %c1 = arith.constant 1 : index
      %c0_28 = arith.constant 0 : index
      %c0_29 = arith.constant 0 : index
      %50 = vector.load %arg6[%c1, %c0_28, %c0_29] : memref<9x128x1xf32, #tpu.memory_space<vmem>>, vector<1x128x1xf32>
      %51 = vector.shape_cast %50 : vector<1x128x1xf32> to vector<128x1xf32>
      %52 = vector.broadcast %51 : vector<128x1xf32> to vector<128x128xf32>
      %53 = arith.mulf %49, %52 : vector<128x128xf32>
      %54 = arith.truncf %53 : vector<128x128xf32> to vector<128x128xbf16>
      %c0_30 = arith.constant 0 : index
      %c128 = arith.constant 128 : index
      %55 = vector.load %arg8[%c0_30, %c128] : memref<128x1152xbf16, #tpu.memory_space<vmem>>, vector<128x128xbf16>
      tpu.vector_store %arg8[%c0_30, %c128], %54 {strides = array<i32>} : memref<128x1152xbf16, #tpu.memory_space<vmem>>, vector<128x128xbf16>,
      %c7_i32 = arith.constant 7 : i32
      %56 = tpu.dynamic_rotate %41 by %c7_i32 dim 0 : vector<128x128xf32>, i32 -> vector<128x128xf32>
      %c2 = arith.constant 2 : index
      %c0_31 = arith.constant 0 : index
      %c0_32 = arith.constant 0 : index
      %57 = vector.load %arg6[%c2, %c0_31, %c0_32] : memref<9x128x1xf32, #tpu.memory_space<vmem>>, vector<1x128x1xf32>
      %58 = vector.shape_cast %57 : vector<1x128x1xf32> to vector<128x1xf32>
      %59 = vector.broadcast %58 : vector<128x1xf32> to vector<128x128xf32>
      %60 = arith.mulf %56, %59 : vector<128x128xf32>
      %61 = arith.truncf %60 : vector<128x128xf32> to vector<128x128xbf16>
      %c0_33 = arith.constant 0 : index
      %c256 = arith.constant 256 : index
      %62 = vector.load %arg8[%c0_33, %c256] : memref<128x1152xbf16, #tpu.memory_space<vmem>>, vector<128x128xbf16>
      tpu.vector_store %arg8[%c0_33, %c256], %61 {strides = array<i32>} : memref<128x1152xbf16, #tpu.memory_space<vmem>>, vector<128x128xbf16>,
      %c1_i32 = arith.constant 1 : i32
      %63 = tpu.dynamic_rotate %41 by %c1_i32 dim 0 : vector<128x128xf32>, i32 -> vector<128x128xf32>
      %c3 = arith.constant 3 : index
      %c0_34 = arith.constant 0 : index
      %c0_35 = arith.constant 0 : index
      %64 = vector.load %arg6[%c3, %c0_34, %c0_35] : memref<9x128x1xf32, #tpu.memory_space<vmem>>, vector<1x128x1xf32>
      %65 = vector.shape_cast %64 : vector<1x128x1xf32> to vector<128x1xf32>
      %66 = vector.broadcast %65 : vector<128x1xf32> to vector<128x128xf32>
      %67 = arith.mulf %63, %66 : vector<128x128xf32>
      %68 = arith.truncf %67 : vector<128x128xf32> to vector<128x128xbf16>
      %c0_36 = arith.constant 0 : index
      %c384 = arith.constant 384 : index
      %69 = vector.load %arg8[%c0_36, %c384] : memref<128x1152xbf16, #tpu.memory_space<vmem>>, vector<128x128xbf16>
      tpu.vector_store %arg8[%c0_36, %c384], %68 {strides = array<i32>} : memref<128x1152xbf16, #tpu.memory_space<vmem>>, vector<128x128xbf16>,
      %70 = arith.truncf %41 : vector<128x128xf32> to vector<128x128xbf16>
      %c0_37 = arith.constant 0 : index
      %c512 = arith.constant 512 : index
      %71 = vector.load %arg8[%c0_37, %c512] : memref<128x1152xbf16, #tpu.memory_space<vmem>>, vector<128x128xbf16>
      tpu.vector_store %arg8[%c0_37, %c512], %70 {strides = array<i32>} : memref<128x1152xbf16, #tpu.memory_space<vmem>>, vector<128x128xbf16>,
      %c127_i32 = arith.constant 127 : i32
      %72 = tpu.dynamic_rotate %41 by %c127_i32 dim 0 : vector<128x128xf32>, i32 -> vector<128x128xf32>
      %c5 = arith.constant 5 : index
      %c0_38 = arith.constant 0 : index
      %c0_39 = arith.constant 0 : index
      %73 = vector.load %arg6[%c5, %c0_38, %c0_39] : memref<9x128x1xf32, #tpu.memory_space<vmem>>, vector<1x128x1xf32>
      %74 = vector.shape_cast %73 : vector<1x128x1xf32> to vector<128x1xf32>
      %75 = vector.broadcast %74 : vector<128x1xf32> to vector<128x128xf32>
      %76 = arith.mulf %72, %75 : vector<128x128xf32>
      %77 = arith.truncf %76 : vector<128x128xf32> to vector<128x128xbf16>
      %c0_40 = arith.constant 0 : index
      %c640 = arith.constant 640 : index
      %78 = vector.load %arg8[%c0_40, %c640] : memref<128x1152xbf16, #tpu.memory_space<vmem>>, vector<128x128xbf16>
      tpu.vector_store %arg8[%c0_40, %c640], %77 {strides = array<i32>} : memref<128x1152xbf16, #tpu.memory_space<vmem>>, vector<128x128xbf16>,
      %c121_i32 = arith.constant 121 : i32
      %79 = tpu.dynamic_rotate %41 by %c121_i32 dim 0 : vector<128x128xf32>, i32 -> vector<128x128xf32>
      %c6 = arith.constant 6 : index
      %c0_41 = arith.constant 0 : index
      %c0_42 = arith.constant 0 : index
      %80 = vector.load %arg6[%c6, %c0_41, %c0_42] : memref<9x128x1xf32, #tpu.memory_space<vmem>>, vector<1x128x1xf32>
      %81 = vector.shape_cast %80 : vector<1x128x1xf32> to vector<128x1xf32>
      %82 = vector.broadcast %81 : vector<128x1xf32> to vector<128x128xf32>
      %83 = arith.mulf %79, %82 : vector<128x128xf32>
      %84 = arith.truncf %83 : vector<128x128xf32> to vector<128x128xbf16>
      %c0_43 = arith.constant 0 : index
      %c768 = arith.constant 768 : index
      %85 = vector.load %arg8[%c0_43, %c768] : memref<128x1152xbf16, #tpu.memory_space<vmem>>, vector<128x128xbf16>
      tpu.vector_store %arg8[%c0_43, %c768], %84 {strides = array<i32>} : memref<128x1152xbf16, #tpu.memory_space<vmem>>, vector<128x128xbf16>,
      %c120_i32 = arith.constant 120 : i32
      %86 = tpu.dynamic_rotate %41 by %c120_i32 dim 0 : vector<128x128xf32>, i32 -> vector<128x128xf32>
      %c7 = arith.constant 7 : index
      %c0_44 = arith.constant 0 : index
      %c0_45 = arith.constant 0 : index
      %87 = vector.load %arg6[%c7, %c0_44, %c0_45] : memref<9x128x1xf32, #tpu.memory_space<vmem>>, vector<1x128x1xf32>
      %88 = vector.shape_cast %87 : vector<1x128x1xf32> to vector<128x1xf32>
      %89 = vector.broadcast %88 : vector<128x1xf32> to vector<128x128xf32>
      %90 = arith.mulf %86, %89 : vector<128x128xf32>
      %91 = arith.truncf %90 : vector<128x128xf32> to vector<128x128xbf16>
      %c0_46 = arith.constant 0 : index
      %c896 = arith.constant 896 : index
      %92 = vector.load %arg8[%c0_46, %c896] : memref<128x1152xbf16, #tpu.memory_space<vmem>>, vector<128x128xbf16>
      tpu.vector_store %arg8[%c0_46, %c896], %91 {strides = array<i32>} : memref<128x1152xbf16, #tpu.memory_space<vmem>>, vector<128x128xbf16>,
      %c119_i32 = arith.constant 119 : i32
      %93 = tpu.dynamic_rotate %41 by %c119_i32 dim 0 : vector<128x128xf32>, i32 -> vector<128x128xf32>
      %c8 = arith.constant 8 : index
      %c0_47 = arith.constant 0 : index
      %c0_48 = arith.constant 0 : index
      %94 = vector.load %arg6[%c8, %c0_47, %c0_48] : memref<9x128x1xf32, #tpu.memory_space<vmem>>, vector<1x128x1xf32>
      %95 = vector.shape_cast %94 : vector<1x128x1xf32> to vector<128x1xf32>
      %96 = vector.broadcast %95 : vector<128x1xf32> to vector<128x128xf32>
      %97 = arith.mulf %93, %96 : vector<128x128xf32>
      %98 = arith.truncf %97 : vector<128x128xf32> to vector<128x128xbf16>
      %c0_49 = arith.constant 0 : index
      %c1024 = arith.constant 1024 : index
      %99 = vector.load %arg8[%c0_49, %c1024] : memref<128x1152xbf16, #tpu.memory_space<vmem>>, vector<128x128xbf16>
      tpu.vector_store %arg8[%c0_49, %c1024], %98 {strides = array<i32>} : memref<128x1152xbf16, #tpu.memory_space<vmem>>, vector<128x128xbf16>,
    } else {
    }
    %4 = arith.mulf %0, %0 : vector<8x128xf32>
    %c0_2 = arith.constant 0 : index
    %c0_3 = arith.constant 0 : index
    %5 = vector.load %arg3[%c0_2, %c0_3] : memref<128x128xf32, #tpu.memory_space<vmem>>, vector<128x128xf32>
    %cst = arith.constant dense<0.000000e+00> : vector<8x128xf32>
    %6 = tpu.matmul %4, %5, %cst {dimension_numbers = #tpu.dot_dimension_numbers<[1], [0], [0], [1], [0, 0, 1, 1], [], []>} : vector<8x128xf32>, vector<128x128xf32>, vector<8x128xf32> -> vector<8x128xf32>
    %cst_4 = arith.constant 9.99999993E-9 : f32
    %7 = vector.broadcast %cst_4 : f32 to vector<8x128xf32>
    %8 = arith.addf %6, %7 : vector<8x128xf32>
    %9 = math.rsqrt %8 : vector<8x128xf32>
    %c0_5 = arith.constant 0 : index
    %c0_6 = arith.constant 0 : index
    %10 = vector.load %arg8[%c0_5, %c0_6] : memref<128x1152xbf16, #tpu.memory_space<vmem>>, vector<128x1152xbf16>
    %c0_7 = arith.constant 0 : index
    %c0_8 = arith.constant 0 : index
    %11 = vector.load %arg2[%c0_7, %c0_8] : memref<1152x128xbf16, #tpu.memory_space<vmem>>, vector<1152x128xbf16>
    %cst_9 = arith.constant dense<0.000000e+00> : vector<128x128xf32>
    %12 = tpu.matmul %10, %11, %cst_9 {dimension_numbers = #tpu.dot_dimension_numbers<[1], [0], [0], [1], [0, 0, 1, 1], [], []>} : vector<128x1152xbf16>, vector<1152x128xbf16>, vector<128x128xf32> -> vector<128x128xf32>
    %13 = vector.shape_cast %12 : vector<128x128xf32> to vector<2x64x128xf32>
    %14 = vector.extract_strided_slice %9 {offsets = [0, 0], sizes = [2, 128], strides = [1, 1]} : vector<8x128xf32> to vector<2x128xf32>
    %15 = vector.shape_cast %14 : vector<2x128xf32> to vector<2x1x128xf32>
    %16 = vector.broadcast %15 : vector<2x1x128xf32> to vector<2x64x128xf32>
    %17 = arith.mulf %13, %16 : vector<2x64x128xf32>
    %c0_10 = arith.constant 0 : index
    %c0_11 = arith.constant 0 : index
    %18 = vector.load %arg5[%c0_10, %c0_11] : memref<1x128xf32, #tpu.memory_space<vmem>>, vector<1x128xf32>
    %19 = vector.shape_cast %18 : vector<1x128xf32> to vector<1x1x128xf32>
    %20 = vector.broadcast %19 : vector<1x1x128xf32> to vector<2x64x128xf32>
    %21 = arith.addf %17, %20 : vector<2x64x128xf32>
    %cst_12 = arith.constant 0.000000e+00 : f32
    %22 = vector.broadcast %cst_12 : f32 to vector<2x64x128xf32>
    %23 = arith.cmpf oge, %21, %22 : vector<2x64x128xf32>
    %cst_13 = arith.constant 2.000000e-01 : f32
    %24 = vector.broadcast %cst_13 : f32 to vector<2x64x128xf32>
    %25 = arith.mulf %24, %21 : vector<2x64x128xf32>
    %26 = arith.select %23, %21, %25 : vector<2x64x128xi1>, vector<2x64x128xf32>
    %cst_14 = arith.constant 1.41421354 : f32
    %27 = vector.broadcast %cst_14 : f32 to vector<2x64x128xf32>
    %28 = arith.mulf %26, %27 : vector<2x64x128xf32>
    %cst_15 = arith.constant -2.560000e+02 : f32
    %cst_16 = arith.constant 2.560000e+02 : f32
    %29 = vector.broadcast %cst_15 : f32 to vector<2x64x128xf32>
    %30 = arith.maximumf %29, %28 : vector<2x64x128xf32>
    %31 = vector.broadcast %cst_16 : f32 to vector<2x64x128xf32>
    %32 = arith.minimumf %31, %30 : vector<2x64x128xf32>
    %33 = arith.truncf %32 : vector<2x64x128xf32> to vector<2x64x128xbf16>
    %c0_17 = arith.constant 0 : index
    %c0_18 = arith.constant 0 : index
    %c0_19 = arith.constant 0 : index
    %34 = vector.load %arg7[%c0_17, %c0_18, %c0_19] : memref<2x64x128xbf16, #tpu.memory_space<vmem>>, vector<2x64x128xbf16>
    tpu.vector_store %arg7[%c0_17, %c0_18, %c0_19], %33 {strides = array<i32>} : memref<2x64x128xbf16, #tpu.memory_space<vmem>>, vector<2x64x128xbf16>,
    return
  }
  func.func @transform_0(%arg0: i32) -> (i32, i32, i32) {
    %c0_i32 = arith.constant 0 : i32
    %c0_i32_0 = arith.constant 0 : i32
    %c0_i32_1 = arith.constant 0 : i32
    %c0_i32_2 = arith.constant 0 : i32
    return %c0_i32, %c0_i32_0, %c0_i32_1 : i32, i32, i32
  }
  func.func @transform_1(%arg0: i32) -> (i32, i32) {
    %c0_i32 = arith.constant 0 : i32
    %c0_i32_0 = arith.constant 0 : i32
    return %c0_i32, %arg0 : i32, i32
  }
  func.func @transform_2(%arg0: i32) -> (i32, i32) {
    %c0_i32 = arith.constant 0 : i32
    %c0_i32_0 = arith.constant 0 : i32
    return %c0_i32, %arg0 : i32, i32
  }
  func.func @transform_3(%arg0: i32) -> (i32, i32) {
    %c0_i32 = arith.constant 0 : i32
    %c0_i32_0 = arith.constant 0 : i32
    %c0_i32_1 = arith.constant 0 : i32
    return %c0_i32, %c0_i32_0 : i32, i32
  }
  func.func @transform_4(%arg0: i32) -> (i32, i32) {
    %c0_i32 = arith.constant 0 : i32
    %c0_i32_0 = arith.constant 0 : i32
    return %c0_i32, %arg0 : i32, i32
  }
  func.func @transform_5(%arg0: i32) -> (i32, i32, i32) {
    %c0_i32 = arith.constant 0 : i32
    %c0_i32_0 = arith.constant 0 : i32
    %c0_i32_1 = arith.constant 0 : i32
    %c0_i32_2 = arith.constant 0 : i32
    return %c0_i32, %c0_i32_0, %c0_i32_1 : i32, i32, i32
  }
  func.func @transform_6(%arg0: i32) -> (i32, i32, i32) {
    %c0_i32 = arith.constant 0 : i32
    %c0_i32_0 = arith.constant 0 : i32
    %c0_i32_1 = arith.constant 0 : i32
    return %c0_i32, %c0_i32_0, %arg0 : i32, i32, i32
  }
}

module attributes {stable_mosaic.version = 11 : i64} {
  func.func @_modconv_kernel(%arg0: i32, %arg1: memref<2x64x128xbf16, #tpu.memory_space<vmem>>, %arg2: memref<1152x128xbf16, #tpu.memory_space<vmem>>, %arg3: memref<128x128xf32, #tpu.memory_space<vmem>>, %arg4: memref<8x128xf32, #tpu.memory_space<vmem>>, %arg5: memref<1x128xf32, #tpu.memory_space<vmem>>, %arg6: memref<9x128x1xf32, #tpu.memory_space<vmem>>, %arg7: memref<128x128xbf16, #tpu.memory_space<vmem>>, %arg8: memref<8x128xf32, #tpu.memory_space<vmem>>, %arg9: memref<1x128xf32, #tpu.memory_space<vmem>>, %arg10: memref<2x64x128xf32, #tpu.memory_space<vmem>>, %arg11: memref<2x64x128xbf16, #tpu.memory_space<vmem>>, %arg12: memref<2x64x128xf32, #tpu.memory_space<vmem>>, %arg13: memref<128x1152xbf16, #tpu.memory_space<vmem>>, %arg14: memref<2x64x128xf32, #tpu.memory_space<vmem>>) attributes {dimension_semantics = [#tpu.dimension_semantics<arbitrary>], iteration_bounds = array<i64: 1>, scalar_prefetch = 0 : i64, scratch_operands = 2 : i64, tpu.core_type = #tpu.core_type<tc>, window_params = [{pipeline_mode = #tpu.pipeline_mode<synchronous>, transform_indices = @transform_0, window_bounds = array<i64: 2, 64, 128>}, {transform_indices = @transform_1, window_bounds = array<i64: 1152, 128>}, {transform_indices = @transform_2, window_bounds = array<i64: 128, 128>}, {pipeline_mode = #tpu.pipeline_mode<synchronous>, transform_indices = @transform_3, window_bounds = array<i64: 8, 128>}, {transform_indices = @transform_4, window_bounds = array<i64: 1, 128>}, {pipeline_mode = #tpu.pipeline_mode<synchronous>, transform_indices = @transform_5, window_bounds = array<i64: 9, 128, 1>}, {transform_indices = @transform_6, window_bounds = array<i64: 128, 128>}, {transform_indices = @transform_7, window_bounds = array<i64: 8, 128>}, {pipeline_mode = #tpu.pipeline_mode<synchronous>, transform_indices = @transform_8, window_bounds = array<i64: 1, 128>}, {pipeline_mode = #tpu.pipeline_mode<synchronous>, transform_indices = @transform_9, window_bounds = array<i64: 2, 64, 128>}, {transform_indices = @transform_10, window_bounds = array<i64: 2, 64, 128>}, {pipeline_mode = #tpu.pipeline_mode<synchronous>, transform_indices = @transform_11, window_bounds = array<i64: 2, 64, 128>}]} {
    %c0 = arith.constant 0 : index
    %c0_0 = arith.constant 0 : index
    %0 = vector.load %arg4[%c0, %c0_0] : memref<8x128xf32, #tpu.memory_space<vmem>>, vector<8x128xf32>
    %c0_i32 = arith.constant 0 : i32
    %1 = arith.cmpi eq, %arg0, %c0_i32 : i32
    %2 = arith.extui %1 : i1 to i32
    %c0_i32_1 = arith.constant 0 : i32
    %3 = arith.cmpi ne, %2, %c0_i32_1 : i32
    scf.if %3 {
      %c0_33 = arith.constant 0 : index
      %c0_34 = arith.constant 0 : index
      %c0_35 = arith.constant 0 : index
      %51 = vector.load %arg1[%c0_33, %c0_34, %c0_35] : memref<2x64x128xbf16, #tpu.memory_space<vmem>>, vector<2x64x128xbf16>
      %52 = arith.extf %51 : vector<2x64x128xbf16> to vector<2x64x128xf32>
      %53 = vector.extract_strided_slice %0 {offsets = [0, 0], sizes = [2, 128], strides = [1, 1]} : vector<8x128xf32> to vector<2x128xf32>
      %54 = vector.shape_cast %53 : vector<2x128xf32> to vector<2x1x128xf32>
      %55 = vector.broadcast %54 : vector<2x1x128xf32> to vector<2x64x128xf32>
      %56 = arith.mulf %52, %55 : vector<2x64x128xf32>
      %57 = vector.shape_cast %56 : vector<2x64x128xf32> to vector<128x128xf32>
      %c9_i32 = arith.constant 9 : i32
      %58 = tpu.dynamic_rotate %57 by %c9_i32 dim 0 : vector<128x128xf32>, i32 -> vector<128x128xf32>
      %c0_36 = arith.constant 0 : index
      %c0_37 = arith.constant 0 : index
      %c0_38 = arith.constant 0 : index
      %59 = vector.load %arg6[%c0_36, %c0_37, %c0_38] : memref<9x128x1xf32, #tpu.memory_space<vmem>>, vector<1x128x1xf32>
      %60 = vector.shape_cast %59 : vector<1x128x1xf32> to vector<128x1xf32>
      %61 = vector.broadcast %60 : vector<128x1xf32> to vector<128x128xf32>
      %62 = arith.mulf %58, %61 : vector<128x128xf32>
      %63 = arith.truncf %62 : vector<128x128xf32> to vector<128x128xbf16>
      %c0_39 = arith.constant 0 : index
      %c0_40 = arith.constant 0 : index
      %64 = vector.load %arg13[%c0_39, %c0_40] : memref<128x1152xbf16, #tpu.memory_space<vmem>>, vector<128x128xbf16>
      tpu.vector_store %arg13[%c0_39, %c0_40], %63 {strides = array<i32>} : memref<128x1152xbf16, #tpu.memory_space<vmem>>, vector<128x128xbf16>,
      %c8_i32 = arith.constant 8 : i32
      %65 = tpu.dynamic_rotate %57 by %c8_i32 dim 0 : vector<128x128xf32>, i32 -> vector<128x128xf32>
      %c1 = arith.constant 1 : index
      %c0_41 = arith.constant 0 : index
      %c0_42 = arith.constant 0 : index
      %66 = vector.load %arg6[%c1, %c0_41, %c0_42] : memref<9x128x1xf32, #tpu.memory_space<vmem>>, vector<1x128x1xf32>
      %67 = vector.shape_cast %66 : vector<1x128x1xf32> to vector<128x1xf32>
      %68 = vector.broadcast %67 : vector<128x1xf32> to vector<128x128xf32>
      %69 = arith.mulf %65, %68 : vector<128x128xf32>
      %70 = arith.truncf %69 : vector<128x128xf32> to vector<128x128xbf16>
      %c0_43 = arith.constant 0 : index
      %c128 = arith.constant 128 : index
      %71 = vector.load %arg13[%c0_43, %c128] : memref<128x1152xbf16, #tpu.memory_space<vmem>>, vector<128x128xbf16>
      tpu.vector_store %arg13[%c0_43, %c128], %70 {strides = array<i32>} : memref<128x1152xbf16, #tpu.memory_space<vmem>>, vector<128x128xbf16>,
      %c7_i32 = arith.constant 7 : i32
      %72 = tpu.dynamic_rotate %57 by %c7_i32 dim 0 : vector<128x128xf32>, i32 -> vector<128x128xf32>
      %c2 = arith.constant 2 : index
      %c0_44 = arith.constant 0 : index
      %c0_45 = arith.constant 0 : index
      %73 = vector.load %arg6[%c2, %c0_44, %c0_45] : memref<9x128x1xf32, #tpu.memory_space<vmem>>, vector<1x128x1xf32>
      %74 = vector.shape_cast %73 : vector<1x128x1xf32> to vector<128x1xf32>
      %75 = vector.broadcast %74 : vector<128x1xf32> to vector<128x128xf32>
      %76 = arith.mulf %72, %75 : vector<128x128xf32>
      %77 = arith.truncf %76 : vector<128x128xf32> to vector<128x128xbf16>
      %c0_46 = arith.constant 0 : index
      %c256 = arith.constant 256 : index
      %78 = vector.load %arg13[%c0_46, %c256] : memref<128x1152xbf16, #tpu.memory_space<vmem>>, vector<128x128xbf16>
      tpu.vector_store %arg13[%c0_46, %c256], %77 {strides = array<i32>} : memref<128x1152xbf16, #tpu.memory_space<vmem>>, vector<128x128xbf16>,
      %c1_i32 = arith.constant 1 : i32
      %79 = tpu.dynamic_rotate %57 by %c1_i32 dim 0 : vector<128x128xf32>, i32 -> vector<128x128xf32>
      %c3 = arith.constant 3 : index
      %c0_47 = arith.constant 0 : index
      %c0_48 = arith.constant 0 : index
      %80 = vector.load %arg6[%c3, %c0_47, %c0_48] : memref<9x128x1xf32, #tpu.memory_space<vmem>>, vector<1x128x1xf32>
      %81 = vector.shape_cast %80 : vector<1x128x1xf32> to vector<128x1xf32>
      %82 = vector.broadcast %81 : vector<128x1xf32> to vector<128x128xf32>
      %83 = arith.mulf %79, %82 : vector<128x128xf32>
      %84 = arith.truncf %83 : vector<128x128xf32> to vector<128x128xbf16>
      %c0_49 = arith.constant 0 : index
      %c384 = arith.constant 384 : index
      %85 = vector.load %arg13[%c0_49, %c384] : memref<128x1152xbf16, #tpu.memory_space<vmem>>, vector<128x128xbf16>
      tpu.vector_store %arg13[%c0_49, %c384], %84 {strides = array<i32>} : memref<128x1152xbf16, #tpu.memory_space<vmem>>, vector<128x128xbf16>,
      %86 = arith.truncf %57 : vector<128x128xf32> to vector<128x128xbf16>
      %c0_50 = arith.constant 0 : index
      %c512 = arith.constant 512 : index
      %87 = vector.load %arg13[%c0_50, %c512] : memref<128x1152xbf16, #tpu.memory_space<vmem>>, vector<128x128xbf16>
      tpu.vector_store %arg13[%c0_50, %c512], %86 {strides = array<i32>} : memref<128x1152xbf16, #tpu.memory_space<vmem>>, vector<128x128xbf16>,
      %c127_i32 = arith.constant 127 : i32
      %88 = tpu.dynamic_rotate %57 by %c127_i32 dim 0 : vector<128x128xf32>, i32 -> vector<128x128xf32>
      %c5 = arith.constant 5 : index
      %c0_51 = arith.constant 0 : index
      %c0_52 = arith.constant 0 : index
      %89 = vector.load %arg6[%c5, %c0_51, %c0_52] : memref<9x128x1xf32, #tpu.memory_space<vmem>>, vector<1x128x1xf32>
      %90 = vector.shape_cast %89 : vector<1x128x1xf32> to vector<128x1xf32>
      %91 = vector.broadcast %90 : vector<128x1xf32> to vector<128x128xf32>
      %92 = arith.mulf %88, %91 : vector<128x128xf32>
      %93 = arith.truncf %92 : vector<128x128xf32> to vector<128x128xbf16>
      %c0_53 = arith.constant 0 : index
      %c640 = arith.constant 640 : index
      %94 = vector.load %arg13[%c0_53, %c640] : memref<128x1152xbf16, #tpu.memory_space<vmem>>, vector<128x128xbf16>
      tpu.vector_store %arg13[%c0_53, %c640], %93 {strides = array<i32>} : memref<128x1152xbf16, #tpu.memory_space<vmem>>, vector<128x128xbf16>,
      %c121_i32 = arith.constant 121 : i32
      %95 = tpu.dynamic_rotate %57 by %c121_i32 dim 0 : vector<128x128xf32>, i32 -> vector<128x128xf32>
      %c6 = arith.constant 6 : index
      %c0_54 = arith.constant 0 : index
      %c0_55 = arith.constant 0 : index
      %96 = vector.load %arg6[%c6, %c0_54, %c0_55] : memref<9x128x1xf32, #tpu.memory_space<vmem>>, vector<1x128x1xf32>
      %97 = vector.shape_cast %96 : vector<1x128x1xf32> to vector<128x1xf32>
      %98 = vector.broadcast %97 : vector<128x1xf32> to vector<128x128xf32>
      %99 = arith.mulf %95, %98 : vector<128x128xf32>
      %100 = arith.truncf %99 : vector<128x128xf32> to vector<128x128xbf16>
      %c0_56 = arith.constant 0 : index
      %c768 = arith.constant 768 : index
      %101 = vector.load %arg13[%c0_56, %c768] : memref<128x1152xbf16, #tpu.memory_space<vmem>>, vector<128x128xbf16>
      tpu.vector_store %arg13[%c0_56, %c768], %100 {strides = array<i32>} : memref<128x1152xbf16, #tpu.memory_space<vmem>>, vector<128x128xbf16>,
      %c120_i32 = arith.constant 120 : i32
      %102 = tpu.dynamic_rotate %57 by %c120_i32 dim 0 : vector<128x128xf32>, i32 -> vector<128x128xf32>
      %c7 = arith.constant 7 : index
      %c0_57 = arith.constant 0 : index
      %c0_58 = arith.constant 0 : index
      %103 = vector.load %arg6[%c7, %c0_57, %c0_58] : memref<9x128x1xf32, #tpu.memory_space<vmem>>, vector<1x128x1xf32>
      %104 = vector.shape_cast %103 : vector<1x128x1xf32> to vector<128x1xf32>
      %105 = vector.broadcast %104 : vector<128x1xf32> to vector<128x128xf32>
      %106 = arith.mulf %102, %105 : vector<128x128xf32>
      %107 = arith.truncf %106 : vector<128x128xf32> to vector<128x128xbf16>
      %c0_59 = arith.constant 0 : index
      %c896 = arith.constant 896 : index
      %108 = vector.load %arg13[%c0_59, %c896] : memref<128x1152xbf16, #tpu.memory_space<vmem>>, vector<128x128xbf16>
      tpu.vector_store %arg13[%c0_59, %c896], %107 {strides = array<i32>} : memref<128x1152xbf16, #tpu.memory_space<vmem>>, vector<128x128xbf16>,
      %c119_i32 = arith.constant 119 : i32
      %109 = tpu.dynamic_rotate %57 by %c119_i32 dim 0 : vector<128x128xf32>, i32 -> vector<128x128xf32>
      %c8 = arith.constant 8 : index
      %c0_60 = arith.constant 0 : index
      %c0_61 = arith.constant 0 : index
      %110 = vector.load %arg6[%c8, %c0_60, %c0_61] : memref<9x128x1xf32, #tpu.memory_space<vmem>>, vector<1x128x1xf32>
      %111 = vector.shape_cast %110 : vector<1x128x1xf32> to vector<128x1xf32>
      %112 = vector.broadcast %111 : vector<128x1xf32> to vector<128x128xf32>
      %113 = arith.mulf %109, %112 : vector<128x128xf32>
      %114 = arith.truncf %113 : vector<128x128xf32> to vector<128x128xbf16>
      %c0_62 = arith.constant 0 : index
      %c1024 = arith.constant 1024 : index
      %115 = vector.load %arg13[%c0_62, %c1024] : memref<128x1152xbf16, #tpu.memory_space<vmem>>, vector<128x128xbf16>
      tpu.vector_store %arg13[%c0_62, %c1024], %114 {strides = array<i32>} : memref<128x1152xbf16, #tpu.memory_space<vmem>>, vector<128x128xbf16>,
      %cst_63 = arith.constant 0.000000e+00 : f32
      %116 = vector.broadcast %cst_63 : f32 to vector<2x64x128xf32>
      %c0_64 = arith.constant 0 : index
      %c0_65 = arith.constant 0 : index
      %c0_66 = arith.constant 0 : index
      %117 = vector.load %arg14[%c0_64, %c0_65, %c0_66] : memref<2x64x128xf32, #tpu.memory_space<vmem>>, vector<2x64x128xf32>
      tpu.vector_store %arg14[%c0_64, %c0_65, %c0_66], %116 {strides = array<i32>} : memref<2x64x128xf32, #tpu.memory_space<vmem>>, vector<2x64x128xf32>,
    } else {
    }
    %4 = arith.mulf %0, %0 : vector<8x128xf32>
    %c0_2 = arith.constant 0 : index
    %c0_3 = arith.constant 0 : index
    %5 = vector.load %arg3[%c0_2, %c0_3] : memref<128x128xf32, #tpu.memory_space<vmem>>, vector<128x128xf32>
    %cst = arith.constant dense<0.000000e+00> : vector<8x128xf32>
    %6 = tpu.matmul %4, %5, %cst {dimension_numbers = #tpu.dot_dimension_numbers<[1], [0], [0], [1], [0, 0, 1, 1], [], []>} : vector<8x128xf32>, vector<128x128xf32>, vector<8x128xf32> -> vector<8x128xf32>
    %cst_4 = arith.constant 9.99999993E-9 : f32
    %7 = vector.broadcast %cst_4 : f32 to vector<8x128xf32>
    %8 = arith.addf %6, %7 : vector<8x128xf32>
    %9 = math.rsqrt %8 : vector<8x128xf32>
    %c0_5 = arith.constant 0 : index
    %c0_6 = arith.constant 0 : index
    %10 = vector.load %arg13[%c0_5, %c0_6] : memref<128x1152xbf16, #tpu.memory_space<vmem>>, vector<128x1152xbf16>
    %c0_7 = arith.constant 0 : index
    %c0_8 = arith.constant 0 : index
    %11 = vector.load %arg2[%c0_7, %c0_8] : memref<1152x128xbf16, #tpu.memory_space<vmem>>, vector<1152x128xbf16>
    %cst_9 = arith.constant dense<0.000000e+00> : vector<128x128xf32>
    %12 = tpu.matmul %10, %11, %cst_9 {dimension_numbers = #tpu.dot_dimension_numbers<[1], [0], [0], [1], [0, 0, 1, 1], [], []>} : vector<128x1152xbf16>, vector<1152x128xbf16>, vector<128x128xf32> -> vector<128x128xf32>
    %13 = vector.shape_cast %12 : vector<128x128xf32> to vector<2x64x128xf32>
    %14 = vector.extract_strided_slice %9 {offsets = [0, 0], sizes = [2, 128], strides = [1, 1]} : vector<8x128xf32> to vector<2x128xf32>
    %15 = vector.shape_cast %14 : vector<2x128xf32> to vector<2x1x128xf32>
    %16 = vector.broadcast %15 : vector<2x1x128xf32> to vector<2x64x128xf32>
    %17 = arith.mulf %13, %16 : vector<2x64x128xf32>
    %c0_10 = arith.constant 0 : index
    %c0_11 = arith.constant 0 : index
    %18 = vector.load %arg5[%c0_10, %c0_11] : memref<1x128xf32, #tpu.memory_space<vmem>>, vector<1x128xf32>
    %19 = vector.shape_cast %18 : vector<1x128xf32> to vector<1x1x128xf32>
    %20 = vector.broadcast %19 : vector<1x1x128xf32> to vector<2x64x128xf32>
    %21 = arith.addf %17, %20 : vector<2x64x128xf32>
    %cst_12 = arith.constant 0.000000e+00 : f32
    %22 = vector.broadcast %cst_12 : f32 to vector<2x64x128xf32>
    %23 = arith.cmpf oge, %21, %22 : vector<2x64x128xf32>
    %cst_13 = arith.constant 2.000000e-01 : f32
    %24 = vector.broadcast %cst_13 : f32 to vector<2x64x128xf32>
    %25 = arith.mulf %24, %21 : vector<2x64x128xf32>
    %26 = arith.select %23, %21, %25 : vector<2x64x128xi1>, vector<2x64x128xf32>
    %cst_14 = arith.constant 1.41421354 : f32
    %27 = vector.broadcast %cst_14 : f32 to vector<2x64x128xf32>
    %28 = arith.mulf %26, %27 : vector<2x64x128xf32>
    %cst_15 = arith.constant -2.560000e+02 : f32
    %cst_16 = arith.constant 2.560000e+02 : f32
    %29 = vector.broadcast %cst_15 : f32 to vector<2x64x128xf32>
    %30 = arith.maximumf %29, %28 : vector<2x64x128xf32>
    %31 = vector.broadcast %cst_16 : f32 to vector<2x64x128xf32>
    %32 = arith.minimumf %31, %30 : vector<2x64x128xf32>
    %33 = arith.truncf %32 : vector<2x64x128xf32> to vector<2x64x128xbf16>
    %c0_17 = arith.constant 0 : index
    %c0_18 = arith.constant 0 : index
    %c0_19 = arith.constant 0 : index
    %34 = vector.load %arg11[%c0_17, %c0_18, %c0_19] : memref<2x64x128xbf16, #tpu.memory_space<vmem>>, vector<2x64x128xbf16>
    tpu.vector_store %arg11[%c0_17, %c0_18, %c0_19], %33 {strides = array<i32>} : memref<2x64x128xbf16, #tpu.memory_space<vmem>>, vector<2x64x128xbf16>,
    %c0_20 = arith.constant 0 : index
    %c0_21 = arith.constant 0 : index
    %35 = vector.load %arg8[%c0_20, %c0_21] : memref<8x128xf32, #tpu.memory_space<vmem>>, vector<8x128xf32>
    %36 = vector.extract_strided_slice %35 {offsets = [0, 0], sizes = [2, 128], strides = [1, 1]} : vector<8x128xf32> to vector<2x128xf32>
    %37 = vector.shape_cast %36 : vector<2x128xf32> to vector<2x1x128xf32>
    %38 = vector.broadcast %37 : vector<2x1x128xf32> to vector<2x64x128xf32>
    %39 = arith.mulf %32, %38 : vector<2x64x128xf32>
    %40 = arith.truncf %39 : vector<2x64x128xf32> to vector<2x64x128xbf16>
    %41 = vector.shape_cast %40 : vector<2x64x128xbf16> to vector<128x128xbf16>
    %c0_22 = arith.constant 0 : index
    %c0_23 = arith.constant 0 : index
    %c0_24 = arith.constant 0 : index
    %42 = vector.load %arg14[%c0_22, %c0_23, %c0_24] : memref<2x64x128xf32, #tpu.memory_space<vmem>>, vector<2x64x128xf32>
    %c0_25 = arith.constant 0 : index
    %c0_26 = arith.constant 0 : index
    %43 = vector.load %arg7[%c0_25, %c0_26] : memref<128x128xbf16, #tpu.memory_space<vmem>>, vector<128x128xbf16>
    %cst_27 = arith.constant dense<0.000000e+00> : vector<128x128xf32>
    %44 = tpu.matmul %41, %43, %cst_27 {dimension_numbers = #tpu.dot_dimension_numbers<[1], [0], [0], [1], [0, 0, 1, 1], [], []>} : vector<128x128xbf16>, vector<128x128xbf16>, vector<128x128xf32> -> vector<128x128xf32>
    %45 = vector.shape_cast %44 : vector<128x128xf32> to vector<2x64x128xf32>
    %46 = arith.addf %42, %45 : vector<2x64x128xf32>
    %c0_28 = arith.constant 0 : index
    %c0_29 = arith.constant 0 : index
    %c0_30 = arith.constant 0 : index
    %47 = vector.load %arg14[%c0_28, %c0_29, %c0_30] : memref<2x64x128xf32, #tpu.memory_space<vmem>>, vector<2x64x128xf32>
    tpu.vector_store %arg14[%c0_28, %c0_29, %c0_30], %46 {strides = array<i32>} : memref<2x64x128xf32, #tpu.memory_space<vmem>>, vector<2x64x128xf32>,
    %c0_i32_31 = arith.constant 0 : i32
    %48 = arith.cmpi eq, %arg0, %c0_i32_31 : i32
    %49 = arith.extui %48 : i1 to i32
    %c0_i32_32 = arith.constant 0 : i32
    %50 = arith.cmpi ne, %49, %c0_i32_32 : i32
    scf.if %50 {
      %c0_33 = arith.constant 0 : index
      %c0_34 = arith.constant 0 : index
      %c0_35 = arith.constant 0 : index
      %51 = vector.load %arg14[%c0_33, %c0_34, %c0_35] : memref<2x64x128xf32, #tpu.memory_space<vmem>>, vector<2x64x128xf32>
      %c0_36 = arith.constant 0 : index
      %c0_37 = arith.constant 0 : index
      %52 = vector.load %arg9[%c0_36, %c0_37] : memref<1x128xf32, #tpu.memory_space<vmem>>, vector<1x128xf32>
      %53 = vector.shape_cast %52 : vector<1x128xf32> to vector<1x1x128xf32>
      %54 = vector.broadcast %53 : vector<1x1x128xf32> to vector<2x64x128xf32>
      %55 = arith.addf %51, %54 : vector<2x64x128xf32>
      %cst_38 = arith.constant -2.560000e+02 : f32
      %cst_39 = arith.constant 2.560000e+02 : f32
      %56 = vector.broadcast %cst_38 : f32 to vector<2x64x128xf32>
      %57 = arith.maximumf %56, %55 : vector<2x64x128xf32>
      %58 = vector.broadcast %cst_39 : f32 to vector<2x64x128xf32>
      %59 = arith.minimumf %58, %57 : vector<2x64x128xf32>
      %c0_40 = arith.constant 0 : index
      %c0_41 = arith.constant 0 : index
      %c0_42 = arith.constant 0 : index
      %60 = vector.load %arg10[%c0_40, %c0_41, %c0_42] : memref<2x64x128xf32, #tpu.memory_space<vmem>>, vector<2x64x128xf32>
      %61 = arith.addf %59, %60 : vector<2x64x128xf32>
      %c0_43 = arith.constant 0 : index
      %c0_44 = arith.constant 0 : index
      %c0_45 = arith.constant 0 : index
      %62 = vector.load %arg12[%c0_43, %c0_44, %c0_45] : memref<2x64x128xf32, #tpu.memory_space<vmem>>, vector<2x64x128xf32>
      tpu.vector_store %arg12[%c0_43, %c0_44, %c0_45], %61 {strides = array<i32>} : memref<2x64x128xf32, #tpu.memory_space<vmem>>, vector<2x64x128xf32>,
    } else {
    }
    return
  }
  func.func @transform_0(%arg0: i32) -> (i32, i32, i32) {
    %c0_i32 = arith.constant 0 : i32
    %c0_i32_0 = arith.constant 0 : i32
    %c0_i32_1 = arith.constant 0 : i32
    %c0_i32_2 = arith.constant 0 : i32
    return %c0_i32, %c0_i32_0, %c0_i32_1 : i32, i32, i32
  }
  func.func @transform_1(%arg0: i32) -> (i32, i32) {
    %c0_i32 = arith.constant 0 : i32
    %c0_i32_0 = arith.constant 0 : i32
    return %c0_i32, %arg0 : i32, i32
  }
  func.func @transform_2(%arg0: i32) -> (i32, i32) {
    %c0_i32 = arith.constant 0 : i32
    %c0_i32_0 = arith.constant 0 : i32
    return %c0_i32, %arg0 : i32, i32
  }
  func.func @transform_3(%arg0: i32) -> (i32, i32) {
    %c0_i32 = arith.constant 0 : i32
    %c0_i32_0 = arith.constant 0 : i32
    %c0_i32_1 = arith.constant 0 : i32
    return %c0_i32, %c0_i32_0 : i32, i32
  }
  func.func @transform_4(%arg0: i32) -> (i32, i32) {
    %c0_i32 = arith.constant 0 : i32
    %c0_i32_0 = arith.constant 0 : i32
    return %c0_i32, %arg0 : i32, i32
  }
  func.func @transform_5(%arg0: i32) -> (i32, i32, i32) {
    %c0_i32 = arith.constant 0 : i32
    %c0_i32_0 = arith.constant 0 : i32
    %c0_i32_1 = arith.constant 0 : i32
    %c0_i32_2 = arith.constant 0 : i32
    return %c0_i32, %c0_i32_0, %c0_i32_1 : i32, i32, i32
  }
  func.func @transform_6(%arg0: i32) -> (i32, i32) {
    %c0_i32 = arith.constant 0 : i32
    %c0_i32_0 = arith.constant 0 : i32
    return %arg0, %c0_i32 : i32, i32
  }
  func.func @transform_7(%arg0: i32) -> (i32, i32) {
    %c0_i32 = arith.constant 0 : i32
    %c0_i32_0 = arith.constant 0 : i32
    return %c0_i32, %arg0 : i32, i32
  }
  func.func @transform_8(%arg0: i32) -> (i32, i32) {
    %c0_i32 = arith.constant 0 : i32
    %c0_i32_0 = arith.constant 0 : i32
    %c0_i32_1 = arith.constant 0 : i32
    return %c0_i32, %c0_i32_0 : i32, i32
  }
  func.func @transform_9(%arg0: i32) -> (i32, i32, i32) {
    %c0_i32 = arith.constant 0 : i32
    %c0_i32_0 = arith.constant 0 : i32
    %c0_i32_1 = arith.constant 0 : i32
    %c0_i32_2 = arith.constant 0 : i32
    return %c0_i32, %c0_i32_0, %c0_i32_1 : i32, i32, i32
  }
  func.func @transform_10(%arg0: i32) -> (i32, i32, i32) {
    %c0_i32 = arith.constant 0 : i32
    %c0_i32_0 = arith.constant 0 : i32
    %c0_i32_1 = arith.constant 0 : i32
    return %c0_i32, %c0_i32_0, %arg0 : i32, i32, i32
  }
  func.func @transform_11(%arg0: i32) -> (i32, i32, i32) {
    %c0_i32 = arith.constant 0 : i32
    %c0_i32_0 = arith.constant 0 : i32
    %c0_i32_1 = arith.constant 0 : i32
    %c0_i32_2 = arith.constant 0 : i32
    return %c0_i32, %c0_i32_0, %c0_i32_1 : i32, i32, i32
  }
}

</mosaic_0001>

<llo_original>
// kernel: _lambda_.4
$region0: #{_lambda_.4}
  #allocation0 [shape = 'u32[]', space=smem, size = 0x4, offset = 0x4, fixed_abs, tag = 'smem constant byte address 0x4 - core index']
  #allocation1 [shape = 'u32[144,128]{1,0:T(1,128)}', space=vmem, size = 0x12000, scoped, tag = 'internal scratch']
  %s0 = inlined_call_operand.vmem [shape: f32[8,128], index: 0, kind: input, shape index: {}]
  %s1 = inlined_call_operand.vmem [shape: f32[8,128], index: 1, kind: input, shape index: {}]
  %s2 = inlined_call_operand.vmem [shape: bf16[128,128], index: 2, kind: input, shape index: {}]
  %s3 = inlined_call_operand.vmem [shape: f32[1,128], index: 3, kind: input, shape index: {}]
  %s4 = inlined_call_operand.vmem [shape: bf16[128,128], index: 4, kind: input, shape index: {}]
  %s5 = inlined_call_operand.vmem [shape: bf16[128,128], index: 5, kind: input, shape index: {}]
  %s6 = inlined_call_operand.vmem [shape: bf16[7,128,128], index: 6, kind: input, shape index: {}]
  %s7 = inlined_call_operand.vmem [shape: f32[8,1,128], index: 7, kind: input, shape index: {}]
  %s8 = inlined_call_operand.vmem [shape: bf16[128,640], index: 8, kind: input, shape index: {}]
  %s9 = inlined_call_operand.vmem [shape: f32[1,640], index: 9, kind: input, shape index: {}]
  %s10 = inlined_call_operand.vmem [shape: f32[8,640], index: 10, kind: output, shape index: {}]
  %s11 = sld [smem:[#allocation0]]
  $region50: #{_lambda_.4} parent=0
    _
  %s13 = ssub.s32 1, %s11
  %s14 = scalar_select 0, %s13, %s11
  // Predicated region
  $region2: #{_lambda_.4} parent=0 // pred_check
    _
  $region3: #{_lambda_.4} parent=0 // pred_check_branch
    %16 = sbr.rel (0) target = $region5
  $region4: #{_lambda_.4} parent=0 // pred_region
    _
  $region5: #{_lambda_.4} parent=0 // pred_fallthru
    _
  // Predicated region
  $region6: #{_lambda_.4} parent=0 // pred_check
    _
  $region7: #{_lambda_.4} parent=0 // pred_check_branch
    %18 = sbr.rel (0) target = $region9
  $region8: #{_lambda_.4} parent=0 // pred_region
    _
  $region9: #{_lambda_.4} parent=0 // pred_fallthru
    _
  // Predicated region
  $region10: #{_lambda_.4} parent=0 // pred_check
    _
  $region11: #{_lambda_.4} parent=0 // pred_check_branch
    %20 = sbr.rel (0) target = $region13
  $region12: #{_lambda_.4} parent=0 // pred_region
    _
  $region13: #{_lambda_.4} parent=0 // pred_fallthru
    _
  // Predicated region
  $region14: #{_lambda_.4} parent=0 // pred_check
    _
  $region15: #{_lambda_.4} parent=0 // pred_check_branch
    %22 = sbr.rel (0) target = $region17
  $region16: #{_lambda_.4} parent=0 // pred_region
    _
  $region17: #{_lambda_.4} parent=0 // pred_fallthru
    _
  // Predicated region
  $region18: #{_lambda_.4} parent=0 // pred_check
    _
  $region19: #{_lambda_.4} parent=0 // pred_check_branch
    %24 = sbr.rel (0) target = $region21
  $region20: #{_lambda_.4} parent=0 // pred_region
    _
  $region21: #{_lambda_.4} parent=0 // pred_fallthru
    _
  // Predicated region
  $region22: #{_lambda_.4} parent=0 // pred_check
    _
  $region23: #{_lambda_.4} parent=0 // pred_check_branch
    %26 = sbr.rel (0) target = $region25
  $region24: #{_lambda_.4} parent=0 // pred_region
    _
  $region25: #{_lambda_.4} parent=0 // pred_fallthru
    _
  // Predicated region
  $region26: #{_lambda_.4} parent=0 // pred_check
    _
  $region27: #{_lambda_.4} parent=0 // pred_check_branch
    %28 = sbr.rel (0) target = $region29
  $region28: #{_lambda_.4} parent=0 // pred_region
    _
  $region29: #{_lambda_.4} parent=0 // pred_fallthru
    _
  // Predicated region
  $region30: #{_lambda_.4} parent=0 // pred_check
    _
  $region31: #{_lambda_.4} parent=0 // pred_check_branch
    %30 = sbr.rel (0) target = $region33
  $region32: #{_lambda_.4} parent=0 // pred_region
    _
  $region33: #{_lambda_.4} parent=0 // pred_fallthru
    _
  // Predicated region
  $region34: #{_lambda_.4} parent=0 // pred_check
    _
  $region35: #{_lambda_.4} parent=0 // pred_check_branch
    %32 = sbr.rel (0) target = $region37
  $region36: #{_lambda_.4} parent=0 // pred_region
    _
  $region37: #{_lambda_.4} parent=0 // pred_fallthru
    _
  // Predicated region
  $region38: #{_lambda_.4} parent=0 // pred_check
    _
  $region39: #{_lambda_.4} parent=0 // pred_check_branch
    %34 = sbr.rel (0) target = $region41
  $region40: #{_lambda_.4} parent=0 // pred_region
    _
  $region41: #{_lambda_.4} parent=0 // pred_fallthru
    _
  %v36 = vld [vmem:[%s0] sm:$0xff]
  %v37 = vmul.f32 %v36, %v36
  %38 = vadd.xlane.f32.xlu0 %v37
  %v39 = vpop.xlane.xlu0 %38
  %v40 = vmul.f32 %v39, 0.015625
  %v41 = vadd.f32 %v40, 1e-08
  %v42 = vrsqrt.pop %v41
  %v43 = vmul.f32 %v36, %v42
  %v44 = vld [vmem:[%s1] sm:$0xff]
  %v45 = vpack.c.bf16 %v44, %v44
  %v46 = vld [vmem:[%s2] sm:$0xf]
  %v47 = vld [vmem:[%s2 + $0x4] sm:$0xf]
  %v48 = vld [vmem:[%s2 + $0x8] sm:$0xf]
  %v49 = vld [vmem:[%s2 + $0xc] sm:$0xf]
  %v50 = vld [vmem:[%s2 + $0x10] sm:$0xf]
  %v51 = vld [vmem:[%s2 + $0x14] sm:$0xf]
  %v52 = vld [vmem:[%s2 + $0x18] sm:$0xf]
  %v53 = vld [vmem:[%s2 + $0x1c] sm:$0xf]
  %v54 = vld [vmem:[%s2 + $0x20] sm:$0xf]
  %v55 = vld [vmem:[%s2 + $0x24] sm:$0xf]
  %v56 = vld [vmem:[%s2 + $0x28] sm:$0xf]
  %v57 = vld [vmem:[%s2 + $0x2c] sm:$0xf]
  %v58 = vld [vmem:[%s2 + $0x30] sm:$0xf]
  %v59 = vld [vmem:[%s2 + $0x34] sm:$0xf]
  %v60 = vld [vmem:[%s2 + $0x38] sm:$0xf]
  %v61 = vld [vmem:[%s2 + $0x3c] sm:$0xf]
  %v62 = vld [vmem:[%s3] sm:$0x1]
  %v64 = vlaneseq
  %v65 = vshrl.u32 %v64, 7
  %v66 = vsub.s32 0, %v65
  %v67 = vrot.slane %v62, %v66
  %v85 = vunpack.c.l.b16 %v46
  %v86 = vunpack.c.l.b16 %v47
  %v87 = vunpack.c.l.b16 %v48
  %v88 = vunpack.c.l.b16 %v49
  %v89 = vunpack.c.l.b16 %v50
  %v90 = vunpack.c.l.b16 %v51
  %v91 = vunpack.c.l.b16 %v52
  %v92 = vunpack.c.l.b16 %v53
  %v93 = vunpack.c.l.b16 %v54
  %v94 = vunpack.c.l.b16 %v55
  %v95 = vunpack.c.l.b16 %v56
  %v96 = vunpack.c.l.b16 %v57
  %v97 = vunpack.c.l.b16 %v58
  %v98 = vunpack.c.l.b16 %v59
  %v99 = vunpack.c.l.b16 %v60
  %v100 = vunpack.c.l.b16 %v61
  %v101 = vpack.c.b16 %v86, %v85
  %v102 = vpack.c.b16 %v88, %v87
  %v103 = vpack.c.b16 %v90, %v89
  %v104 = vpack.c.b16 %v92, %v91
  %v105 = vpack.c.b16 %v94, %v93
  %v106 = vpack.c.b16 %v96, %v95
  %v107 = vpack.c.b16 %v98, %v97
  %v108 = vpack.c.b16 %v100, %v99
  %117 = vmatprep.subr.bf16.mxu0 0
  %118 = vmatpush1.bf16.msra.mxu0 %v101
  %119 = vmatprep.subr.bf16.mxu0 0
  %120 = vmatpush1.bf16.msra.mxu0 %v102
  %121 = vmatprep.subr.bf16.mxu0 0
  %122 = vmatpush1.bf16.msra.mxu0 %v103
  %123 = vmatprep.subr.bf16.mxu0 0
  %124 = vmatpush1.bf16.msra.mxu0 %v104
  %125 = vmatprep.subr.bf16.mxu0 0
  %126 = vmatpush1.bf16.msra.mxu0 %v105
  %127 = vmatprep.subr.bf16.mxu0 0
  %128 = vmatpush1.bf16.msra.mxu0 %v106
  %129 = vmatprep.subr.bf16.mxu0 0
  %130 = vmatpush1.bf16.msra.mxu0 %v107
  %131 = vmatprep.subr.bf16.mxu0 0
  %132 = vmatpush1.bf16.msra.mxu0 %v108
  %133 = vmatprep.subr.bf16.mxu0 0
  %134 = vmatpush1.bf16.msra.mxu0 0
  %135 = vmatprep.subr.bf16.mxu0 0
  %136 = vmatpush1.bf16.msra.mxu0 0
  %137 = vmatprep.subr.bf16.mxu0 0
  %138 = vmatpush1.bf16.msra.mxu0 0
  %139 = vmatprep.subr.bf16.mxu0 0
  %140 = vmatpush1.bf16.msra.mxu0 0
  %141 = vmatprep.subr.bf16.mxu0 0
  %142 = vmatpush1.bf16.msra.mxu0 0
  %143 = vmatprep.subr.bf16.mxu0 0
  %144 = vmatpush1.bf16.msra.mxu0 0
  %145 = vmatprep.subr.bf16.mxu0 0
  %146 = vmatpush1.bf16.msra.mxu0 0
  %147 = vmatprep.subr.bf16.mxu0 0
  %148 = vmatpush1.bf16.msra.mxu0 0
  %149 = vmatprep.mubr.bf16.mxu0 0
  %150 = vmatmul.mubr.bf16.gmra.mrb[0].mxu0 %v45
  %v151 = vpop.f32.mrb[0].mxu0
  %v152 = vadd.f32 %v67, %v151
  %v153 = vpop.f32.mrb[0].mxu0
  %v154 = vpop.f32.mrb[0].mxu0
  %v155 = vpop.f32.mrb[0].mxu0
  %156 = vdwg.mxu0
  %v157 = vmul.f32 %v152, %v152
  %158 = vadd.xlane.f32.xlu0 %v157
  %v159 = vpop.xlane.xlu0 %158
  %v160 = vmul.f32 %v159, 0.015625
  %v161 = vadd.f32 %v160, 1e-08
  %v162 = vrsqrt.pop %v161
  %v163 = vmul.f32 %v152, %v162
  %v164 = vpack.c.bf16 %v43, %v43
  %v165 = vld [vmem:[%s4] sm:$0xf]
  %v166 = vld [vmem:[%s4 + $0x4] sm:$0xf]
  %v167 = vld [vmem:[%s4 + $0x8] sm:$0xf]
  %v168 = vld [vmem:[%s4 + $0xc] sm:$0xf]
  %v169 = vld [vmem:[%s4 + $0x10] sm:$0xf]
  %v170 = vld [vmem:[%s4 + $0x14] sm:$0xf]
  %v171 = vld [vmem:[%s4 + $0x18] sm:$0xf]
  %v172 = vld [vmem:[%s4 + $0x1c] sm:$0xf]
  %v173 = vld [vmem:[%s4 + $0x20] sm:$0xf]
  %v174 = vld [vmem:[%s4 + $0x24] sm:$0xf]
  %v175 = vld [vmem:[%s4 + $0x28] sm:$0xf]
  %v176 = vld [vmem:[%s4 + $0x2c] sm:$0xf]
  %v177 = vld [vmem:[%s4 + $0x30] sm:$0xf]
  %v178 = vld [vmem:[%s4 + $0x34] sm:$0xf]
  %v179 = vld [vmem:[%s4 + $0x38] sm:$0xf]
  %v180 = vld [vmem:[%s4 + $0x3c] sm:$0xf]
  %v181 = vpack.c.bf16 %v163, %v163
  %v182 = vld [vmem:[%s5] sm:$0xf]
  %v183 = vld [vmem:[%s5 + $0x4] sm:$0xf]
  %v184 = vld [vmem:[%s5 + $0x8] sm:$0xf]
  %v185 = vld [vmem:[%s5 + $0xc] sm:$0xf]
  %v186 = vld [vmem:[%s5 + $0x10] sm:$0xf]
  %v187 = vld [vmem:[%s5 + $0x14] sm:$0xf]
  %v188 = vld [vmem:[%s5 + $0x18] sm:$0xf]
  %v189 = vld [vmem:[%s5 + $0x1c] sm:$0xf]
  %v190 = vld [vmem:[%s5 + $0x20] sm:$0xf]
  %v191 = vld [vmem:[%s5 + $0x24] sm:$0xf]
  %v192 = vld [vmem:[%s5 + $0x28] sm:$0xf]
  %v193 = vld [vmem:[%s5 + $0x2c] sm:$0xf]
  %v194 = vld [vmem:[%s5 + $0x30] sm:$0xf]
  %v195 = vld [vmem:[%s5 + $0x34] sm:$0xf]
  %v196 = vld [vmem:[%s5 + $0x38] sm:$0xf]
  %v197 = vld [vmem:[%s5 + $0x3c] sm:$0xf]
  %v214 = vunpack.c.l.b16 %v182
  %v215 = vunpack.c.l.b16 %v183
  %v216 = vunpack.c.l.b16 %v184
  %v217 = vunpack.c.l.b16 %v185
  %v218 = vunpack.c.l.b16 %v186
  %v219 = vunpack.c.l.b16 %v187
  %v220 = vunpack.c.l.b16 %v188
  %v221 = vunpack.c.l.b16 %v189
  %v222 = vunpack.c.l.b16 %v190
  %v223 = vunpack.c.l.b16 %v191
  %v224 = vunpack.c.l.b16 %v192
  %v225 = vunpack.c.l.b16 %v193
  %v226 = vunpack.c.l.b16 %v194
  %v227 = vunpack.c.l.b16 %v195
  %v228 = vunpack.c.l.b16 %v196
  %v229 = vunpack.c.l.b16 %v197
  %v230 = vpack.c.b16 %v215, %v214
  %v231 = vpack.c.b16 %v217, %v216
  %v232 = vpack.c.b16 %v219, %v218
  %v233 = vpack.c.b16 %v221, %v220
  %v234 = vpack.c.b16 %v223, %v222
  %v235 = vpack.c.b16 %v225, %v224
  %v236 = vpack.c.b16 %v227, %v226
  %v237 = vpack.c.b16 %v229, %v228
  %246 = vmatprep.subr.bf16.mxu0 0
  %247 = vmatpush1.bf16.msra.mxu0 %v230
  %248 = vmatprep.subr.bf16.mxu0 0
  %249 = vmatpush1.bf16.msra.mxu0 %v231
  %250 = vmatprep.subr.bf16.mxu0 0
  %251 = vmatpush1.bf16.msra.mxu0 %v232
  %252 = vmatprep.subr.bf16.mxu0 0
  %253 = vmatpush1.bf16.msra.mxu0 %v233
  %254 = vmatprep.subr.bf16.mxu0 0
  %255 = vmatpush1.bf16.msra.mxu0 %v234
  %256 = vmatprep.subr.bf16.mxu0 0
  %257 = vmatpush1.bf16.msra.mxu0 %v235
  %258 = vmatprep.subr.bf16.mxu0 0
  %259 = vmatpush1.bf16.msra.mxu0 %v236
  %260 = vmatprep.subr.bf16.mxu0 0
  %261 = vmatpush1.bf16.msra.mxu0 %v237
  %262 = vmatprep.subr.bf16.mxu0 0
  %263 = vmatpush1.bf16.msra.mxu0 0
  %264 = vmatprep.subr.bf16.mxu0 0
  %265 = vmatpush1.bf16.msra.mxu0 0
  %266 = vmatprep.subr.bf16.mxu0 0
  %267 = vmatpush1.bf16.msra.mxu0 0
  %268 = vmatprep.subr.bf16.mxu0 0
  %269 = vmatpush1.bf16.msra.mxu0 0
  %270 = vmatprep.subr.bf16.mxu0 0
  %271 = vmatpush1.bf16.msra.mxu0 0
  %272 = vmatprep.subr.bf16.mxu0 0
  %273 = vmatpush1.bf16.msra.mxu0 0
  %274 = vmatprep.subr.bf16.mxu0 0
  %275 = vmatpush1.bf16.msra.mxu0 0
  %276 = vmatprep.subr.bf16.mxu0 0
  %277 = vmatpush1.bf16.msra.mxu0 0
  %278 = vmatprep.mubr.bf16.mxu0 0
  %279 = vmatmul.mubr.bf16.gmra.mrb[0].mxu0 %v181
  %v280 = vpop.f32.mrb[0].mxu0
  %v281 = vadd.f32 0.0, %v280
  %v282 = vpop.f32.mrb[0].mxu0
  %v283 = vpop.f32.mrb[0].mxu0
  %v284 = vpop.f32.mrb[0].mxu0
  %285 = vdwg.mxu0
  %v302 = vunpack.c.l.b16 %v165
  %v303 = vunpack.c.l.b16 %v166
  %v304 = vunpack.c.l.b16 %v167
  %v305 = vunpack.c.l.b16 %v168
  %v306 = vunpack.c.l.b16 %v169
  %v307 = vunpack.c.l.b16 %v170
  %v308 = vunpack.c.l.b16 %v171
  %v309 = vunpack.c.l.b16 %v172
  %v310 = vunpack.c.l.b16 %v173
  %v311 = vunpack.c.l.b16 %v174
  %v312 = vunpack.c.l.b16 %v175
  %v313 = vunpack.c.l.b16 %v176
  %v314 = vunpack.c.l.b16 %v177
  %v315 = vunpack.c.l.b16 %v178
  %v316 = vunpack.c.l.b16 %v179
  %v317 = vunpack.c.l.b16 %v180
  %v318 = vpack.c.b16 %v303, %v302
  %v319 = vpack.c.b16 %v305, %v304
  %v320 = vpack.c.b16 %v307, %v306
  %v321 = vpack.c.b16 %v309, %v308
  %v322 = vpack.c.b16 %v311, %v310
  %v323 = vpack.c.b16 %v313, %v312
  %v324 = vpack.c.b16 %v315, %v314
  %v325 = vpack.c.b16 %v317, %v316
  %334 = vmatprep.subr.bf16.mxu0 0
  %335 = vmatpush1.bf16.msra.mxu0 %v318
  %336 = vmatprep.subr.bf16.mxu0 0
  %337 = vmatpush1.bf16.msra.mxu0 %v319
  %338 = vmatprep.subr.bf16.mxu0 0
  %339 = vmatpush1.bf16.msra.mxu0 %v320
  %340 = vmatprep.subr.bf16.mxu0 0
  %341 = vmatpush1.bf16.msra.mxu0 %v321
  %342 = vmatprep.subr.bf16.mxu0 0
  %343 = vmatpush1.bf16.msra.mxu0 %v322
  %344 = vmatprep.subr.bf16.mxu0 0
  %345 = vmatpush1.bf16.msra.mxu0 %v323
  %346 = vmatprep.subr.bf16.mxu0 0
  %347 = vmatpush1.bf16.msra.mxu0 %v324
  %348 = vmatprep.subr.bf16.mxu0 0
  %349 = vmatpush1.bf16.msra.mxu0 %v325
  %350 = vmatprep.subr.bf16.mxu0 0
  %351 = vmatpush1.bf16.msra.mxu0 0
  %352 = vmatprep.subr.bf16.mxu0 0
  %353 = vmatpush1.bf16.msra.mxu0 0
  %354 = vmatprep.subr.bf16.mxu0 0
  %355 = vmatpush1.bf16.msra.mxu0 0
  %356 = vmatprep.subr.bf16.mxu0 0
  %357 = vmatpush1.bf16.msra.mxu0 0
  %358 = vmatprep.subr.bf16.mxu0 0
  %359 = vmatpush1.bf16.msra.mxu0 0
  %360 = vmatprep.subr.bf16.mxu0 0
  %361 = vmatpush1.bf16.msra.mxu0 0
  %362 = vmatprep.subr.bf16.mxu0 0
  %363 = vmatpush1.bf16.msra.mxu0 0
  %364 = vmatprep.subr.bf16.mxu0 0
  %365 = vmatpush1.bf16.msra.mxu0 0
  %366 = vmatprep.mubr.bf16.mxu0 0
  %367 = vmatmul.mubr.bf16.gmra.mrb[0].mxu0 %v164
  %v368 = vpop.f32.mrb[0].mxu0
  %v369 = vadd.f32 %v281, %v368
  %v370 = vpop.f32.mrb[0].mxu0
  %v371 = vpop.f32.mrb[0].mxu0
  %v372 = vpop.f32.mrb[0].mxu0
  %373 = vdwg.mxu0
  %v374 = vld [vmem:[%s7] sm:$0x1]
  %v376 = vlaneseq
  %v377 = vshrl.u32 %v376, 7
  %v378 = vsub.s32 0, %v377
  %v379 = vrot.slane %v374, %v378
  %v381 = vadd.f32 %v369, %v379
  %vm382 = vcmp.ge.f32.partialorder %v381, 0.0
  %v383 = vmul.f32 %v381, 0.2
  %v384 = vsel %vm382, %v381, %v383
  %v385 = vmul.f32 %v384, 1.4142135
  %v386 = vpack.c.bf16 %v385, %v385
  %v387 = vld [vmem:[%s6] sm:$0xf]
  %v388 = vld [vmem:[%s6 + $0x4] sm:$0xf]
  %v389 = vld [vmem:[%s6 + $0x8] sm:$0xf]
  %v390 = vld [vmem:[%s6 + $0xc] sm:$0xf]
  %v391 = vld [vmem:[%s6 + $0x10] sm:$0xf]
  %v392 = vld [vmem:[%s6 + $0x14] sm:$0xf]
  %v393 = vld [vmem:[%s6 + $0x18] sm:$0xf]
  %v394 = vld [vmem:[%s6 + $0x1c] sm:$0xf]
  %v395 = vld [vmem:[%s6 + $0x20] sm:$0xf]
  %v396 = vld [vmem:[%s6 + $0x24] sm:$0xf]
  %v397 = vld [vmem:[%s6 + $0x28] sm:$0xf]
  %v398 = vld [vmem:[%s6 + $0x2c] sm:$0xf]
  %v399 = vld [vmem:[%s6 + $0x30] sm:$0xf]
  %v400 = vld [vmem:[%s6 + $0x34] sm:$0xf]
  %v401 = vld [vmem:[%s6 + $0x38] sm:$0xf]
  %v402 = vld [vmem:[%s6 + $0x3c] sm:$0xf]
  %s403 = scalar_lea.vmem %s7, 1
  %v404 = vld [vmem:[%s403] sm:$0x1]
  %v406 = vlaneseq
  %v407 = vshrl.u32 %v406, 7
  %v408 = vsub.s32 0, %v407
  %v409 = vrot.slane %v404, %v408
  %v427 = vunpack.c.l.b16 %v387
  %v428 = vunpack.c.l.b16 %v388
  %v429 = vunpack.c.l.b16 %v389
  %v430 = vunpack.c.l.b16 %v390
  %v431 = vunpack.c.l.b16 %v391
  %v432 = vunpack.c.l.b16 %v392
  %v433 = vunpack.c.l.b16 %v393
  %v434 = vunpack.c.l.b16 %v394
  %v435 = vunpack.c.l.b16 %v395
  %v436 = vunpack.c.l.b16 %v396
  %v437 = vunpack.c.l.b16 %v397
  %v438 = vunpack.c.l.b16 %v398
  %v439 = vunpack.c.l.b16 %v399
  %v440 = vunpack.c.l.b16 %v400
  %v441 = vunpack.c.l.b16 %v401
  %v442 = vunpack.c.l.b16 %v402
  %v443 = vpack.c.b16 %v428, %v427
  %v444 = vpack.c.b16 %v430, %v429
  %v445 = vpack.c.b16 %v432, %v431
  %v446 = vpack.c.b16 %v434, %v433
  %v447 = vpack.c.b16 %v436, %v435
  %v448 = vpack.c.b16 %v438, %v437
  %v449 = vpack.c.b16 %v440, %v439
  %v450 = vpack.c.b16 %v442, %v441
  %459 = vmatprep.subr.bf16.mxu0 0
  %460 = vmatpush1.bf16.msra.mxu0 %v443
  %461 = vmatprep.subr.bf16.mxu0 0
  %462 = vmatpush1.bf16.msra.mxu0 %v444
  %463 = vmatprep.subr.bf16.mxu0 0
  %464 = vmatpush1.bf16.msra.mxu0 %v445
  %465 = vmatprep.subr.bf16.mxu0 0
  %466 = vmatpush1.bf16.msra.mxu0 %v446
  %467 = vmatprep.subr.bf16.mxu0 0
  %468 = vmatpush1.bf16.msra.mxu0 %v447
  %469 = vmatprep.subr.bf16.mxu0 0
  %470 = vmatpush1.bf16.msra.mxu0 %v448
  %471 = vmatprep.subr.bf16.mxu0 0
  %472 = vmatpush1.bf16.msra.mxu0 %v449
  %473 = vmatprep.subr.bf16.mxu0 0
  %474 = vmatpush1.bf16.msra.mxu0 %v450
  %475 = vmatprep.subr.bf16.mxu0 0
  %476 = vmatpush1.bf16.msra.mxu0 0
  %477 = vmatprep.subr.bf16.mxu0 0
  %478 = vmatpush1.bf16.msra.mxu0 0
  %479 = vmatprep.subr.bf16.mxu0 0
  %480 = vmatpush1.bf16.msra.mxu0 0
  %481 = vmatprep.subr.bf16.mxu0 0
  %482 = vmatpush1.bf16.msra.mxu0 0
  %483 = vmatprep.subr.bf16.mxu0 0
  %484 = vmatpush1.bf16.msra.mxu0 0
  %485 = vmatprep.subr.bf16.mxu0 0
  %486 = vmatpush1.bf16.msra.mxu0 0
  %487 = vmatprep.subr.bf16.mxu0 0
  %488 = vmatpush1.bf16.msra.mxu0 0
  %489 = vmatprep.subr.bf16.mxu0 0
  %490 = vmatpush1.bf16.msra.mxu0 0
  %491 = vmatprep.mubr.bf16.mxu0 0
  %492 = vmatmul.mubr.bf16.gmra.mrb[0].mxu0 %v386
  %v493 = vpop.f32.mrb[0].mxu0
  %v494 = vadd.f32 %v409, %v493
  %v495 = vpop.f32.mrb[0].mxu0
  %v496 = vpop.f32.mrb[0].mxu0
  %v497 = vpop.f32.mrb[0].mxu0
  %498 = vdwg.mxu0
  %vm499 = vcmp.ge.f32.partialorder %v494, 0.0
  %v500 = vmul.f32 %v494, 0.2
  %v501 = vsel %vm499, %v494, %v500
  %v502 = vmul.f32 %v501, 1.4142135
  %v503 = vpack.c.bf16 %v502, %v502
  %s504 = scalar_lea.vmem %s6, 64
  %v505 = vld [vmem:[%s504] sm:$0xf]
  %v506 = vld [vmem:[%s504 + $0x4] sm:$0xf]
  %v507 = vld [vmem:[%s504 + $0x8] sm:$0xf]
  %v508 = vld [vmem:[%s504 + $0xc] sm:$0xf]
  %v509 = vld [vmem:[%s504 + $0x10] sm:$0xf]
  %v510 = vld [vmem:[%s504 + $0x14] sm:$0xf]
  %v511 = vld [vmem:[%s504 + $0x18] sm:$0xf]
  %v512 = vld [vmem:[%s504 + $0x1c] sm:$0xf]
  %v513 = vld [vmem:[%s504 + $0x20] sm:$0xf]
  %v514 = vld [vmem:[%s504 + $0x24] sm:$0xf]
  %v515 = vld [vmem:[%s504 + $0x28] sm:$0xf]
  %v516 = vld [vmem:[%s504 + $0x2c] sm:$0xf]
  %v517 = vld [vmem:[%s504 + $0x30] sm:$0xf]
  %v518 = vld [vmem:[%s504 + $0x34] sm:$0xf]
  %v519 = vld [vmem:[%s504 + $0x38] sm:$0xf]
  %v520 = vld [vmem:[%s504 + $0x3c] sm:$0xf]
  %s521 = scalar_lea.vmem %s7, 2
  %v522 = vld [vmem:[%s521] sm:$0x1]
  %v524 = vlaneseq
  %v525 = vshrl.u32 %v524, 7
  %v526 = vsub.s32 0, %v525
  %v527 = vrot.slane %v522, %v526
  %v545 = vunpack.c.l.b16 %v505
  %v546 = vunpack.c.l.b16 %v506
  %v547 = vunpack.c.l.b16 %v507
  %v548 = vunpack.c.l.b16 %v508
  %v549 = vunpack.c.l.b16 %v509
  %v550 = vunpack.c.l.b16 %v510
  %v551 = vunpack.c.l.b16 %v511
  %v552 = vunpack.c.l.b16 %v512
  %v553 = vunpack.c.l.b16 %v513
  %v554 = vunpack.c.l.b16 %v514
  %v555 = vunpack.c.l.b16 %v515
  %v556 = vunpack.c.l.b16 %v516
  %v557 = vunpack.c.l.b16 %v517
  %v558 = vunpack.c.l.b16 %v518
  %v559 = vunpack.c.l.b16 %v519
  %v560 = vunpack.c.l.b16 %v520
  %v561 = vpack.c.b16 %v546, %v545
  %v562 = vpack.c.b16 %v548, %v547
  %v563 = vpack.c.b16 %v550, %v549
  %v564 = vpack.c.b16 %v552, %v551
  %v565 = vpack.c.b16 %v554, %v553
  %v566 = vpack.c.b16 %v556, %v555
  %v567 = vpack.c.b16 %v558, %v557
  %v568 = vpack.c.b16 %v560, %v559
  %577 = vmatprep.subr.bf16.mxu0 0
  %578 = vmatpush1.bf16.msra.mxu0 %v561
  %579 = vmatprep.subr.bf16.mxu0 0
  %580 = vmatpush1.bf16.msra.mxu0 %v562
  %581 = vmatprep.subr.bf16.mxu0 0
  %582 = vmatpush1.bf16.msra.mxu0 %v563
  %583 = vmatprep.subr.bf16.mxu0 0
  %584 = vmatpush1.bf16.msra.mxu0 %v564
  %585 = vmatprep.subr.bf16.mxu0 0
  %586 = vmatpush1.bf16.msra.mxu0 %v565
  %587 = vmatprep.subr.bf16.mxu0 0
  %588 = vmatpush1.bf16.msra.mxu0 %v566
  %589 = vmatprep.subr.bf16.mxu0 0
  %590 = vmatpush1.bf16.msra.mxu0 %v567
  %591 = vmatprep.subr.bf16.mxu0 0
  %592 = vmatpush1.bf16.msra.mxu0 %v568
  %593 = vmatprep.subr.bf16.mxu0 0
  %594 = vmatpush1.bf16.msra.mxu0 0
  %595 = vmatprep.subr.bf16.mxu0 0
  %596 = vmatpush1.bf16.msra.mxu0 0
  %597 = vmatprep.subr.bf16.mxu0 0
  %598 = vmatpush1.bf16.msra.mxu0 0
  %599 = vmatprep.subr.bf16.mxu0 0
  %600 = vmatpush1.bf16.msra.mxu0 0
  %601 = vmatprep.subr.bf16.mxu0 0
  %602 = vmatpush1.bf16.msra.mxu0 0
  %603 = vmatprep.subr.bf16.mxu0 0
  %604 = vmatpush1.bf16.msra.mxu0 0
  %605 = vmatprep.subr.bf16.mxu0 0
  %606 = vmatpush1.bf16.msra.mxu0 0
  %607 = vmatprep.subr.bf16.mxu0 0
  %608 = vmatpush1.bf16.msra.mxu0 0
  %609 = vmatprep.mubr.bf16.mxu0 0
  %610 = vmatmul.mubr.bf16.gmra.mrb[0].mxu0 %v503
  %v611 = vpop.f32.mrb[0].mxu0
  %v612 = vadd.f32 %v527, %v611
  %v613 = vpop.f32.mrb[0].mxu0
  %v614 = vpop.f32.mrb[0].mxu0
  %v615 = vpop.f32.mrb[0].mxu0
  %616 = vdwg.mxu0
  %vm617 = vcmp.ge.f32.partialorder %v612, 0.0
  %v618 = vmul.f32 %v612, 0.2
  %v619 = vsel %vm617, %v612, %v618
  %v620 = vmul.f32 %v619, 1.4142135
  %v621 = vpack.c.bf16 %v620, %v620
  %s622 = scalar_lea.vmem %s6, 128
  %v623 = vld [vmem:[%s622] sm:$0xf]
  %v624 = vld [vmem:[%s622 + $0x4] sm:$0xf]
  %v625 = vld [vmem:[%s622 + $0x8] sm:$0xf]
  %v626 = vld [vmem:[%s622 + $0xc] sm:$0xf]
  %v627 = vld [vmem:[%s622 + $0x10] sm:$0xf]
  %v628 = vld [vmem:[%s622 + $0x14] sm:$0xf]
  %v629 = vld [vmem:[%s622 + $0x18] sm:$0xf]
  %v630 = vld [vmem:[%s622 + $0x1c] sm:$0xf]
  %v631 = vld [vmem:[%s622 + $0x20] sm:$0xf]
  %v632 = vld [vmem:[%s622 + $0x24] sm:$0xf]
  %v633 = vld [vmem:[%s622 + $0x28] sm:$0xf]
  %v634 = vld [vmem:[%s622 + $0x2c] sm:$0xf]
  %v635 = vld [vmem:[%s622 + $0x30] sm:$0xf]
  %v636 = vld [vmem:[%s622 + $0x34] sm:$0xf]
  %v637 = vld [vmem:[%s622 + $0x38] sm:$0xf]
  %v638 = vld [vmem:[%s622 + $0x3c] sm:$0xf]
  %s639 = scalar_lea.vmem %s7, 3
  %v640 = vld [vmem:[%s639] sm:$0x1]
  %v642 = vlaneseq
  %v643 = vshrl.u32 %v642, 7
  %v644 = vsub.s32 0, %v643
  %v645 = vrot.slane %v640, %v644
  %v663 = vunpack.c.l.b16 %v623
  %v664 = vunpack.c.l.b16 %v624
  %v665 = vunpack.c.l.b16 %v625
  %v666 = vunpack.c.l.b16 %v626
  %v667 = vunpack.c.l.b16 %v627
  %v668 = vunpack.c.l.b16 %v628
  %v669 = vunpack.c.l.b16 %v629
  %v670 = vunpack.c.l.b16 %v630
  %v671 = vunpack.c.l.b16 %v631
  %v672 = vunpack.c.l.b16 %v632
  %v673 = vunpack.c.l.b16 %v633
  %v674 = vunpack.c.l.b16 %v634
  %v675 = vunpack.c.l.b16 %v635
  %v676 = vunpack.c.l.b16 %v636
  %v677 = vunpack.c.l.b16 %v637
  %v678 = vunpack.c.l.b16 %v638
  %v679 = vpack.c.b16 %v664, %v663
  %v680 = vpack.c.b16 %v666, %v665
  %v681 = vpack.c.b16 %v668, %v667
  %v682 = vpack.c.b16 %v670, %v669
  %v683 = vpack.c.b16 %v672, %v671
  %v684 = vpack.c.b16 %v674, %v673
  %v685 = vpack.c.b16 %v676, %v675
  %v686 = vpack.c.b16 %v678, %v677
  %695 = vmatprep.subr.bf16.mxu0 0
  %696 = vmatpush1.bf16.msra.mxu0 %v679
  %697 = vmatprep.subr.bf16.mxu0 0
  %698 = vmatpush1.bf16.msra.mxu0 %v680
  %699 = vmatprep.subr.bf16.mxu0 0
  %700 = vmatpush1.bf16.msra.mxu0 %v681
  %701 = vmatprep.subr.bf16.mxu0 0
  %702 = vmatpush1.bf16.msra.mxu0 %v682
  %703 = vmatprep.subr.bf16.mxu0 0
  %704 = vmatpush1.bf16.msra.mxu0 %v683
  %705 = vmatprep.subr.bf16.mxu0 0
  %706 = vmatpush1.bf16.msra.mxu0 %v684
  %707 = vmatprep.subr.bf16.mxu0 0
  %708 = vmatpush1.bf16.msra.mxu0 %v685
  %709 = vmatprep.subr.bf16.mxu0 0
  %710 = vmatpush1.bf16.msra.mxu0 %v686
  %711 = vmatprep.subr.bf16.mxu0 0
  %712 = vmatpush1.bf16.msra.mxu0 0
  %713 = vmatprep.subr.bf16.mxu0 0
  %714 = vmatpush1.bf16.msra.mxu0 0
  %715 = vmatprep.subr.bf16.mxu0 0
  %716 = vmatpush1.bf16.msra.mxu0 0
  %717 = vmatprep.subr.bf16.mxu0 0
  %718 = vmatpush1.bf16.msra.mxu0 0
  %719 = vmatprep.subr.bf16.mxu0 0
  %720 = vmatpush1.bf16.msra.mxu0 0
  %721 = vmatprep.subr.bf16.mxu0 0
  %722 = vmatpush1.bf16.msra.mxu0 0
  %723 = vmatprep.subr.bf16.mxu0 0
  %724 = vmatpush1.bf16.msra.mxu0 0
  %725 = vmatprep.subr.bf16.mxu0 0
  %726 = vmatpush1.bf16.msra.mxu0 0
  %727 = vmatprep.mubr.bf16.mxu0 0
  %728 = vmatmul.mubr.bf16.gmra.mrb[0].mxu0 %v621
  %v729 = vpop.f32.mrb[0].mxu0
  %v730 = vadd.f32 %v645, %v729
  %v731 = vpop.f32.mrb[0].mxu0
  %v732 = vpop.f32.mrb[0].mxu0
  %v733 = vpop.f32.mrb[0].mxu0
  %734 = vdwg.mxu0
  %vm735 = vcmp.ge.f32.partialorder %v730, 0.0
  %v736 = vmul.f32 %v730, 0.2
  %v737 = vsel %vm735, %v730, %v736
  %v738 = vmul.f32 %v737, 1.4142135
  %v739 = vpack.c.bf16 %v738, %v738
  %s740 = scalar_lea.vmem %s6, 192
  %v741 = vld [vmem:[%s740] sm:$0xf]
  %v742 = vld [vmem:[%s740 + $0x4] sm:$0xf]
  %v743 = vld [vmem:[%s740 + $0x8] sm:$0xf]
  %v744 = vld [vmem:[%s740 + $0xc] sm:$0xf]
  %v745 = vld [vmem:[%s740 + $0x10] sm:$0xf]
  %v746 = vld [vmem:[%s740 + $0x14] sm:$0xf]
  %v747 = vld [vmem:[%s740 + $0x18] sm:$0xf]
  %v748 = vld [vmem:[%s740 + $0x1c] sm:$0xf]
  %v749 = vld [vmem:[%s740 + $0x20] sm:$0xf]
  %v750 = vld [vmem:[%s740 + $0x24] sm:$0xf]
  %v751 = vld [vmem:[%s740 + $0x28] sm:$0xf]
  %v752 = vld [vmem:[%s740 + $0x2c] sm:$0xf]
  %v753 = vld [vmem:[%s740 + $0x30] sm:$0xf]
  %v754 = vld [vmem:[%s740 + $0x34] sm:$0xf]
  %v755 = vld [vmem:[%s740 + $0x38] sm:$0xf]
  %v756 = vld [vmem:[%s740 + $0x3c] sm:$0xf]
  %s757 = scalar_lea.vmem %s7, 4
  %v758 = vld [vmem:[%s757] sm:$0x1]
  %v760 = vlaneseq
  %v761 = vshrl.u32 %v760, 7
  %v762 = vsub.s32 0, %v761
  %v763 = vrot.slane %v758, %v762
  %v781 = vunpack.c.l.b16 %v741
  %v782 = vunpack.c.l.b16 %v742
  %v783 = vunpack.c.l.b16 %v743
  %v784 = vunpack.c.l.b16 %v744
  %v785 = vunpack.c.l.b16 %v745
  %v786 = vunpack.c.l.b16 %v746
  %v787 = vunpack.c.l.b16 %v747
  %v788 = vunpack.c.l.b16 %v748
  %v789 = vunpack.c.l.b16 %v749
  %v790 = vunpack.c.l.b16 %v750
  %v791 = vunpack.c.l.b16 %v751
  %v792 = vunpack.c.l.b16 %v752
  %v793 = vunpack.c.l.b16 %v753
  %v794 = vunpack.c.l.b16 %v754
  %v795 = vunpack.c.l.b16 %v755
  %v796 = vunpack.c.l.b16 %v756
  %v797 = vpack.c.b16 %v782, %v781
  %v798 = vpack.c.b16 %v784, %v783
  %v799 = vpack.c.b16 %v786, %v785
  %v800 = vpack.c.b16 %v788, %v787
  %v801 = vpack.c.b16 %v790, %v789
  %v802 = vpack.c.b16 %v792, %v791
  %v803 = vpack.c.b16 %v794, %v793
  %v804 = vpack.c.b16 %v796, %v795
  %813 = vmatprep.subr.bf16.mxu0 0
  %814 = vmatpush1.bf16.msra.mxu0 %v797
  %815 = vmatprep.subr.bf16.mxu0 0
  %816 = vmatpush1.bf16.msra.mxu0 %v798
  %817 = vmatprep.subr.bf16.mxu0 0
  %818 = vmatpush1.bf16.msra.mxu0 %v799
  %819 = vmatprep.subr.bf16.mxu0 0
  %820 = vmatpush1.bf16.msra.mxu0 %v800
  %821 = vmatprep.subr.bf16.mxu0 0
  %822 = vmatpush1.bf16.msra.mxu0 %v801
  %823 = vmatprep.subr.bf16.mxu0 0
  %824 = vmatpush1.bf16.msra.mxu0 %v802
  %825 = vmatprep.subr.bf16.mxu0 0
  %826 = vmatpush1.bf16.msra.mxu0 %v803
  %827 = vmatprep.subr.bf16.mxu0 0
  %828 = vmatpush1.bf16.msra.mxu0 %v804
  %829 = vmatprep.subr.bf16.mxu0 0
  %830 = vmatpush1.bf16.msra.mxu0 0
  %831 = vmatprep.subr.bf16.mxu0 0
  %832 = vmatpush1.bf16.msra.mxu0 0
  %833 = vmatprep.subr.bf16.mxu0 0
  %834 = vmatpush1.bf16.msra.mxu0 0
  %835 = vmatprep.subr.bf16.mxu0 0
  %836 = vmatpush1.bf16.msra.mxu0 0
  %837 = vmatprep.subr.bf16.mxu0 0
  %838 = vmatpush1.bf16.msra.mxu0 0
  %839 = vmatprep.subr.bf16.mxu0 0
  %840 = vmatpush1.bf16.msra.mxu0 0
  %841 = vmatprep.subr.bf16.mxu0 0
  %842 = vmatpush1.bf16.msra.mxu0 0
  %843 = vmatprep.subr.bf16.mxu0 0
  %844 = vmatpush1.bf16.msra.mxu0 0
  %845 = vmatprep.mubr.bf16.mxu0 0
  %846 = vmatmul.mubr.bf16.gmra.mrb[0].mxu0 %v739
  %v847 = vpop.f32.mrb[0].mxu0
  %v848 = vadd.f32 %v763, %v847
  %v849 = vpop.f32.mrb[0].mxu0
  %v850 = vpop.f32.mrb[0].mxu0
  %v851 = vpop.f32.mrb[0].mxu0
  %852 = vdwg.mxu0
  %vm853 = vcmp.ge.f32.partialorder %v848, 0.0
  %v854 = vmul.f32 %v848, 0.2
  %v855 = vsel %vm853, %v848, %v854
  %v856 = vmul.f32 %v855, 1.4142135
  %v857 = vpack.c.bf16 %v856, %v856
  %s858 = scalar_lea.vmem %s6, 256
  %v859 = vld [vmem:[%s858] sm:$0xf]
  %v860 = vld [vmem:[%s858 + $0x4] sm:$0xf]
  %v861 = vld [vmem:[%s858 + $0x8] sm:$0xf]
  %v862 = vld [vmem:[%s858 + $0xc] sm:$0xf]
  %v863 = vld [vmem:[%s858 + $0x10] sm:$0xf]
  %v864 = vld [vmem:[%s858 + $0x14] sm:$0xf]
  %v865 = vld [vmem:[%s858 + $0x18] sm:$0xf]
  %v866 = vld [vmem:[%s858 + $0x1c] sm:$0xf]
  %v867 = vld [vmem:[%s858 + $0x20] sm:$0xf]
  %v868 = vld [vmem:[%s858 + $0x24] sm:$0xf]
  %v869 = vld [vmem:[%s858 + $0x28] sm:$0xf]
  %v870 = vld [vmem:[%s858 + $0x2c] sm:$0xf]
  %v871 = vld [vmem:[%s858 + $0x30] sm:$0xf]
  %v872 = vld [vmem:[%s858 + $0x34] sm:$0xf]
  %v873 = vld [vmem:[%s858 + $0x38] sm:$0xf]
  %v874 = vld [vmem:[%s858 + $0x3c] sm:$0xf]
  %s875 = scalar_lea.vmem %s7, 5
  %v876 = vld [vmem:[%s875] sm:$0x1]
  %v878 = vlaneseq
  %v879 = vshrl.u32 %v878, 7
  %v880 = vsub.s32 0, %v879
  %v881 = vrot.slane %v876, %v880
  %v899 = vunpack.c.l.b16 %v859
  %v900 = vunpack.c.l.b16 %v860
  %v901 = vunpack.c.l.b16 %v861
  %v902 = vunpack.c.l.b16 %v862
  %v903 = vunpack.c.l.b16 %v863
  %v904 = vunpack.c.l.b16 %v864
  %v905 = vunpack.c.l.b16 %v865
  %v906 = vunpack.c.l.b16 %v866
  %v907 = vunpack.c.l.b16 %v867
  %v908 = vunpack.c.l.b16 %v868
  %v909 = vunpack.c.l.b16 %v869
  %v910 = vunpack.c.l.b16 %v870
  %v911 = vunpack.c.l.b16 %v871
  %v912 = vunpack.c.l.b16 %v872
  %v913 = vunpack.c.l.b16 %v873
  %v914 = vunpack.c.l.b16 %v874
  %v915 = vpack.c.b16 %v900, %v899
  %v916 = vpack.c.b16 %v902, %v901
  %v917 = vpack.c.b16 %v904, %v903
  %v918 = vpack.c.b16 %v906, %v905
  %v919 = vpack.c.b16 %v908, %v907
  %v920 = vpack.c.b16 %v910, %v909
  %v921 = vpack.c.b16 %v912, %v911
  %v922 = vpack.c.b16 %v914, %v913
  %931 = vmatprep.subr.bf16.mxu0 0
  %932 = vmatpush1.bf16.msra.mxu0 %v915
  %933 = vmatprep.subr.bf16.mxu0 0
  %934 = vmatpush1.bf16.msra.mxu0 %v916
  %935 = vmatprep.subr.bf16.mxu0 0
  %936 = vmatpush1.bf16.msra.mxu0 %v917
  %937 = vmatprep.subr.bf16.mxu0 0
  %938 = vmatpush1.bf16.msra.mxu0 %v918
  %939 = vmatprep.subr.bf16.mxu0 0
  %940 = vmatpush1.bf16.msra.mxu0 %v919
  %941 = vmatprep.subr.bf16.mxu0 0
  %942 = vmatpush1.bf16.msra.mxu0 %v920
  %943 = vmatprep.subr.bf16.mxu0 0
  %944 = vmatpush1.bf16.msra.mxu0 %v921
  %945 = vmatprep.subr.bf16.mxu0 0
  %946 = vmatpush1.bf16.msra.mxu0 %v922
  %947 = vmatprep.subr.bf16.mxu0 0
  %948 = vmatpush1.bf16.msra.mxu0 0
  %949 = vmatprep.subr.bf16.mxu0 0
  %950 = vmatpush1.bf16.msra.mxu0 0
  %951 = vmatprep.subr.bf16.mxu0 0
  %952 = vmatpush1.bf16.msra.mxu0 0
  %953 = vmatprep.subr.bf16.mxu0 0
  %954 = vmatpush1.bf16.msra.mxu0 0
  %955 = vmatprep.subr.bf16.mxu0 0
  %956 = vmatpush1.bf16.msra.mxu0 0
  %957 = vmatprep.subr.bf16.mxu0 0
  %958 = vmatpush1.bf16.msra.mxu0 0
  %959 = vmatprep.subr.bf16.mxu0 0
  %960 = vmatpush1.bf16.msra.mxu0 0
  %961 = vmatprep.subr.bf16.mxu0 0
  %962 = vmatpush1.bf16.msra.mxu0 0
  %963 = vmatprep.mubr.bf16.mxu0 0
  %964 = vmatmul.mubr.bf16.gmra.mrb[0].mxu0 %v857
  %v965 = vpop.f32.mrb[0].mxu0
  %v966 = vadd.f32 %v881, %v965
  %v967 = vpop.f32.mrb[0].mxu0
  %v968 = vpop.f32.mrb[0].mxu0
  %v969 = vpop.f32.mrb[0].mxu0
  %970 = vdwg.mxu0
  %vm971 = vcmp.ge.f32.partialorder %v966, 0.0
  %v972 = vmul.f32 %v966, 0.2
  %v973 = vsel %vm971, %v966, %v972
  %v974 = vmul.f32 %v973, 1.4142135
  %v975 = vpack.c.bf16 %v974, %v974
  %s976 = scalar_lea.vmem %s6, 320
  %v977 = vld [vmem:[%s976] sm:$0xf]
  %v978 = vld [vmem:[%s976 + $0x4] sm:$0xf]
  %v979 = vld [vmem:[%s976 + $0x8] sm:$0xf]
  %v980 = vld [vmem:[%s976 + $0xc] sm:$0xf]
  %v981 = vld [vmem:[%s976 + $0x10] sm:$0xf]
  %v982 = vld [vmem:[%s976 + $0x14] sm:$0xf]
  %v983 = vld [vmem:[%s976 + $0x18] sm:$0xf]
  %v984 = vld [vmem:[%s976 + $0x1c] sm:$0xf]
  %v985 = vld [vmem:[%s976 + $0x20] sm:$0xf]
  %v986 = vld [vmem:[%s976 + $0x24] sm:$0xf]
  %v987 = vld [vmem:[%s976 + $0x28] sm:$0xf]
  %v988 = vld [vmem:[%s976 + $0x2c] sm:$0xf]
  %v989 = vld [vmem:[%s976 + $0x30] sm:$0xf]
  %v990 = vld [vmem:[%s976 + $0x34] sm:$0xf]
  %v991 = vld [vmem:[%s976 + $0x38] sm:$0xf]
  %v992 = vld [vmem:[%s976 + $0x3c] sm:$0xf]
  %s993 = scalar_lea.vmem %s7, 6
  %v994 = vld [vmem:[%s993] sm:$0x1]
  %v996 = vlaneseq
  %v997 = vshrl.u32 %v996, 7
  %v998 = vsub.s32 0, %v997
  %v999 = vrot.slane %v994, %v998
  %v1017 = vunpack.c.l.b16 %v977
  %v1018 = vunpack.c.l.b16 %v978
  %v1019 = vunpack.c.l.b16 %v979
  %v1020 = vunpack.c.l.b16 %v980
  %v1021 = vunpack.c.l.b16 %v981
  %v1022 = vunpack.c.l.b16 %v982
  %v1023 = vunpack.c.l.b16 %v983
  %v1024 = vunpack.c.l.b16 %v984
  %v1025 = vunpack.c.l.b16 %v985
  %v1026 = vunpack.c.l.b16 %v986
  %v1027 = vunpack.c.l.b16 %v987
  %v1028 = vunpack.c.l.b16 %v988
  %v1029 = vunpack.c.l.b16 %v989
  %v1030 = vunpack.c.l.b16 %v990
  %v1031 = vunpack.c.l.b16 %v991
  %v1032 = vunpack.c.l.b16 %v992
  %v1033 = vpack.c.b16 %v1018, %v1017
  %v1034 = vpack.c.b16 %v1020, %v1019
  %v1035 = vpack.c.b16 %v1022, %v1021
  %v1036 = vpack.c.b16 %v1024, %v1023
  %v1037 = vpack.c.b16 %v1026, %v1025
  %v1038 = vpack.c.b16 %v1028, %v1027
  %v1039 = vpack.c.b16 %v1030, %v1029
  %v1040 = vpack.c.b16 %v1032, %v1031
  %1049 = vmatprep.subr.bf16.mxu0 0
  %1050 = vmatpush1.bf16.msra.mxu0 %v1033
  %1051 = vmatprep.subr.bf16.mxu0 0
  %1052 = vmatpush1.bf16.msra.mxu0 %v1034
  %1053 = vmatprep.subr.bf16.mxu0 0
  %1054 = vmatpush1.bf16.msra.mxu0 %v1035
  %1055 = vmatprep.subr.bf16.mxu0 0
  %1056 = vmatpush1.bf16.msra.mxu0 %v1036
  %1057 = vmatprep.subr.bf16.mxu0 0
  %1058 = vmatpush1.bf16.msra.mxu0 %v1037
  %1059 = vmatprep.subr.bf16.mxu0 0
  %1060 = vmatpush1.bf16.msra.mxu0 %v1038
  %1061 = vmatprep.subr.bf16.mxu0 0
  %1062 = vmatpush1.bf16.msra.mxu0 %v1039
  %1063 = vmatprep.subr.bf16.mxu0 0
  %1064 = vmatpush1.bf16.msra.mxu0 %v1040
  %1065 = vmatprep.subr.bf16.mxu0 0
  %1066 = vmatpush1.bf16.msra.mxu0 0
  %1067 = vmatprep.subr.bf16.mxu0 0
  %1068 = vmatpush1.bf16.msra.mxu0 0
  %1069 = vmatprep.subr.bf16.mxu0 0
  %1070 = vmatpush1.bf16.msra.mxu0 0
  %1071 = vmatprep.subr.bf16.mxu0 0
  %1072 = vmatpush1.bf16.msra.mxu0 0
  %1073 = vmatprep.subr.bf16.mxu0 0
  %1074 = vmatpush1.bf16.msra.mxu0 0
  %1075 = vmatprep.subr.bf16.mxu0 0
  %1076 = vmatpush1.bf16.msra.mxu0 0
  %1077 = vmatprep.subr.bf16.mxu0 0
  %1078 = vmatpush1.bf16.msra.mxu0 0
  %1079 = vmatprep.subr.bf16.mxu0 0
  %1080 = vmatpush1.bf16.msra.mxu0 0
  %1081 = vmatprep.mubr.bf16.mxu0 0
  %1082 = vmatmul.mubr.bf16.gmra.mrb[0].mxu0 %v975
  %v1083 = vpop.f32.mrb[0].mxu0
  %v1084 = vadd.f32 %v999, %v1083
  %v1085 = vpop.f32.mrb[0].mxu0
  %v1086 = vpop.f32.mrb[0].mxu0
  %v1087 = vpop.f32.mrb[0].mxu0
  %1088 = vdwg.mxu0
  %vm1089 = vcmp.ge.f32.partialorder %v1084, 0.0
  %v1090 = vmul.f32 %v1084, 0.2
  %v1091 = vsel %vm1089, %v1084, %v1090
  %v1092 = vmul.f32 %v1091, 1.4142135
  %v1093 = vpack.c.bf16 %v1092, %v1092
  %s1094 = scalar_lea.vmem %s6, 384
  %v1095 = vld [vmem:[%s1094] sm:$0xf]
  %v1096 = vld [vmem:[%s1094 + $0x4] sm:$0xf]
  %v1097 = vld [vmem:[%s1094 + $0x8] sm:$0xf]
  %v1098 = vld [vmem:[%s1094 + $0xc] sm:$0xf]
  %v1099 = vld [vmem:[%s1094 + $0x10] sm:$0xf]
  %v1100 = vld [vmem:[%s1094 + $0x14] sm:$0xf]
  %v1101 = vld [vmem:[%s1094 + $0x18] sm:$0xf]
  %v1102 = vld [vmem:[%s1094 + $0x1c] sm:$0xf]
  %v1103 = vld [vmem:[%s1094 + $0x20] sm:$0xf]
  %v1104 = vld [vmem:[%s1094 + $0x24] sm:$0xf]
  %v1105 = vld [vmem:[%s1094 + $0x28] sm:$0xf]
  %v1106 = vld [vmem:[%s1094 + $0x2c] sm:$0xf]
  %v1107 = vld [vmem:[%s1094 + $0x30] sm:$0xf]
  %v1108 = vld [vmem:[%s1094 + $0x34] sm:$0xf]
  %v1109 = vld [vmem:[%s1094 + $0x38] sm:$0xf]
  %v1110 = vld [vmem:[%s1094 + $0x3c] sm:$0xf]
  %s1111 = scalar_lea.vmem %s7, 7
  %v1112 = vld [vmem:[%s1111] sm:$0x1]
  %v1114 = vlaneseq
  %v1115 = vshrl.u32 %v1114, 7
  %v1116 = vsub.s32 0, %v1115
  %v1117 = vrot.slane %v1112, %v1116
  %v1135 = vunpack.c.l.b16 %v1095
  %v1136 = vunpack.c.l.b16 %v1096
  %v1137 = vunpack.c.l.b16 %v1097
  %v1138 = vunpack.c.l.b16 %v1098
  %v1139 = vunpack.c.l.b16 %v1099
  %v1140 = vunpack.c.l.b16 %v1100
  %v1141 = vunpack.c.l.b16 %v1101
  %v1142 = vunpack.c.l.b16 %v1102
  %v1143 = vunpack.c.l.b16 %v1103
  %v1144 = vunpack.c.l.b16 %v1104
  %v1145 = vunpack.c.l.b16 %v1105
  %v1146 = vunpack.c.l.b16 %v1106
  %v1147 = vunpack.c.l.b16 %v1107
  %v1148 = vunpack.c.l.b16 %v1108
  %v1149 = vunpack.c.l.b16 %v1109
  %v1150 = vunpack.c.l.b16 %v1110
  %v1151 = vpack.c.b16 %v1136, %v1135
  %v1152 = vpack.c.b16 %v1138, %v1137
  %v1153 = vpack.c.b16 %v1140, %v1139
  %v1154 = vpack.c.b16 %v1142, %v1141
  %v1155 = vpack.c.b16 %v1144, %v1143
  %v1156 = vpack.c.b16 %v1146, %v1145
  %v1157 = vpack.c.b16 %v1148, %v1147
  %v1158 = vpack.c.b16 %v1150, %v1149
  %1167 = vmatprep.subr.bf16.mxu0 0
  %1168 = vmatpush1.bf16.msra.mxu0 %v1151
  %1169 = vmatprep.subr.bf16.mxu0 0
  %1170 = vmatpush1.bf16.msra.mxu0 %v1152
  %1171 = vmatprep.subr.bf16.mxu0 0
  %1172 = vmatpush1.bf16.msra.mxu0 %v1153
  %1173 = vmatprep.subr.bf16.mxu0 0
  %1174 = vmatpush1.bf16.msra.mxu0 %v1154
  %1175 = vmatprep.subr.bf16.mxu0 0
  %1176 = vmatpush1.bf16.msra.mxu0 %v1155
  %1177 = vmatprep.subr.bf16.mxu0 0
  %1178 = vmatpush1.bf16.msra.mxu0 %v1156
  %1179 = vmatprep.subr.bf16.mxu0 0
  %1180 = vmatpush1.bf16.msra.mxu0 %v1157
  %1181 = vmatprep.subr.bf16.mxu0 0
  %1182 = vmatpush1.bf16.msra.mxu0 %v1158
  %1183 = vmatprep.subr.bf16.mxu0 0
  %1184 = vmatpush1.bf16.msra.mxu0 0
  %1185 = vmatprep.subr.bf16.mxu0 0
  %1186 = vmatpush1.bf16.msra.mxu0 0
  %1187 = vmatprep.subr.bf16.mxu0 0
  %1188 = vmatpush1.bf16.msra.mxu0 0
  %1189 = vmatprep.subr.bf16.mxu0 0
  %1190 = vmatpush1.bf16.msra.mxu0 0
  %1191 = vmatprep.subr.bf16.mxu0 0
  %1192 = vmatpush1.bf16.msra.mxu0 0
  %1193 = vmatprep.subr.bf16.mxu0 0
  %1194 = vmatpush1.bf16.msra.mxu0 0
  %1195 = vmatprep.subr.bf16.mxu0 0
  %1196 = vmatpush1.bf16.msra.mxu0 0
  %1197 = vmatprep.subr.bf16.mxu0 0
  %1198 = vmatpush1.bf16.msra.mxu0 0
  %1199 = vmatprep.mubr.bf16.mxu0 0
  %1200 = vmatmul.mubr.bf16.gmra.mrb[0].mxu0 %v1093
  %v1201 = vpop.f32.mrb[0].mxu0
  %v1202 = vadd.f32 %v1117, %v1201
  %v1203 = vpop.f32.mrb[0].mxu0
  %v1204 = vpop.f32.mrb[0].mxu0
  %v1205 = vpop.f32.mrb[0].mxu0
  %1206 = vdwg.mxu0
  %vm1207 = vcmp.ge.f32.partialorder %v1202, 0.0
  %v1208 = vmul.f32 %v1202, 0.2
  %v1209 = vsel %vm1207, %v1202, %v1208
  %v1210 = vmul.f32 %v1209, 1.4142135
  %v1211 = vpack.c.bf16 %v1210, %v1210
  %v1212 = vld [vmem:[%s8] sm:$0xff]
  %v1213 = vld [vmem:[%s8 + $0x8] sm:$0xff]
  %v1214 = vld [vmem:[%s8 + $0x10] sm:$0xf]
  %v1215 = vld [vmem:[%s8 + $0x14] sm:$0xff]
  %v1216 = vld [vmem:[%s8 + $0x1c] sm:$0xff]
  %v1217 = vld [vmem:[%s8 + $0x24] sm:$0xf]
  %v1218 = vld [vmem:[%s8 + $0x28] sm:$0xff]
  %v1219 = vld [vmem:[%s8 + $0x30] sm:$0xff]
  %v1220 = vld [vmem:[%s8 + $0x38] sm:$0xf]
  %v1221 = vld [vmem:[%s8 + $0x3c] sm:$0xff]
  %v1222 = vld [vmem:[%s8 + $0x44] sm:$0xff]
  %v1223 = vld [vmem:[%s8 + $0x4c] sm:$0xf]
  %v1224 = vld [vmem:[%s8 + $0x50] sm:$0xff]
  %v1225 = vld [vmem:[%s8 + $0x58] sm:$0xff]
  %v1226 = vld [vmem:[%s8 + $0x60] sm:$0xf]
  %v1227 = vld [vmem:[%s8 + $0x64] sm:$0xff]
  %v1228 = vld [vmem:[%s8 + $0x6c] sm:$0xff]
  %v1229 = vld [vmem:[%s8 + $0x74] sm:$0xf]
  %v1230 = vld [vmem:[%s8 + $0x78] sm:$0xff]
  %v1231 = vld [vmem:[%s8 + $0x80] sm:$0xff]
  %v1232 = vld [vmem:[%s8 + $0x88] sm:$0xf]
  %v1233 = vld [vmem:[%s8 + $0x8c] sm:$0xff]
  %v1234 = vld [vmem:[%s8 + $0x94] sm:$0xff]
  %v1235 = vld [vmem:[%s8 + $0x9c] sm:$0xf]
  %v1236 = vld [vmem:[%s8 + $0xa0] sm:$0xff]
  %v1237 = vld [vmem:[%s8 + $0xa8] sm:$0xff]
  %v1238 = vld [vmem:[%s8 + $0xb0] sm:$0xf]
  %v1239 = vld [vmem:[%s8 + $0xb4] sm:$0xff]
  %v1240 = vld [vmem:[%s8 + $0xbc] sm:$0xff]
  %v1241 = vld [vmem:[%s8 + $0xc4] sm:$0xf]
  %v1242 = vld [vmem:[%s8 + $0xc8] sm:$0xff]
  %v1243 = vld [vmem:[%s8 + $0xd0] sm:$0xff]
  %v1244 = vld [vmem:[%s8 + $0xd8] sm:$0xf]
  %v1245 = vld [vmem:[%s8 + $0xdc] sm:$0xff]
  %v1246 = vld [vmem:[%s8 + $0xe4] sm:$0xff]
  %v1247 = vld [vmem:[%s8 + $0xec] sm:$0xf]
  %v1248 = vld [vmem:[%s8 + $0xf0] sm:$0xff]
  %v1249 = vld [vmem:[%s8 + $0xf8] sm:$0xff]
  %v1250 = vld [vmem:[%s8 + $0x100] sm:$0xf]
  %v1251 = vld [vmem:[%s8 + $0x104] sm:$0xff]
  %v1252 = vld [vmem:[%s8 + $0x10c] sm:$0xff]
  %v1253 = vld [vmem:[%s8 + $0x114] sm:$0xf]
  %v1254 = vld [vmem:[%s8 + $0x118] sm:$0xff]
  %v1255 = vld [vmem:[%s8 + $0x120] sm:$0xff]
  %v1256 = vld [vmem:[%s8 + $0x128] sm:$0xf]
  %v1257 = vld [vmem:[%s8 + $0x12c] sm:$0xff]
  %v1258 = vld [vmem:[%s8 + $0x134] sm:$0xff]
  %v1259 = vld [vmem:[%s8 + $0x13c] sm:$0xf]
  %v1260 = vld [vmem:[%s9] sm:$0x1f]
  %v1262 = vlaneseq
  %v1263 = vshrl.u32 %v1262, 7
  %v1264 = vsub.s32 0, %v1263
  %v1265 = vrot.slane %v1260, %v1264
  %v1266 = vlaneseq
  %v1267 = vshrl.u32 %v1266, 7
  %v1268 = vsub.s32 1, %v1267
  %v1269 = vrot.slane %v1260, %v1268
  %v1270 = vlaneseq
  %v1271 = vshrl.u32 %v1270, 7
  %v1272 = vsub.s32 2, %v1271
  %v1273 = vrot.slane %v1260, %v1272
  %v1274 = vlaneseq
  %v1275 = vshrl.u32 %v1274, 7
  %v1276 = vsub.s32 3, %v1275
  %v1277 = vrot.slane %v1260, %v1276
  %v1278 = vlaneseq
  %v1279 = vshrl.u32 %v1278, 7
  %v1280 = vsub.s32 4, %v1279
  %v1281 = vrot.slane %v1260, %v1280
  %v1335 = vunpack.c.l.b16 %v1212
  %v1336 = vunpack.c.h.b16 %v1212
  %v1337 = vunpack.c.l.b16 %v1213
  %v1338 = vunpack.c.h.b16 %v1213
  %v1339 = vunpack.c.l.b16 %v1214
  %v1340 = vunpack.c.l.b16 %v1215
  %v1341 = vunpack.c.h.b16 %v1215
  %v1342 = vunpack.c.l.b16 %v1216
  %v1343 = vunpack.c.h.b16 %v1216
  %v1344 = vunpack.c.l.b16 %v1217
  %v1345 = vunpack.c.l.b16 %v1218
  %v1346 = vunpack.c.h.b16 %v1218
  %v1347 = vunpack.c.l.b16 %v1219
  %v1348 = vunpack.c.h.b16 %v1219
  %v1349 = vunpack.c.l.b16 %v1220
  %v1350 = vunpack.c.l.b16 %v1221
  %v1351 = vunpack.c.h.b16 %v1221
  %v1352 = vunpack.c.l.b16 %v1222
  %v1353 = vunpack.c.h.b16 %v1222
  %v1354 = vunpack.c.l.b16 %v1223
  %v1355 = vunpack.c.l.b16 %v1224
  %v1356 = vunpack.c.h.b16 %v1224
  %v1357 = vunpack.c.l.b16 %v1225
  %v1358 = vunpack.c.h.b16 %v1225
  %v1359 = vunpack.c.l.b16 %v1226
  %v1360 = vunpack.c.l.b16 %v1227
  %v1361 = vunpack.c.h.b16 %v1227
  %v1362 = vunpack.c.l.b16 %v1228
  %v1363 = vunpack.c.h.b16 %v1228
  %v1364 = vunpack.c.l.b16 %v1229
  %v1365 = vunpack.c.l.b16 %v1230
  %v1366 = vunpack.c.h.b16 %v1230
  %v1367 = vunpack.c.l.b16 %v1231
  %v1368 = vunpack.c.h.b16 %v1231
  %v1369 = vunpack.c.l.b16 %v1232
  %v1370 = vunpack.c.l.b16 %v1233
  %v1371 = vunpack.c.h.b16 %v1233
  %v1372 = vunpack.c.l.b16 %v1234
  %v1373 = vunpack.c.h.b16 %v1234
  %v1374 = vunpack.c.l.b16 %v1235
  %v1375 = vunpack.c.l.b16 %v1236
  %v1376 = vunpack.c.h.b16 %v1236
  %v1377 = vunpack.c.l.b16 %v1237
  %v1378 = vunpack.c.h.b16 %v1237
  %v1379 = vunpack.c.l.b16 %v1238
  %v1380 = vunpack.c.l.b16 %v1239
  %v1381 = vunpack.c.h.b16 %v1239
  %v1382 = vunpack.c.l.b16 %v1240
  %v1383 = vunpack.c.h.b16 %v1240
  %v1384 = vunpack.c.l.b16 %v1241
  %v1385 = vunpack.c.l.b16 %v1242
  %v1386 = vunpack.c.h.b16 %v1242
  %v1387 = vunpack.c.l.b16 %v1243
  %v1388 = vunpack.c.h.b16 %v1243
  %v1389 = vunpack.c.l.b16 %v1244
  %v1390 = vunpack.c.l.b16 %v1245
  %v1391 = vunpack.c.h.b16 %v1245
  %v1392 = vunpack.c.l.b16 %v1246
  %v1393 = vunpack.c.h.b16 %v1246
  %v1394 = vunpack.c.l.b16 %v1247
  %v1395 = vunpack.c.l.b16 %v1248
  %v1396 = vunpack.c.h.b16 %v1248
  %v1397 = vunpack.c.l.b16 %v1249
  %v1398 = vunpack.c.h.b16 %v1249
  %v1399 = vunpack.c.l.b16 %v1250
  %v1400 = vunpack.c.l.b16 %v1251
  %v1401 = vunpack.c.h.b16 %v1251
  %v1402 = vunpack.c.l.b16 %v1252
  %v1403 = vunpack.c.h.b16 %v1252
  %v1404 = vunpack.c.l.b16 %v1253
  %v1405 = vunpack.c.l.b16 %v1254
  %v1406 = vunpack.c.h.b16 %v1254
  %v1407 = vunpack.c.l.b16 %v1255
  %v1408 = vunpack.c.h.b16 %v1255
  %v1409 = vunpack.c.l.b16 %v1256
  %v1410 = vunpack.c.l.b16 %v1257
  %v1411 = vunpack.c.h.b16 %v1257
  %v1412 = vunpack.c.l.b16 %v1258
  %v1413 = vunpack.c.h.b16 %v1258
  %v1414 = vunpack.c.l.b16 %v1259
  %v1415 = vpack.c.b16 %v1340, %v1335
  %v1416 = vpack.c.b16 %v1341, %v1336
  %v1417 = vpack.c.b16 %v1342, %v1337
  %v1418 = vpack.c.b16 %v1343, %v1338
  %v1419 = vpack.c.b16 %v1344, %v1339
  %v1420 = vpack.c.b16 %v1350, %v1345
  %v1421 = vpack.c.b16 %v1351, %v1346
  %v1422 = vpack.c.b16 %v1352, %v1347
  %v1423 = vpack.c.b16 %v1353, %v1348
  %v1424 = vpack.c.b16 %v1354, %v1349
  %v1425 = vpack.c.b16 %v1360, %v1355
  %v1426 = vpack.c.b16 %v1361, %v1356
  %v1427 = vpack.c.b16 %v1362, %v1357
  %v1428 = vpack.c.b16 %v1363, %v1358
  %v1429 = vpack.c.b16 %v1364, %v1359
  %v1430 = vpack.c.b16 %v1370, %v1365
  %v1431 = vpack.c.b16 %v1371, %v1366
  %v1432 = vpack.c.b16 %v1372, %v1367
  %v1433 = vpack.c.b16 %v1373, %v1368
  %v1434 = vpack.c.b16 %v1374, %v1369
  %v1435 = vpack.c.b16 %v1380, %v1375
  %v1436 = vpack.c.b16 %v1381, %v1376
  %v1437 = vpack.c.b16 %v1382, %v1377
  %v1438 = vpack.c.b16 %v1383, %v1378
  %v1439 = vpack.c.b16 %v1384, %v1379
  %v1440 = vpack.c.b16 %v1390, %v1385
  %v1441 = vpack.c.b16 %v1391, %v1386
  %v1442 = vpack.c.b16 %v1392, %v1387
  %v1443 = vpack.c.b16 %v1393, %v1388
  %v1444 = vpack.c.b16 %v1394, %v1389
  %v1445 = vpack.c.b16 %v1400, %v1395
  %v1446 = vpack.c.b16 %v1401, %v1396
  %v1447 = vpack.c.b16 %v1402, %v1397
  %v1448 = vpack.c.b16 %v1403, %v1398
  %v1449 = vpack.c.b16 %v1404, %v1399
  %v1450 = vpack.c.b16 %v1410, %v1405
  %v1451 = vpack.c.b16 %v1411, %v1406
  %v1452 = vpack.c.b16 %v1412, %v1407
  %v1453 = vpack.c.b16 %v1413, %v1408
  %v1454 = vpack.c.b16 %v1414, %v1409
  %1495 = vmatprep.subr.bf16.mxu0 %v1416
  %1496 = vmatpush1.bf16.msra.mxu0 %v1415
  %1497 = vmatprep.subr.bf16.mxu0 %v1421
  %1498 = vmatpush1.bf16.msra.mxu0 %v1420
  %1499 = vmatprep.subr.bf16.mxu0 %v1426
  %1500 = vmatpush1.bf16.msra.mxu0 %v1425
  %1501 = vmatprep.subr.bf16.mxu0 %v1431
  %1502 = vmatpush1.bf16.msra.mxu0 %v1430
  %1503 = vmatprep.subr.bf16.mxu0 %v1436
  %1504 = vmatpush1.bf16.msra.mxu0 %v1435
  %1505 = vmatprep.subr.bf16.mxu0 %v1441
  %1506 = vmatpush1.bf16.msra.mxu0 %v1440
  %1507 = vmatprep.subr.bf16.mxu0 %v1446
  %1508 = vmatpush1.bf16.msra.mxu0 %v1445
  %1509 = vmatprep.subr.bf16.mxu0 %v1451
  %1510 = vmatpush1.bf16.msra.mxu0 %v1450
  %1511 = vmatprep.subr.bf16.mxu0 0
  %1512 = vmatpush1.bf16.msra.mxu0 0
  %1513 = vmatprep.subr.bf16.mxu0 0
  %1514 = vmatpush1.bf16.msra.mxu0 0
  %1515 = vmatprep.subr.bf16.mxu0 0
  %1516 = vmatpush1.bf16.msra.mxu0 0
  %1517 = vmatprep.subr.bf16.mxu0 0
  %1518 = vmatpush1.bf16.msra.mxu0 0
  %1519 = vmatprep.subr.bf16.mxu0 0
  %1520 = vmatpush1.bf16.msra.mxu0 0
  %1521 = vmatprep.subr.bf16.mxu0 0
  %1522 = vmatpush1.bf16.msra.mxu0 0
  %1523 = vmatprep.subr.bf16.mxu0 0
  %1524 = vmatpush1.bf16.msra.mxu0 0
  %1525 = vmatprep.subr.bf16.mxu0 0
  %1526 = vmatpush1.bf16.msra.mxu0 0
  %1527 = vmatprep.mubr.bf16.mxu0 0
  %1528 = vmatmul.mubr.bf16.gmra.mrb[0].mxu0 %v1211
  %v1529 = vpop.f32.mrb[0].mxu0
  %v1530 = vadd.f32 %v1265, %v1529
  %v1531 = vpop.f32.mrb[0].mxu0
  %v1532 = vadd.f32 %v1269, %v1531
  %v1533 = vpop.f32.mrb[0].mxu0
  %v1534 = vpop.f32.mrb[0].mxu0
  %1535 = vdwg.mxu0
  %1536 = vmatprep.subr.bf16.mxu0 %v1418
  %1537 = vmatpush1.bf16.msra.mxu0 %v1417
  %1538 = vmatprep.subr.bf16.mxu0 %v1423
  %1539 = vmatpush1.bf16.msra.mxu0 %v1422
  %1540 = vmatprep.subr.bf16.mxu0 %v1428
  %1541 = vmatpush1.bf16.msra.mxu0 %v1427
  %1542 = vmatprep.subr.bf16.mxu0 %v1433
  %1543 = vmatpush1.bf16.msra.mxu0 %v1432
  %1544 = vmatprep.subr.bf16.mxu0 %v1438
  %1545 = vmatpush1.bf16.msra.mxu0 %v1437
  %1546 = vmatprep.subr.bf16.mxu0 %v1443
  %1547 = vmatpush1.bf16.msra.mxu0 %v1442
  %1548 = vmatprep.subr.bf16.mxu0 %v1448
  %1549 = vmatpush1.bf16.msra.mxu0 %v1447
  %1550 = vmatprep.subr.bf16.mxu0 %v1453
  %1551 = vmatpush1.bf16.msra.mxu0 %v1452
  %1552 = vmatprep.subr.bf16.mxu0 0
  %1553 = vmatpush1.bf16.msra.mxu0 0
  %1554 = vmatprep.subr.bf16.mxu0 0
  %1555 = vmatpush1.bf16.msra.mxu0 0
  %1556 = vmatprep.subr.bf16.mxu0 0
  %1557 = vmatpush1.bf16.msra.mxu0 0
  %1558 = vmatprep.subr.bf16.mxu0 0
  %1559 = vmatpush1.bf16.msra.mxu0 0
  %1560 = vmatprep.subr.bf16.mxu0 0
  %1561 = vmatpush1.bf16.msra.mxu0 0
  %1562 = vmatprep.subr.bf16.mxu0 0
  %1563 = vmatpush1.bf16.msra.mxu0 0
  %1564 = vmatprep.subr.bf16.mxu0 0
  %1565 = vmatpush1.bf16.msra.mxu0 0
  %1566 = vmatprep.subr.bf16.mxu0 0
  %1567 = vmatpush1.bf16.msra.mxu0 0
  %1568 = vmatprep.mubr.bf16.mxu0 0
  %1569 = vmatmul.mubr.bf16.gmra.mrb[0].mxu0 %v1211
  %v1570 = vpop.f32.mrb[0].mxu0
  %v1571 = vadd.f32 %v1273, %v1570
  %v1572 = vpop.f32.mrb[0].mxu0
  %v1573 = vadd.f32 %v1277, %v1572
  %v1574 = vpop.f32.mrb[0].mxu0
  %v1575 = vpop.f32.mrb[0].mxu0
  %1576 = vdwg.mxu0
  %1577 = vmatprep.subr.bf16.mxu0 0
  %1578 = vmatpush1.bf16.msra.mxu0 %v1419
  %1579 = vmatprep.subr.bf16.mxu0 0
  %1580 = vmatpush1.bf16.msra.mxu0 %v1424
  %1581 = vmatprep.subr.bf16.mxu0 0
  %1582 = vmatpush1.bf16.msra.mxu0 %v1429
  %1583 = vmatprep.subr.bf16.mxu0 0
  %1584 = vmatpush1.bf16.msra.mxu0 %v1434
  %1585 = vmatprep.subr.bf16.mxu0 0
  %1586 = vmatpush1.bf16.msra.mxu0 %v1439
  %1587 = vmatprep.subr.bf16.mxu0 0
  %1588 = vmatpush1.bf16.msra.mxu0 %v1444
  %1589 = vmatprep.subr.bf16.mxu0 0
  %1590 = vmatpush1.bf16.msra.mxu0 %v1449
  %1591 = vmatprep.subr.bf16.mxu0 0
  %1592 = vmatpush1.bf16.msra.mxu0 %v1454
  %1593 = vmatprep.subr.bf16.mxu0 0
  %1594 = vmatpush1.bf16.msra.mxu0 0
  %1595 = vmatprep.subr.bf16.mxu0 0
  %1596 = vmatpush1.bf16.msra.mxu0 0
  %1597 = vmatprep.subr.bf16.mxu0 0
  %1598 = vmatpush1.bf16.msra.mxu0 0
  %1599 = vmatprep.subr.bf16.mxu0 0
  %1600 = vmatpush1.bf16.msra.mxu0 0
  %1601 = vmatprep.subr.bf16.mxu0 0
  %1602 = vmatpush1.bf16.msra.mxu0 0
  %1603 = vmatprep.subr.bf16.mxu0 0
  %1604 = vmatpush1.bf16.msra.mxu0 0
  %1605 = vmatprep.subr.bf16.mxu0 0
  %1606 = vmatpush1.bf16.msra.mxu0 0
  %1607 = vmatprep.subr.bf16.mxu0 0
  %1608 = vmatpush1.bf16.msra.mxu0 0
  %1609 = vmatprep.mubr.bf16.mxu0 0
  %1610 = vmatmul.mubr.bf16.gmra.mrb[0].mxu0 %v1211
  %v1611 = vpop.f32.mrb[0].mxu0
  %v1612 = vadd.f32 %v1281, %v1611
  %v1613 = vpop.f32.mrb[0].mxu0
  %v1614 = vpop.f32.mrb[0].mxu0
  %v1615 = vpop.f32.mrb[0].mxu0
  %1616 = vdwg.mxu0
  %1617 = vst [vmem:[%s10] sm:$0xff] %v1530
  %1618 = vst [vmem:[%s10 + $0x8] sm:$0xff] %v1532
  %1619 = vst [vmem:[%s10 + $0x10] sm:$0xff] %v1571
  %1620 = vst [vmem:[%s10 + $0x18] sm:$0xff] %v1573
  %1621 = vst [vmem:[%s10 + $0x20] sm:$0xff] %v1612
  // Predicated region
  $region42: #{_lambda_.4} parent=0 // pred_check
    _
  $region43: #{_lambda_.4} parent=0 // pred_check_branch
    %1623 = sbr.rel (0) target = $region45
  $region44: #{_lambda_.4} parent=0 // pred_region
    _
  $region45: #{_lambda_.4} parent=0 // pred_fallthru
    _
  // Predicated region
  $region46: #{_lambda_.4} parent=0 // pred_check
    _
  $region47: #{_lambda_.4} parent=0 // pred_check_branch
    %1625 = sbr.rel (0) target = $region49
  $region48: #{_lambda_.4} parent=0 // pred_region
    _
  $region49: #{_lambda_.4} parent=0 // pred_fallthru
    _

// kernel: _lambda_.5
$region0: #{_lambda_.5}
  #allocation0 [shape = 'u32[]', space=smem, size = 0x4, offset = 0x4, fixed_abs, tag = 'smem constant byte address 0x4 - core index']
  #allocation1 [shape = 'u32[144,128]{1,0:T(1,128)}', space=vmem, size = 0x12000, scoped, tag = 'internal scratch']
  #allocation2 [shape = 'bf16[32,1152]{1,0:T(16,128)(2,1)}', space=vmem, size = 0x12000, scoped, tag = 'scratch operand']
  #allocation3 [shape = 'f32[2,16,128]{2,1,0:T(8,128)}', space=vmem, size = 0x4000, scoped, tag = 'scratch operand']
  %s0 = inlined_call_operand.vmem [shape: bf16[2,16,128], index: 0, kind: input, shape index: {}]
  %s1 = inlined_call_operand.vmem [shape: bf16[1152,128], index: 1, kind: input, shape index: {}]
  %s2 = inlined_call_operand.vmem [shape: f32[128,128], index: 2, kind: input, shape index: {}]
  %s3 = inlined_call_operand.vmem [shape: f32[8,128], index: 3, kind: input, shape index: {}]
  %s4 = inlined_call_operand.vmem [shape: f32[1,128], index: 4, kind: input, shape index: {}, may-alias: {4,8}]
  %s5 = inlined_call_operand.vmem [shape: f32[9,32,1], index: 5, kind: input, shape index: {}]
  %s6 = inlined_call_operand.vmem [shape: bf16[128,128], index: 6, kind: input, shape index: {}]
  %s7 = inlined_call_operand.vmem [shape: f32[8,128], index: 7, kind: input, shape index: {}]
  %s8 = inlined_call_operand.vmem [shape: f32[1,128], index: 8, kind: input, shape index: {}, may-alias: {4,8}]
  %s9 = inlined_call_operand.vmem [shape: f32[2,16,128], index: 9, kind: input, shape index: {}]
  %s10 = inlined_call_operand.vmem [shape: bf16[2,16,128], index: 10, kind: output, shape index: {0}]
  %s11 = inlined_call_operand.vmem [shape: f32[2,16,128], index: 11, kind: output, shape index: {1}]
  %12 = xla_tuple %s10, %s11
  %s13 = sld [smem:[#allocation0]]
  $region66: #{_lambda_.5} parent=0
    _
  %s15 = ssub.s32 1, %s13
  %s16 = scalar_select 0, %s15, %s13
  // Predicated region
  $region2: #{_lambda_.5} parent=0 // pred_check
    _
  $region3: #{_lambda_.5} parent=0 // pred_check_branch
    %18 = sbr.rel (0) target = $region5
  $region4: #{_lambda_.5} parent=0 // pred_region
    _
  $region5: #{_lambda_.5} parent=0 // pred_fallthru
    _
  // Predicated region
  $region6: #{_lambda_.5} parent=0 // pred_check
    _
  $region7: #{_lambda_.5} parent=0 // pred_check_branch
    %20 = sbr.rel (0) target = $region9
  $region8: #{_lambda_.5} parent=0 // pred_region
    _
  $region9: #{_lambda_.5} parent=0 // pred_fallthru
    _
  // Predicated region
  $region10: #{_lambda_.5} parent=0 // pred_check
    _
  $region11: #{_lambda_.5} parent=0 // pred_check_branch
    %22 = sbr.rel (0) target = $region13
  $region12: #{_lambda_.5} parent=0 // pred_region
    _
  $region13: #{_lambda_.5} parent=0 // pred_fallthru
    _
  // Predicated region
  $region14: #{_lambda_.5} parent=0 // pred_check
    _
  $region15: #{_lambda_.5} parent=0 // pred_check_branch
    %24 = sbr.rel (0) target = $region17
  $region16: #{_lambda_.5} parent=0 // pred_region
    _
  $region17: #{_lambda_.5} parent=0 // pred_fallthru
    _
  // Predicated region
  $region18: #{_lambda_.5} parent=0 // pred_check
    _
  $region19: #{_lambda_.5} parent=0 // pred_check_branch
    %26 = sbr.rel (0) target = $region21
  $region20: #{_lambda_.5} parent=0 // pred_region
    _
  $region21: #{_lambda_.5} parent=0 // pred_fallthru
    _
  // Predicated region
  $region22: #{_lambda_.5} parent=0 // pred_check
    _
  $region23: #{_lambda_.5} parent=0 // pred_check_branch
    %28 = sbr.rel (0) target = $region25
  $region24: #{_lambda_.5} parent=0 // pred_region
    _
  $region25: #{_lambda_.5} parent=0 // pred_fallthru
    _
  // Predicated region
  $region26: #{_lambda_.5} parent=0 // pred_check
    _
  $region27: #{_lambda_.5} parent=0 // pred_check_branch
    %30 = sbr.rel (0) target = $region29
  $region28: #{_lambda_.5} parent=0 // pred_region
    _
  $region29: #{_lambda_.5} parent=0 // pred_fallthru
    _
  // Predicated region
  $region30: #{_lambda_.5} parent=0 // pred_check
    _
  $region31: #{_lambda_.5} parent=0 // pred_check_branch
    %32 = sbr.rel (0) target = $region33
  $region32: #{_lambda_.5} parent=0 // pred_region
    _
  $region33: #{_lambda_.5} parent=0 // pred_fallthru
    _
  // Predicated region
  $region34: #{_lambda_.5} parent=0 // pred_check
    _
  $region35: #{_lambda_.5} parent=0 // pred_check_branch
    %34 = sbr.rel (0) target = $region37
  $region36: #{_lambda_.5} parent=0 // pred_region
    _
  $region37: #{_lambda_.5} parent=0 // pred_fallthru
    _
  // Predicated region
  $region38: #{_lambda_.5} parent=0 // pred_check
    _
  $region39: #{_lambda_.5} parent=0 // pred_check_branch
    %36 = sbr.rel (0) target = $region41
  $region40: #{_lambda_.5} parent=0 // pred_region
    _
  $region41: #{_lambda_.5} parent=0 // pred_fallthru
    _
  %v38 = vld [vmem:[%s3] sm:$0xff]
  %p39 = scmp.eq.s32.totalorder 0, 0
  // Predicated region
  $region42: #{_lambda_.5} parent=0 // pred_check
    %p40 = pneg %p39
  $region43: #{_lambda_.5} parent=0 // pred_check_branch
    %42 = sbr.rel (%p40) target = $region45
  $region44: #{_lambda_.5} parent=0 // pred_region
    %v43 = vld [vmem:[%s0] sm:$0xf]
    %v44 = vld [vmem:[%s0 + $0x4] sm:$0xf]
    %v45 = vld [vmem:[%s0 + $0x8] sm:$0xf]
    %v46 = vld [vmem:[%s0 + $0xc] sm:$0xf]
    %v47 = vunpack.c.l.bf16 %v43
    %v48 = vunpack.c.l.bf16 %v44
    %v49 = vunpack.c.l.bf16 %v45
    %v50 = vunpack.c.l.bf16 %v46
    %v53 = vunpack.c.l.s4 1966171168
    %v54 = vunpack.c.0.s8 %v53
    %v55 = vlaneseq
    %v56 = vshrl.u32 %v55, 7
    %v57 = vsub.s32 %v54, %v56
    %v58 = vrot.slane %v38, %v57
    %v59 = vcombine.high %v58, %v58
    %v61 = vunpack.c.l.s4 1966171168
    %v62 = vunpack.c.0.s8 %v61
    %v63 = vlaneseq
    %v64 = vshrl.u32 %v63, 7
    %v65 = vsub.s32 %v62, %v64
    %v66 = vrot.slane %v58, %v65
    %v68 = vunpack.c.l.s4 1966171168
    %v69 = vunpack.c.0.s8 %v68
    %v70 = vlaneseq
    %v71 = vshrl.u32 %v70, 7
    %v72 = vsub.s32 %v69, %v71
    %v73 = vrot.slane %v59, %v72
    %v74 = vlaneseq
    %v75 = vshrl.u32 %v74, 7
    %v76 = vsub.s32 0, %v75
    %v77 = vrot.slane %v66, %v76
    %v78 = vlaneseq
    %v79 = vshrl.u32 %v78, 7
    %v80 = vsub.s32 0, %v79
    %v81 = vrot.slane %v73, %v80
    %v84 = vmul.f32 %v47, %v77
    %v85 = vmul.f32 %v48, %v77
    %v86 = vmul.f32 %v49, %v81
    %v87 = vmul.f32 %v50, %v81
    %v88 = vrot.slane %v84, 3
    %v89 = vrot.slane %v85, 3
    %v90 = vrot.slane %v86, 3
    %v91 = vrot.slane %v87, 3
    %v92 = vlaneseq
    %v93 = vshrl.u32 %v92, 7
    %vm94 = vcmp.lt.s32.totalorder %v93, 5
    %v95 = vsel %vm94, %v90, %v91
    %v96 = vsel %vm94, %v89, %v90
    %v97 = vsel %vm94, %v88, %v89
    %v98 = vsel %vm94, %v91, %v88
    %v99 = vld [vmem:[%s5] sm:$0xff]
    %v100 = vld [vmem:[%s5 + $0x8] sm:$0xff]
    %v101 = vld [vmem:[%s5 + $0x10] sm:$0xff]
    %v102 = vld [vmem:[%s5 + $0x18] sm:$0xff]
    %104 = vset.pattern.permute.xlu0 0
    %105 = vperm.xlu0 %104, %v99
    %v106 = vpop.permute.xlu0 %105
    %109 = vset.pattern.permute.xlu0 0
    %110 = vperm.xlu0 %109, %v100
    %v111 = vpop.permute.xlu0 %110
    %114 = vset.pattern.permute.xlu0 0
    %115 = vperm.xlu0 %114, %v101
    %v116 = vpop.permute.xlu0 %115
    %119 = vset.pattern.permute.xlu0 0
    %120 = vperm.xlu0 %119, %v102
    %v121 = vpop.permute.xlu0 %120
    %v123 = vmul.f32 %v98, %v106
    %v124 = vmul.f32 %v97, %v111
    %v125 = vmul.f32 %v96, %v116
    %v126 = vmul.f32 %v95, %v121
    %v127 = vpack.c.bf16 %v124, %v123
    %v128 = vpack.c.bf16 %v126, %v125
    %129 = vst [vmem:[#allocation2] sm:$0xff] %v127
    %130 = vst [vmem:[#allocation2 + $0x48] sm:$0xff] %v128
    %v131 = vrot.slane %v84, 4
    %v132 = vrot.slane %v85, 4
    %v133 = vrot.slane %v86, 4
    %v134 = vrot.slane %v87, 4
    %vm135 = vcmp.lt.s32.totalorder %v93, 4
    %v136 = vsel %vm135, %v133, %v134
    %v137 = vsel %vm135, %v132, %v133
    %v138 = vsel %vm135, %v131, %v132
    %v139 = vsel %vm135, %v134, %v131
    %s140 = scalar_lea.vmem %s5, 32
    %v141 = vld [vmem:[%s140] sm:$0xff]
    %v142 = vld [vmem:[%s140 + $0x8] sm:$0xff]
    %v143 = vld [vmem:[%s140 + $0x10] sm:$0xff]
    %v144 = vld [vmem:[%s140 + $0x18] sm:$0xff]
    %146 = vset.pattern.permute.xlu0 0
    %147 = vperm.xlu0 %146, %v141
    %v148 = vpop.permute.xlu0 %147
    %151 = vset.pattern.permute.xlu0 0
    %152 = vperm.xlu0 %151, %v142
    %v153 = vpop.permute.xlu0 %152
    %156 = vset.pattern.permute.xlu0 0
    %157 = vperm.xlu0 %156, %v143
    %v158 = vpop.permute.xlu0 %157
    %161 = vset.pattern.permute.xlu0 0
    %162 = vperm.xlu0 %161, %v144
    %v163 = vpop.permute.xlu0 %162
    %v165 = vmul.f32 %v139, %v148
    %v166 = vmul.f32 %v138, %v153
    %v167 = vmul.f32 %v137, %v158
    %v168 = vmul.f32 %v136, %v163
    %v169 = vpack.c.bf16 %v166, %v165
    %v170 = vpack.c.bf16 %v168, %v167
    %171 = vst [vmem:[#allocation2 + $0x8] sm:$0xff] %v169
    %172 = vst [vmem:[#allocation2 + $0x50] sm:$0xff] %v170
    %v173 = vrot.slane %v84, 5
    %v174 = vrot.slane %v85, 5
    %v175 = vrot.slane %v86, 5
    %v176 = vrot.slane %v87, 5
    %vm177 = vcmp.lt.s32.totalorder %v93, 3
    %v178 = vsel %vm177, %v175, %v176
    %v179 = vsel %vm177, %v174, %v175
    %v180 = vsel %vm177, %v173, %v174
    %v181 = vsel %vm177, %v176, %v173
    %s182 = scalar_lea.vmem %s5, 64
    %v183 = vld [vmem:[%s182] sm:$0xff]
    %v184 = vld [vmem:[%s182 + $0x8] sm:$0xff]
    %v185 = vld [vmem:[%s182 + $0x10] sm:$0xff]
    %v186 = vld [vmem:[%s182 + $0x18] sm:$0xff]
    %188 = vset.pattern.permute.xlu0 0
    %189 = vperm.xlu0 %188, %v183
    %v190 = vpop.permute.xlu0 %189
    %193 = vset.pattern.permute.xlu0 0
    %194 = vperm.xlu0 %193, %v184
    %v195 = vpop.permute.xlu0 %194
    %198 = vset.pattern.permute.xlu0 0
    %199 = vperm.xlu0 %198, %v185
    %v200 = vpop.permute.xlu0 %199
    %203 = vset.pattern.permute.xlu0 0
    %204 = vperm.xlu0 %203, %v186
    %v205 = vpop.permute.xlu0 %204
    %v207 = vmul.f32 %v181, %v190
    %v208 = vmul.f32 %v180, %v195
    %v209 = vmul.f32 %v179, %v200
    %v210 = vmul.f32 %v178, %v205
    %v211 = vpack.c.bf16 %v208, %v207
    %v212 = vpack.c.bf16 %v210, %v209
    %213 = vst [vmem:[#allocation2 + $0x10] sm:$0xff] %v211
    %214 = vst [vmem:[#allocation2 + $0x58] sm:$0xff] %v212
    %v215 = vrot.slane %v84, 7
    %v216 = vrot.slane %v85, 7
    %v217 = vrot.slane %v86, 7
    %v218 = vrot.slane %v87, 7
    %vm219 = vcmp.lt.s32.totalorder %v93, 1
    %v220 = vsel %vm219, %v217, %v218
    %v221 = vsel %vm219, %v216, %v217
    %v222 = vsel %vm219, %v215, %v216
    %v223 = vsel %vm219, %v218, %v215
    %s224 = scalar_lea.vmem %s5, 96
    %v225 = vld [vmem:[%s224] sm:$0xff]
    %v226 = vld [vmem:[%s224 + $0x8] sm:$0xff]
    %v227 = vld [vmem:[%s224 + $0x10] sm:$0xff]
    %v228 = vld [vmem:[%s224 + $0x18] sm:$0xff]
    %230 = vset.pattern.permute.xlu0 0
    %231 = vperm.xlu0 %230, %v225
    %v232 = vpop.permute.xlu0 %231
    %235 = vset.pattern.permute.xlu0 0
    %236 = vperm.xlu0 %235, %v226
    %v237 = vpop.permute.xlu0 %236
    %240 = vset.pattern.permute.xlu0 0
    %241 = vperm.xlu0 %240, %v227
    %v242 = vpop.permute.xlu0 %241
    %245 = vset.pattern.permute.xlu0 0
    %246 = vperm.xlu0 %245, %v228
    %v247 = vpop.permute.xlu0 %246
    %v249 = vmul.f32 %v223, %v232
    %v250 = vmul.f32 %v222, %v237
    %v251 = vmul.f32 %v221, %v242
    %v252 = vmul.f32 %v220, %v247
    %v253 = vpack.c.bf16 %v250, %v249
    %v254 = vpack.c.bf16 %v252, %v251
    %255 = vst [vmem:[#allocation2 + $0x18] sm:$0xff] %v253
    %256 = vst [vmem:[#allocation2 + $0x60] sm:$0xff] %v254
    %v257 = vpack.c.bf16 %v85, %v84
    %v258 = vpack.c.bf16 %v87, %v86
    %259 = vst [vmem:[#allocation2 + $0x20] sm:$0xff] %v257
    %260 = vst [vmem:[#allocation2 + $0x68] sm:$0xff] %v258
    %v261 = vrot.slane %v84, 1
    %v262 = vrot.slane %v85, 1
    %v263 = vrot.slane %v86, 1
    %v264 = vrot.slane %v87, 1
    %vm265 = vcmp.lt.s32.totalorder %v93, 7
    %v266 = vsel %vm265, %v263, %v264
    %v267 = vsel %vm265, %v262, %v263
    %v268 = vsel %vm265, %v261, %v262
    %v269 = vsel %vm265, %v264, %v261
    %s270 = scalar_lea.vmem %s5, 160
    %v271 = vld [vmem:[%s270] sm:$0xff]
    %v272 = vld [vmem:[%s270 + $0x8] sm:$0xff]
    %v273 = vld [vmem:[%s270 + $0x10] sm:$0xff]
    %v274 = vld [vmem:[%s270 + $0x18] sm:$0xff]
    %276 = vset.pattern.permute.xlu0 0
    %277 = vperm.xlu0 %276, %v271
    %v278 = vpop.permute.xlu0 %277
    %281 = vset.pattern.permute.xlu0 0
    %282 = vperm.xlu0 %281, %v272
    %v283 = vpop.permute.xlu0 %282
    %286 = vset.pattern.permute.xlu0 0
    %287 = vperm.xlu0 %286, %v273
    %v288 = vpop.permute.xlu0 %287
    %291 = vset.pattern.permute.xlu0 0
    %292 = vperm.xlu0 %291, %v274
    %v293 = vpop.permute.xlu0 %292
    %v295 = vmul.f32 %v268, %v278
    %v296 = vmul.f32 %v267, %v283
    %v297 = vmul.f32 %v266, %v288
    %v298 = vmul.f32 %v269, %v293
    %v299 = vpack.c.bf16 %v296, %v295
    %v300 = vpack.c.bf16 %v298, %v297
    %301 = vst [vmem:[#allocation2 + $0x28] sm:$0xff] %v299
    %302 = vst [vmem:[#allocation2 + $0x70] sm:$0xff] %v300
    %s303 = scalar_lea.vmem %s5, 192
    %v304 = vld [vmem:[%s303] sm:$0xff]
    %v305 = vld [vmem:[%s303 + $0x8] sm:$0xff]
    %v306 = vld [vmem:[%s303 + $0x10] sm:$0xff]
    %v307 = vld [vmem:[%s303 + $0x18] sm:$0xff]
    %309 = vset.pattern.permute.xlu0 0
    %310 = vperm.xlu0 %309, %v304
    %v311 = vpop.permute.xlu0 %310
    %314 = vset.pattern.permute.xlu0 0
    %315 = vperm.xlu0 %314, %v305
    %v316 = vpop.permute.xlu0 %315
    %319 = vset.pattern.permute.xlu0 0
    %320 = vperm.xlu0 %319, %v306
    %v321 = vpop.permute.xlu0 %320
    %324 = vset.pattern.permute.xlu0 0
    %325 = vperm.xlu0 %324, %v307
    %v326 = vpop.permute.xlu0 %325
    %v328 = vmul.f32 %v97, %v311
    %v329 = vmul.f32 %v96, %v316
    %v330 = vmul.f32 %v95, %v321
    %v331 = vmul.f32 %v98, %v326
    %v332 = vpack.c.bf16 %v329, %v328
    %v333 = vpack.c.bf16 %v331, %v330
    %334 = vst [vmem:[#allocation2 + $0x30] sm:$0xff] %v332
    %335 = vst [vmem:[#allocation2 + $0x78] sm:$0xff] %v333
    %s336 = scalar_lea.vmem %s5, 224
    %v337 = vld [vmem:[%s336] sm:$0xff]
    %v338 = vld [vmem:[%s336 + $0x8] sm:$0xff]
    %v339 = vld [vmem:[%s336 + $0x10] sm:$0xff]
    %v340 = vld [vmem:[%s336 + $0x18] sm:$0xff]
    %342 = vset.pattern.permute.xlu0 0
    %343 = vperm.xlu0 %342, %v337
    %v344 = vpop.permute.xlu0 %343
    %347 = vset.pattern.permute.xlu0 0
    %348 = vperm.xlu0 %347, %v338
    %v349 = vpop.permute.xlu0 %348
    %352 = vset.pattern.permute.xlu0 0
    %353 = vperm.xlu0 %352, %v339
    %v354 = vpop.permute.xlu0 %353
    %357 = vset.pattern.permute.xlu0 0
    %358 = vperm.xlu0 %357, %v340
    %v359 = vpop.permute.xlu0 %358
    %v361 = vmul.f32 %v138, %v344
    %v362 = vmul.f32 %v137, %v349
    %v363 = vmul.f32 %v136, %v354
    %v364 = vmul.f32 %v139, %v359
    %v365 = vpack.c.bf16 %v362, %v361
    %v366 = vpack.c.bf16 %v364, %v363
    %367 = vst [vmem:[#allocation2 + $0x38] sm:$0xff] %v365
    %368 = vst [vmem:[#allocation2 + $0x80] sm:$0xff] %v366
    %s369 = scalar_lea.vmem %s5, 256
    %v370 = vld [vmem:[%s369] sm:$0xff]
    %v371 = vld [vmem:[%s369 + $0x8] sm:$0xff]
    %v372 = vld [vmem:[%s369 + $0x10] sm:$0xff]
    %v373 = vld [vmem:[%s369 + $0x18] sm:$0xff]
    %375 = vset.pattern.permute.xlu0 0
    %376 = vperm.xlu0 %375, %v370
    %v377 = vpop.permute.xlu0 %376
    %380 = vset.pattern.permute.xlu0 0
    %381 = vperm.xlu0 %380, %v371
    %v382 = vpop.permute.xlu0 %381
    %385 = vset.pattern.permute.xlu0 0
    %386 = vperm.xlu0 %385, %v372
    %v387 = vpop.permute.xlu0 %386
    %390 = vset.pattern.permute.xlu0 0
    %391 = vperm.xlu0 %390, %v373
    %v392 = vpop.permute.xlu0 %391
    %v394 = vmul.f32 %v180, %v377
    %v395 = vmul.f32 %v179, %v382
    %v396 = vmul.f32 %v178, %v387
    %v397 = vmul.f32 %v181, %v392
    %v398 = vpack.c.bf16 %v395, %v394
    %v399 = vpack.c.bf16 %v397, %v396
    %400 = vst [vmem:[#allocation2 + $0x40] sm:$0xff] %v398
    %401 = vst [vmem:[#allocation2 + $0x88] sm:$0xff] %v399
    %402 = vst [vmem:[#allocation3] sm:$0xff] 0.0
    %403 = vst [vmem:[#allocation3 + $0x8] sm:$0xff] 0.0
    %404 = vst [vmem:[#allocation3 + $0x10] sm:$0xff] 0.0
    %405 = vst [vmem:[#allocation3 + $0x18] sm:$0xff] 0.0
  $region45: #{_lambda_.5} parent=0 // pred_fallthru
    _
  %v406 = vmul.f32 %v38, %v38
  %v407 = vld [vmem:[%s2] sm:$0xff]
  %v408 = vld [vmem:[%s2 + $0x8] sm:$0xff]
  %v409 = vld [vmem:[%s2 + $0x10] sm:$0xff]
  %v410 = vld [vmem:[%s2 + $0x18] sm:$0xff]
  %v411 = vld [vmem:[%s2 + $0x20] sm:$0xff]
  %v412 = vld [vmem:[%s2 + $0x28] sm:$0xff]
  %v413 = vld [vmem:[%s2 + $0x30] sm:$0xff]
  %v414 = vld [vmem:[%s2 + $0x38] sm:$0xff]
  %v415 = vld [vmem:[%s2 + $0x40] sm:$0xff]
  %v416 = vld [vmem:[%s2 + $0x48] sm:$0xff]
  %v417 = vld [vmem:[%s2 + $0x50] sm:$0xff]
  %v418 = vld [vmem:[%s2 + $0x58] sm:$0xff]
  %v419 = vld [vmem:[%s2 + $0x60] sm:$0xff]
  %v420 = vld [vmem:[%s2 + $0x68] sm:$0xff]
  %v421 = vld [vmem:[%s2 + $0x70] sm:$0xff]
  %v422 = vld [vmem:[%s2 + $0x78] sm:$0xff]
  %423 = vmatprep.subr.mxu0 0.0
  %424 = vmatpush1.msra.mxu0 %v407
  %425 = vmatprep.subr.mxu0 0.0
  %426 = vmatpush1.msra.mxu0 %v408
  %427 = vmatprep.subr.mxu0 0.0
  %428 = vmatpush1.msra.mxu0 %v409
  %429 = vmatprep.subr.mxu0 0.0
  %430 = vmatpush1.msra.mxu0 %v410
  %431 = vmatprep.subr.mxu0 0.0
  %432 = vmatpush1.msra.mxu0 %v411
  %433 = vmatprep.subr.mxu0 0.0
  %434 = vmatpush1.msra.mxu0 %v412
  %435 = vmatprep.subr.mxu0 0.0
  %436 = vmatpush1.msra.mxu0 %v413
  %437 = vmatprep.subr.mxu0 0.0
  %438 = vmatpush1.msra.mxu0 %v414
  %439 = vmatprep.subr.mxu0 0.0
  %440 = vmatpush1.msra.mxu0 %v415
  %441 = vmatprep.subr.mxu0 0.0
  %442 = vmatpush1.msra.mxu0 %v416
  %443 = vmatprep.subr.mxu0 0.0
  %444 = vmatpush1.msra.mxu0 %v417
  %445 = vmatprep.subr.mxu0 0.0
  %446 = vmatpush1.msra.mxu0 %v418
  %447 = vmatprep.subr.mxu0 0.0
  %448 = vmatpush1.msra.mxu0 %v419
  %449 = vmatprep.subr.mxu0 0.0
  %450 = vmatpush1.msra.mxu0 %v420
  %451 = vmatprep.subr.mxu0 0.0
  %452 = vmatpush1.msra.mxu0 %v421
  %453 = vmatprep.subr.mxu0 0.0
  %454 = vmatpush1.msra.mxu0 %v422
  %455 = vmatprep.subr.mxu0 0.0
  %456 = vmatpush1.msra.mxu0 0.0
  %457 = vmatprep.subr.mxu0 0.0
  %458 = vmatpush1.msra.mxu0 0.0
  %459 = vmatprep.subr.mxu0 0.0
  %460 = vmatpush1.msra.mxu0 0.0
  %461 = vmatprep.subr.mxu0 0.0
  %462 = vmatpush1.msra.mxu0 0.0
  %463 = vmatprep.subr.mxu0 0.0
  %464 = vmatpush1.msra.mxu0 0.0
  %465 = vmatprep.subr.mxu0 0.0
  %466 = vmatpush1.msra.mxu0 0.0
  %467 = vmatprep.subr.mxu0 0.0
  %468 = vmatpush1.msra.mxu0 0.0
  %469 = vmatprep.subr.mxu0 0.0
  %470 = vmatpush1.msra.mxu0 0.0
  %471 = vmatprep.subr.mxu0 0.0
  %472 = vmatpush1.msra.mxu0 0.0
  %473 = vmatprep.subr.mxu0 0.0
  %474 = vmatpush1.msra.mxu0 0.0
  %475 = vmatprep.subr.mxu0 0.0
  %476 = vmatpush1.msra.mxu0 0.0
  %477 = vmatprep.subr.mxu0 0.0
  %478 = vmatpush1.msra.mxu0 0.0
  %479 = vmatprep.subr.mxu0 0.0
  %480 = vmatpush1.msra.mxu0 0.0
  %481 = vmatprep.subr.mxu0 0.0
  %482 = vmatpush1.msra.mxu0 0.0
  %483 = vmatprep.subr.mxu0 0.0
  %484 = vmatpush1.msra.mxu0 0.0
  %485 = vmatprep.subr.mxu0 0.0
  %486 = vmatpush1.msra.mxu0 0.0
  %487 = vmatprep.mubr.f32.mxu0 0.0
  %488 = vmatmul.mubr.f32.gmra.mrb[0].mxu0 %v406
  %v489 = vpop.f32.mrb[0].mxu0
  %v490 = vadd.f32 1e-08, %v489
  %v491 = vpop.f32.mrb[0].mxu0
  %492 = vdwg.mxu0
  %v493 = vrsqrt.pop %v490
  %v494 = vld [vmem:[#allocation2] sm:$0xff]
  %v495 = vld [vmem:[#allocation2 + $0x8] sm:$0xff]
  %v496 = vld [vmem:[#allocation2 + $0x10] sm:$0xff]
  %v497 = vld [vmem:[#allocation2 + $0x18] sm:$0xff]
  %v498 = vld [vmem:[#allocation2 + $0x20] sm:$0xff]
  %v499 = vld [vmem:[#allocation2 + $0x28] sm:$0xff]
  %v500 = vld [vmem:[#allocation2 + $0x30] sm:$0xff]
  %v501 = vld [vmem:[#allocation2 + $0x38] sm:$0xff]
  %v502 = vld [vmem:[#allocation2 + $0x40] sm:$0xff]
  %v503 = vld [vmem:[#allocation2 + $0x48] sm:$0xff]
  %v504 = vld [vmem:[#allocation2 + $0x50] sm:$0xff]
  %v505 = vld [vmem:[#allocation2 + $0x58] sm:$0xff]
  %v506 = vld [vmem:[#allocation2 + $0x60] sm:$0xff]
  %v507 = vld [vmem:[#allocation2 + $0x68] sm:$0xff]
  %v508 = vld [vmem:[#allocation2 + $0x70] sm:$0xff]
  %v509 = vld [vmem:[#allocation2 + $0x78] sm:$0xff]
  %v510 = vld [vmem:[#allocation2 + $0x80] sm:$0xff]
  %v511 = vld [vmem:[#allocation2 + $0x88] sm:$0xff]
  %v512 = vld [vmem:[%s1] sm:$0xf]
  %v513 = vld [vmem:[%s1 + $0x4] sm:$0xf]
  %v514 = vld [vmem:[%s1 + $0x8] sm:$0xf]
  %v515 = vld [vmem:[%s1 + $0xc] sm:$0xf]
  %v516 = vld [vmem:[%s1 + $0x10] sm:$0xf]
  %v517 = vld [vmem:[%s1 + $0x14] sm:$0xf]
  %v518 = vld [vmem:[%s1 + $0x18] sm:$0xf]
  %v519 = vld [vmem:[%s1 + $0x1c] sm:$0xf]
  %v520 = vld [vmem:[%s1 + $0x20] sm:$0xf]
  %v521 = vld [vmem:[%s1 + $0x24] sm:$0xf]
  %v522 = vld [vmem:[%s1 + $0x28] sm:$0xf]
  %v523 = vld [vmem:[%s1 + $0x2c] sm:$0xf]
  %v524 = vld [vmem:[%s1 + $0x30] sm:$0xf]
  %v525 = vld [vmem:[%s1 + $0x34] sm:$0xf]
  %v526 = vld [vmem:[%s1 + $0x38] sm:$0xf]
  %v527 = vld [vmem:[%s1 + $0x3c] sm:$0xf]
  %v528 = vld [vmem:[%s1 + $0x40] sm:$0xf]
  %v529 = vld [vmem:[%s1 + $0x44] sm:$0xf]
  %v530 = vld [vmem:[%s1 + $0x48] sm:$0xf]
  %v531 = vld [vmem:[%s1 + $0x4c] sm:$0xf]
  %v532 = vld [vmem:[%s1 + $0x50] sm:$0xf]
  %v533 = vld [vmem:[%s1 + $0x54] sm:$0xf]
  %v534 = vld [vmem:[%s1 + $0x58] sm:$0xf]
  %v535 = vld [vmem:[%s1 + $0x5c] sm:$0xf]
  %v536 = vld [vmem:[%s1 + $0x60] sm:$0xf]
  %v537 = vld [vmem:[%s1 + $0x64] sm:$0xf]
  %v538 = vld [vmem:[%s1 + $0x68] sm:$0xf]
  %v539 = vld [vmem:[%s1 + $0x6c] sm:$0xf]
  %v540 = vld [vmem:[%s1 + $0x70] sm:$0xf]
  %v541 = vld [vmem:[%s1 + $0x74] sm:$0xf]
  %v542 = vld [vmem:[%s1 + $0x78] sm:$0xf]
  %v543 = vld [vmem:[%s1 + $0x7c] sm:$0xf]
  %v544 = vld [vmem:[%s1 + $0x80] sm:$0xf]
  %v545 = vld [vmem:[%s1 + $0x84] sm:$0xf]
  %v546 = vld [vmem:[%s1 + $0x88] sm:$0xf]
  %v547 = vld [vmem:[%s1 + $0x8c] sm:$0xf]
  %v548 = vld [vmem:[%s1 + $0x90] sm:$0xf]
  %v549 = vld [vmem:[%s1 + $0x94] sm:$0xf]
  %v550 = vld [vmem:[%s1 + $0x98] sm:$0xf]
  %v551 = vld [vmem:[%s1 + $0x9c] sm:$0xf]
  %v552 = vld [vmem:[%s1 + $0xa0] sm:$0xf]
  %v553 = vld [vmem:[%s1 + $0xa4] sm:$0xf]
  %v554 = vld [vmem:[%s1 + $0xa8] sm:$0xf]
  %v555 = vld [vmem:[%s1 + $0xac] sm:$0xf]
  %v556 = vld [vmem:[%s1 + $0xb0] sm:$0xf]
  %v557 = vld [vmem:[%s1 + $0xb4] sm:$0xf]
  %v558 = vld [vmem:[%s1 + $0xb8] sm:$0xf]
  %v559 = vld [vmem:[%s1 + $0xbc] sm:$0xf]
  %v560 = vld [vmem:[%s1 + $0xc0] sm:$0xf]
  %v561 = vld [vmem:[%s1 + $0xc4] sm:$0xf]
  %v562 = vld [vmem:[%s1 + $0xc8] sm:$0xf]
  %v563 = vld [vmem:[%s1 + $0xcc] sm:$0xf]
  %v564 = vld [vmem:[%s1 + $0xd0] sm:$0xf]
  %v565 = vld [vmem:[%s1 + $0xd4] sm:$0xf]
  %v566 = vld [vmem:[%s1 + $0xd8] sm:$0xf]
  %v567 = vld [vmem:[%s1 + $0xdc] sm:$0xf]
  %v568 = vld [vmem:[%s1 + $0xe0] sm:$0xf]
  %v569 = vld [vmem:[%s1 + $0xe4] sm:$0xf]
  %v570 = vld [vmem:[%s1 + $0xe8] sm:$0xf]
  %v571 = vld [vmem:[%s1 + $0xec] sm:$0xf]
  %v572 = vld [vmem:[%s1 + $0xf0] sm:$0xf]
  %v573 = vld [vmem:[%s1 + $0xf4] sm:$0xf]
  %v574 = vld [vmem:[%s1 + $0xf8] sm:$0xf]
  %v575 = vld [vmem:[%s1 + $0xfc] sm:$0xf]
  %v576 = vld [vmem:[%s1 + $0x100] sm:$0xf]
  %v577 = vld [vmem:[%s1 + $0x104] sm:$0xf]
  %v578 = vld [vmem:[%s1 + $0x108] sm:$0xf]
  %v579 = vld [vmem:[%s1 + $0x10c] sm:$0xf]
  %v580 = vld [vmem:[%s1 + $0x110] sm:$0xf]
  %v581 = vld [vmem:[%s1 + $0x114] sm:$0xf]
  %v582 = vld [vmem:[%s1 + $0x118] sm:$0xf]
  %v583 = vld [vmem:[%s1 + $0x11c] sm:$0xf]
  %v584 = vld [vmem:[%s1 + $0x120] sm:$0xf]
  %v585 = vld [vmem:[%s1 + $0x124] sm:$0xf]
  %v586 = vld [vmem:[%s1 + $0x128] sm:$0xf]
  %v587 = vld [vmem:[%s1 + $0x12c] sm:$0xf]
  %v588 = vld [vmem:[%s1 + $0x130] sm:$0xf]
  %v589 = vld [vmem:[%s1 + $0x134] sm:$0xf]
  %v590 = vld [vmem:[%s1 + $0x138] sm:$0xf]
  %v591 = vld [vmem:[%s1 + $0x13c] sm:$0xf]
  %v592 = vld [vmem:[%s1 + $0x140] sm:$0xf]
  %v593 = vld [vmem:[%s1 + $0x144] sm:$0xf]
  %v594 = vld [vmem:[%s1 + $0x148] sm:$0xf]
  %v595 = vld [vmem:[%s1 + $0x14c] sm:$0xf]
  %v596 = vld [vmem:[%s1 + $0x150] sm:$0xf]
  %v597 = vld [vmem:[%s1 + $0x154] sm:$0xf]
  %v598 = vld [vmem:[%s1 + $0x158] sm:$0xf]
  %v599 = vld [vmem:[%s1 + $0x15c] sm:$0xf]
  %v600 = vld [vmem:[%s1 + $0x160] sm:$0xf]
  %v601 = vld [vmem:[%s1 + $0x164] sm:$0xf]
  %v602 = vld [vmem:[%s1 + $0x168] sm:$0xf]
  %v603 = vld [vmem:[%s1 + $0x16c] sm:$0xf]
  %v604 = vld [vmem:[%s1 + $0x170] sm:$0xf]
  %v605 = vld [vmem:[%s1 + $0x174] sm:$0xf]
  %v606 = vld [vmem:[%s1 + $0x178] sm:$0xf]
  %v607 = vld [vmem:[%s1 + $0x17c] sm:$0xf]
  %v608 = vld [vmem:[%s1 + $0x180] sm:$0xf]
  %v609 = vld [vmem:[%s1 + $0x184] sm:$0xf]
  %v610 = vld [vmem:[%s1 + $0x188] sm:$0xf]
  %v611 = vld [vmem:[%s1 + $0x18c] sm:$0xf]
  %v612 = vld [vmem:[%s1 + $0x190] sm:$0xf]
  %v613 = vld [vmem:[%s1 + $0x194] sm:$0xf]
  %v614 = vld [vmem:[%s1 + $0x198] sm:$0xf]
  %v615 = vld [vmem:[%s1 + $0x19c] sm:$0xf]
  %v616 = vld [vmem:[%s1 + $0x1a0] sm:$0xf]
  %v617 = vld [vmem:[%s1 + $0x1a4] sm:$0xf]
  %v618 = vld [vmem:[%s1 + $0x1a8] sm:$0xf]
  %v619 = vld [vmem:[%s1 + $0x1ac] sm:$0xf]
  %v620 = vld [vmem:[%s1 + $0x1b0] sm:$0xf]
  %v621 = vld [vmem:[%s1 + $0x1b4] sm:$0xf]
  %v622 = vld [vmem:[%s1 + $0x1b8] sm:$0xf]
  %v623 = vld [vmem:[%s1 + $0x1bc] sm:$0xf]
  %v624 = vld [vmem:[%s1 + $0x1c0] sm:$0xf]
  %v625 = vld [vmem:[%s1 + $0x1c4] sm:$0xf]
  %v626 = vld [vmem:[%s1 + $0x1c8] sm:$0xf]
  %v627 = vld [vmem:[%s1 + $0x1cc] sm:$0xf]
  %v628 = vld [vmem:[%s1 + $0x1d0] sm:$0xf]
  %v629 = vld [vmem:[%s1 + $0x1d4] sm:$0xf]
  %v630 = vld [vmem:[%s1 + $0x1d8] sm:$0xf]
  %v631 = vld [vmem:[%s1 + $0x1dc] sm:$0xf]
  %v632 = vld [vmem:[%s1 + $0x1e0] sm:$0xf]
  %v633 = vld [vmem:[%s1 + $0x1e4] sm:$0xf]
  %v634 = vld [vmem:[%s1 + $0x1e8] sm:$0xf]
  %v635 = vld [vmem:[%s1 + $0x1ec] sm:$0xf]
  %v636 = vld [vmem:[%s1 + $0x1f0] sm:$0xf]
  %v637 = vld [vmem:[%s1 + $0x1f4] sm:$0xf]
  %v638 = vld [vmem:[%s1 + $0x1f8] sm:$0xf]
  %v639 = vld [vmem:[%s1 + $0x1fc] sm:$0xf]
  %v640 = vld [vmem:[%s1 + $0x200] sm:$0xf]
  %v641 = vld [vmem:[%s1 + $0x204] sm:$0xf]
  %v642 = vld [vmem:[%s1 + $0x208] sm:$0xf]
  %v643 = vld [vmem:[%s1 + $0x20c] sm:$0xf]
  %v644 = vld [vmem:[%s1 + $0x210] sm:$0xf]
  %v645 = vld [vmem:[%s1 + $0x214] sm:$0xf]
  %v646 = vld [vmem:[%s1 + $0x218] sm:$0xf]
  %v647 = vld [vmem:[%s1 + $0x21c] sm:$0xf]
  %v648 = vld [vmem:[%s1 + $0x220] sm:$0xf]
  %v649 = vld [vmem:[%s1 + $0x224] sm:$0xf]
  %v650 = vld [vmem:[%s1 + $0x228] sm:$0xf]
  %v651 = vld [vmem:[%s1 + $0x22c] sm:$0xf]
  %v652 = vld [vmem:[%s1 + $0x230] sm:$0xf]
  %v653 = vld [vmem:[%s1 + $0x234] sm:$0xf]
  %v654 = vld [vmem:[%s1 + $0x238] sm:$0xf]
  %v655 = vld [vmem:[%s1 + $0x23c] sm:$0xf]
  %v800 = vunpack.c.l.b16 %v512
  %v801 = vunpack.c.l.b16 %v513
  %v802 = vunpack.c.l.b16 %v514
  %v803 = vunpack.c.l.b16 %v515
  %v804 = vunpack.c.l.b16 %v516
  %v805 = vunpack.c.l.b16 %v517
  %v806 = vunpack.c.l.b16 %v518
  %v807 = vunpack.c.l.b16 %v519
  %v808 = vunpack.c.l.b16 %v520
  %v809 = vunpack.c.l.b16 %v521
  %v810 = vunpack.c.l.b16 %v522
  %v811 = vunpack.c.l.b16 %v523
  %v812 = vunpack.c.l.b16 %v524
  %v813 = vunpack.c.l.b16 %v525
  %v814 = vunpack.c.l.b16 %v526
  %v815 = vunpack.c.l.b16 %v527
  %v816 = vunpack.c.l.b16 %v528
  %v817 = vunpack.c.l.b16 %v529
  %v818 = vunpack.c.l.b16 %v530
  %v819 = vunpack.c.l.b16 %v531
  %v820 = vunpack.c.l.b16 %v532
  %v821 = vunpack.c.l.b16 %v533
  %v822 = vunpack.c.l.b16 %v534
  %v823 = vunpack.c.l.b16 %v535
  %v824 = vunpack.c.l.b16 %v536
  %v825 = vunpack.c.l.b16 %v537
  %v826 = vunpack.c.l.b16 %v538
  %v827 = vunpack.c.l.b16 %v539
  %v828 = vunpack.c.l.b16 %v540
  %v829 = vunpack.c.l.b16 %v541
  %v830 = vunpack.c.l.b16 %v542
  %v831 = vunpack.c.l.b16 %v543
  %v832 = vunpack.c.l.b16 %v544
  %v833 = vunpack.c.l.b16 %v545
  %v834 = vunpack.c.l.b16 %v546
  %v835 = vunpack.c.l.b16 %v547
  %v836 = vunpack.c.l.b16 %v548
  %v837 = vunpack.c.l.b16 %v549
  %v838 = vunpack.c.l.b16 %v550
  %v839 = vunpack.c.l.b16 %v551
  %v840 = vunpack.c.l.b16 %v552
  %v841 = vunpack.c.l.b16 %v553
  %v842 = vunpack.c.l.b16 %v554
  %v843 = vunpack.c.l.b16 %v555
  %v844 = vunpack.c.l.b16 %v556
  %v845 = vunpack.c.l.b16 %v557
  %v846 = vunpack.c.l.b16 %v558
  %v847 = vunpack.c.l.b16 %v559
  %v848 = vunpack.c.l.b16 %v560
  %v849 = vunpack.c.l.b16 %v561
  %v850 = vunpack.c.l.b16 %v562
  %v851 = vunpack.c.l.b16 %v563
  %v852 = vunpack.c.l.b16 %v564
  %v853 = vunpack.c.l.b16 %v565
  %v854 = vunpack.c.l.b16 %v566
  %v855 = vunpack.c.l.b16 %v567
  %v856 = vunpack.c.l.b16 %v568
  %v857 = vunpack.c.l.b16 %v569
  %v858 = vunpack.c.l.b16 %v570
  %v859 = vunpack.c.l.b16 %v571
  %v860 = vunpack.c.l.b16 %v572
  %v861 = vunpack.c.l.b16 %v573
  %v862 = vunpack.c.l.b16 %v574
  %v863 = vunpack.c.l.b16 %v575
  %v864 = vunpack.c.l.b16 %v576
  %v865 = vunpack.c.l.b16 %v577
  %v866 = vunpack.c.l.b16 %v578
  %v867 = vunpack.c.l.b16 %v579
  %v868 = vunpack.c.l.b16 %v580
  %v869 = vunpack.c.l.b16 %v581
  %v870 = vunpack.c.l.b16 %v582
  %v871 = vunpack.c.l.b16 %v583
  %v872 = vunpack.c.l.b16 %v584
  %v873 = vunpack.c.l.b16 %v585
  %v874 = vunpack.c.l.b16 %v586
  %v875 = vunpack.c.l.b16 %v587
  %v876 = vunpack.c.l.b16 %v588
  %v877 = vunpack.c.l.b16 %v589
  %v878 = vunpack.c.l.b16 %v590
  %v879 = vunpack.c.l.b16 %v591
  %v880 = vunpack.c.l.b16 %v592
  %v881 = vunpack.c.l.b16 %v593
  %v882 = vunpack.c.l.b16 %v594
  %v883 = vunpack.c.l.b16 %v595
  %v884 = vunpack.c.l.b16 %v596
  %v885 = vunpack.c.l.b16 %v597
  %v886 = vunpack.c.l.b16 %v598
  %v887 = vunpack.c.l.b16 %v599
  %v888 = vunpack.c.l.b16 %v600
  %v889 = vunpack.c.l.b16 %v601
  %v890 = vunpack.c.l.b16 %v602
  %v891 = vunpack.c.l.b16 %v603
  %v892 = vunpack.c.l.b16 %v604
  %v893 = vunpack.c.l.b16 %v605
  %v894 = vunpack.c.l.b16 %v606
  %v895 = vunpack.c.l.b16 %v607
  %v896 = vunpack.c.l.b16 %v608
  %v897 = vunpack.c.l.b16 %v609
  %v898 = vunpack.c.l.b16 %v610
  %v899 = vunpack.c.l.b16 %v611
  %v900 = vunpack.c.l.b16 %v612
  %v901 = vunpack.c.l.b16 %v613
  %v902 = vunpack.c.l.b16 %v614
  %v903 = vunpack.c.l.b16 %v615
  %v904 = vunpack.c.l.b16 %v616
  %v905 = vunpack.c.l.b16 %v617
  %v906 = vunpack.c.l.b16 %v618
  %v907 = vunpack.c.l.b16 %v619
  %v908 = vunpack.c.l.b16 %v620
  %v909 = vunpack.c.l.b16 %v621
  %v910 = vunpack.c.l.b16 %v622
  %v911 = vunpack.c.l.b16 %v623
  %v912 = vunpack.c.l.b16 %v624
  %v913 = vunpack.c.l.b16 %v625
  %v914 = vunpack.c.l.b16 %v626
  %v915 = vunpack.c.l.b16 %v627
  %v916 = vunpack.c.l.b16 %v628
  %v917 = vunpack.c.l.b16 %v629
  %v918 = vunpack.c.l.b16 %v630
  %v919 = vunpack.c.l.b16 %v631
  %v920 = vunpack.c.l.b16 %v632
  %v921 = vunpack.c.l.b16 %v633
  %v922 = vunpack.c.l.b16 %v634
  %v923 = vunpack.c.l.b16 %v635
  %v924 = vunpack.c.l.b16 %v636
  %v925 = vunpack.c.l.b16 %v637
  %v926 = vunpack.c.l.b16 %v638
  %v927 = vunpack.c.l.b16 %v639
  %v928 = vunpack.c.l.b16 %v640
  %v929 = vunpack.c.l.b16 %v641
  %v930 = vunpack.c.l.b16 %v642
  %v931 = vunpack.c.l.b16 %v643
  %v932 = vunpack.c.l.b16 %v644
  %v933 = vunpack.c.l.b16 %v645
  %v934 = vunpack.c.l.b16 %v646
  %v935 = vunpack.c.l.b16 %v647
  %v936 = vunpack.c.l.b16 %v648
  %v937 = vunpack.c.l.b16 %v649
  %v938 = vunpack.c.l.b16 %v650
  %v939 = vunpack.c.l.b16 %v651
  %v940 = vunpack.c.l.b16 %v652
  %v941 = vunpack.c.l.b16 %v653
  %v942 = vunpack.c.l.b16 %v654
  %v943 = vunpack.c.l.b16 %v655
  %v944 = vpack.c.b16 %v801, %v800
  %v945 = vpack.c.b16 %v803, %v802
  %v946 = vpack.c.b16 %v805, %v804
  %v947 = vpack.c.b16 %v807, %v806
  %v948 = vpack.c.b16 %v809, %v808
  %v949 = vpack.c.b16 %v811, %v810
  %v950 = vpack.c.b16 %v813, %v812
  %v951 = vpack.c.b16 %v815, %v814
  %v952 = vpack.c.b16 %v817, %v816
  %v953 = vpack.c.b16 %v819, %v818
  %v954 = vpack.c.b16 %v821, %v820
  %v955 = vpack.c.b16 %v823, %v822
  %v956 = vpack.c.b16 %v825, %v824
  %v957 = vpack.c.b16 %v827, %v826
  %v958 = vpack.c.b16 %v829, %v828
  %v959 = vpack.c.b16 %v831, %v830
  %v960 = vpack.c.b16 %v833, %v832
  %v961 = vpack.c.b16 %v835, %v834
  %v962 = vpack.c.b16 %v837, %v836
  %v963 = vpack.c.b16 %v839, %v838
  %v964 = vpack.c.b16 %v841, %v840
  %v965 = vpack.c.b16 %v843, %v842
  %v966 = vpack.c.b16 %v845, %v844
  %v967 = vpack.c.b16 %v847, %v846
  %v968 = vpack.c.b16 %v849, %v848
  %v969 = vpack.c.b16 %v851, %v850
  %v970 = vpack.c.b16 %v853, %v852
  %v971 = vpack.c.b16 %v855, %v854
  %v972 = vpack.c.b16 %v857, %v856
  %v973 = vpack.c.b16 %v859, %v858
  %v974 = vpack.c.b16 %v861, %v860
  %v975 = vpack.c.b16 %v863, %v862
  %v976 = vpack.c.b16 %v865, %v864
  %v977 = vpack.c.b16 %v867, %v866
  %v978 = vpack.c.b16 %v869, %v868
  %v979 = vpack.c.b16 %v871, %v870
  %v980 = vpack.c.b16 %v873, %v872
  %v981 = vpack.c.b16 %v875, %v874
  %v982 = vpack.c.b16 %v877, %v876
  %v983 = vpack.c.b16 %v879, %v878
  %v984 = vpack.c.b16 %v881, %v880
  %v985 = vpack.c.b16 %v883, %v882
  %v986 = vpack.c.b16 %v885, %v884
  %v987 = vpack.c.b16 %v887, %v886
  %v988 = vpack.c.b16 %v889, %v888
  %v989 = vpack.c.b16 %v891, %v890
  %v990 = vpack.c.b16 %v893, %v892
  %v991 = vpack.c.b16 %v895, %v894
  %v992 = vpack.c.b16 %v897, %v896
  %v993 = vpack.c.b16 %v899, %v898
  %v994 = vpack.c.b16 %v901, %v900
  %v995 = vpack.c.b16 %v903, %v902
  %v996 = vpack.c.b16 %v905, %v904
  %v997 = vpack.c.b16 %v907, %v906
  %v998 = vpack.c.b16 %v909, %v908
  %v999 = vpack.c.b16 %v911, %v910
  %v1000 = vpack.c.b16 %v913, %v912
  %v1001 = vpack.c.b16 %v915, %v914
  %v1002 = vpack.c.b16 %v917, %v916
  %v1003 = vpack.c.b16 %v919, %v918
  %v1004 = vpack.c.b16 %v921, %v920
  %v1005 = vpack.c.b16 %v923, %v922
  %v1006 = vpack.c.b16 %v925, %v924
  %v1007 = vpack.c.b16 %v927, %v926
  %v1008 = vpack.c.b16 %v929, %v928
  %v1009 = vpack.c.b16 %v931, %v930
  %v1010 = vpack.c.b16 %v933, %v932
  %v1011 = vpack.c.b16 %v935, %v934
  %v1012 = vpack.c.b16 %v937, %v936
  %v1013 = vpack.c.b16 %v939, %v938
  %v1014 = vpack.c.b16 %v941, %v940
  %v1015 = vpack.c.b16 %v943, %v942
  %1088 = vmatprep.subr.bf16.mxu0 0
  %1089 = vmatpush1.bf16.msra.mxu0 %v944
  %1090 = vmatprep.subr.bf16.mxu0 0
  %1091 = vmatpush1.bf16.msra.mxu0 %v945
  %1092 = vmatprep.subr.bf16.mxu0 0
  %1093 = vmatpush1.bf16.msra.mxu0 %v946
  %1094 = vmatprep.subr.bf16.mxu0 0
  %1095 = vmatpush1.bf16.msra.mxu0 %v947
  %1096 = vmatprep.subr.bf16.mxu0 0
  %1097 = vmatpush1.bf16.msra.mxu0 %v948
  %1098 = vmatprep.subr.bf16.mxu0 0
  %1099 = vmatpush1.bf16.msra.mxu0 %v949
  %1100 = vmatprep.subr.bf16.mxu0 0
  %1101 = vmatpush1.bf16.msra.mxu0 %v950
  %1102 = vmatprep.subr.bf16.mxu0 0
  %1103 = vmatpush1.bf16.msra.mxu0 %v951
  %1104 = vmatprep.subr.bf16.mxu0 0
  %1105 = vmatpush1.bf16.msra.mxu0 %v952
  %1106 = vmatprep.subr.bf16.mxu0 0
  %1107 = vmatpush1.bf16.msra.mxu0 %v953
  %1108 = vmatprep.subr.bf16.mxu0 0
  %1109 = vmatpush1.bf16.msra.mxu0 %v954
  %1110 = vmatprep.subr.bf16.mxu0 0
  %1111 = vmatpush1.bf16.msra.mxu0 %v955
  %1112 = vmatprep.subr.bf16.mxu0 0
  %1113 = vmatpush1.bf16.msra.mxu0 %v956
  %1114 = vmatprep.subr.bf16.mxu0 0
  %1115 = vmatpush1.bf16.msra.mxu0 %v957
  %1116 = vmatprep.subr.bf16.mxu0 0
  %1117 = vmatpush1.bf16.msra.mxu0 %v958
  %1118 = vmatprep.subr.bf16.mxu0 0
  %1119 = vmatpush1.bf16.msra.mxu0 %v959
  %1120 = vmatprep.mubr.bf16.mxu0 %v495
  %1121 = vmatmul.mubr.bf16.gmra.mrb[0].mxu0 %v494
  %v1122 = vpop.f32.mrb[0].mxu0
  %v1123 = vadd.f32 0.0, %v1122
  %v1124 = vpop.f32.mrb[0].mxu0
  %v1125 = vpop.f32.mrb[0].mxu0
  %v1126 = vadd.f32 0.0, %v1125
  %v1127 = vpop.f32.mrb[0].mxu0
  %1128 = vmatprep.mubr.bf16.mxu0 %v504
  %1129 = vmatmul.mubr.bf16.gmra.mrb[0].mxu0 %v503
  %v1130 = vpop.f32.mrb[0].mxu0
  %v1131 = vadd.f32 0.0, %v1130
  %v1132 = vpop.f32.mrb[0].mxu0
  %v1133 = vpop.f32.mrb[0].mxu0
  %v1134 = vadd.f32 0.0, %v1133
  %v1135 = vpop.f32.mrb[0].mxu0
  %1136 = vdwg.mxu0
  %1137 = vmatprep.subr.bf16.mxu0 0
  %1138 = vmatpush1.bf16.msra.mxu0 %v960
  %1139 = vmatprep.subr.bf16.mxu0 0
  %1140 = vmatpush1.bf16.msra.mxu0 %v961
  %1141 = vmatprep.subr.bf16.mxu0 0
  %1142 = vmatpush1.bf16.msra.mxu0 %v962
  %1143 = vmatprep.subr.bf16.mxu0 0
  %1144 = vmatpush1.bf16.msra.mxu0 %v963
  %1145 = vmatprep.subr.bf16.mxu0 0
  %1146 = vmatpush1.bf16.msra.mxu0 %v964
  %1147 = vmatprep.subr.bf16.mxu0 0
  %1148 = vmatpush1.bf16.msra.mxu0 %v965
  %1149 = vmatprep.subr.bf16.mxu0 0
  %1150 = vmatpush1.bf16.msra.mxu0 %v966
  %1151 = vmatprep.subr.bf16.mxu0 0
  %1152 = vmatpush1.bf16.msra.mxu0 %v967
  %1153 = vmatprep.subr.bf16.mxu0 0
  %1154 = vmatpush1.bf16.msra.mxu0 %v968
  %1155 = vmatprep.subr.bf16.mxu0 0
  %1156 = vmatpush1.bf16.msra.mxu0 %v969
  %1157 = vmatprep.subr.bf16.mxu0 0
  %1158 = vmatpush1.bf16.msra.mxu0 %v970
  %1159 = vmatprep.subr.bf16.mxu0 0
  %1160 = vmatpush1.bf16.msra.mxu0 %v971
  %1161 = vmatprep.subr.bf16.mxu0 0
  %1162 = vmatpush1.bf16.msra.mxu0 %v972
  %1163 = vmatprep.subr.bf16.mxu0 0
  %1164 = vmatpush1.bf16.msra.mxu0 %v973
  %1165 = vmatprep.subr.bf16.mxu0 0
  %1166 = vmatpush1.bf16.msra.mxu0 %v974
  %1167 = vmatprep.subr.bf16.mxu0 0
  %1168 = vmatpush1.bf16.msra.mxu0 %v975
  %1169 = vmatprep.mubr.bf16.mxu0 %v497
  %1170 = vmatmul.mubr.bf16.gmra.mrb[0].mxu0 %v496
  %v1171 = vpop.f32.mrb[0].mxu0
  %v1172 = vadd.f32 %v1123, %v1171
  %v1173 = vpop.f32.mrb[0].mxu0
  %v1174 = vpop.f32.mrb[0].mxu0
  %v1175 = vadd.f32 %v1126, %v1174
  %v1176 = vpop.f32.mrb[0].mxu0
  %1177 = vmatprep.mubr.bf16.mxu0 %v506
  %1178 = vmatmul.mubr.bf16.gmra.mrb[0].mxu0 %v505
  %v1179 = vpop.f32.mrb[0].mxu0
  %v1180 = vadd.f32 %v1131, %v1179
  %v1181 = vpop.f32.mrb[0].mxu0
  %v1182 = vpop.f32.mrb[0].mxu0
  %v1183 = vadd.f32 %v1134, %v1182
  %v1184 = vpop.f32.mrb[0].mxu0
  %1185 = vdwg.mxu0
  %1186 = vmatprep.subr.bf16.mxu0 0
  %1187 = vmatpush1.bf16.msra.mxu0 %v976
  %1188 = vmatprep.subr.bf16.mxu0 0
  %1189 = vmatpush1.bf16.msra.mxu0 %v977
  %1190 = vmatprep.subr.bf16.mxu0 0
  %1191 = vmatpush1.bf16.msra.mxu0 %v978
  %1192 = vmatprep.subr.bf16.mxu0 0
  %1193 = vmatpush1.bf16.msra.mxu0 %v979
  %1194 = vmatprep.subr.bf16.mxu0 0
  %1195 = vmatpush1.bf16.msra.mxu0 %v980
  %1196 = vmatprep.subr.bf16.mxu0 0
  %1197 = vmatpush1.bf16.msra.mxu0 %v981
  %1198 = vmatprep.subr.bf16.mxu0 0
  %1199 = vmatpush1.bf16.msra.mxu0 %v982
  %1200 = vmatprep.subr.bf16.mxu0 0
  %1201 = vmatpush1.bf16.msra.mxu0 %v983
  %1202 = vmatprep.subr.bf16.mxu0 0
  %1203 = vmatpush1.bf16.msra.mxu0 %v984
  %1204 = vmatprep.subr.bf16.mxu0 0
  %1205 = vmatpush1.bf16.msra.mxu0 %v985
  %1206 = vmatprep.subr.bf16.mxu0 0
  %1207 = vmatpush1.bf16.msra.mxu0 %v986
  %1208 = vmatprep.subr.bf16.mxu0 0
  %1209 = vmatpush1.bf16.msra.mxu0 %v987
  %1210 = vmatprep.subr.bf16.mxu0 0
  %1211 = vmatpush1.bf16.msra.mxu0 %v988
  %1212 = vmatprep.subr.bf16.mxu0 0
  %1213 = vmatpush1.bf16.msra.mxu0 %v989
  %1214 = vmatprep.subr.bf16.mxu0 0
  %1215 = vmatpush1.bf16.msra.mxu0 %v990
  %1216 = vmatprep.subr.bf16.mxu0 0
  %1217 = vmatpush1.bf16.msra.mxu0 %v991
  %1218 = vmatprep.mubr.bf16.mxu0 %v499
  %1219 = vmatmul.mubr.bf16.gmra.mrb[0].mxu0 %v498
  %v1220 = vpop.f32.mrb[0].mxu0
  %v1221 = vadd.f32 %v1172, %v1220
  %v1222 = vpop.f32.mrb[0].mxu0
  %v1223 = vpop.f32.mrb[0].mxu0
  %v1224 = vadd.f32 %v1175, %v1223
  %v1225 = vpop.f32.mrb[0].mxu0
  %1226 = vmatprep.mubr.bf16.mxu0 %v508
  %1227 = vmatmul.mubr.bf16.gmra.mrb[0].mxu0 %v507
  %v1228 = vpop.f32.mrb[0].mxu0
  %v1229 = vadd.f32 %v1180, %v1228
  %v1230 = vpop.f32.mrb[0].mxu0
  %v1231 = vpop.f32.mrb[0].mxu0
  %v1232 = vadd.f32 %v1183, %v1231
  %v1233 = vpop.f32.mrb[0].mxu0
  %1234 = vdwg.mxu0
  %1235 = vmatprep.subr.bf16.mxu0 0
  %1236 = vmatpush1.bf16.msra.mxu0 %v992
  %1237 = vmatprep.subr.bf16.mxu0 0
  %1238 = vmatpush1.bf16.msra.mxu0 %v993
  %1239 = vmatprep.subr.bf16.mxu0 0
  %1240 = vmatpush1.bf16.msra.mxu0 %v994
  %1241 = vmatprep.subr.bf16.mxu0 0
  %1242 = vmatpush1.bf16.msra.mxu0 %v995
  %1243 = vmatprep.subr.bf16.mxu0 0
  %1244 = vmatpush1.bf16.msra.mxu0 %v996
  %1245 = vmatprep.subr.bf16.mxu0 0
  %1246 = vmatpush1.bf16.msra.mxu0 %v997
  %1247 = vmatprep.subr.bf16.mxu0 0
  %1248 = vmatpush1.bf16.msra.mxu0 %v998
  %1249 = vmatprep.subr.bf16.mxu0 0
  %1250 = vmatpush1.bf16.msra.mxu0 %v999
  %1251 = vmatprep.subr.bf16.mxu0 0
  %1252 = vmatpush1.bf16.msra.mxu0 %v1000
  %1253 = vmatprep.subr.bf16.mxu0 0
  %1254 = vmatpush1.bf16.msra.mxu0 %v1001
  %1255 = vmatprep.subr.bf16.mxu0 0
  %1256 = vmatpush1.bf16.msra.mxu0 %v1002
  %1257 = vmatprep.subr.bf16.mxu0 0
  %1258 = vmatpush1.bf16.msra.mxu0 %v1003
  %1259 = vmatprep.subr.bf16.mxu0 0
  %1260 = vmatpush1.bf16.msra.mxu0 %v1004
  %1261 = vmatprep.subr.bf16.mxu0 0
  %1262 = vmatpush1.bf16.msra.mxu0 %v1005
  %1263 = vmatprep.subr.bf16.mxu0 0
  %1264 = vmatpush1.bf16.msra.mxu0 %v1006
  %1265 = vmatprep.subr.bf16.mxu0 0
  %1266 = vmatpush1.bf16.msra.mxu0 %v1007
  %1267 = vmatprep.mubr.bf16.mxu0 %v501
  %1268 = vmatmul.mubr.bf16.gmra.mrb[0].mxu0 %v500
  %v1269 = vpop.f32.mrb[0].mxu0
  %v1270 = vadd.f32 %v1221, %v1269
  %v1271 = vpop.f32.mrb[0].mxu0
  %v1272 = vpop.f32.mrb[0].mxu0
  %v1273 = vadd.f32 %v1224, %v1272
  %v1274 = vpop.f32.mrb[0].mxu0
  %1275 = vmatprep.mubr.bf16.mxu0 %v510
  %1276 = vmatmul.mubr.bf16.gmra.mrb[0].mxu0 %v509
  %v1277 = vpop.f32.mrb[0].mxu0
  %v1278 = vadd.f32 %v1229, %v1277
  %v1279 = vpop.f32.mrb[0].mxu0
  %v1280 = vpop.f32.mrb[0].mxu0
  %v1281 = vadd.f32 %v1232, %v1280
  %v1282 = vpop.f32.mrb[0].mxu0
  %1283 = vdwg.mxu0
  %1284 = vmatprep.subr.bf16.mxu0 0
  %1285 = vmatpush1.bf16.msra.mxu0 %v1008
  %1286 = vmatprep.subr.bf16.mxu0 0
  %1287 = vmatpush1.bf16.msra.mxu0 %v1009
  %1288 = vmatprep.subr.bf16.mxu0 0
  %1289 = vmatpush1.bf16.msra.mxu0 %v1010
  %1290 = vmatprep.subr.bf16.mxu0 0
  %1291 = vmatpush1.bf16.msra.mxu0 %v1011
  %1292 = vmatprep.subr.bf16.mxu0 0
  %1293 = vmatpush1.bf16.msra.mxu0 %v1012
  %1294 = vmatprep.subr.bf16.mxu0 0
  %1295 = vmatpush1.bf16.msra.mxu0 %v1013
  %1296 = vmatprep.subr.bf16.mxu0 0
  %1297 = vmatpush1.bf16.msra.mxu0 %v1014
  %1298 = vmatprep.subr.bf16.mxu0 0
  %1299 = vmatpush1.bf16.msra.mxu0 %v1015
  %1300 = vmatprep.subr.bf16.mxu0 0
  %1301 = vmatpush1.bf16.msra.mxu0 0
  %1302 = vmatprep.subr.bf16.mxu0 0
  %1303 = vmatpush1.bf16.msra.mxu0 0
  %1304 = vmatprep.subr.bf16.mxu0 0
  %1305 = vmatpush1.bf16.msra.mxu0 0
  %1306 = vmatprep.subr.bf16.mxu0 0
  %1307 = vmatpush1.bf16.msra.mxu0 0
  %1308 = vmatprep.subr.bf16.mxu0 0
  %1309 = vmatpush1.bf16.msra.mxu0 0
  %1310 = vmatprep.subr.bf16.mxu0 0
  %1311 = vmatpush1.bf16.msra.mxu0 0
  %1312 = vmatprep.subr.bf16.mxu0 0
  %1313 = vmatpush1.bf16.msra.mxu0 0
  %1314 = vmatprep.subr.bf16.mxu0 0
  %1315 = vmatpush1.bf16.msra.mxu0 0
  %1316 = vmatprep.mubr.bf16.mxu0 0
  %1317 = vmatmul.mubr.bf16.gmra.mrb[0].mxu0 %v502
  %v1318 = vpop.f32.mrb[0].mxu0
  %v1319 = vadd.f32 %v1270, %v1318
  %v1320 = vpop.f32.mrb[0].mxu0
  %v1321 = vpop.f32.mrb[0].mxu0
  %v1322 = vadd.f32 %v1273, %v1321
  %v1323 = vpop.f32.mrb[0].mxu0
  %1324 = vmatprep.mubr.bf16.mxu0 0
  %1325 = vmatmul.mubr.bf16.gmra.mrb[0].mxu0 %v511
  %v1326 = vpop.f32.mrb[0].mxu0
  %v1327 = vadd.f32 %v1278, %v1326
  %v1328 = vpop.f32.mrb[0].mxu0
  %v1329 = vpop.f32.mrb[0].mxu0
  %v1330 = vadd.f32 %v1281, %v1329
  %v1331 = vpop.f32.mrb[0].mxu0
  %1332 = vdwg.mxu0
  %v1335 = vunpack.c.l.s4 1966171168
  %v1336 = vunpack.c.0.s8 %v1335
  %v1337 = vlaneseq
  %v1338 = vshrl.u32 %v1337, 7
  %v1339 = vsub.s32 %v1336, %v1338
  %v1340 = vrot.slane %v493, %v1339
  %v1341 = vcombine.high %v1340, %v1340
  %v1343 = vunpack.c.l.s4 1966171168
  %v1344 = vunpack.c.0.s8 %v1343
  %v1345 = vlaneseq
  %v1346 = vshrl.u32 %v1345, 7
  %v1347 = vsub.s32 %v1344, %v1346
  %v1348 = vrot.slane %v1340, %v1347
  %v1350 = vunpack.c.l.s4 1966171168
  %v1351 = vunpack.c.0.s8 %v1350
  %v1352 = vlaneseq
  %v1353 = vshrl.u32 %v1352, 7
  %v1354 = vsub.s32 %v1351, %v1353
  %v1355 = vrot.slane %v1341, %v1354
  %v1356 = vlaneseq
  %v1357 = vshrl.u32 %v1356, 7
  %v1358 = vsub.s32 0, %v1357
  %v1359 = vrot.slane %v1348, %v1358
  %v1360 = vlaneseq
  %v1361 = vshrl.u32 %v1360, 7
  %v1362 = vsub.s32 0, %v1361
  %v1363 = vrot.slane %v1355, %v1362
  %v1366 = vmul.f32 %v1319, %v1359
  %v1367 = vmul.f32 %v1322, %v1359
  %v1368 = vmul.f32 %v1327, %v1363
  %v1369 = vmul.f32 %v1330, %v1363
  %v1370 = vld [vmem:[%s4] sm:$0x1]
  %v1372 = vlaneseq
  %v1373 = vshrl.u32 %v1372, 7
  %v1374 = vsub.s32 0, %v1373
  %v1375 = vrot.slane %v1370, %v1374
  %v1377 = vadd.f32 %v1366, %v1375
  %v1378 = vadd.f32 %v1367, %v1375
  %v1379 = vadd.f32 %v1368, %v1375
  %v1380 = vadd.f32 %v1369, %v1375
  %vm1381 = vcmp.ge.f32.partialorder %v1377, 0.0
  %vm1382 = vcmp.ge.f32.partialorder %v1378, 0.0
  %vm1383 = vcmp.ge.f32.partialorder %v1379, 0.0
  %vm1384 = vcmp.ge.f32.partialorder %v1380, 0.0
  %v1385 = vmul.f32 %v1377, 0.2
  %v1386 = vmul.f32 %v1378, 0.2
  %v1387 = vmul.f32 %v1379, 0.2
  %v1388 = vmul.f32 %v1380, 0.2
  %v1389 = vsel %vm1381, %v1377, %v1385
  %v1390 = vsel %vm1382, %v1378, %v1386
  %v1391 = vsel %vm1383, %v1379, %v1387
  %v1392 = vsel %vm1384, %v1380, %v1388
  %v1393 = vmul.f32 %v1389, 1.4142135
  %v1394 = vmul.f32 %v1390, 1.4142135
  %v1395 = vmul.f32 %v1391, 1.4142135
  %v1396 = vmul.f32 %v1392, 1.4142135
  %v1397 = vmax.f32 %v1393, -256.0
  %v1398 = vmax.f32 %v1394, -256.0
  %v1399 = vmax.f32 %v1395, -256.0
  %v1400 = vmax.f32 %v1396, -256.0
  %v1401 = vmin.f32 %v1397, 256.0
  %v1402 = vmin.f32 %v1398, 256.0
  %v1403 = vmin.f32 %v1399, 256.0
  %v1404 = vmin.f32 %v1400, 256.0
  %v1405 = vpack.c.bf16 %v1402, %v1401
  %v1406 = vpack.c.bf16 %v1404, %v1403
  %v1409 = vunpack.c.l.b16 %v1405
  %v1410 = vunpack.c.h.b16 %v1405
  %v1411 = vunpack.c.l.b16 %v1406
  %v1412 = vunpack.c.h.b16 %v1406
  %v1413 = vpack.c.b16 %v1409, %v1409
  %v1414 = vpack.c.b16 %v1410, %v1410
  %v1415 = vpack.c.b16 %v1411, %v1411
  %v1416 = vpack.c.b16 %v1412, %v1412
  %1421 = vst [vmem:[%s10] sm:$0xf] %v1413
  %1422 = vst [vmem:[%s10 + $0x4] sm:$0xf] %v1414
  %1423 = vst [vmem:[%s10 + $0x8] sm:$0xf] %v1415
  %1424 = vst [vmem:[%s10 + $0xc] sm:$0xf] %v1416
  %v1425 = vld [vmem:[%s7] sm:$0xff]
  %v1428 = vunpack.c.l.s4 1966171168
  %v1429 = vunpack.c.0.s8 %v1428
  %v1430 = vlaneseq
  %v1431 = vshrl.u32 %v1430, 7
  %v1432 = vsub.s32 %v1429, %v1431
  %v1433 = vrot.slane %v1425, %v1432
  %v1434 = vcombine.high %v1433, %v1433
  %v1436 = vunpack.c.l.s4 1966171168
  %v1437 = vunpack.c.0.s8 %v1436
  %v1438 = vlaneseq
  %v1439 = vshrl.u32 %v1438, 7
  %v1440 = vsub.s32 %v1437, %v1439
  %v1441 = vrot.slane %v1433, %v1440
  %v1443 = vunpack.c.l.s4 1966171168
  %v1444 = vunpack.c.0.s8 %v1443
  %v1445 = vlaneseq
  %v1446 = vshrl.u32 %v1445, 7
  %v1447 = vsub.s32 %v1444, %v1446
  %v1448 = vrot.slane %v1434, %v1447
  %v1449 = vlaneseq
  %v1450 = vshrl.u32 %v1449, 7
  %v1451 = vsub.s32 0, %v1450
  %v1452 = vrot.slane %v1441, %v1451
  %v1453 = vlaneseq
  %v1454 = vshrl.u32 %v1453, 7
  %v1455 = vsub.s32 0, %v1454
  %v1456 = vrot.slane %v1448, %v1455
  %v1459 = vmul.f32 %v1401, %v1452
  %v1460 = vmul.f32 %v1402, %v1452
  %v1461 = vmul.f32 %v1403, %v1456
  %v1462 = vmul.f32 %v1404, %v1456
  %v1463 = vpack.c.bf16 %v1460, %v1459
  %v1464 = vpack.c.bf16 %v1462, %v1461
  %v1465 = vld [vmem:[#allocation3] sm:$0xff]
  %v1466 = vld [vmem:[#allocation3 + $0x8] sm:$0xff]
  %v1467 = vld [vmem:[#allocation3 + $0x10] sm:$0xff]
  %v1468 = vld [vmem:[#allocation3 + $0x18] sm:$0xff]
  %v1469 = vld [vmem:[%s6] sm:$0xf]
  %v1470 = vld [vmem:[%s6 + $0x4] sm:$0xf]
  %v1471 = vld [vmem:[%s6 + $0x8] sm:$0xf]
  %v1472 = vld [vmem:[%s6 + $0xc] sm:$0xf]
  %v1473 = vld [vmem:[%s6 + $0x10] sm:$0xf]
  %v1474 = vld [vmem:[%s6 + $0x14] sm:$0xf]
  %v1475 = vld [vmem:[%s6 + $0x18] sm:$0xf]
  %v1476 = vld [vmem:[%s6 + $0x1c] sm:$0xf]
  %v1477 = vld [vmem:[%s6 + $0x20] sm:$0xf]
  %v1478 = vld [vmem:[%s6 + $0x24] sm:$0xf]
  %v1479 = vld [vmem:[%s6 + $0x28] sm:$0xf]
  %v1480 = vld [vmem:[%s6 + $0x2c] sm:$0xf]
  %v1481 = vld [vmem:[%s6 + $0x30] sm:$0xf]
  %v1482 = vld [vmem:[%s6 + $0x34] sm:$0xf]
  %v1483 = vld [vmem:[%s6 + $0x38] sm:$0xf]
  %v1484 = vld [vmem:[%s6 + $0x3c] sm:$0xf]
  %v1501 = vunpack.c.l.b16 %v1469
  %v1502 = vunpack.c.l.b16 %v1470
  %v1503 = vunpack.c.l.b16 %v1471
  %v1504 = vunpack.c.l.b16 %v1472
  %v1505 = vunpack.c.l.b16 %v1473
  %v1506 = vunpack.c.l.b16 %v1474
  %v1507 = vunpack.c.l.b16 %v1475
  %v1508 = vunpack.c.l.b16 %v1476
  %v1509 = vunpack.c.l.b16 %v1477
  %v1510 = vunpack.c.l.b16 %v1478
  %v1511 = vunpack.c.l.b16 %v1479
  %v1512 = vunpack.c.l.b16 %v1480
  %v1513 = vunpack.c.l.b16 %v1481
  %v1514 = vunpack.c.l.b16 %v1482
  %v1515 = vunpack.c.l.b16 %v1483
  %v1516 = vunpack.c.l.b16 %v1484
  %v1517 = vpack.c.b16 %v1502, %v1501
  %v1518 = vpack.c.b16 %v1504, %v1503
  %v1519 = vpack.c.b16 %v1506, %v1505
  %v1520 = vpack.c.b16 %v1508, %v1507
  %v1521 = vpack.c.b16 %v1510, %v1509
  %v1522 = vpack.c.b16 %v1512, %v1511
  %v1523 = vpack.c.b16 %v1514, %v1513
  %v1524 = vpack.c.b16 %v1516, %v1515
  %1533 = vmatprep.subr.bf16.mxu0 0
  %1534 = vmatpush1.bf16.msra.mxu0 %v1517
  %1535 = vmatprep.subr.bf16.mxu0 0
  %1536 = vmatpush1.bf16.msra.mxu0 %v1518
  %1537 = vmatprep.subr.bf16.mxu0 0
  %1538 = vmatpush1.bf16.msra.mxu0 %v1519
  %1539 = vmatprep.subr.bf16.mxu0 0
  %1540 = vmatpush1.bf16.msra.mxu0 %v1520
  %1541 = vmatprep.subr.bf16.mxu0 0
  %1542 = vmatpush1.bf16.msra.mxu0 %v1521
  %1543 = vmatprep.subr.bf16.mxu0 0
  %1544 = vmatpush1.bf16.msra.mxu0 %v1522
  %1545 = vmatprep.subr.bf16.mxu0 0
  %1546 = vmatpush1.bf16.msra.mxu0 %v1523
  %1547 = vmatprep.subr.bf16.mxu0 0
  %1548 = vmatpush1.bf16.msra.mxu0 %v1524
  %1549 = vmatprep.subr.bf16.mxu0 0
  %1550 = vmatpush1.bf16.msra.mxu0 0
  %1551 = vmatprep.subr.bf16.mxu0 0
  %1552 = vmatpush1.bf16.msra.mxu0 0
  %1553 = vmatprep.subr.bf16.mxu0 0
  %1554 = vmatpush1.bf16.msra.mxu0 0
  %1555 = vmatprep.subr.bf16.mxu0 0
  %1556 = vmatpush1.bf16.msra.mxu0 0
  %1557 = vmatprep.subr.bf16.mxu0 0
  %1558 = vmatpush1.bf16.msra.mxu0 0
  %1559 = vmatprep.subr.bf16.mxu0 0
  %1560 = vmatpush1.bf16.msra.mxu0 0
  %1561 = vmatprep.subr.bf16.mxu0 0
  %1562 = vmatpush1.bf16.msra.mxu0 0
  %1563 = vmatprep.subr.bf16.mxu0 0
  %1564 = vmatpush1.bf16.msra.mxu0 0
  %1565 = vmatprep.mubr.bf16.mxu0 0
  %1566 = vmatmul.mubr.bf16.gmra.mrb[0].mxu0 %v1463
  %v1567 = vpop.f32.mrb[0].mxu0
  %v1568 = vadd.f32 0.0, %v1567
  %v1569 = vpop.f32.mrb[0].mxu0
  %v1570 = vpop.f32.mrb[0].mxu0
  %v1571 = vadd.f32 0.0, %v1570
  %v1572 = vpop.f32.mrb[0].mxu0
  %1573 = vmatprep.mubr.bf16.mxu0 0
  %1574 = vmatmul.mubr.bf16.gmra.mrb[0].mxu0 %v1464
  %v1575 = vpop.f32.mrb[0].mxu0
  %v1576 = vadd.f32 0.0, %v1575
  %v1577 = vpop.f32.mrb[0].mxu0
  %v1578 = vpop.f32.mrb[0].mxu0
  %v1579 = vadd.f32 0.0, %v1578
  %v1580 = vpop.f32.mrb[0].mxu0
  %1581 = vdwg.mxu0
  %v1582 = vadd.f32 %v1465, %v1568
  %v1583 = vadd.f32 %v1466, %v1571
  %v1584 = vadd.f32 %v1467, %v1576
  %v1585 = vadd.f32 %v1468, %v1579
  %1586 = vst [vmem:[#allocation3] sm:$0xff] %v1582
  %1587 = vst [vmem:[#allocation3 + $0x8] sm:$0xff] %v1583
  %1588 = vst [vmem:[#allocation3 + $0x10] sm:$0xff] %v1584
  %1589 = vst [vmem:[#allocation3 + $0x18] sm:$0xff] %v1585
  // Predicated region
  $region46: #{_lambda_.5} parent=0 // pred_check
    %p1590 = pneg %p39
  $region47: #{_lambda_.5} parent=0 // pred_check_branch
    %1592 = sbr.rel (%p1590) target = $region49
  $region48: #{_lambda_.5} parent=0 // pred_region
    %v1593 = vld [vmem:[#allocation3] sm:$0xff]
    %v1594 = vld [vmem:[#allocation3 + $0x8] sm:$0xff]
    %v1595 = vld [vmem:[#allocation3 + $0x10] sm:$0xff]
    %v1596 = vld [vmem:[#allocation3 + $0x18] sm:$0xff]
    %v1597 = vld [vmem:[%s8] sm:$0x1]
    %v1599 = vlaneseq
    %v1600 = vshrl.u32 %v1599, 7
    %v1601 = vsub.s32 0, %v1600
    %v1602 = vrot.slane %v1597, %v1601
    %v1604 = vadd.f32 %v1593, %v1602
    %v1605 = vadd.f32 %v1594, %v1602
    %v1606 = vadd.f32 %v1595, %v1602
    %v1607 = vadd.f32 %v1596, %v1602
    %v1608 = vmax.f32 %v1604, -256.0
    %v1609 = vmax.f32 %v1605, -256.0
    %v1610 = vmax.f32 %v1606, -256.0
    %v1611 = vmax.f32 %v1607, -256.0
    %v1612 = vmin.f32 %v1608, 256.0
    %v1613 = vmin.f32 %v1609, 256.0
    %v1614 = vmin.f32 %v1610, 256.0
    %v1615 = vmin.f32 %v1611, 256.0
    %v1616 = vld [vmem:[%s9] sm:$0xff]
    %v1617 = vld [vmem:[%s9 + $0x8] sm:$0xff]
    %v1618 = vld [vmem:[%s9 + $0x10] sm:$0xff]
    %v1619 = vld [vmem:[%s9 + $0x18] sm:$0xff]
    %v1620 = vadd.f32 %v1612, %v1616
    %v1621 = vadd.f32 %v1613, %v1617
    %v1622 = vadd.f32 %v1614, %v1618
    %v1623 = vadd.f32 %v1615, %v1619
    %1624 = vst [vmem:[%s11] sm:$0xff] %v1620
    %1625 = vst [vmem:[%s11 + $0x8] sm:$0xff] %v1621
    %1626 = vst [vmem:[%s11 + $0x10] sm:$0xff] %v1622
    %1627 = vst [vmem:[%s11 + $0x18] sm:$0xff] %v1623
  $region49: #{_lambda_.5} parent=0 // pred_fallthru
    _
  // Predicated region
  $region50: #{_lambda_.5} parent=0 // pred_check
    _
  $region51: #{_lambda_.5} parent=0 // pred_check_branch
    %1629 = sbr.rel (0) target = $region53
  $region52: #{_lambda_.5} parent=0 // pred_region
    _
  $region53: #{_lambda_.5} parent=0 // pred_fallthru
    _
  // Predicated region
  $region54: #{_lambda_.5} parent=0 // pred_check
    _
  $region55: #{_lambda_.5} parent=0 // pred_check_branch
    %1631 = sbr.rel (0) target = $region57
  $region56: #{_lambda_.5} parent=0 // pred_region
    _
  $region57: #{_lambda_.5} parent=0 // pred_fallthru
    _
  // Predicated region
  $region58: #{_lambda_.5} parent=0 // pred_check
    _
  $region59: #{_lambda_.5} parent=0 // pred_check_branch
    %1633 = sbr.rel (0) target = $region61
  $region60: #{_lambda_.5} parent=0 // pred_region
    _
  $region61: #{_lambda_.5} parent=0 // pred_fallthru
    _
  // Predicated region
  $region62: #{_lambda_.5} parent=0 // pred_check
    _
  $region63: #{_lambda_.5} parent=0 // pred_check_branch
    %1635 = sbr.rel (0) target = $region65
  $region64: #{_lambda_.5} parent=0 // pred_region
    _
  $region65: #{_lambda_.5} parent=0 // pred_fallthru
    _

// kernel: _lambda_.6
$region0: #{_lambda_.6}
  #allocation0 [shape = 'u32[]', space=smem, size = 0x4, offset = 0x4, fixed_abs, tag = 'smem constant byte address 0x4 - core index']
  #allocation1 [shape = 'u32[144,128]{1,0:T(1,128)}', space=vmem, size = 0x12000, scoped, tag = 'internal scratch']
  #allocation2 [shape = 'bf16[128,1152]{1,0:T(16,128)(2,1)}', space=vmem, size = 0x48000, scoped, tag = 'scratch operand']
  %s0 = inlined_call_operand.vmem [shape: bf16[2,64,128], index: 0, kind: input, shape index: {}]
  %s1 = inlined_call_operand.vmem [shape: bf16[1152,128], index: 1, kind: input, shape index: {}]
  %s2 = inlined_call_operand.vmem [shape: f32[128,128], index: 2, kind: input, shape index: {}]
  %s3 = inlined_call_operand.vmem [shape: f32[8,128], index: 3, kind: input, shape index: {}]
  %s4 = inlined_call_operand.vmem [shape: f32[1,128], index: 4, kind: input, shape index: {}]
  %s5 = inlined_call_operand.vmem [shape: f32[9,128,1], index: 5, kind: input, shape index: {}]
  %s6 = inlined_call_operand.vmem [shape: bf16[2,64,128], index: 6, kind: output, shape index: {}]
  %s7 = sld [smem:[#allocation0]]
  $region38: #{_lambda_.6} parent=0
    _
  %s9 = ssub.s32 1, %s7
  %s10 = scalar_select 0, %s9, %s7
  // Predicated region
  $region2: #{_lambda_.6} parent=0 // pred_check
    _
  $region3: #{_lambda_.6} parent=0 // pred_check_branch
    %12 = sbr.rel (0) target = $region5
  $region4: #{_lambda_.6} parent=0 // pred_region
    _
  $region5: #{_lambda_.6} parent=0 // pred_fallthru
    _
  // Predicated region
  $region6: #{_lambda_.6} parent=0 // pred_check
    _
  $region7: #{_lambda_.6} parent=0 // pred_check_branch
    %14 = sbr.rel (0) target = $region9
  $region8: #{_lambda_.6} parent=0 // pred_region
    _
  $region9: #{_lambda_.6} parent=0 // pred_fallthru
    _
  // Predicated region
  $region10: #{_lambda_.6} parent=0 // pred_check
    _
  $region11: #{_lambda_.6} parent=0 // pred_check_branch
    %16 = sbr.rel (0) target = $region13
  $region12: #{_lambda_.6} parent=0 // pred_region
    _
  $region13: #{_lambda_.6} parent=0 // pred_fallthru
    _
  // Predicated region
  $region14: #{_lambda_.6} parent=0 // pred_check
    _
  $region15: #{_lambda_.6} parent=0 // pred_check_branch
    %18 = sbr.rel (0) target = $region17
  $region16: #{_lambda_.6} parent=0 // pred_region
    _
  $region17: #{_lambda_.6} parent=0 // pred_fallthru
    _
  // Predicated region
  $region18: #{_lambda_.6} parent=0 // pred_check
    _
  $region19: #{_lambda_.6} parent=0 // pred_check_branch
    %20 = sbr.rel (0) target = $region21
  $region20: #{_lambda_.6} parent=0 // pred_region
    _
  $region21: #{_lambda_.6} parent=0 // pred_fallthru
    _
  // Predicated region
  $region22: #{_lambda_.6} parent=0 // pred_check
    _
  $region23: #{_lambda_.6} parent=0 // pred_check_branch
    %22 = sbr.rel (0) target = $region25
  $region24: #{_lambda_.6} parent=0 // pred_region
    _
  $region25: #{_lambda_.6} parent=0 // pred_fallthru
    _
  %v24 = vld [vmem:[%s3] sm:$0xff]
  %p25 = scmp.eq.s32.totalorder 0, 0
  // Predicated region
  $region26: #{_lambda_.6} parent=0 // pred_check
    %p26 = pneg %p25
  $region27: #{_lambda_.6} parent=0 // pred_check_branch
    %28 = sbr.rel (%p26) target = $region29
  $region28: #{_lambda_.6} parent=0 // pred_region
    %v29 = vld [vmem:[%s0] sm:$0xf]
    %v30 = vld [vmem:[%s0 + $0x4] sm:$0xf]
    %v31 = vld [vmem:[%s0 + $0x8] sm:$0xf]
    %v32 = vld [vmem:[%s0 + $0xc] sm:$0xf]
    %v33 = vld [vmem:[%s0 + $0x10] sm:$0xf]
    %v34 = vld [vmem:[%s0 + $0x14] sm:$0xf]
    %v35 = vld [vmem:[%s0 + $0x18] sm:$0xf]
    %v36 = vld [vmem:[%s0 + $0x1c] sm:$0xf]
    %v37 = vld [vmem:[%s0 + $0x20] sm:$0xf]
    %v38 = vld [vmem:[%s0 + $0x24] sm:$0xf]
    %v39 = vld [vmem:[%s0 + $0x28] sm:$0xf]
    %v40 = vld [vmem:[%s0 + $0x2c] sm:$0xf]
    %v41 = vld [vmem:[%s0 + $0x30] sm:$0xf]
    %v42 = vld [vmem:[%s0 + $0x34] sm:$0xf]
    %v43 = vld [vmem:[%s0 + $0x38] sm:$0xf]
    %v44 = vld [vmem:[%s0 + $0x3c] sm:$0xf]
    %v45 = vunpack.c.l.bf16 %v29
    %v46 = vunpack.c.l.bf16 %v30
    %v47 = vunpack.c.l.bf16 %v31
    %v48 = vunpack.c.l.bf16 %v32
    %v49 = vunpack.c.l.bf16 %v33
    %v50 = vunpack.c.l.bf16 %v34
    %v51 = vunpack.c.l.bf16 %v35
    %v52 = vunpack.c.l.bf16 %v36
    %v53 = vunpack.c.l.bf16 %v37
    %v54 = vunpack.c.l.bf16 %v38
    %v55 = vunpack.c.l.bf16 %v39
    %v56 = vunpack.c.l.bf16 %v40
    %v57 = vunpack.c.l.bf16 %v41
    %v58 = vunpack.c.l.bf16 %v42
    %v59 = vunpack.c.l.bf16 %v43
    %v60 = vunpack.c.l.bf16 %v44
    %v63 = vunpack.c.l.s4 1966171168
    %v64 = vunpack.c.0.s8 %v63
    %v65 = vlaneseq
    %v66 = vshrl.u32 %v65, 7
    %v67 = vsub.s32 %v64, %v66
    %v68 = vrot.slane %v24, %v67
    %v69 = vcombine.high %v68, %v68
    %v71 = vunpack.c.l.s4 1966171168
    %v72 = vunpack.c.0.s8 %v71
    %v73 = vlaneseq
    %v74 = vshrl.u32 %v73, 7
    %v75 = vsub.s32 %v72, %v74
    %v76 = vrot.slane %v68, %v75
    %v78 = vunpack.c.l.s4 1966171168
    %v79 = vunpack.c.0.s8 %v78
    %v80 = vlaneseq
    %v81 = vshrl.u32 %v80, 7
    %v82 = vsub.s32 %v79, %v81
    %v83 = vrot.slane %v69, %v82
    %v84 = vlaneseq
    %v85 = vshrl.u32 %v84, 7
    %v86 = vsub.s32 0, %v85
    %v87 = vrot.slane %v76, %v86
    %v88 = vlaneseq
    %v89 = vshrl.u32 %v88, 7
    %v90 = vsub.s32 0, %v89
    %v91 = vrot.slane %v83, %v90
    %v94 = vmul.f32 %v45, %v87
    %v95 = vmul.f32 %v46, %v87
    %v96 = vmul.f32 %v47, %v87
    %v97 = vmul.f32 %v48, %v87
    %v98 = vmul.f32 %v49, %v87
    %v99 = vmul.f32 %v50, %v87
    %v100 = vmul.f32 %v51, %v87
    %v101 = vmul.f32 %v52, %v87
    %v102 = vmul.f32 %v53, %v91
    %v103 = vmul.f32 %v54, %v91
    %v104 = vmul.f32 %v55, %v91
    %v105 = vmul.f32 %v56, %v91
    %v106 = vmul.f32 %v57, %v91
    %v107 = vmul.f32 %v58, %v91
    %v108 = vmul.f32 %v59, %v91
    %v109 = vmul.f32 %v60, %v91
    %v110 = vrot.slane %v94, 7
    %v111 = vrot.slane %v95, 7
    %v112 = vrot.slane %v96, 7
    %v113 = vrot.slane %v97, 7
    %v114 = vrot.slane %v98, 7
    %v115 = vrot.slane %v99, 7
    %v116 = vrot.slane %v100, 7
    %v117 = vrot.slane %v101, 7
    %v118 = vrot.slane %v102, 7
    %v119 = vrot.slane %v103, 7
    %v120 = vrot.slane %v104, 7
    %v121 = vrot.slane %v105, 7
    %v122 = vrot.slane %v106, 7
    %v123 = vrot.slane %v107, 7
    %v124 = vrot.slane %v108, 7
    %v125 = vrot.slane %v109, 7
    %v126 = vlaneseq
    %v127 = vshrl.u32 %v126, 7
    %vm128 = vcmp.lt.s32.totalorder %v127, 1
    %v129 = vsel %vm128, %v124, %v125
    %v130 = vsel %vm128, %v123, %v124
    %v131 = vsel %vm128, %v122, %v123
    %v132 = vsel %vm128, %v121, %v122
    %v133 = vsel %vm128, %v120, %v121
    %v134 = vsel %vm128, %v119, %v120
    %v135 = vsel %vm128, %v118, %v119
    %v136 = vsel %vm128, %v117, %v118
    %v137 = vsel %vm128, %v116, %v117
    %v138 = vsel %vm128, %v115, %v116
    %v139 = vsel %vm128, %v114, %v115
    %v140 = vsel %vm128, %v113, %v114
    %v141 = vsel %vm128, %v112, %v113
    %v142 = vsel %vm128, %v111, %v112
    %v143 = vsel %vm128, %v110, %v111
    %v144 = vsel %vm128, %v125, %v110
    %v145 = vld [vmem:[%s5] sm:$0xff]
    %v146 = vld [vmem:[%s5 + $0x8] sm:$0xff]
    %v147 = vld [vmem:[%s5 + $0x10] sm:$0xff]
    %v148 = vld [vmem:[%s5 + $0x18] sm:$0xff]
    %v149 = vld [vmem:[%s5 + $0x20] sm:$0xff]
    %v150 = vld [vmem:[%s5 + $0x28] sm:$0xff]
    %v151 = vld [vmem:[%s5 + $0x30] sm:$0xff]
    %v152 = vld [vmem:[%s5 + $0x38] sm:$0xff]
    %v153 = vld [vmem:[%s5 + $0x40] sm:$0xff]
    %v154 = vld [vmem:[%s5 + $0x48] sm:$0xff]
    %v155 = vld [vmem:[%s5 + $0x50] sm:$0xff]
    %v156 = vld [vmem:[%s5 + $0x58] sm:$0xff]
    %v157 = vld [vmem:[%s5 + $0x60] sm:$0xff]
    %v158 = vld [vmem:[%s5 + $0x68] sm:$0xff]
    %v159 = vld [vmem:[%s5 + $0x70] sm:$0xff]
    %v160 = vld [vmem:[%s5 + $0x78] sm:$0xff]
    %162 = vset.pattern.permute.xlu0 0
    %163 = vperm.xlu0 %162, %v145
    %v164 = vpop.permute.xlu0 %163
    %167 = vset.pattern.permute.xlu0 0
    %168 = vperm.xlu0 %167, %v146
    %v169 = vpop.permute.xlu0 %168
    %172 = vset.pattern.permute.xlu0 0
    %173 = vperm.xlu0 %172, %v147
    %v174 = vpop.permute.xlu0 %173
    %177 = vset.pattern.permute.xlu0 0
    %178 = vperm.xlu0 %177, %v148
    %v179 = vpop.permute.xlu0 %178
    %182 = vset.pattern.permute.xlu0 0
    %183 = vperm.xlu0 %182, %v149
    %v184 = vpop.permute.xlu0 %183
    %187 = vset.pattern.permute.xlu0 0
    %188 = vperm.xlu0 %187, %v150
    %v189 = vpop.permute.xlu0 %188
    %192 = vset.pattern.permute.xlu0 0
    %193 = vperm.xlu0 %192, %v151
    %v194 = vpop.permute.xlu0 %193
    %197 = vset.pattern.permute.xlu0 0
    %198 = vperm.xlu0 %197, %v152
    %v199 = vpop.permute.xlu0 %198
    %202 = vset.pattern.permute.xlu0 0
    %203 = vperm.xlu0 %202, %v153
    %v204 = vpop.permute.xlu0 %203
    %207 = vset.pattern.permute.xlu0 0
    %208 = vperm.xlu0 %207, %v154
    %v209 = vpop.permute.xlu0 %208
    %212 = vset.pattern.permute.xlu0 0
    %213 = vperm.xlu0 %212, %v155
    %v214 = vpop.permute.xlu0 %213
    %217 = vset.pattern.permute.xlu0 0
    %218 = vperm.xlu0 %217, %v156
    %v219 = vpop.permute.xlu0 %218
    %222 = vset.pattern.permute.xlu0 0
    %223 = vperm.xlu0 %222, %v157
    %v224 = vpop.permute.xlu0 %223
    %227 = vset.pattern.permute.xlu0 0
    %228 = vperm.xlu0 %227, %v158
    %v229 = vpop.permute.xlu0 %228
    %232 = vset.pattern.permute.xlu0 0
    %233 = vperm.xlu0 %232, %v159
    %v234 = vpop.permute.xlu0 %233
    %237 = vset.pattern.permute.xlu0 0
    %238 = vperm.xlu0 %237, %v160
    %v239 = vpop.permute.xlu0 %238
    %v241 = vmul.f32 %v129, %v164
    %v242 = vmul.f32 %v144, %v169
    %v243 = vmul.f32 %v143, %v174
    %v244 = vmul.f32 %v142, %v179
    %v245 = vmul.f32 %v141, %v184
    %v246 = vmul.f32 %v140, %v189
    %v247 = vmul.f32 %v139, %v194
    %v248 = vmul.f32 %v138, %v199
    %v249 = vmul.f32 %v137, %v204
    %v250 = vmul.f32 %v136, %v209
    %v251 = vmul.f32 %v135, %v214
    %v252 = vmul.f32 %v134, %v219
    %v253 = vmul.f32 %v133, %v224
    %v254 = vmul.f32 %v132, %v229
    %v255 = vmul.f32 %v131, %v234
    %v256 = vmul.f32 %v130, %v239
    %v257 = vpack.c.bf16 %v242, %v241
    %v258 = vpack.c.bf16 %v244, %v243
    %v259 = vpack.c.bf16 %v246, %v245
    %v260 = vpack.c.bf16 %v248, %v247
    %v261 = vpack.c.bf16 %v250, %v249
    %v262 = vpack.c.bf16 %v252, %v251
    %v263 = vpack.c.bf16 %v254, %v253
    %v264 = vpack.c.bf16 %v256, %v255
    %265 = vst [vmem:[#allocation2] sm:$0xff] %v257
    %266 = vst [vmem:[#allocation2 + $0x48] sm:$0xff] %v258
    %267 = vst [vmem:[#allocation2 + $0x90] sm:$0xff] %v259
    %268 = vst [vmem:[#allocation2 + $0xd8] sm:$0xff] %v260
    %269 = vst [vmem:[#allocation2 + $0x120] sm:$0xff] %v261
    %270 = vst [vmem:[#allocation2 + $0x168] sm:$0xff] %v262
    %271 = vst [vmem:[#allocation2 + $0x1b0] sm:$0xff] %v263
    %272 = vst [vmem:[#allocation2 + $0x1f8] sm:$0xff] %v264
    %s273 = scalar_lea.vmem %s5, 128
    %v274 = vld [vmem:[%s273] sm:$0xff]
    %v275 = vld [vmem:[%s273 + $0x8] sm:$0xff]
    %v276 = vld [vmem:[%s273 + $0x10] sm:$0xff]
    %v277 = vld [vmem:[%s273 + $0x18] sm:$0xff]
    %v278 = vld [vmem:[%s273 + $0x20] sm:$0xff]
    %v279 = vld [vmem:[%s273 + $0x28] sm:$0xff]
    %v280 = vld [vmem:[%s273 + $0x30] sm:$0xff]
    %v281 = vld [vmem:[%s273 + $0x38] sm:$0xff]
    %v282 = vld [vmem:[%s273 + $0x40] sm:$0xff]
    %v283 = vld [vmem:[%s273 + $0x48] sm:$0xff]
    %v284 = vld [vmem:[%s273 + $0x50] sm:$0xff]
    %v285 = vld [vmem:[%s273 + $0x58] sm:$0xff]
    %v286 = vld [vmem:[%s273 + $0x60] sm:$0xff]
    %v287 = vld [vmem:[%s273 + $0x68] sm:$0xff]
    %v288 = vld [vmem:[%s273 + $0x70] sm:$0xff]
    %v289 = vld [vmem:[%s273 + $0x78] sm:$0xff]
    %291 = vset.pattern.permute.xlu0 0
    %292 = vperm.xlu0 %291, %v274
    %v293 = vpop.permute.xlu0 %292
    %296 = vset.pattern.permute.xlu0 0
    %297 = vperm.xlu0 %296, %v275
    %v298 = vpop.permute.xlu0 %297
    %301 = vset.pattern.permute.xlu0 0
    %302 = vperm.xlu0 %301, %v276
    %v303 = vpop.permute.xlu0 %302
    %306 = vset.pattern.permute.xlu0 0
    %307 = vperm.xlu0 %306, %v277
    %v308 = vpop.permute.xlu0 %307
    %311 = vset.pattern.permute.xlu0 0
    %312 = vperm.xlu0 %311, %v278
    %v313 = vpop.permute.xlu0 %312
    %316 = vset.pattern.permute.xlu0 0
    %317 = vperm.xlu0 %316, %v279
    %v318 = vpop.permute.xlu0 %317
    %321 = vset.pattern.permute.xlu0 0
    %322 = vperm.xlu0 %321, %v280
    %v323 = vpop.permute.xlu0 %322
    %326 = vset.pattern.permute.xlu0 0
    %327 = vperm.xlu0 %326, %v281
    %v328 = vpop.permute.xlu0 %327
    %331 = vset.pattern.permute.xlu0 0
    %332 = vperm.xlu0 %331, %v282
    %v333 = vpop.permute.xlu0 %332
    %336 = vset.pattern.permute.xlu0 0
    %337 = vperm.xlu0 %336, %v283
    %v338 = vpop.permute.xlu0 %337
    %341 = vset.pattern.permute.xlu0 0
    %342 = vperm.xlu0 %341, %v284
    %v343 = vpop.permute.xlu0 %342
    %346 = vset.pattern.permute.xlu0 0
    %347 = vperm.xlu0 %346, %v285
    %v348 = vpop.permute.xlu0 %347
    %351 = vset.pattern.permute.xlu0 0
    %352 = vperm.xlu0 %351, %v286
    %v353 = vpop.permute.xlu0 %352
    %356 = vset.pattern.permute.xlu0 0
    %357 = vperm.xlu0 %356, %v287
    %v358 = vpop.permute.xlu0 %357
    %361 = vset.pattern.permute.xlu0 0
    %362 = vperm.xlu0 %361, %v288
    %v363 = vpop.permute.xlu0 %362
    %366 = vset.pattern.permute.xlu0 0
    %367 = vperm.xlu0 %366, %v289
    %v368 = vpop.permute.xlu0 %367
    %v370 = vmul.f32 %v109, %v293
    %v371 = vmul.f32 %v94, %v298
    %v372 = vmul.f32 %v95, %v303
    %v373 = vmul.f32 %v96, %v308
    %v374 = vmul.f32 %v97, %v313
    %v375 = vmul.f32 %v98, %v318
    %v376 = vmul.f32 %v99, %v323
    %v377 = vmul.f32 %v100, %v328
    %v378 = vmul.f32 %v101, %v333
    %v379 = vmul.f32 %v102, %v338
    %v380 = vmul.f32 %v103, %v343
    %v381 = vmul.f32 %v104, %v348
    %v382 = vmul.f32 %v105, %v353
    %v383 = vmul.f32 %v106, %v358
    %v384 = vmul.f32 %v107, %v363
    %v385 = vmul.f32 %v108, %v368
    %v386 = vpack.c.bf16 %v371, %v370
    %v387 = vpack.c.bf16 %v373, %v372
    %v388 = vpack.c.bf16 %v375, %v374
    %v389 = vpack.c.bf16 %v377, %v376
    %v390 = vpack.c.bf16 %v379, %v378
    %v391 = vpack.c.bf16 %v381, %v380
    %v392 = vpack.c.bf16 %v383, %v382
    %v393 = vpack.c.bf16 %v385, %v384
    %394 = vst [vmem:[#allocation2 + $0x8] sm:$0xff] %v386
    %395 = vst [vmem:[#allocation2 + $0x50] sm:$0xff] %v387
    %396 = vst [vmem:[#allocation2 + $0x98] sm:$0xff] %v388
    %397 = vst [vmem:[#allocation2 + $0xe0] sm:$0xff] %v389
    %398 = vst [vmem:[#allocation2 + $0x128] sm:$0xff] %v390
    %399 = vst [vmem:[#allocation2 + $0x170] sm:$0xff] %v391
    %400 = vst [vmem:[#allocation2 + $0x1b8] sm:$0xff] %v392
    %401 = vst [vmem:[#allocation2 + $0x200] sm:$0xff] %v393
    %v402 = vrot.slane %v94, 1
    %v403 = vrot.slane %v95, 1
    %v404 = vrot.slane %v96, 1
    %v405 = vrot.slane %v97, 1
    %v406 = vrot.slane %v98, 1
    %v407 = vrot.slane %v99, 1
    %v408 = vrot.slane %v100, 1
    %v409 = vrot.slane %v101, 1
    %v410 = vrot.slane %v102, 1
    %v411 = vrot.slane %v103, 1
    %v412 = vrot.slane %v104, 1
    %v413 = vrot.slane %v105, 1
    %v414 = vrot.slane %v106, 1
    %v415 = vrot.slane %v107, 1
    %v416 = vrot.slane %v108, 1
    %v417 = vrot.slane %v109, 1
    %vm418 = vcmp.lt.s32.totalorder %v127, 7
    %v419 = vsel %vm418, %v416, %v417
    %v420 = vsel %vm418, %v415, %v416
    %v421 = vsel %vm418, %v414, %v415
    %v422 = vsel %vm418, %v413, %v414
    %v423 = vsel %vm418, %v412, %v413
    %v424 = vsel %vm418, %v411, %v412
    %v425 = vsel %vm418, %v410, %v411
    %v426 = vsel %vm418, %v409, %v410
    %v427 = vsel %vm418, %v408, %v409
    %v428 = vsel %vm418, %v407, %v408
    %v429 = vsel %vm418, %v406, %v407
    %v430 = vsel %vm418, %v405, %v406
    %v431 = vsel %vm418, %v404, %v405
    %v432 = vsel %vm418, %v403, %v404
    %v433 = vsel %vm418, %v402, %v403
    %v434 = vsel %vm418, %v417, %v402
    %s435 = scalar_lea.vmem %s5, 256
    %v436 = vld [vmem:[%s435] sm:$0xff]
    %v437 = vld [vmem:[%s435 + $0x8] sm:$0xff]
    %v438 = vld [vmem:[%s435 + $0x10] sm:$0xff]
    %v439 = vld [vmem:[%s435 + $0x18] sm:$0xff]
    %v440 = vld [vmem:[%s435 + $0x20] sm:$0xff]
    %v441 = vld [vmem:[%s435 + $0x28] sm:$0xff]
    %v442 = vld [vmem:[%s435 + $0x30] sm:$0xff]
    %v443 = vld [vmem:[%s435 + $0x38] sm:$0xff]
    %v444 = vld [vmem:[%s435 + $0x40] sm:$0xff]
    %v445 = vld [vmem:[%s435 + $0x48] sm:$0xff]
    %v446 = vld [vmem:[%s435 + $0x50] sm:$0xff]
    %v447 = vld [vmem:[%s435 + $0x58] sm:$0xff]
    %v448 = vld [vmem:[%s435 + $0x60] sm:$0xff]
    %v449 = vld [vmem:[%s435 + $0x68] sm:$0xff]
    %v450 = vld [vmem:[%s435 + $0x70] sm:$0xff]
    %v451 = vld [vmem:[%s435 + $0x78] sm:$0xff]
    %453 = vset.pattern.permute.xlu0 0
    %454 = vperm.xlu0 %453, %v436
    %v455 = vpop.permute.xlu0 %454
    %458 = vset.pattern.permute.xlu0 0
    %459 = vperm.xlu0 %458, %v437
    %v460 = vpop.permute.xlu0 %459
    %463 = vset.pattern.permute.xlu0 0
    %464 = vperm.xlu0 %463, %v438
    %v465 = vpop.permute.xlu0 %464
    %468 = vset.pattern.permute.xlu0 0
    %469 = vperm.xlu0 %468, %v439
    %v470 = vpop.permute.xlu0 %469
    %473 = vset.pattern.permute.xlu0 0
    %474 = vperm.xlu0 %473, %v440
    %v475 = vpop.permute.xlu0 %474
    %478 = vset.pattern.permute.xlu0 0
    %479 = vperm.xlu0 %478, %v441
    %v480 = vpop.permute.xlu0 %479
    %483 = vset.pattern.permute.xlu0 0
    %484 = vperm.xlu0 %483, %v442
    %v485 = vpop.permute.xlu0 %484
    %488 = vset.pattern.permute.xlu0 0
    %489 = vperm.xlu0 %488, %v443
    %v490 = vpop.permute.xlu0 %489
    %493 = vset.pattern.permute.xlu0 0
    %494 = vperm.xlu0 %493, %v444
    %v495 = vpop.permute.xlu0 %494
    %498 = vset.pattern.permute.xlu0 0
    %499 = vperm.xlu0 %498, %v445
    %v500 = vpop.permute.xlu0 %499
    %503 = vset.pattern.permute.xlu0 0
    %504 = vperm.xlu0 %503, %v446
    %v505 = vpop.permute.xlu0 %504
    %508 = vset.pattern.permute.xlu0 0
    %509 = vperm.xlu0 %508, %v447
    %v510 = vpop.permute.xlu0 %509
    %513 = vset.pattern.permute.xlu0 0
    %514 = vperm.xlu0 %513, %v448
    %v515 = vpop.permute.xlu0 %514
    %518 = vset.pattern.permute.xlu0 0
    %519 = vperm.xlu0 %518, %v449
    %v520 = vpop.permute.xlu0 %519
    %523 = vset.pattern.permute.xlu0 0
    %524 = vperm.xlu0 %523, %v450
    %v525 = vpop.permute.xlu0 %524
    %528 = vset.pattern.permute.xlu0 0
    %529 = vperm.xlu0 %528, %v451
    %v530 = vpop.permute.xlu0 %529
    %v532 = vmul.f32 %v434, %v455
    %v533 = vmul.f32 %v433, %v460
    %v534 = vmul.f32 %v432, %v465
    %v535 = vmul.f32 %v431, %v470
    %v536 = vmul.f32 %v430, %v475
    %v537 = vmul.f32 %v429, %v480
    %v538 = vmul.f32 %v428, %v485
    %v539 = vmul.f32 %v427, %v490
    %v540 = vmul.f32 %v426, %v495
    %v541 = vmul.f32 %v425, %v500
    %v542 = vmul.f32 %v424, %v505
    %v543 = vmul.f32 %v423, %v510
    %v544 = vmul.f32 %v422, %v515
    %v545 = vmul.f32 %v421, %v520
    %v546 = vmul.f32 %v420, %v525
    %v547 = vmul.f32 %v419, %v530
    %v548 = vpack.c.bf16 %v533, %v532
    %v549 = vpack.c.bf16 %v535, %v534
    %v550 = vpack.c.bf16 %v537, %v536
    %v551 = vpack.c.bf16 %v539, %v538
    %v552 = vpack.c.bf16 %v541, %v540
    %v553 = vpack.c.bf16 %v543, %v542
    %v554 = vpack.c.bf16 %v545, %v544
    %v555 = vpack.c.bf16 %v547, %v546
    %556 = vst [vmem:[#allocation2 + $0x10] sm:$0xff] %v548
    %557 = vst [vmem:[#allocation2 + $0x58] sm:$0xff] %v549
    %558 = vst [vmem:[#allocation2 + $0xa0] sm:$0xff] %v550
    %559 = vst [vmem:[#allocation2 + $0xe8] sm:$0xff] %v551
    %560 = vst [vmem:[#allocation2 + $0x130] sm:$0xff] %v552
    %561 = vst [vmem:[#allocation2 + $0x178] sm:$0xff] %v553
    %562 = vst [vmem:[#allocation2 + $0x1c0] sm:$0xff] %v554
    %563 = vst [vmem:[#allocation2 + $0x208] sm:$0xff] %v555
    %s564 = scalar_lea.vmem %s5, 384
    %v565 = vld [vmem:[%s564] sm:$0xff]
    %v566 = vld [vmem:[%s564 + $0x8] sm:$0xff]
    %v567 = vld [vmem:[%s564 + $0x10] sm:$0xff]
    %v568 = vld [vmem:[%s564 + $0x18] sm:$0xff]
    %v569 = vld [vmem:[%s564 + $0x20] sm:$0xff]
    %v570 = vld [vmem:[%s564 + $0x28] sm:$0xff]
    %v571 = vld [vmem:[%s564 + $0x30] sm:$0xff]
    %v572 = vld [vmem:[%s564 + $0x38] sm:$0xff]
    %v573 = vld [vmem:[%s564 + $0x40] sm:$0xff]
    %v574 = vld [vmem:[%s564 + $0x48] sm:$0xff]
    %v575 = vld [vmem:[%s564 + $0x50] sm:$0xff]
    %v576 = vld [vmem:[%s564 + $0x58] sm:$0xff]
    %v577 = vld [vmem:[%s564 + $0x60] sm:$0xff]
    %v578 = vld [vmem:[%s564 + $0x68] sm:$0xff]
    %v579 = vld [vmem:[%s564 + $0x70] sm:$0xff]
    %v580 = vld [vmem:[%s564 + $0x78] sm:$0xff]
    %582 = vset.pattern.permute.xlu0 0
    %583 = vperm.xlu0 %582, %v565
    %v584 = vpop.permute.xlu0 %583
    %587 = vset.pattern.permute.xlu0 0
    %588 = vperm.xlu0 %587, %v566
    %v589 = vpop.permute.xlu0 %588
    %592 = vset.pattern.permute.xlu0 0
    %593 = vperm.xlu0 %592, %v567
    %v594 = vpop.permute.xlu0 %593
    %597 = vset.pattern.permute.xlu0 0
    %598 = vperm.xlu0 %597, %v568
    %v599 = vpop.permute.xlu0 %598
    %602 = vset.pattern.permute.xlu0 0
    %603 = vperm.xlu0 %602, %v569
    %v604 = vpop.permute.xlu0 %603
    %607 = vset.pattern.permute.xlu0 0
    %608 = vperm.xlu0 %607, %v570
    %v609 = vpop.permute.xlu0 %608
    %612 = vset.pattern.permute.xlu0 0
    %613 = vperm.xlu0 %612, %v571
    %v614 = vpop.permute.xlu0 %613
    %617 = vset.pattern.permute.xlu0 0
    %618 = vperm.xlu0 %617, %v572
    %v619 = vpop.permute.xlu0 %618
    %622 = vset.pattern.permute.xlu0 0
    %623 = vperm.xlu0 %622, %v573
    %v624 = vpop.permute.xlu0 %623
    %627 = vset.pattern.permute.xlu0 0
    %628 = vperm.xlu0 %627, %v574
    %v629 = vpop.permute.xlu0 %628
    %632 = vset.pattern.permute.xlu0 0
    %633 = vperm.xlu0 %632, %v575
    %v634 = vpop.permute.xlu0 %633
    %637 = vset.pattern.permute.xlu0 0
    %638 = vperm.xlu0 %637, %v576
    %v639 = vpop.permute.xlu0 %638
    %642 = vset.pattern.permute.xlu0 0
    %643 = vperm.xlu0 %642, %v577
    %v644 = vpop.permute.xlu0 %643
    %647 = vset.pattern.permute.xlu0 0
    %648 = vperm.xlu0 %647, %v578
    %v649 = vpop.permute.xlu0 %648
    %652 = vset.pattern.permute.xlu0 0
    %653 = vperm.xlu0 %652, %v579
    %v654 = vpop.permute.xlu0 %653
    %657 = vset.pattern.permute.xlu0 0
    %658 = vperm.xlu0 %657, %v580
    %v659 = vpop.permute.xlu0 %658
    %v661 = vmul.f32 %v144, %v584
    %v662 = vmul.f32 %v143, %v589
    %v663 = vmul.f32 %v142, %v594
    %v664 = vmul.f32 %v141, %v599
    %v665 = vmul.f32 %v140, %v604
    %v666 = vmul.f32 %v139, %v609
    %v667 = vmul.f32 %v138, %v614
    %v668 = vmul.f32 %v137, %v619
    %v669 = vmul.f32 %v136, %v624
    %v670 = vmul.f32 %v135, %v629
    %v671 = vmul.f32 %v134, %v634
    %v672 = vmul.f32 %v133, %v639
    %v673 = vmul.f32 %v132, %v644
    %v674 = vmul.f32 %v131, %v649
    %v675 = vmul.f32 %v130, %v654
    %v676 = vmul.f32 %v129, %v659
    %v677 = vpack.c.bf16 %v662, %v661
    %v678 = vpack.c.bf16 %v664, %v663
    %v679 = vpack.c.bf16 %v666, %v665
    %v680 = vpack.c.bf16 %v668, %v667
    %v681 = vpack.c.bf16 %v670, %v669
    %v682 = vpack.c.bf16 %v672, %v671
    %v683 = vpack.c.bf16 %v674, %v673
    %v684 = vpack.c.bf16 %v676, %v675
    %685 = vst [vmem:[#allocation2 + $0x18] sm:$0xff] %v677
    %686 = vst [vmem:[#allocation2 + $0x60] sm:$0xff] %v678
    %687 = vst [vmem:[#allocation2 + $0xa8] sm:$0xff] %v679
    %688 = vst [vmem:[#allocation2 + $0xf0] sm:$0xff] %v680
    %689 = vst [vmem:[#allocation2 + $0x138] sm:$0xff] %v681
    %690 = vst [vmem:[#allocation2 + $0x180] sm:$0xff] %v682
    %691 = vst [vmem:[#allocation2 + $0x1c8] sm:$0xff] %v683
    %692 = vst [vmem:[#allocation2 + $0x210] sm:$0xff] %v684
    %v693 = vpack.c.bf16 %v95, %v94
    %v694 = vpack.c.bf16 %v97, %v96
    %v695 = vpack.c.bf16 %v99, %v98
    %v696 = vpack.c.bf16 %v101, %v100
    %v697 = vpack.c.bf16 %v103, %v102
    %v698 = vpack.c.bf16 %v105, %v104
    %v699 = vpack.c.bf16 %v107, %v106
    %v700 = vpack.c.bf16 %v109, %v108
    %701 = vst [vmem:[#allocation2 + $0x20] sm:$0xff] %v693
    %702 = vst [vmem:[#allocation2 + $0x68] sm:$0xff] %v694
    %703 = vst [vmem:[#allocation2 + $0xb0] sm:$0xff] %v695
    %704 = vst [vmem:[#allocation2 + $0xf8] sm:$0xff] %v696
    %705 = vst [vmem:[#allocation2 + $0x140] sm:$0xff] %v697
    %706 = vst [vmem:[#allocation2 + $0x188] sm:$0xff] %v698
    %707 = vst [vmem:[#allocation2 + $0x1d0] sm:$0xff] %v699
    %708 = vst [vmem:[#allocation2 + $0x218] sm:$0xff] %v700
    %s709 = scalar_lea.vmem %s5, 640
    %v710 = vld [vmem:[%s709] sm:$0xff]
    %v711 = vld [vmem:[%s709 + $0x8] sm:$0xff]
    %v712 = vld [vmem:[%s709 + $0x10] sm:$0xff]
    %v713 = vld [vmem:[%s709 + $0x18] sm:$0xff]
    %v714 = vld [vmem:[%s709 + $0x20] sm:$0xff]
    %v715 = vld [vmem:[%s709 + $0x28] sm:$0xff]
    %v716 = vld [vmem:[%s709 + $0x30] sm:$0xff]
    %v717 = vld [vmem:[%s709 + $0x38] sm:$0xff]
    %v718 = vld [vmem:[%s709 + $0x40] sm:$0xff]
    %v719 = vld [vmem:[%s709 + $0x48] sm:$0xff]
    %v720 = vld [vmem:[%s709 + $0x50] sm:$0xff]
    %v721 = vld [vmem:[%s709 + $0x58] sm:$0xff]
    %v722 = vld [vmem:[%s709 + $0x60] sm:$0xff]
    %v723 = vld [vmem:[%s709 + $0x68] sm:$0xff]
    %v724 = vld [vmem:[%s709 + $0x70] sm:$0xff]
    %v725 = vld [vmem:[%s709 + $0x78] sm:$0xff]
    %727 = vset.pattern.permute.xlu0 0
    %728 = vperm.xlu0 %727, %v710
    %v729 = vpop.permute.xlu0 %728
    %732 = vset.pattern.permute.xlu0 0
    %733 = vperm.xlu0 %732, %v711
    %v734 = vpop.permute.xlu0 %733
    %737 = vset.pattern.permute.xlu0 0
    %738 = vperm.xlu0 %737, %v712
    %v739 = vpop.permute.xlu0 %738
    %742 = vset.pattern.permute.xlu0 0
    %743 = vperm.xlu0 %742, %v713
    %v744 = vpop.permute.xlu0 %743
    %747 = vset.pattern.permute.xlu0 0
    %748 = vperm.xlu0 %747, %v714
    %v749 = vpop.permute.xlu0 %748
    %752 = vset.pattern.permute.xlu0 0
    %753 = vperm.xlu0 %752, %v715
    %v754 = vpop.permute.xlu0 %753
    %757 = vset.pattern.permute.xlu0 0
    %758 = vperm.xlu0 %757, %v716
    %v759 = vpop.permute.xlu0 %758
    %762 = vset.pattern.permute.xlu0 0
    %763 = vperm.xlu0 %762, %v717
    %v764 = vpop.permute.xlu0 %763
    %767 = vset.pattern.permute.xlu0 0
    %768 = vperm.xlu0 %767, %v718
    %v769 = vpop.permute.xlu0 %768
    %772 = vset.pattern.permute.xlu0 0
    %773 = vperm.xlu0 %772, %v719
    %v774 = vpop.permute.xlu0 %773
    %777 = vset.pattern.permute.xlu0 0
    %778 = vperm.xlu0 %777, %v720
    %v779 = vpop.permute.xlu0 %778
    %782 = vset.pattern.permute.xlu0 0
    %783 = vperm.xlu0 %782, %v721
    %v784 = vpop.permute.xlu0 %783
    %787 = vset.pattern.permute.xlu0 0
    %788 = vperm.xlu0 %787, %v722
    %v789 = vpop.permute.xlu0 %788
    %792 = vset.pattern.permute.xlu0 0
    %793 = vperm.xlu0 %792, %v723
    %v794 = vpop.permute.xlu0 %793
    %797 = vset.pattern.permute.xlu0 0
    %798 = vperm.xlu0 %797, %v724
    %v799 = vpop.permute.xlu0 %798
    %802 = vset.pattern.permute.xlu0 0
    %803 = vperm.xlu0 %802, %v725
    %v804 = vpop.permute.xlu0 %803
    %v806 = vmul.f32 %v433, %v729
    %v807 = vmul.f32 %v432, %v734
    %v808 = vmul.f32 %v431, %v739
    %v809 = vmul.f32 %v430, %v744
    %v810 = vmul.f32 %v429, %v749
    %v811 = vmul.f32 %v428, %v754
    %v812 = vmul.f32 %v427, %v759
    %v813 = vmul.f32 %v426, %v764
    %v814 = vmul.f32 %v425, %v769
    %v815 = vmul.f32 %v424, %v774
    %v816 = vmul.f32 %v423, %v779
    %v817 = vmul.f32 %v422, %v784
    %v818 = vmul.f32 %v421, %v789
    %v819 = vmul.f32 %v420, %v794
    %v820 = vmul.f32 %v419, %v799
    %v821 = vmul.f32 %v434, %v804
    %v822 = vpack.c.bf16 %v807, %v806
    %v823 = vpack.c.bf16 %v809, %v808
    %v824 = vpack.c.bf16 %v811, %v810
    %v825 = vpack.c.bf16 %v813, %v812
    %v826 = vpack.c.bf16 %v815, %v814
    %v827 = vpack.c.bf16 %v817, %v816
    %v828 = vpack.c.bf16 %v819, %v818
    %v829 = vpack.c.bf16 %v821, %v820
    %830 = vst [vmem:[#allocation2 + $0x28] sm:$0xff] %v822
    %831 = vst [vmem:[#allocation2 + $0x70] sm:$0xff] %v823
    %832 = vst [vmem:[#allocation2 + $0xb8] sm:$0xff] %v824
    %833 = vst [vmem:[#allocation2 + $0x100] sm:$0xff] %v825
    %834 = vst [vmem:[#allocation2 + $0x148] sm:$0xff] %v826
    %835 = vst [vmem:[#allocation2 + $0x190] sm:$0xff] %v827
    %836 = vst [vmem:[#allocation2 + $0x1d8] sm:$0xff] %v828
    %837 = vst [vmem:[#allocation2 + $0x220] sm:$0xff] %v829
    %s838 = scalar_lea.vmem %s5, 768
    %v839 = vld [vmem:[%s838] sm:$0xff]
    %v840 = vld [vmem:[%s838 + $0x8] sm:$0xff]
    %v841 = vld [vmem:[%s838 + $0x10] sm:$0xff]
    %v842 = vld [vmem:[%s838 + $0x18] sm:$0xff]
    %v843 = vld [vmem:[%s838 + $0x20] sm:$0xff]
    %v844 = vld [vmem:[%s838 + $0x28] sm:$0xff]
    %v845 = vld [vmem:[%s838 + $0x30] sm:$0xff]
    %v846 = vld [vmem:[%s838 + $0x38] sm:$0xff]
    %v847 = vld [vmem:[%s838 + $0x40] sm:$0xff]
    %v848 = vld [vmem:[%s838 + $0x48] sm:$0xff]
    %v849 = vld [vmem:[%s838 + $0x50] sm:$0xff]
    %v850 = vld [vmem:[%s838 + $0x58] sm:$0xff]
    %v851 = vld [vmem:[%s838 + $0x60] sm:$0xff]
    %v852 = vld [vmem:[%s838 + $0x68] sm:$0xff]
    %v853 = vld [vmem:[%s838 + $0x70] sm:$0xff]
    %v854 = vld [vmem:[%s838 + $0x78] sm:$0xff]
    %856 = vset.pattern.permute.xlu0 0
    %857 = vperm.xlu0 %856, %v839
    %v858 = vpop.permute.xlu0 %857
    %861 = vset.pattern.permute.xlu0 0
    %862 = vperm.xlu0 %861, %v840
    %v863 = vpop.permute.xlu0 %862
    %866 = vset.pattern.permute.xlu0 0
    %867 = vperm.xlu0 %866, %v841
    %v868 = vpop.permute.xlu0 %867
    %871 = vset.pattern.permute.xlu0 0
    %872 = vperm.xlu0 %871, %v842
    %v873 = vpop.permute.xlu0 %872
    %876 = vset.pattern.permute.xlu0 0
    %877 = vperm.xlu0 %876, %v843
    %v878 = vpop.permute.xlu0 %877
    %881 = vset.pattern.permute.xlu0 0
    %882 = vperm.xlu0 %881, %v844
    %v883 = vpop.permute.xlu0 %882
    %886 = vset.pattern.permute.xlu0 0
    %887 = vperm.xlu0 %886, %v845
    %v888 = vpop.permute.xlu0 %887
    %891 = vset.pattern.permute.xlu0 0
    %892 = vperm.xlu0 %891, %v846
    %v893 = vpop.permute.xlu0 %892
    %896 = vset.pattern.permute.xlu0 0
    %897 = vperm.xlu0 %896, %v847
    %v898 = vpop.permute.xlu0 %897
    %901 = vset.pattern.permute.xlu0 0
    %902 = vperm.xlu0 %901, %v848
    %v903 = vpop.permute.xlu0 %902
    %906 = vset.pattern.permute.xlu0 0
    %907 = vperm.xlu0 %906, %v849
    %v908 = vpop.permute.xlu0 %907
    %911 = vset.pattern.permute.xlu0 0
    %912 = vperm.xlu0 %911, %v850
    %v913 = vpop.permute.xlu0 %912
    %916 = vset.pattern.permute.xlu0 0
    %917 = vperm.xlu0 %916, %v851
    %v918 = vpop.permute.xlu0 %917
    %921 = vset.pattern.permute.xlu0 0
    %922 = vperm.xlu0 %921, %v852
    %v923 = vpop.permute.xlu0 %922
    %926 = vset.pattern.permute.xlu0 0
    %927 = vperm.xlu0 %926, %v853
    %v928 = vpop.permute.xlu0 %927
    %931 = vset.pattern.permute.xlu0 0
    %932 = vperm.xlu0 %931, %v854
    %v933 = vpop.permute.xlu0 %932
    %v935 = vmul.f32 %v143, %v858
    %v936 = vmul.f32 %v142, %v863
    %v937 = vmul.f32 %v141, %v868
    %v938 = vmul.f32 %v140, %v873
    %v939 = vmul.f32 %v139, %v878
    %v940 = vmul.f32 %v138, %v883
    %v941 = vmul.f32 %v137, %v888
    %v942 = vmul.f32 %v136, %v893
    %v943 = vmul.f32 %v135, %v898
    %v944 = vmul.f32 %v134, %v903
    %v945 = vmul.f32 %v133, %v908
    %v946 = vmul.f32 %v132, %v913
    %v947 = vmul.f32 %v131, %v918
    %v948 = vmul.f32 %v130, %v923
    %v949 = vmul.f32 %v129, %v928
    %v950 = vmul.f32 %v144, %v933
    %v951 = vpack.c.bf16 %v936, %v935
    %v952 = vpack.c.bf16 %v938, %v937
    %v953 = vpack.c.bf16 %v940, %v939
    %v954 = vpack.c.bf16 %v942, %v941
    %v955 = vpack.c.bf16 %v944, %v943
    %v956 = vpack.c.bf16 %v946, %v945
    %v957 = vpack.c.bf16 %v948, %v947
    %v958 = vpack.c.bf16 %v950, %v949
    %959 = vst [vmem:[#allocation2 + $0x30] sm:$0xff] %v951
    %960 = vst [vmem:[#allocation2 + $0x78] sm:$0xff] %v952
    %961 = vst [vmem:[#allocation2 + $0xc0] sm:$0xff] %v953
    %962 = vst [vmem:[#allocation2 + $0x108] sm:$0xff] %v954
    %963 = vst [vmem:[#allocation2 + $0x150] sm:$0xff] %v955
    %964 = vst [vmem:[#allocation2 + $0x198] sm:$0xff] %v956
    %965 = vst [vmem:[#allocation2 + $0x1e0] sm:$0xff] %v957
    %966 = vst [vmem:[#allocation2 + $0x228] sm:$0xff] %v958
    %s967 = scalar_lea.vmem %s5, 896
    %v968 = vld [vmem:[%s967] sm:$0xff]
    %v969 = vld [vmem:[%s967 + $0x8] sm:$0xff]
    %v970 = vld [vmem:[%s967 + $0x10] sm:$0xff]
    %v971 = vld [vmem:[%s967 + $0x18] sm:$0xff]
    %v972 = vld [vmem:[%s967 + $0x20] sm:$0xff]
    %v973 = vld [vmem:[%s967 + $0x28] sm:$0xff]
    %v974 = vld [vmem:[%s967 + $0x30] sm:$0xff]
    %v975 = vld [vmem:[%s967 + $0x38] sm:$0xff]
    %v976 = vld [vmem:[%s967 + $0x40] sm:$0xff]
    %v977 = vld [vmem:[%s967 + $0x48] sm:$0xff]
    %v978 = vld [vmem:[%s967 + $0x50] sm:$0xff]
    %v979 = vld [vmem:[%s967 + $0x58] sm:$0xff]
    %v980 = vld [vmem:[%s967 + $0x60] sm:$0xff]
    %v981 = vld [vmem:[%s967 + $0x68] sm:$0xff]
    %v982 = vld [vmem:[%s967 + $0x70] sm:$0xff]
    %v983 = vld [vmem:[%s967 + $0x78] sm:$0xff]
    %985 = vset.pattern.permute.xlu0 0
    %986 = vperm.xlu0 %985, %v968
    %v987 = vpop.permute.xlu0 %986
    %990 = vset.pattern.permute.xlu0 0
    %991 = vperm.xlu0 %990, %v969
    %v992 = vpop.permute.xlu0 %991
    %995 = vset.pattern.permute.xlu0 0
    %996 = vperm.xlu0 %995, %v970
    %v997 = vpop.permute.xlu0 %996
    %1000 = vset.pattern.permute.xlu0 0
    %1001 = vperm.xlu0 %1000, %v971
    %v1002 = vpop.permute.xlu0 %1001
    %1005 = vset.pattern.permute.xlu0 0
    %1006 = vperm.xlu0 %1005, %v972
    %v1007 = vpop.permute.xlu0 %1006
    %1010 = vset.pattern.permute.xlu0 0
    %1011 = vperm.xlu0 %1010, %v973
    %v1012 = vpop.permute.xlu0 %1011
    %1015 = vset.pattern.permute.xlu0 0
    %1016 = vperm.xlu0 %1015, %v974
    %v1017 = vpop.permute.xlu0 %1016
    %1020 = vset.pattern.permute.xlu0 0
    %1021 = vperm.xlu0 %1020, %v975
    %v1022 = vpop.permute.xlu0 %1021
    %1025 = vset.pattern.permute.xlu0 0
    %1026 = vperm.xlu0 %1025, %v976
    %v1027 = vpop.permute.xlu0 %1026
    %1030 = vset.pattern.permute.xlu0 0
    %1031 = vperm.xlu0 %1030, %v977
    %v1032 = vpop.permute.xlu0 %1031
    %1035 = vset.pattern.permute.xlu0 0
    %1036 = vperm.xlu0 %1035, %v978
    %v1037 = vpop.permute.xlu0 %1036
    %1040 = vset.pattern.permute.xlu0 0
    %1041 = vperm.xlu0 %1040, %v979
    %v1042 = vpop.permute.xlu0 %1041
    %1045 = vset.pattern.permute.xlu0 0
    %1046 = vperm.xlu0 %1045, %v980
    %v1047 = vpop.permute.xlu0 %1046
    %1050 = vset.pattern.permute.xlu0 0
    %1051 = vperm.xlu0 %1050, %v981
    %v1052 = vpop.permute.xlu0 %1051
    %1055 = vset.pattern.permute.xlu0 0
    %1056 = vperm.xlu0 %1055, %v982
    %v1057 = vpop.permute.xlu0 %1056
    %1060 = vset.pattern.permute.xlu0 0
    %1061 = vperm.xlu0 %1060, %v983
    %v1062 = vpop.permute.xlu0 %1061
    %v1064 = vmul.f32 %v95, %v987
    %v1065 = vmul.f32 %v96, %v992
    %v1066 = vmul.f32 %v97, %v997
    %v1067 = vmul.f32 %v98, %v1002
    %v1068 = vmul.f32 %v99, %v1007
    %v1069 = vmul.f32 %v100, %v1012
    %v1070 = vmul.f32 %v101, %v1017
    %v1071 = vmul.f32 %v102, %v1022
    %v1072 = vmul.f32 %v103, %v1027
    %v1073 = vmul.f32 %v104, %v1032
    %v1074 = vmul.f32 %v105, %v1037
    %v1075 = vmul.f32 %v106, %v1042
    %v1076 = vmul.f32 %v107, %v1047
    %v1077 = vmul.f32 %v108, %v1052
    %v1078 = vmul.f32 %v109, %v1057
    %v1079 = vmul.f32 %v94, %v1062
    %v1080 = vpack.c.bf16 %v1065, %v1064
    %v1081 = vpack.c.bf16 %v1067, %v1066
    %v1082 = vpack.c.bf16 %v1069, %v1068
    %v1083 = vpack.c.bf16 %v1071, %v1070
    %v1084 = vpack.c.bf16 %v1073, %v1072
    %v1085 = vpack.c.bf16 %v1075, %v1074
    %v1086 = vpack.c.bf16 %v1077, %v1076
    %v1087 = vpack.c.bf16 %v1079, %v1078
    %1088 = vst [vmem:[#allocation2 + $0x38] sm:$0xff] %v1080
    %1089 = vst [vmem:[#allocation2 + $0x80] sm:$0xff] %v1081
    %1090 = vst [vmem:[#allocation2 + $0xc8] sm:$0xff] %v1082
    %1091 = vst [vmem:[#allocation2 + $0x110] sm:$0xff] %v1083
    %1092 = vst [vmem:[#allocation2 + $0x158] sm:$0xff] %v1084
    %1093 = vst [vmem:[#allocation2 + $0x1a0] sm:$0xff] %v1085
    %1094 = vst [vmem:[#allocation2 + $0x1e8] sm:$0xff] %v1086
    %1095 = vst [vmem:[#allocation2 + $0x230] sm:$0xff] %v1087
    %s1096 = scalar_lea.vmem %s5, 1024
    %v1097 = vld [vmem:[%s1096] sm:$0xff]
    %v1098 = vld [vmem:[%s1096 + $0x8] sm:$0xff]
    %v1099 = vld [vmem:[%s1096 + $0x10] sm:$0xff]
    %v1100 = vld [vmem:[%s1096 + $0x18] sm:$0xff]
    %v1101 = vld [vmem:[%s1096 + $0x20] sm:$0xff]
    %v1102 = vld [vmem:[%s1096 + $0x28] sm:$0xff]
    %v1103 = vld [vmem:[%s1096 + $0x30] sm:$0xff]
    %v1104 = vld [vmem:[%s1096 + $0x38] sm:$0xff]
    %v1105 = vld [vmem:[%s1096 + $0x40] sm:$0xff]
    %v1106 = vld [vmem:[%s1096 + $0x48] sm:$0xff]
    %v1107 = vld [vmem:[%s1096 + $0x50] sm:$0xff]
    %v1108 = vld [vmem:[%s1096 + $0x58] sm:$0xff]
    %v1109 = vld [vmem:[%s1096 + $0x60] sm:$0xff]
    %v1110 = vld [vmem:[%s1096 + $0x68] sm:$0xff]
    %v1111 = vld [vmem:[%s1096 + $0x70] sm:$0xff]
    %v1112 = vld [vmem:[%s1096 + $0x78] sm:$0xff]
    %1114 = vset.pattern.permute.xlu0 0
    %1115 = vperm.xlu0 %1114, %v1097
    %v1116 = vpop.permute.xlu0 %1115
    %1119 = vset.pattern.permute.xlu0 0
    %1120 = vperm.xlu0 %1119, %v1098
    %v1121 = vpop.permute.xlu0 %1120
    %1124 = vset.pattern.permute.xlu0 0
    %1125 = vperm.xlu0 %1124, %v1099
    %v1126 = vpop.permute.xlu0 %1125
    %1129 = vset.pattern.permute.xlu0 0
    %1130 = vperm.xlu0 %1129, %v1100
    %v1131 = vpop.permute.xlu0 %1130
    %1134 = vset.pattern.permute.xlu0 0
    %1135 = vperm.xlu0 %1134, %v1101
    %v1136 = vpop.permute.xlu0 %1135
    %1139 = vset.pattern.permute.xlu0 0
    %1140 = vperm.xlu0 %1139, %v1102
    %v1141 = vpop.permute.xlu0 %1140
    %1144 = vset.pattern.permute.xlu0 0
    %1145 = vperm.xlu0 %1144, %v1103
    %v1146 = vpop.permute.xlu0 %1145
    %1149 = vset.pattern.permute.xlu0 0
    %1150 = vperm.xlu0 %1149, %v1104
    %v1151 = vpop.permute.xlu0 %1150
    %1154 = vset.pattern.permute.xlu0 0
    %1155 = vperm.xlu0 %1154, %v1105
    %v1156 = vpop.permute.xlu0 %1155
    %1159 = vset.pattern.permute.xlu0 0
    %1160 = vperm.xlu0 %1159, %v1106
    %v1161 = vpop.permute.xlu0 %1160
    %1164 = vset.pattern.permute.xlu0 0
    %1165 = vperm.xlu0 %1164, %v1107
    %v1166 = vpop.permute.xlu0 %1165
    %1169 = vset.pattern.permute.xlu0 0
    %1170 = vperm.xlu0 %1169, %v1108
    %v1171 = vpop.permute.xlu0 %1170
    %1174 = vset.pattern.permute.xlu0 0
    %1175 = vperm.xlu0 %1174, %v1109
    %v1176 = vpop.permute.xlu0 %1175
    %1179 = vset.pattern.permute.xlu0 0
    %1180 = vperm.xlu0 %1179, %v1110
    %v1181 = vpop.permute.xlu0 %1180
    %1184 = vset.pattern.permute.xlu0 0
    %1185 = vperm.xlu0 %1184, %v1111
    %v1186 = vpop.permute.xlu0 %1185
    %1189 = vset.pattern.permute.xlu0 0
    %1190 = vperm.xlu0 %1189, %v1112
    %v1191 = vpop.permute.xlu0 %1190
    %v1193 = vmul.f32 %v432, %v1116
    %v1194 = vmul.f32 %v431, %v1121
    %v1195 = vmul.f32 %v430, %v1126
    %v1196 = vmul.f32 %v429, %v1131
    %v1197 = vmul.f32 %v428, %v1136
    %v1198 = vmul.f32 %v427, %v1141
    %v1199 = vmul.f32 %v426, %v1146
    %v1200 = vmul.f32 %v425, %v1151
    %v1201 = vmul.f32 %v424, %v1156
    %v1202 = vmul.f32 %v423, %v1161
    %v1203 = vmul.f32 %v422, %v1166
    %v1204 = vmul.f32 %v421, %v1171
    %v1205 = vmul.f32 %v420, %v1176
    %v1206 = vmul.f32 %v419, %v1181
    %v1207 = vmul.f32 %v434, %v1186
    %v1208 = vmul.f32 %v433, %v1191
    %v1209 = vpack.c.bf16 %v1194, %v1193
    %v1210 = vpack.c.bf16 %v1196, %v1195
    %v1211 = vpack.c.bf16 %v1198, %v1197
    %v1212 = vpack.c.bf16 %v1200, %v1199
    %v1213 = vpack.c.bf16 %v1202, %v1201
    %v1214 = vpack.c.bf16 %v1204, %v1203
    %v1215 = vpack.c.bf16 %v1206, %v1205
    %v1216 = vpack.c.bf16 %v1208, %v1207
    %1217 = vst [vmem:[#allocation2 + $0x40] sm:$0xff] %v1209
    %1218 = vst [vmem:[#allocation2 + $0x88] sm:$0xff] %v1210
    %1219 = vst [vmem:[#allocation2 + $0xd0] sm:$0xff] %v1211
    %1220 = vst [vmem:[#allocation2 + $0x118] sm:$0xff] %v1212
    %1221 = vst [vmem:[#allocation2 + $0x160] sm:$0xff] %v1213
    %1222 = vst [vmem:[#allocation2 + $0x1a8] sm:$0xff] %v1214
    %1223 = vst [vmem:[#allocation2 + $0x1f0] sm:$0xff] %v1215
    %1224 = vst [vmem:[#allocation2 + $0x238] sm:$0xff] %v1216
  $region29: #{_lambda_.6} parent=0 // pred_fallthru
    _
  %v1225 = vmul.f32 %v24, %v24
  %v1226 = vld [vmem:[%s2] sm:$0xff]
  %v1227 = vld [vmem:[%s2 + $0x8] sm:$0xff]
  %v1228 = vld [vmem:[%s2 + $0x10] sm:$0xff]
  %v1229 = vld [vmem:[%s2 + $0x18] sm:$0xff]
  %v1230 = vld [vmem:[%s2 + $0x20] sm:$0xff]
  %v1231 = vld [vmem:[%s2 + $0x28] sm:$0xff]
  %v1232 = vld [vmem:[%s2 + $0x30] sm:$0xff]
  %v1233 = vld [vmem:[%s2 + $0x38] sm:$0xff]
  %v1234 = vld [vmem:[%s2 + $0x40] sm:$0xff]
  %v1235 = vld [vmem:[%s2 + $0x48] sm:$0xff]
  %v1236 = vld [vmem:[%s2 + $0x50] sm:$0xff]
  %v1237 = vld [vmem:[%s2 + $0x58] sm:$0xff]
  %v1238 = vld [vmem:[%s2 + $0x60] sm:$0xff]
  %v1239 = vld [vmem:[%s2 + $0x68] sm:$0xff]
  %v1240 = vld [vmem:[%s2 + $0x70] sm:$0xff]
  %v1241 = vld [vmem:[%s2 + $0x78] sm:$0xff]
  %1242 = vmatprep.subr.mxu0 0.0
  %1243 = vmatpush1.msra.mxu0 %v1226
  %1244 = vmatprep.subr.mxu0 0.0
  %1245 = vmatpush1.msra.mxu0 %v1227
  %1246 = vmatprep.subr.mxu0 0.0
  %1247 = vmatpush1.msra.mxu0 %v1228
  %1248 = vmatprep.subr.mxu0 0.0
  %1249 = vmatpush1.msra.mxu0 %v1229
  %1250 = vmatprep.subr.mxu0 0.0
  %1251 = vmatpush1.msra.mxu0 %v1230
  %1252 = vmatprep.subr.mxu0 0.0
  %1253 = vmatpush1.msra.mxu0 %v1231
  %1254 = vmatprep.subr.mxu0 0.0
  %1255 = vmatpush1.msra.mxu0 %v1232
  %1256 = vmatprep.subr.mxu0 0.0
  %1257 = vmatpush1.msra.mxu0 %v1233
  %1258 = vmatprep.subr.mxu0 0.0
  %1259 = vmatpush1.msra.mxu0 %v1234
  %1260 = vmatprep.subr.mxu0 0.0
  %1261 = vmatpush1.msra.mxu0 %v1235
  %1262 = vmatprep.subr.mxu0 0.0
  %1263 = vmatpush1.msra.mxu0 %v1236
  %1264 = vmatprep.subr.mxu0 0.0
  %1265 = vmatpush1.msra.mxu0 %v1237
  %1266 = vmatprep.subr.mxu0 0.0
  %1267 = vmatpush1.msra.mxu0 %v1238
  %1268 = vmatprep.subr.mxu0 0.0
  %1269 = vmatpush1.msra.mxu0 %v1239
  %1270 = vmatprep.subr.mxu0 0.0
  %1271 = vmatpush1.msra.mxu0 %v1240
  %1272 = vmatprep.subr.mxu0 0.0
  %1273 = vmatpush1.msra.mxu0 %v1241
  %1274 = vmatprep.subr.mxu0 0.0
  %1275 = vmatpush1.msra.mxu0 0.0
  %1276 = vmatprep.subr.mxu0 0.0
  %1277 = vmatpush1.msra.mxu0 0.0
  %1278 = vmatprep.subr.mxu0 0.0
  %1279 = vmatpush1.msra.mxu0 0.0
  %1280 = vmatprep.subr.mxu0 0.0
  %1281 = vmatpush1.msra.mxu0 0.0
  %1282 = vmatprep.subr.mxu0 0.0
  %1283 = vmatpush1.msra.mxu0 0.0
  %1284 = vmatprep.subr.mxu0 0.0
  %1285 = vmatpush1.msra.mxu0 0.0
  %1286 = vmatprep.subr.mxu0 0.0
  %1287 = vmatpush1.msra.mxu0 0.0
  %1288 = vmatprep.subr.mxu0 0.0
  %1289 = vmatpush1.msra.mxu0 0.0
  %1290 = vmatprep.subr.mxu0 0.0
  %1291 = vmatpush1.msra.mxu0 0.0
  %1292 = vmatprep.subr.mxu0 0.0
  %1293 = vmatpush1.msra.mxu0 0.0
  %1294 = vmatprep.subr.mxu0 0.0
  %1295 = vmatpush1.msra.mxu0 0.0
  %1296 = vmatprep.subr.mxu0 0.0
  %1297 = vmatpush1.msra.mxu0 0.0
  %1298 = vmatprep.subr.mxu0 0.0
  %1299 = vmatpush1.msra.mxu0 0.0
  %1300 = vmatprep.subr.mxu0 0.0
  %1301 = vmatpush1.msra.mxu0 0.0
  %1302 = vmatprep.subr.mxu0 0.0
  %1303 = vmatpush1.msra.mxu0 0.0
  %1304 = vmatprep.subr.mxu0 0.0
  %1305 = vmatpush1.msra.mxu0 0.0
  %1306 = vmatprep.mubr.f32.mxu0 0.0
  %1307 = vmatmul.mubr.f32.gmra.mrb[0].mxu0 %v1225
  %v1308 = vpop.f32.mrb[0].mxu0
  %v1309 = vadd.f32 1e-08, %v1308
  %v1310 = vpop.f32.mrb[0].mxu0
  %1311 = vdwg.mxu0
  %v1312 = vrsqrt.pop %v1309
  %v1313 = vld [vmem:[#allocation2] sm:$0xff]
  %v1314 = vld [vmem:[#allocation2 + $0x8] sm:$0xff]
  %v1315 = vld [vmem:[#allocation2 + $0x10] sm:$0xff]
  %v1316 = vld [vmem:[#allocation2 + $0x18] sm:$0xff]
  %v1317 = vld [vmem:[#allocation2 + $0x20] sm:$0xff]
  %v1318 = vld [vmem:[#allocation2 + $0x28] sm:$0xff]
  %v1319 = vld [vmem:[#allocation2 + $0x30] sm:$0xff]
  %v1320 = vld [vmem:[#allocation2 + $0x38] sm:$0xff]
  %v1321 = vld [vmem:[#allocation2 + $0x40] sm:$0xff]
  %v1322 = vld [vmem:[#allocation2 + $0x48] sm:$0xff]
  %v1323 = vld [vmem:[#allocation2 + $0x50] sm:$0xff]
  %v1324 = vld [vmem:[#allocation2 + $0x58] sm:$0xff]
  %v1325 = vld [vmem:[#allocation2 + $0x60] sm:$0xff]
  %v1326 = vld [vmem:[#allocation2 + $0x68] sm:$0xff]
  %v1327 = vld [vmem:[#allocation2 + $0x70] sm:$0xff]
  %v1328 = vld [vmem:[#allocation2 + $0x78] sm:$0xff]
  %v1329 = vld [vmem:[#allocation2 + $0x80] sm:$0xff]
  %v1330 = vld [vmem:[#allocation2 + $0x88] sm:$0xff]
  %v1331 = vld [vmem:[#allocation2 + $0x90] sm:$0xff]
  %v1332 = vld [vmem:[#allocation2 + $0x98] sm:$0xff]
  %v1333 = vld [vmem:[#allocation2 + $0xa0] sm:$0xff]
  %v1334 = vld [vmem:[#allocation2 + $0xa8] sm:$0xff]
  %v1335 = vld [vmem:[#allocation2 + $0xb0] sm:$0xff]
  %v1336 = vld [vmem:[#allocation2 + $0xb8] sm:$0xff]
  %v1337 = vld [vmem:[#allocation2 + $0xc0] sm:$0xff]
  %v1338 = vld [vmem:[#allocation2 + $0xc8] sm:$0xff]
  %v1339 = vld [vmem:[#allocation2 + $0xd0] sm:$0xff]
  %v1340 = vld [vmem:[#allocation2 + $0xd8] sm:$0xff]
  %v1341 = vld [vmem:[#allocation2 + $0xe0] sm:$0xff]
  %v1342 = vld [vmem:[#allocation2 + $0xe8] sm:$0xff]
  %v1343 = vld [vmem:[#allocation2 + $0xf0] sm:$0xff]
  %v1344 = vld [vmem:[#allocation2 + $0xf8] sm:$0xff]
  %v1345 = vld [vmem:[#allocation2 + $0x100] sm:$0xff]
  %v1346 = vld [vmem:[#allocation2 + $0x108] sm:$0xff]
  %v1347 = vld [vmem:[#allocation2 + $0x110] sm:$0xff]
  %v1348 = vld [vmem:[#allocation2 + $0x118] sm:$0xff]
  %v1349 = vld [vmem:[#allocation2 + $0x120] sm:$0xff]
  %v1350 = vld [vmem:[#allocation2 + $0x128] sm:$0xff]
  %v1351 = vld [vmem:[#allocation2 + $0x130] sm:$0xff]
  %v1352 = vld [vmem:[#allocation2 + $0x138] sm:$0xff]
  %v1353 = vld [vmem:[#allocation2 + $0x140] sm:$0xff]
  %v1354 = vld [vmem:[#allocation2 + $0x148] sm:$0xff]
  %v1355 = vld [vmem:[#allocation2 + $0x150] sm:$0xff]
  %v1356 = vld [vmem:[#allocation2 + $0x158] sm:$0xff]
  %v1357 = vld [vmem:[#allocation2 + $0x160] sm:$0xff]
  %v1358 = vld [vmem:[#allocation2 + $0x168] sm:$0xff]
  %v1359 = vld [vmem:[#allocation2 + $0x170] sm:$0xff]
  %v1360 = vld [vmem:[#allocation2 + $0x178] sm:$0xff]
  %v1361 = vld [vmem:[#allocation2 + $0x180] sm:$0xff]
  %v1362 = vld [vmem:[#allocation2 + $0x188] sm:$0xff]
  %v1363 = vld [vmem:[#allocation2 + $0x190] sm:$0xff]
  %v1364 = vld [vmem:[#allocation2 + $0x198] sm:$0xff]
  %v1365 = vld [vmem:[#allocation2 + $0x1a0] sm:$0xff]
  %v1366 = vld [vmem:[#allocation2 + $0x1a8] sm:$0xff]
  %v1367 = vld [vmem:[#allocation2 + $0x1b0] sm:$0xff]
  %v1368 = vld [vmem:[#allocation2 + $0x1b8] sm:$0xff]
  %v1369 = vld [vmem:[#allocation2 + $0x1c0] sm:$0xff]
  %v1370 = vld [vmem:[#allocation2 + $0x1c8] sm:$0xff]
  %v1371 = vld [vmem:[#allocation2 + $0x1d0] sm:$0xff]
  %v1372 = vld [vmem:[#allocation2 + $0x1d8] sm:$0xff]
  %v1373 = vld [vmem:[#allocation2 + $0x1e0] sm:$0xff]
  %v1374 = vld [vmem:[#allocation2 + $0x1e8] sm:$0xff]
  %v1375 = vld [vmem:[#allocation2 + $0x1f0] sm:$0xff]
  %v1376 = vld [vmem:[#allocation2 + $0x1f8] sm:$0xff]
  %v1377 = vld [vmem:[#allocation2 + $0x200] sm:$0xff]
  %v1378 = vld [vmem:[#allocation2 + $0x208] sm:$0xff]
  %v1379 = vld [vmem:[#allocation2 + $0x210] sm:$0xff]
  %v1380 = vld [vmem:[#allocation2 + $0x218] sm:$0xff]
  %v1381 = vld [vmem:[#allocation2 + $0x220] sm:$0xff]
  %v1382 = vld [vmem:[#allocation2 + $0x228] sm:$0xff]
  %v1383 = vld [vmem:[#allocation2 + $0x230] sm:$0xff]
  %v1384 = vld [vmem:[#allocation2 + $0x238] sm:$0xff]
  %v1385 = vld [vmem:[%s1] sm:$0xf]
  %v1386 = vld [vmem:[%s1 + $0x4] sm:$0xf]
  %v1387 = vld [vmem:[%s1 + $0x8] sm:$0xf]
  %v1388 = vld [vmem:[%s1 + $0xc] sm:$0xf]
  %v1389 = vld [vmem:[%s1 + $0x10] sm:$0xf]
  %v1390 = vld [vmem:[%s1 + $0x14] sm:$0xf]
  %v1391 = vld [vmem:[%s1 + $0x18] sm:$0xf]
  %v1392 = vld [vmem:[%s1 + $0x1c] sm:$0xf]
  %v1393 = vld [vmem:[%s1 + $0x20] sm:$0xf]
  %v1394 = vld [vmem:[%s1 + $0x24] sm:$0xf]
  %v1395 = vld [vmem:[%s1 + $0x28] sm:$0xf]
  %v1396 = vld [vmem:[%s1 + $0x2c] sm:$0xf]
  %v1397 = vld [vmem:[%s1 + $0x30] sm:$0xf]
  %v1398 = vld [vmem:[%s1 + $0x34] sm:$0xf]
  %v1399 = vld [vmem:[%s1 + $0x38] sm:$0xf]
  %v1400 = vld [vmem:[%s1 + $0x3c] sm:$0xf]
  %v1401 = vld [vmem:[%s1 + $0x40] sm:$0xf]
  %v1402 = vld [vmem:[%s1 + $0x44] sm:$0xf]
  %v1403 = vld [vmem:[%s1 + $0x48] sm:$0xf]
  %v1404 = vld [vmem:[%s1 + $0x4c] sm:$0xf]
  %v1405 = vld [vmem:[%s1 + $0x50] sm:$0xf]
  %v1406 = vld [vmem:[%s1 + $0x54] sm:$0xf]
  %v1407 = vld [vmem:[%s1 + $0x58] sm:$0xf]
  %v1408 = vld [vmem:[%s1 + $0x5c] sm:$0xf]
  %v1409 = vld [vmem:[%s1 + $0x60] sm:$0xf]
  %v1410 = vld [vmem:[%s1 + $0x64] sm:$0xf]
  %v1411 = vld [vmem:[%s1 + $0x68] sm:$0xf]
  %v1412 = vld [vmem:[%s1 + $0x6c] sm:$0xf]
  %v1413 = vld [vmem:[%s1 + $0x70] sm:$0xf]
  %v1414 = vld [vmem:[%s1 + $0x74] sm:$0xf]
  %v1415 = vld [vmem:[%s1 + $0x78] sm:$0xf]
  %v1416 = vld [vmem:[%s1 + $0x7c] sm:$0xf]
  %v1417 = vld [vmem:[%s1 + $0x80] sm:$0xf]
  %v1418 = vld [vmem:[%s1 + $0x84] sm:$0xf]
  %v1419 = vld [vmem:[%s1 + $0x88] sm:$0xf]
  %v1420 = vld [vmem:[%s1 + $0x8c] sm:$0xf]
  %v1421 = vld [vmem:[%s1 + $0x90] sm:$0xf]
  %v1422 = vld [vmem:[%s1 + $0x94] sm:$0xf]
  %v1423 = vld [vmem:[%s1 + $0x98] sm:$0xf]
  %v1424 = vld [vmem:[%s1 + $0x9c] sm:$0xf]
  %v1425 = vld [vmem:[%s1 + $0xa0] sm:$0xf]
  %v1426 = vld [vmem:[%s1 + $0xa4] sm:$0xf]
  %v1427 = vld [vmem:[%s1 + $0xa8] sm:$0xf]
  %v1428 = vld [vmem:[%s1 + $0xac] sm:$0xf]
  %v1429 = vld [vmem:[%s1 + $0xb0] sm:$0xf]
  %v1430 = vld [vmem:[%s1 + $0xb4] sm:$0xf]
  %v1431 = vld [vmem:[%s1 + $0xb8] sm:$0xf]
  %v1432 = vld [vmem:[%s1 + $0xbc] sm:$0xf]
  %v1433 = vld [vmem:[%s1 + $0xc0] sm:$0xf]
  %v1434 = vld [vmem:[%s1 + $0xc4] sm:$0xf]
  %v1435 = vld [vmem:[%s1 + $0xc8] sm:$0xf]
  %v1436 = vld [vmem:[%s1 + $0xcc] sm:$0xf]
  %v1437 = vld [vmem:[%s1 + $0xd0] sm:$0xf]
  %v1438 = vld [vmem:[%s1 + $0xd4] sm:$0xf]
  %v1439 = vld [vmem:[%s1 + $0xd8] sm:$0xf]
  %v1440 = vld [vmem:[%s1 + $0xdc] sm:$0xf]
  %v1441 = vld [vmem:[%s1 + $0xe0] sm:$0xf]
  %v1442 = vld [vmem:[%s1 + $0xe4] sm:$0xf]
  %v1443 = vld [vmem:[%s1 + $0xe8] sm:$0xf]
  %v1444 = vld [vmem:[%s1 + $0xec] sm:$0xf]
  %v1445 = vld [vmem:[%s1 + $0xf0] sm:$0xf]
  %v1446 = vld [vmem:[%s1 + $0xf4] sm:$0xf]
  %v1447 = vld [vmem:[%s1 + $0xf8] sm:$0xf]
  %v1448 = vld [vmem:[%s1 + $0xfc] sm:$0xf]
  %v1449 = vld [vmem:[%s1 + $0x100] sm:$0xf]
  %v1450 = vld [vmem:[%s1 + $0x104] sm:$0xf]
  %v1451 = vld [vmem:[%s1 + $0x108] sm:$0xf]
  %v1452 = vld [vmem:[%s1 + $0x10c] sm:$0xf]
  %v1453 = vld [vmem:[%s1 + $0x110] sm:$0xf]
  %v1454 = vld [vmem:[%s1 + $0x114] sm:$0xf]
  %v1455 = vld [vmem:[%s1 + $0x118] sm:$0xf]
  %v1456 = vld [vmem:[%s1 + $0x11c] sm:$0xf]
  %v1457 = vld [vmem:[%s1 + $0x120] sm:$0xf]
  %v1458 = vld [vmem:[%s1 + $0x124] sm:$0xf]
  %v1459 = vld [vmem:[%s1 + $0x128] sm:$0xf]
  %v1460 = vld [vmem:[%s1 + $0x12c] sm:$0xf]
  %v1461 = vld [vmem:[%s1 + $0x130] sm:$0xf]
  %v1462 = vld [vmem:[%s1 + $0x134] sm:$0xf]
  %v1463 = vld [vmem:[%s1 + $0x138] sm:$0xf]
  %v1464 = vld [vmem:[%s1 + $0x13c] sm:$0xf]
  %v1465 = vld [vmem:[%s1 + $0x140] sm:$0xf]
  %v1466 = vld [vmem:[%s1 + $0x144] sm:$0xf]
  %v1467 = vld [vmem:[%s1 + $0x148] sm:$0xf]
  %v1468 = vld [vmem:[%s1 + $0x14c] sm:$0xf]
  %v1469 = vld [vmem:[%s1 + $0x150] sm:$0xf]
  %v1470 = vld [vmem:[%s1 + $0x154] sm:$0xf]
  %v1471 = vld [vmem:[%s1 + $0x158] sm:$0xf]
  %v1472 = vld [vmem:[%s1 + $0x15c] sm:$0xf]
  %v1473 = vld [vmem:[%s1 + $0x160] sm:$0xf]
  %v1474 = vld [vmem:[%s1 + $0x164] sm:$0xf]
  %v1475 = vld [vmem:[%s1 + $0x168] sm:$0xf]
  %v1476 = vld [vmem:[%s1 + $0x16c] sm:$0xf]
  %v1477 = vld [vmem:[%s1 + $0x170] sm:$0xf]
  %v1478 = vld [vmem:[%s1 + $0x174] sm:$0xf]
  %v1479 = vld [vmem:[%s1 + $0x178] sm:$0xf]
  %v1480 = vld [vmem:[%s1 + $0x17c] sm:$0xf]
  %v1481 = vld [vmem:[%s1 + $0x180] sm:$0xf]
  %v1482 = vld [vmem:[%s1 + $0x184] sm:$0xf]
  %v1483 = vld [vmem:[%s1 + $0x188] sm:$0xf]
  %v1484 = vld [vmem:[%s1 + $0x18c] sm:$0xf]
  %v1485 = vld [vmem:[%s1 + $0x190] sm:$0xf]
  %v1486 = vld [vmem:[%s1 + $0x194] sm:$0xf]
  %v1487 = vld [vmem:[%s1 + $0x198] sm:$0xf]
  %v1488 = vld [vmem:[%s1 + $0x19c] sm:$0xf]
  %v1489 = vld [vmem:[%s1 + $0x1a0] sm:$0xf]
  %v1490 = vld [vmem:[%s1 + $0x1a4] sm:$0xf]
  %v1491 = vld [vmem:[%s1 + $0x1a8] sm:$0xf]
  %v1492 = vld [vmem:[%s1 + $0x1ac] sm:$0xf]
  %v1493 = vld [vmem:[%s1 + $0x1b0] sm:$0xf]
  %v1494 = vld [vmem:[%s1 + $0x1b4] sm:$0xf]
  %v1495 = vld [vmem:[%s1 + $0x1b8] sm:$0xf]
  %v1496 = vld [vmem:[%s1 + $0x1bc] sm:$0xf]
  %v1497 = vld [vmem:[%s1 + $0x1c0] sm:$0xf]
  %v1498 = vld [vmem:[%s1 + $0x1c4] sm:$0xf]
  %v1499 = vld [vmem:[%s1 + $0x1c8] sm:$0xf]
  %v1500 = vld [vmem:[%s1 + $0x1cc] sm:$0xf]
  %v1501 = vld [vmem:[%s1 + $0x1d0] sm:$0xf]
  %v1502 = vld [vmem:[%s1 + $0x1d4] sm:$0xf]
  %v1503 = vld [vmem:[%s1 + $0x1d8] sm:$0xf]
  %v1504 = vld [vmem:[%s1 + $0x1dc] sm:$0xf]
  %v1505 = vld [vmem:[%s1 + $0x1e0] sm:$0xf]
  %v1506 = vld [vmem:[%s1 + $0x1e4] sm:$0xf]
  %v1507 = vld [vmem:[%s1 + $0x1e8] sm:$0xf]
  %v1508 = vld [vmem:[%s1 + $0x1ec] sm:$0xf]
  %v1509 = vld [vmem:[%s1 + $0x1f0] sm:$0xf]
  %v1510 = vld [vmem:[%s1 + $0x1f4] sm:$0xf]
  %v1511 = vld [vmem:[%s1 + $0x1f8] sm:$0xf]
  %v1512 = vld [vmem:[%s1 + $0x1fc] sm:$0xf]
  %v1513 = vld [vmem:[%s1 + $0x200] sm:$0xf]
  %v1514 = vld [vmem:[%s1 + $0x204] sm:$0xf]
  %v1515 = vld [vmem:[%s1 + $0x208] sm:$0xf]
  %v1516 = vld [vmem:[%s1 + $0x20c] sm:$0xf]
  %v1517 = vld [vmem:[%s1 + $0x210] sm:$0xf]
  %v1518 = vld [vmem:[%s1 + $0x214] sm:$0xf]
  %v1519 = vld [vmem:[%s1 + $0x218] sm:$0xf]
  %v1520 = vld [vmem:[%s1 + $0x21c] sm:$0xf]
  %v1521 = vld [vmem:[%s1 + $0x220] sm:$0xf]
  %v1522 = vld [vmem:[%s1 + $0x224] sm:$0xf]
  %v1523 = vld [vmem:[%s1 + $0x228] sm:$0xf]
  %v1524 = vld [vmem:[%s1 + $0x22c] sm:$0xf]
  %v1525 = vld [vmem:[%s1 + $0x230] sm:$0xf]
  %v1526 = vld [vmem:[%s1 + $0x234] sm:$0xf]
  %v1527 = vld [vmem:[%s1 + $0x238] sm:$0xf]
  %v1528 = vld [vmem:[%s1 + $0x23c] sm:$0xf]
  %v1673 = vunpack.c.l.b16 %v1385
  %v1674 = vunpack.c.l.b16 %v1386
  %v1675 = vunpack.c.l.b16 %v1387
  %v1676 = vunpack.c.l.b16 %v1388
  %v1677 = vunpack.c.l.b16 %v1389
  %v1678 = vunpack.c.l.b16 %v1390
  %v1679 = vunpack.c.l.b16 %v1391
  %v1680 = vunpack.c.l.b16 %v1392
  %v1681 = vunpack.c.l.b16 %v1393
  %v1682 = vunpack.c.l.b16 %v1394
  %v1683 = vunpack.c.l.b16 %v1395
  %v1684 = vunpack.c.l.b16 %v1396
  %v1685 = vunpack.c.l.b16 %v1397
  %v1686 = vunpack.c.l.b16 %v1398
  %v1687 = vunpack.c.l.b16 %v1399
  %v1688 = vunpack.c.l.b16 %v1400
  %v1689 = vunpack.c.l.b16 %v1401
  %v1690 = vunpack.c.l.b16 %v1402
  %v1691 = vunpack.c.l.b16 %v1403
  %v1692 = vunpack.c.l.b16 %v1404
  %v1693 = vunpack.c.l.b16 %v1405
  %v1694 = vunpack.c.l.b16 %v1406
  %v1695 = vunpack.c.l.b16 %v1407
  %v1696 = vunpack.c.l.b16 %v1408
  %v1697 = vunpack.c.l.b16 %v1409
  %v1698 = vunpack.c.l.b16 %v1410
  %v1699 = vunpack.c.l.b16 %v1411
  %v1700 = vunpack.c.l.b16 %v1412
  %v1701 = vunpack.c.l.b16 %v1413
  %v1702 = vunpack.c.l.b16 %v1414
  %v1703 = vunpack.c.l.b16 %v1415
  %v1704 = vunpack.c.l.b16 %v1416
  %v1705 = vunpack.c.l.b16 %v1417
  %v1706 = vunpack.c.l.b16 %v1418
  %v1707 = vunpack.c.l.b16 %v1419
  %v1708 = vunpack.c.l.b16 %v1420
  %v1709 = vunpack.c.l.b16 %v1421
  %v1710 = vunpack.c.l.b16 %v1422
  %v1711 = vunpack.c.l.b16 %v1423
  %v1712 = vunpack.c.l.b16 %v1424
  %v1713 = vunpack.c.l.b16 %v1425
  %v1714 = vunpack.c.l.b16 %v1426
  %v1715 = vunpack.c.l.b16 %v1427
  %v1716 = vunpack.c.l.b16 %v1428
  %v1717 = vunpack.c.l.b16 %v1429
  %v1718 = vunpack.c.l.b16 %v1430
  %v1719 = vunpack.c.l.b16 %v1431
  %v1720 = vunpack.c.l.b16 %v1432
  %v1721 = vunpack.c.l.b16 %v1433
  %v1722 = vunpack.c.l.b16 %v1434
  %v1723 = vunpack.c.l.b16 %v1435
  %v1724 = vunpack.c.l.b16 %v1436
  %v1725 = vunpack.c.l.b16 %v1437
  %v1726 = vunpack.c.l.b16 %v1438
  %v1727 = vunpack.c.l.b16 %v1439
  %v1728 = vunpack.c.l.b16 %v1440
  %v1729 = vunpack.c.l.b16 %v1441
  %v1730 = vunpack.c.l.b16 %v1442
  %v1731 = vunpack.c.l.b16 %v1443
  %v1732 = vunpack.c.l.b16 %v1444
  %v1733 = vunpack.c.l.b16 %v1445
  %v1734 = vunpack.c.l.b16 %v1446
  %v1735 = vunpack.c.l.b16 %v1447
  %v1736 = vunpack.c.l.b16 %v1448
  %v1737 = vunpack.c.l.b16 %v1449
  %v1738 = vunpack.c.l.b16 %v1450
  %v1739 = vunpack.c.l.b16 %v1451
  %v1740 = vunpack.c.l.b16 %v1452
  %v1741 = vunpack.c.l.b16 %v1453
  %v1742 = vunpack.c.l.b16 %v1454
  %v1743 = vunpack.c.l.b16 %v1455
  %v1744 = vunpack.c.l.b16 %v1456
  %v1745 = vunpack.c.l.b16 %v1457
  %v1746 = vunpack.c.l.b16 %v1458
  %v1747 = vunpack.c.l.b16 %v1459
  %v1748 = vunpack.c.l.b16 %v1460
  %v1749 = vunpack.c.l.b16 %v1461
  %v1750 = vunpack.c.l.b16 %v1462
  %v1751 = vunpack.c.l.b16 %v1463
  %v1752 = vunpack.c.l.b16 %v1464
  %v1753 = vunpack.c.l.b16 %v1465
  %v1754 = vunpack.c.l.b16 %v1466
  %v1755 = vunpack.c.l.b16 %v1467
  %v1756 = vunpack.c.l.b16 %v1468
  %v1757 = vunpack.c.l.b16 %v1469
  %v1758 = vunpack.c.l.b16 %v1470
  %v1759 = vunpack.c.l.b16 %v1471
  %v1760 = vunpack.c.l.b16 %v1472
  %v1761 = vunpack.c.l.b16 %v1473
  %v1762 = vunpack.c.l.b16 %v1474
  %v1763 = vunpack.c.l.b16 %v1475
  %v1764 = vunpack.c.l.b16 %v1476
  %v1765 = vunpack.c.l.b16 %v1477
  %v1766 = vunpack.c.l.b16 %v1478
  %v1767 = vunpack.c.l.b16 %v1479
  %v1768 = vunpack.c.l.b16 %v1480
  %v1769 = vunpack.c.l.b16 %v1481
  %v1770 = vunpack.c.l.b16 %v1482
  %v1771 = vunpack.c.l.b16 %v1483
  %v1772 = vunpack.c.l.b16 %v1484
  %v1773 = vunpack.c.l.b16 %v1485
  %v1774 = vunpack.c.l.b16 %v1486
  %v1775 = vunpack.c.l.b16 %v1487
  %v1776 = vunpack.c.l.b16 %v1488
  %v1777 = vunpack.c.l.b16 %v1489
  %v1778 = vunpack.c.l.b16 %v1490
  %v1779 = vunpack.c.l.b16 %v1491
  %v1780 = vunpack.c.l.b16 %v1492
  %v1781 = vunpack.c.l.b16 %v1493
  %v1782 = vunpack.c.l.b16 %v1494
  %v1783 = vunpack.c.l.b16 %v1495
  %v1784 = vunpack.c.l.b16 %v1496
  %v1785 = vunpack.c.l.b16 %v1497
  %v1786 = vunpack.c.l.b16 %v1498
  %v1787 = vunpack.c.l.b16 %v1499
  %v1788 = vunpack.c.l.b16 %v1500
  %v1789 = vunpack.c.l.b16 %v1501
  %v1790 = vunpack.c.l.b16 %v1502
  %v1791 = vunpack.c.l.b16 %v1503
  %v1792 = vunpack.c.l.b16 %v1504
  %v1793 = vunpack.c.l.b16 %v1505
  %v1794 = vunpack.c.l.b16 %v1506
  %v1795 = vunpack.c.l.b16 %v1507
  %v1796 = vunpack.c.l.b16 %v1508
  %v1797 = vunpack.c.l.b16 %v1509
  %v1798 = vunpack.c.l.b16 %v1510
  %v1799 = vunpack.c.l.b16 %v1511
  %v1800 = vunpack.c.l.b16 %v1512
  %v1801 = vunpack.c.l.b16 %v1513
  %v1802 = vunpack.c.l.b16 %v1514
  %v1803 = vunpack.c.l.b16 %v1515
  %v1804 = vunpack.c.l.b16 %v1516
  %v1805 = vunpack.c.l.b16 %v1517
  %v1806 = vunpack.c.l.b16 %v1518
  %v1807 = vunpack.c.l.b16 %v1519
  %v1808 = vunpack.c.l.b16 %v1520
  %v1809 = vunpack.c.l.b16 %v1521
  %v1810 = vunpack.c.l.b16 %v1522
  %v1811 = vunpack.c.l.b16 %v1523
  %v1812 = vunpack.c.l.b16 %v1524
  %v1813 = vunpack.c.l.b16 %v1525
  %v1814 = vunpack.c.l.b16 %v1526
  %v1815 = vunpack.c.l.b16 %v1527
  %v1816 = vunpack.c.l.b16 %v1528
  %v1817 = vpack.c.b16 %v1674, %v1673
  %v1818 = vpack.c.b16 %v1676, %v1675
  %v1819 = vpack.c.b16 %v1678, %v1677
  %v1820 = vpack.c.b16 %v1680, %v1679
  %v1821 = vpack.c.b16 %v1682, %v1681
  %v1822 = vpack.c.b16 %v1684, %v1683
  %v1823 = vpack.c.b16 %v1686, %v1685
  %v1824 = vpack.c.b16 %v1688, %v1687
  %v1825 = vpack.c.b16 %v1690, %v1689
  %v1826 = vpack.c.b16 %v1692, %v1691
  %v1827 = vpack.c.b16 %v1694, %v1693
  %v1828 = vpack.c.b16 %v1696, %v1695
  %v1829 = vpack.c.b16 %v1698, %v1697
  %v1830 = vpack.c.b16 %v1700, %v1699
  %v1831 = vpack.c.b16 %v1702, %v1701
  %v1832 = vpack.c.b16 %v1704, %v1703
  %v1833 = vpack.c.b16 %v1706, %v1705
  %v1834 = vpack.c.b16 %v1708, %v1707
  %v1835 = vpack.c.b16 %v1710, %v1709
  %v1836 = vpack.c.b16 %v1712, %v1711
  %v1837 = vpack.c.b16 %v1714, %v1713
  %v1838 = vpack.c.b16 %v1716, %v1715
  %v1839 = vpack.c.b16 %v1718, %v1717
  %v1840 = vpack.c.b16 %v1720, %v1719
  %v1841 = vpack.c.b16 %v1722, %v1721
  %v1842 = vpack.c.b16 %v1724, %v1723
  %v1843 = vpack.c.b16 %v1726, %v1725
  %v1844 = vpack.c.b16 %v1728, %v1727
  %v1845 = vpack.c.b16 %v1730, %v1729
  %v1846 = vpack.c.b16 %v1732, %v1731
  %v1847 = vpack.c.b16 %v1734, %v1733
  %v1848 = vpack.c.b16 %v1736, %v1735
  %v1849 = vpack.c.b16 %v1738, %v1737
  %v1850 = vpack.c.b16 %v1740, %v1739
  %v1851 = vpack.c.b16 %v1742, %v1741
  %v1852 = vpack.c.b16 %v1744, %v1743
  %v1853 = vpack.c.b16 %v1746, %v1745
  %v1854 = vpack.c.b16 %v1748, %v1747
  %v1855 = vpack.c.b16 %v1750, %v1749
  %v1856 = vpack.c.b16 %v1752, %v1751
  %v1857 = vpack.c.b16 %v1754, %v1753
  %v1858 = vpack.c.b16 %v1756, %v1755
  %v1859 = vpack.c.b16 %v1758, %v1757
  %v1860 = vpack.c.b16 %v1760, %v1759
  %v1861 = vpack.c.b16 %v1762, %v1761
  %v1862 = vpack.c.b16 %v1764, %v1763
  %v1863 = vpack.c.b16 %v1766, %v1765
  %v1864 = vpack.c.b16 %v1768, %v1767
  %v1865 = vpack.c.b16 %v1770, %v1769
  %v1866 = vpack.c.b16 %v1772, %v1771
  %v1867 = vpack.c.b16 %v1774, %v1773
  %v1868 = vpack.c.b16 %v1776, %v1775
  %v1869 = vpack.c.b16 %v1778, %v1777
  %v1870 = vpack.c.b16 %v1780, %v1779
  %v1871 = vpack.c.b16 %v1782, %v1781
  %v1872 = vpack.c.b16 %v1784, %v1783
  %v1873 = vpack.c.b16 %v1786, %v1785
  %v1874 = vpack.c.b16 %v1788, %v1787
  %v1875 = vpack.c.b16 %v1790, %v1789
  %v1876 = vpack.c.b16 %v1792, %v1791
  %v1877 = vpack.c.b16 %v1794, %v1793
  %v1878 = vpack.c.b16 %v1796, %v1795
  %v1879 = vpack.c.b16 %v1798, %v1797
  %v1880 = vpack.c.b16 %v1800, %v1799
  %v1881 = vpack.c.b16 %v1802, %v1801
  %v1882 = vpack.c.b16 %v1804, %v1803
  %v1883 = vpack.c.b16 %v1806, %v1805
  %v1884 = vpack.c.b16 %v1808, %v1807
  %v1885 = vpack.c.b16 %v1810, %v1809
  %v1886 = vpack.c.b16 %v1812, %v1811
  %v1887 = vpack.c.b16 %v1814, %v1813
  %v1888 = vpack.c.b16 %v1816, %v1815
  %1961 = vmatprep.subr.bf16.mxu0 0
  %1962 = vmatpush1.bf16.msra.mxu0 %v1817
  %1963 = vmatprep.subr.bf16.mxu0 0
  %1964 = vmatpush1.bf16.msra.mxu0 %v1818
  %1965 = vmatprep.subr.bf16.mxu0 0
  %1966 = vmatpush1.bf16.msra.mxu0 %v1819
  %1967 = vmatprep.subr.bf16.mxu0 0
  %1968 = vmatpush1.bf16.msra.mxu0 %v1820
  %1969 = vmatprep.subr.bf16.mxu0 0
  %1970 = vmatpush1.bf16.msra.mxu0 %v1821
  %1971 = vmatprep.subr.bf16.mxu0 0
  %1972 = vmatpush1.bf16.msra.mxu0 %v1822
  %1973 = vmatprep.subr.bf16.mxu0 0
  %1974 = vmatpush1.bf16.msra.mxu0 %v1823
  %1975 = vmatprep.subr.bf16.mxu0 0
  %1976 = vmatpush1.bf16.msra.mxu0 %v1824
  %1977 = vmatprep.subr.bf16.mxu0 0
  %1978 = vmatpush1.bf16.msra.mxu0 %v1825
  %1979 = vmatprep.subr.bf16.mxu0 0
  %1980 = vmatpush1.bf16.msra.mxu0 %v1826
  %1981 = vmatprep.subr.bf16.mxu0 0
  %1982 = vmatpush1.bf16.msra.mxu0 %v1827
  %1983 = vmatprep.subr.bf16.mxu0 0
  %1984 = vmatpush1.bf16.msra.mxu0 %v1828
  %1985 = vmatprep.subr.bf16.mxu0 0
  %1986 = vmatpush1.bf16.msra.mxu0 %v1829
  %1987 = vmatprep.subr.bf16.mxu0 0
  %1988 = vmatpush1.bf16.msra.mxu0 %v1830
  %1989 = vmatprep.subr.bf16.mxu0 0
  %1990 = vmatpush1.bf16.msra.mxu0 %v1831
  %1991 = vmatprep.subr.bf16.mxu0 0
  %1992 = vmatpush1.bf16.msra.mxu0 %v1832
  %1993 = vmatprep.mubr.bf16.mxu0 %v1314
  %1994 = vmatmul.mubr.bf16.gmra.mrb[0].mxu0 %v1313
  %v1995 = vpop.f32.mrb[0].mxu0
  %v1996 = vadd.f32 0.0, %v1995
  %v1997 = vpop.f32.mrb[0].mxu0
  %v1998 = vpop.f32.mrb[0].mxu0
  %v1999 = vadd.f32 0.0, %v1998
  %v2000 = vpop.f32.mrb[0].mxu0
  %2001 = vmatprep.mubr.bf16.mxu0 %v1323
  %2002 = vmatmul.mubr.bf16.gmra.mrb[0].mxu0 %v1322
  %v2003 = vpop.f32.mrb[0].mxu0
  %v2004 = vadd.f32 0.0, %v2003
  %v2005 = vpop.f32.mrb[0].mxu0
  %v2006 = vpop.f32.mrb[0].mxu0
  %v2007 = vadd.f32 0.0, %v2006
  %v2008 = vpop.f32.mrb[0].mxu0
  %2009 = vmatprep.mubr.bf16.mxu0 %v1332
  %2010 = vmatmul.mubr.bf16.gmra.mrb[0].mxu0 %v1331
  %v2011 = vpop.f32.mrb[0].mxu0
  %v2012 = vadd.f32 0.0, %v2011
  %v2013 = vpop.f32.mrb[0].mxu0
  %v2014 = vpop.f32.mrb[0].mxu0
  %v2015 = vadd.f32 0.0, %v2014
  %v2016 = vpop.f32.mrb[0].mxu0
  %2017 = vmatprep.mubr.bf16.mxu0 %v1341
  %2018 = vmatmul.mubr.bf16.gmra.mrb[0].mxu0 %v1340
  %v2019 = vpop.f32.mrb[0].mxu0
  %v2020 = vadd.f32 0.0, %v2019
  %v2021 = vpop.f32.mrb[0].mxu0
  %v2022 = vpop.f32.mrb[0].mxu0
  %v2023 = vadd.f32 0.0, %v2022
  %v2024 = vpop.f32.mrb[0].mxu0
  %2025 = vmatprep.mubr.bf16.mxu0 %v1350
  %2026 = vmatmul.mubr.bf16.gmra.mrb[0].mxu0 %v1349
  %v2027 = vpop.f32.mrb[0].mxu0
  %v2028 = vadd.f32 0.0, %v2027
  %v2029 = vpop.f32.mrb[0].mxu0
  %v2030 = vpop.f32.mrb[0].mxu0
  %v2031 = vadd.f32 0.0, %v2030
  %v2032 = vpop.f32.mrb[0].mxu0
  %2033 = vmatprep.mubr.bf16.mxu0 %v1359
  %2034 = vmatmul.mubr.bf16.gmra.mrb[0].mxu0 %v1358
  %v2035 = vpop.f32.mrb[0].mxu0
  %v2036 = vadd.f32 0.0, %v2035
  %v2037 = vpop.f32.mrb[0].mxu0
  %v2038 = vpop.f32.mrb[0].mxu0
  %v2039 = vadd.f32 0.0, %v2038
  %v2040 = vpop.f32.mrb[0].mxu0
  %2041 = vmatprep.mubr.bf16.mxu0 %v1368
  %2042 = vmatmul.mubr.bf16.gmra.mrb[0].mxu0 %v1367
  %v2043 = vpop.f32.mrb[0].mxu0
  %v2044 = vadd.f32 0.0, %v2043
  %v2045 = vpop.f32.mrb[0].mxu0
  %v2046 = vpop.f32.mrb[0].mxu0
  %v2047 = vadd.f32 0.0, %v2046
  %v2048 = vpop.f32.mrb[0].mxu0
  %2049 = vmatprep.mubr.bf16.mxu0 %v1377
  %2050 = vmatmul.mubr.bf16.gmra.mrb[0].mxu0 %v1376
  %v2051 = vpop.f32.mrb[0].mxu0
  %v2052 = vadd.f32 0.0, %v2051
  %v2053 = vpop.f32.mrb[0].mxu0
  %v2054 = vpop.f32.mrb[0].mxu0
  %v2055 = vadd.f32 0.0, %v2054
  %v2056 = vpop.f32.mrb[0].mxu0
  %2057 = vdwg.mxu0
  %2058 = vmatprep.subr.bf16.mxu0 0
  %2059 = vmatpush1.bf16.msra.mxu0 %v1833
  %2060 = vmatprep.subr.bf16.mxu0 0
  %2061 = vmatpush1.bf16.msra.mxu0 %v1834
  %2062 = vmatprep.subr.bf16.mxu0 0
  %2063 = vmatpush1.bf16.msra.mxu0 %v1835
  %2064 = vmatprep.subr.bf16.mxu0 0
  %2065 = vmatpush1.bf16.msra.mxu0 %v1836
  %2066 = vmatprep.subr.bf16.mxu0 0
  %2067 = vmatpush1.bf16.msra.mxu0 %v1837
  %2068 = vmatprep.subr.bf16.mxu0 0
  %2069 = vmatpush1.bf16.msra.mxu0 %v1838
  %2070 = vmatprep.subr.bf16.mxu0 0
  %2071 = vmatpush1.bf16.msra.mxu0 %v1839
  %2072 = vmatprep.subr.bf16.mxu0 0
  %2073 = vmatpush1.bf16.msra.mxu0 %v1840
  %2074 = vmatprep.subr.bf16.mxu0 0
  %2075 = vmatpush1.bf16.msra.mxu0 %v1841
  %2076 = vmatprep.subr.bf16.mxu0 0
  %2077 = vmatpush1.bf16.msra.mxu0 %v1842
  %2078 = vmatprep.subr.bf16.mxu0 0
  %2079 = vmatpush1.bf16.msra.mxu0 %v1843
  %2080 = vmatprep.subr.bf16.mxu0 0
  %2081 = vmatpush1.bf16.msra.mxu0 %v1844
  %2082 = vmatprep.subr.bf16.mxu0 0
  %2083 = vmatpush1.bf16.msra.mxu0 %v1845
  %2084 = vmatprep.subr.bf16.mxu0 0
  %2085 = vmatpush1.bf16.msra.mxu0 %v1846
  %2086 = vmatprep.subr.bf16.mxu0 0
  %2087 = vmatpush1.bf16.msra.mxu0 %v1847
  %2088 = vmatprep.subr.bf16.mxu0 0
  %2089 = vmatpush1.bf16.msra.mxu0 %v1848
  %2090 = vmatprep.mubr.bf16.mxu0 %v1316
  %2091 = vmatmul.mubr.bf16.gmra.mrb[0].mxu0 %v1315
  %v2092 = vpop.f32.mrb[0].mxu0
  %v2093 = vadd.f32 %v1996, %v2092
  %v2094 = vpop.f32.mrb[0].mxu0
  %v2095 = vpop.f32.mrb[0].mxu0
  %v2096 = vadd.f32 %v1999, %v2095
  %v2097 = vpop.f32.mrb[0].mxu0
  %2098 = vmatprep.mubr.bf16.mxu0 %v1325
  %2099 = vmatmul.mubr.bf16.gmra.mrb[0].mxu0 %v1324
  %v2100 = vpop.f32.mrb[0].mxu0
  %v2101 = vadd.f32 %v2004, %v2100
  %v2102 = vpop.f32.mrb[0].mxu0
  %v2103 = vpop.f32.mrb[0].mxu0
  %v2104 = vadd.f32 %v2007, %v2103
  %v2105 = vpop.f32.mrb[0].mxu0
  %2106 = vmatprep.mubr.bf16.mxu0 %v1334
  %2107 = vmatmul.mubr.bf16.gmra.mrb[0].mxu0 %v1333
  %v2108 = vpop.f32.mrb[0].mxu0
  %v2109 = vadd.f32 %v2012, %v2108
  %v2110 = vpop.f32.mrb[0].mxu0
  %v2111 = vpop.f32.mrb[0].mxu0
  %v2112 = vadd.f32 %v2015, %v2111
  %v2113 = vpop.f32.mrb[0].mxu0
  %2114 = vmatprep.mubr.bf16.mxu0 %v1343
  %2115 = vmatmul.mubr.bf16.gmra.mrb[0].mxu0 %v1342
  %v2116 = vpop.f32.mrb[0].mxu0
  %v2117 = vadd.f32 %v2020, %v2116
  %v2118 = vpop.f32.mrb[0].mxu0
  %v2119 = vpop.f32.mrb[0].mxu0
  %v2120 = vadd.f32 %v2023, %v2119
  %v2121 = vpop.f32.mrb[0].mxu0
  %2122 = vmatprep.mubr.bf16.mxu0 %v1352
  %2123 = vmatmul.mubr.bf16.gmra.mrb[0].mxu0 %v1351
  %v2124 = vpop.f32.mrb[0].mxu0
  %v2125 = vadd.f32 %v2028, %v2124
  %v2126 = vpop.f32.mrb[0].mxu0
  %v2127 = vpop.f32.mrb[0].mxu0
  %v2128 = vadd.f32 %v2031, %v2127
  %v2129 = vpop.f32.mrb[0].mxu0
  %2130 = vmatprep.mubr.bf16.mxu0 %v1361
  %2131 = vmatmul.mubr.bf16.gmra.mrb[0].mxu0 %v1360
  %v2132 = vpop.f32.mrb[0].mxu0
  %v2133 = vadd.f32 %v2036, %v2132
  %v2134 = vpop.f32.mrb[0].mxu0
  %v2135 = vpop.f32.mrb[0].mxu0
  %v2136 = vadd.f32 %v2039, %v2135
  %v2137 = vpop.f32.mrb[0].mxu0
  %2138 = vmatprep.mubr.bf16.mxu0 %v1370
  %2139 = vmatmul.mubr.bf16.gmra.mrb[0].mxu0 %v1369
  %v2140 = vpop.f32.mrb[0].mxu0
  %v2141 = vadd.f32 %v2044, %v2140
  %v2142 = vpop.f32.mrb[0].mxu0
  %v2143 = vpop.f32.mrb[0].mxu0
  %v2144 = vadd.f32 %v2047, %v2143
  %v2145 = vpop.f32.mrb[0].mxu0
  %2146 = vmatprep.mubr.bf16.mxu0 %v1379
  %2147 = vmatmul.mubr.bf16.gmra.mrb[0].mxu0 %v1378
  %v2148 = vpop.f32.mrb[0].mxu0
  %v2149 = vadd.f32 %v2052, %v2148
  %v2150 = vpop.f32.mrb[0].mxu0
  %v2151 = vpop.f32.mrb[0].mxu0
  %v2152 = vadd.f32 %v2055, %v2151
  %v2153 = vpop.f32.mrb[0].mxu0
  %2154 = vdwg.mxu0
  %2155 = vmatprep.subr.bf16.mxu0 0
  %2156 = vmatpush1.bf16.msra.mxu0 %v1849
  %2157 = vmatprep.subr.bf16.mxu0 0
  %2158 = vmatpush1.bf16.msra.mxu0 %v1850
  %2159 = vmatprep.subr.bf16.mxu0 0
  %2160 = vmatpush1.bf16.msra.mxu0 %v1851
  %2161 = vmatprep.subr.bf16.mxu0 0
  %2162 = vmatpush1.bf16.msra.mxu0 %v1852
  %2163 = vmatprep.subr.bf16.mxu0 0
  %2164 = vmatpush1.bf16.msra.mxu0 %v1853
  %2165 = vmatprep.subr.bf16.mxu0 0
  %2166 = vmatpush1.bf16.msra.mxu0 %v1854
  %2167 = vmatprep.subr.bf16.mxu0 0
  %2168 = vmatpush1.bf16.msra.mxu0 %v1855
  %2169 = vmatprep.subr.bf16.mxu0 0
  %2170 = vmatpush1.bf16.msra.mxu0 %v1856
  %2171 = vmatprep.subr.bf16.mxu0 0
  %2172 = vmatpush1.bf16.msra.mxu0 %v1857
  %2173 = vmatprep.subr.bf16.mxu0 0
  %2174 = vmatpush1.bf16.msra.mxu0 %v1858
  %2175 = vmatprep.subr.bf16.mxu0 0
  %2176 = vmatpush1.bf16.msra.mxu0 %v1859
  %2177 = vmatprep.subr.bf16.mxu0 0
  %2178 = vmatpush1.bf16.msra.mxu0 %v1860
  %2179 = vmatprep.subr.bf16.mxu0 0
  %2180 = vmatpush1.bf16.msra.mxu0 %v1861
  %2181 = vmatprep.subr.bf16.mxu0 0
  %2182 = vmatpush1.bf16.msra.mxu0 %v1862
  %2183 = vmatprep.subr.bf16.mxu0 0
  %2184 = vmatpush1.bf16.msra.mxu0 %v1863
  %2185 = vmatprep.subr.bf16.mxu0 0
  %2186 = vmatpush1.bf16.msra.mxu0 %v1864
  %2187 = vmatprep.mubr.bf16.mxu0 %v1318
  %2188 = vmatmul.mubr.bf16.gmra.mrb[0].mxu0 %v1317
  %v2189 = vpop.f32.mrb[0].mxu0
  %v2190 = vadd.f32 %v2093, %v2189
  %v2191 = vpop.f32.mrb[0].mxu0
  %v2192 = vpop.f32.mrb[0].mxu0
  %v2193 = vadd.f32 %v2096, %v2192
  %v2194 = vpop.f32.mrb[0].mxu0
  %2195 = vmatprep.mubr.bf16.mxu0 %v1327
  %2196 = vmatmul.mubr.bf16.gmra.mrb[0].mxu0 %v1326
  %v2197 = vpop.f32.mrb[0].mxu0
  %v2198 = vadd.f32 %v2101, %v2197
  %v2199 = vpop.f32.mrb[0].mxu0
  %v2200 = vpop.f32.mrb[0].mxu0
  %v2201 = vadd.f32 %v2104, %v2200
  %v2202 = vpop.f32.mrb[0].mxu0
  %2203 = vmatprep.mubr.bf16.mxu0 %v1336
  %2204 = vmatmul.mubr.bf16.gmra.mrb[0].mxu0 %v1335
  %v2205 = vpop.f32.mrb[0].mxu0
  %v2206 = vadd.f32 %v2109, %v2205
  %v2207 = vpop.f32.mrb[0].mxu0
  %v2208 = vpop.f32.mrb[0].mxu0
  %v2209 = vadd.f32 %v2112, %v2208
  %v2210 = vpop.f32.mrb[0].mxu0
  %2211 = vmatprep.mubr.bf16.mxu0 %v1345
  %2212 = vmatmul.mubr.bf16.gmra.mrb[0].mxu0 %v1344
  %v2213 = vpop.f32.mrb[0].mxu0
  %v2214 = vadd.f32 %v2117, %v2213
  %v2215 = vpop.f32.mrb[0].mxu0
  %v2216 = vpop.f32.mrb[0].mxu0
  %v2217 = vadd.f32 %v2120, %v2216
  %v2218 = vpop.f32.mrb[0].mxu0
  %2219 = vmatprep.mubr.bf16.mxu0 %v1354
  %2220 = vmatmul.mubr.bf16.gmra.mrb[0].mxu0 %v1353
  %v2221 = vpop.f32.mrb[0].mxu0
  %v2222 = vadd.f32 %v2125, %v2221
  %v2223 = vpop.f32.mrb[0].mxu0
  %v2224 = vpop.f32.mrb[0].mxu0
  %v2225 = vadd.f32 %v2128, %v2224
  %v2226 = vpop.f32.mrb[0].mxu0
  %2227 = vmatprep.mubr.bf16.mxu0 %v1363
  %2228 = vmatmul.mubr.bf16.gmra.mrb[0].mxu0 %v1362
  %v2229 = vpop.f32.mrb[0].mxu0
  %v2230 = vadd.f32 %v2133, %v2229
  %v2231 = vpop.f32.mrb[0].mxu0
  %v2232 = vpop.f32.mrb[0].mxu0
  %v2233 = vadd.f32 %v2136, %v2232
  %v2234 = vpop.f32.mrb[0].mxu0
  %2235 = vmatprep.mubr.bf16.mxu0 %v1372
  %2236 = vmatmul.mubr.bf16.gmra.mrb[0].mxu0 %v1371
  %v2237 = vpop.f32.mrb[0].mxu0
  %v2238 = vadd.f32 %v2141, %v2237
  %v2239 = vpop.f32.mrb[0].mxu0
  %v2240 = vpop.f32.mrb[0].mxu0
  %v2241 = vadd.f32 %v2144, %v2240
  %v2242 = vpop.f32.mrb[0].mxu0
  %2243 = vmatprep.mubr.bf16.mxu0 %v1381
  %2244 = vmatmul.mubr.bf16.gmra.mrb[0].mxu0 %v1380
  %v2245 = vpop.f32.mrb[0].mxu0
  %v2246 = vadd.f32 %v2149, %v2245
  %v2247 = vpop.f32.mrb[0].mxu0
  %v2248 = vpop.f32.mrb[0].mxu0
  %v2249 = vadd.f32 %v2152, %v2248
  %v2250 = vpop.f32.mrb[0].mxu0
  %2251 = vdwg.mxu0
  %2252 = vmatprep.subr.bf16.mxu0 0
  %2253 = vmatpush1.bf16.msra.mxu0 %v1865
  %2254 = vmatprep.subr.bf16.mxu0 0
  %2255 = vmatpush1.bf16.msra.mxu0 %v1866
  %2256 = vmatprep.subr.bf16.mxu0 0
  %2257 = vmatpush1.bf16.msra.mxu0 %v1867
  %2258 = vmatprep.subr.bf16.mxu0 0
  %2259 = vmatpush1.bf16.msra.mxu0 %v1868
  %2260 = vmatprep.subr.bf16.mxu0 0
  %2261 = vmatpush1.bf16.msra.mxu0 %v1869
  %2262 = vmatprep.subr.bf16.mxu0 0
  %2263 = vmatpush1.bf16.msra.mxu0 %v1870
  %2264 = vmatprep.subr.bf16.mxu0 0
  %2265 = vmatpush1.bf16.msra.mxu0 %v1871
  %2266 = vmatprep.subr.bf16.mxu0 0
  %2267 = vmatpush1.bf16.msra.mxu0 %v1872
  %2268 = vmatprep.subr.bf16.mxu0 0
  %2269 = vmatpush1.bf16.msra.mxu0 %v1873
  %2270 = vmatprep.subr.bf16.mxu0 0
  %2271 = vmatpush1.bf16.msra.mxu0 %v1874
  %2272 = vmatprep.subr.bf16.mxu0 0
  %2273 = vmatpush1.bf16.msra.mxu0 %v1875
  %2274 = vmatprep.subr.bf16.mxu0 0
  %2275 = vmatpush1.bf16.msra.mxu0 %v1876
  %2276 = vmatprep.subr.bf16.mxu0 0
  %2277 = vmatpush1.bf16.msra.mxu0 %v1877
  %2278 = vmatprep.subr.bf16.mxu0 0
  %2279 = vmatpush1.bf16.msra.mxu0 %v1878
  %2280 = vmatprep.subr.bf16.mxu0 0
  %2281 = vmatpush1.bf16.msra.mxu0 %v1879
  %2282 = vmatprep.subr.bf16.mxu0 0
  %2283 = vmatpush1.bf16.msra.mxu0 %v1880
  %2284 = vmatprep.mubr.bf16.mxu0 %v1320
  %2285 = vmatmul.mubr.bf16.gmra.mrb[0].mxu0 %v1319
  %v2286 = vpop.f32.mrb[0].mxu0
  %v2287 = vadd.f32 %v2190, %v2286
  %v2288 = vpop.f32.mrb[0].mxu0
  %v2289 = vpop.f32.mrb[0].mxu0
  %v2290 = vadd.f32 %v2193, %v2289
  %v2291 = vpop.f32.mrb[0].mxu0
  %2292 = vmatprep.mubr.bf16.mxu0 %v1329
  %2293 = vmatmul.mubr.bf16.gmra.mrb[0].mxu0 %v1328
  %v2294 = vpop.f32.mrb[0].mxu0
  %v2295 = vadd.f32 %v2198, %v2294
  %v2296 = vpop.f32.mrb[0].mxu0
  %v2297 = vpop.f32.mrb[0].mxu0
  %v2298 = vadd.f32 %v2201, %v2297
  %v2299 = vpop.f32.mrb[0].mxu0
  %2300 = vmatprep.mubr.bf16.mxu0 %v1338
  %2301 = vmatmul.mubr.bf16.gmra.mrb[0].mxu0 %v1337
  %v2302 = vpop.f32.mrb[0].mxu0
  %v2303 = vadd.f32 %v2206, %v2302
  %v2304 = vpop.f32.mrb[0].mxu0
  %v2305 = vpop.f32.mrb[0].mxu0
  %v2306 = vadd.f32 %v2209, %v2305
  %v2307 = vpop.f32.mrb[0].mxu0
  %2308 = vmatprep.mubr.bf16.mxu0 %v1347
  %2309 = vmatmul.mubr.bf16.gmra.mrb[0].mxu0 %v1346
  %v2310 = vpop.f32.mrb[0].mxu0
  %v2311 = vadd.f32 %v2214, %v2310
  %v2312 = vpop.f32.mrb[0].mxu0
  %v2313 = vpop.f32.mrb[0].mxu0
  %v2314 = vadd.f32 %v2217, %v2313
  %v2315 = vpop.f32.mrb[0].mxu0
  %2316 = vmatprep.mubr.bf16.mxu0 %v1356
  %2317 = vmatmul.mubr.bf16.gmra.mrb[0].mxu0 %v1355
  %v2318 = vpop.f32.mrb[0].mxu0
  %v2319 = vadd.f32 %v2222, %v2318
  %v2320 = vpop.f32.mrb[0].mxu0
  %v2321 = vpop.f32.mrb[0].mxu0
  %v2322 = vadd.f32 %v2225, %v2321
  %v2323 = vpop.f32.mrb[0].mxu0
  %2324 = vmatprep.mubr.bf16.mxu0 %v1365
  %2325 = vmatmul.mubr.bf16.gmra.mrb[0].mxu0 %v1364
  %v2326 = vpop.f32.mrb[0].mxu0
  %v2327 = vadd.f32 %v2230, %v2326
  %v2328 = vpop.f32.mrb[0].mxu0
  %v2329 = vpop.f32.mrb[0].mxu0
  %v2330 = vadd.f32 %v2233, %v2329
  %v2331 = vpop.f32.mrb[0].mxu0
  %2332 = vmatprep.mubr.bf16.mxu0 %v1374
  %2333 = vmatmul.mubr.bf16.gmra.mrb[0].mxu0 %v1373
  %v2334 = vpop.f32.mrb[0].mxu0
  %v2335 = vadd.f32 %v2238, %v2334
  %v2336 = vpop.f32.mrb[0].mxu0
  %v2337 = vpop.f32.mrb[0].mxu0
  %v2338 = vadd.f32 %v2241, %v2337
  %v2339 = vpop.f32.mrb[0].mxu0
  %2340 = vmatprep.mubr.bf16.mxu0 %v1383
  %2341 = vmatmul.mubr.bf16.gmra.mrb[0].mxu0 %v1382
  %v2342 = vpop.f32.mrb[0].mxu0
  %v2343 = vadd.f32 %v2246, %v2342
  %v2344 = vpop.f32.mrb[0].mxu0
  %v2345 = vpop.f32.mrb[0].mxu0
  %v2346 = vadd.f32 %v2249, %v2345
  %v2347 = vpop.f32.mrb[0].mxu0
  %2348 = vdwg.mxu0
  %2349 = vmatprep.subr.bf16.mxu0 0
  %2350 = vmatpush1.bf16.msra.mxu0 %v1881
  %2351 = vmatprep.subr.bf16.mxu0 0
  %2352 = vmatpush1.bf16.msra.mxu0 %v1882
  %2353 = vmatprep.subr.bf16.mxu0 0
  %2354 = vmatpush1.bf16.msra.mxu0 %v1883
  %2355 = vmatprep.subr.bf16.mxu0 0
  %2356 = vmatpush1.bf16.msra.mxu0 %v1884
  %2357 = vmatprep.subr.bf16.mxu0 0
  %2358 = vmatpush1.bf16.msra.mxu0 %v1885
  %2359 = vmatprep.subr.bf16.mxu0 0
  %2360 = vmatpush1.bf16.msra.mxu0 %v1886
  %2361 = vmatprep.subr.bf16.mxu0 0
  %2362 = vmatpush1.bf16.msra.mxu0 %v1887
  %2363 = vmatprep.subr.bf16.mxu0 0
  %2364 = vmatpush1.bf16.msra.mxu0 %v1888
  %2365 = vmatprep.subr.bf16.mxu0 0
  %2366 = vmatpush1.bf16.msra.mxu0 0
  %2367 = vmatprep.subr.bf16.mxu0 0
  %2368 = vmatpush1.bf16.msra.mxu0 0
  %2369 = vmatprep.subr.bf16.mxu0 0
  %2370 = vmatpush1.bf16.msra.mxu0 0
  %2371 = vmatprep.subr.bf16.mxu0 0
  %2372 = vmatpush1.bf16.msra.mxu0 0
  %2373 = vmatprep.subr.bf16.mxu0 0
  %2374 = vmatpush1.bf16.msra.mxu0 0
  %2375 = vmatprep.subr.bf16.mxu0 0
  %2376 = vmatpush1.bf16.msra.mxu0 0
  %2377 = vmatprep.subr.bf16.mxu0 0
  %2378 = vmatpush1.bf16.msra.mxu0 0
  %2379 = vmatprep.subr.bf16.mxu0 0
  %2380 = vmatpush1.bf16.msra.mxu0 0
  %2381 = vmatprep.mubr.bf16.mxu0 0
  %2382 = vmatmul.mubr.bf16.gmra.mrb[0].mxu0 %v1321
  %v2383 = vpop.f32.mrb[0].mxu0
  %v2384 = vadd.f32 %v2287, %v2383
  %v2385 = vpop.f32.mrb[0].mxu0
  %v2386 = vpop.f32.mrb[0].mxu0
  %v2387 = vadd.f32 %v2290, %v2386
  %v2388 = vpop.f32.mrb[0].mxu0
  %2389 = vmatprep.mubr.bf16.mxu0 0
  %2390 = vmatmul.mubr.bf16.gmra.mrb[0].mxu0 %v1330
  %v2391 = vpop.f32.mrb[0].mxu0
  %v2392 = vadd.f32 %v2295, %v2391
  %v2393 = vpop.f32.mrb[0].mxu0
  %v2394 = vpop.f32.mrb[0].mxu0
  %v2395 = vadd.f32 %v2298, %v2394
  %v2396 = vpop.f32.mrb[0].mxu0
  %2397 = vmatprep.mubr.bf16.mxu0 0
  %2398 = vmatmul.mubr.bf16.gmra.mrb[0].mxu0 %v1339
  %v2399 = vpop.f32.mrb[0].mxu0
  %v2400 = vadd.f32 %v2303, %v2399
  %v2401 = vpop.f32.mrb[0].mxu0
  %v2402 = vpop.f32.mrb[0].mxu0
  %v2403 = vadd.f32 %v2306, %v2402
  %v2404 = vpop.f32.mrb[0].mxu0
  %2405 = vmatprep.mubr.bf16.mxu0 0
  %2406 = vmatmul.mubr.bf16.gmra.mrb[0].mxu0 %v1348
  %v2407 = vpop.f32.mrb[0].mxu0
  %v2408 = vadd.f32 %v2311, %v2407
  %v2409 = vpop.f32.mrb[0].mxu0
  %v2410 = vpop.f32.mrb[0].mxu0
  %v2411 = vadd.f32 %v2314, %v2410
  %v2412 = vpop.f32.mrb[0].mxu0
  %2413 = vmatprep.mubr.bf16.mxu0 0
  %2414 = vmatmul.mubr.bf16.gmra.mrb[0].mxu0 %v1357
  %v2415 = vpop.f32.mrb[0].mxu0
  %v2416 = vadd.f32 %v2319, %v2415
  %v2417 = vpop.f32.mrb[0].mxu0
  %v2418 = vpop.f32.mrb[0].mxu0
  %v2419 = vadd.f32 %v2322, %v2418
  %v2420 = vpop.f32.mrb[0].mxu0
  %2421 = vmatprep.mubr.bf16.mxu0 0
  %2422 = vmatmul.mubr.bf16.gmra.mrb[0].mxu0 %v1366
  %v2423 = vpop.f32.mrb[0].mxu0
  %v2424 = vadd.f32 %v2327, %v2423
  %v2425 = vpop.f32.mrb[0].mxu0
  %v2426 = vpop.f32.mrb[0].mxu0
  %v2427 = vadd.f32 %v2330, %v2426
  %v2428 = vpop.f32.mrb[0].mxu0
  %2429 = vmatprep.mubr.bf16.mxu0 0
  %2430 = vmatmul.mubr.bf16.gmra.mrb[0].mxu0 %v1375
  %v2431 = vpop.f32.mrb[0].mxu0
  %v2432 = vadd.f32 %v2335, %v2431
  %v2433 = vpop.f32.mrb[0].mxu0
  %v2434 = vpop.f32.mrb[0].mxu0
  %v2435 = vadd.f32 %v2338, %v2434
  %v2436 = vpop.f32.mrb[0].mxu0
  %2437 = vmatprep.mubr.bf16.mxu0 0
  %2438 = vmatmul.mubr.bf16.gmra.mrb[0].mxu0 %v1384
  %v2439 = vpop.f32.mrb[0].mxu0
  %v2440 = vadd.f32 %v2343, %v2439
  %v2441 = vpop.f32.mrb[0].mxu0
  %v2442 = vpop.f32.mrb[0].mxu0
  %v2443 = vadd.f32 %v2346, %v2442
  %v2444 = vpop.f32.mrb[0].mxu0
  %2445 = vdwg.mxu0
  %v2448 = vunpack.c.l.s4 1966171168
  %v2449 = vunpack.c.0.s8 %v2448
  %v2450 = vlaneseq
  %v2451 = vshrl.u32 %v2450, 7
  %v2452 = vsub.s32 %v2449, %v2451
  %v2453 = vrot.slane %v1312, %v2452
  %v2454 = vcombine.high %v2453, %v2453
  %v2456 = vunpack.c.l.s4 1966171168
  %v2457 = vunpack.c.0.s8 %v2456
  %v2458 = vlaneseq
  %v2459 = vshrl.u32 %v2458, 7
  %v2460 = vsub.s32 %v2457, %v2459
  %v2461 = vrot.slane %v2453, %v2460
  %v2463 = vunpack.c.l.s4 1966171168
  %v2464 = vunpack.c.0.s8 %v2463
  %v2465 = vlaneseq
  %v2466 = vshrl.u32 %v2465, 7
  %v2467 = vsub.s32 %v2464, %v2466
  %v2468 = vrot.slane %v2454, %v2467
  %v2469 = vlaneseq
  %v2470 = vshrl.u32 %v2469, 7
  %v2471 = vsub.s32 0, %v2470
  %v2472 = vrot.slane %v2461, %v2471
  %v2473 = vlaneseq
  %v2474 = vshrl.u32 %v2473, 7
  %v2475 = vsub.s32 0, %v2474
  %v2476 = vrot.slane %v2468, %v2475
  %v2479 = vmul.f32 %v2384, %v2472
  %v2480 = vmul.f32 %v2387, %v2472
  %v2481 = vmul.f32 %v2392, %v2472
  %v2482 = vmul.f32 %v2395, %v2472
  %v2483 = vmul.f32 %v2400, %v2472
  %v2484 = vmul.f32 %v2403, %v2472
  %v2485 = vmul.f32 %v2408, %v2472
  %v2486 = vmul.f32 %v2411, %v2472
  %v2487 = vmul.f32 %v2416, %v2476
  %v2488 = vmul.f32 %v2419, %v2476
  %v2489 = vmul.f32 %v2424, %v2476
  %v2490 = vmul.f32 %v2427, %v2476
  %v2491 = vmul.f32 %v2432, %v2476
  %v2492 = vmul.f32 %v2435, %v2476
  %v2493 = vmul.f32 %v2440, %v2476
  %v2494 = vmul.f32 %v2443, %v2476
  %v2495 = vld [vmem:[%s4] sm:$0x1]
  %v2497 = vlaneseq
  %v2498 = vshrl.u32 %v2497, 7
  %v2499 = vsub.s32 0, %v2498
  %v2500 = vrot.slane %v2495, %v2499
  %v2502 = vadd.f32 %v2479, %v2500
  %v2503 = vadd.f32 %v2480, %v2500
  %v2504 = vadd.f32 %v2481, %v2500
  %v2505 = vadd.f32 %v2482, %v2500
  %v2506 = vadd.f32 %v2483, %v2500
  %v2507 = vadd.f32 %v2484, %v2500
  %v2508 = vadd.f32 %v2485, %v2500
  %v2509 = vadd.f32 %v2486, %v2500
  %v2510 = vadd.f32 %v2487, %v2500
  %v2511 = vadd.f32 %v2488, %v2500
  %v2512 = vadd.f32 %v2489, %v2500
  %v2513 = vadd.f32 %v2490, %v2500
  %v2514 = vadd.f32 %v2491, %v2500
  %v2515 = vadd.f32 %v2492, %v2500
  %v2516 = vadd.f32 %v2493, %v2500
  %v2517 = vadd.f32 %v2494, %v2500
  %vm2518 = vcmp.ge.f32.partialorder %v2502, 0.0
  %vm2519 = vcmp.ge.f32.partialorder %v2503, 0.0
  %vm2520 = vcmp.ge.f32.partialorder %v2504, 0.0
  %vm2521 = vcmp.ge.f32.partialorder %v2505, 0.0
  %vm2522 = vcmp.ge.f32.partialorder %v2506, 0.0
  %vm2523 = vcmp.ge.f32.partialorder %v2507, 0.0
  %vm2524 = vcmp.ge.f32.partialorder %v2508, 0.0
  %vm2525 = vcmp.ge.f32.partialorder %v2509, 0.0
  %vm2526 = vcmp.ge.f32.partialorder %v2510, 0.0
  %vm2527 = vcmp.ge.f32.partialorder %v2511, 0.0
  %vm2528 = vcmp.ge.f32.partialorder %v2512, 0.0
  %vm2529 = vcmp.ge.f32.partialorder %v2513, 0.0
  %vm2530 = vcmp.ge.f32.partialorder %v2514, 0.0
  %vm2531 = vcmp.ge.f32.partialorder %v2515, 0.0
  %vm2532 = vcmp.ge.f32.partialorder %v2516, 0.0
  %vm2533 = vcmp.ge.f32.partialorder %v2517, 0.0
  %v2534 = vmul.f32 %v2502, 0.2
  %v2535 = vmul.f32 %v2503, 0.2
  %v2536 = vmul.f32 %v2504, 0.2
  %v2537 = vmul.f32 %v2505, 0.2
  %v2538 = vmul.f32 %v2506, 0.2
  %v2539 = vmul.f32 %v2507, 0.2
  %v2540 = vmul.f32 %v2508, 0.2
  %v2541 = vmul.f32 %v2509, 0.2
  %v2542 = vmul.f32 %v2510, 0.2
  %v2543 = vmul.f32 %v2511, 0.2
  %v2544 = vmul.f32 %v2512, 0.2
  %v2545 = vmul.f32 %v2513, 0.2
  %v2546 = vmul.f32 %v2514, 0.2
  %v2547 = vmul.f32 %v2515, 0.2
  %v2548 = vmul.f32 %v2516, 0.2
  %v2549 = vmul.f32 %v2517, 0.2
  %v2550 = vsel %vm2518, %v2502, %v2534
  %v2551 = vsel %vm2519, %v2503, %v2535
  %v2552 = vsel %vm2520, %v2504, %v2536
  %v2553 = vsel %vm2521, %v2505, %v2537
  %v2554 = vsel %vm2522, %v2506, %v2538
  %v2555 = vsel %vm2523, %v2507, %v2539
  %v2556 = vsel %vm2524, %v2508, %v2540
  %v2557 = vsel %vm2525, %v2509, %v2541
  %v2558 = vsel %vm2526, %v2510, %v2542
  %v2559 = vsel %vm2527, %v2511, %v2543
  %v2560 = vsel %vm2528, %v2512, %v2544
  %v2561 = vsel %vm2529, %v2513, %v2545
  %v2562 = vsel %vm2530, %v2514, %v2546
  %v2563 = vsel %vm2531, %v2515, %v2547
  %v2564 = vsel %vm2532, %v2516, %v2548
  %v2565 = vsel %vm2533, %v2517, %v2549
  %v2566 = vmul.f32 %v2550, 1.4142135
  %v2567 = vmul.f32 %v2551, 1.4142135
  %v2568 = vmul.f32 %v2552, 1.4142135
  %v2569 = vmul.f32 %v2553, 1.4142135
  %v2570 = vmul.f32 %v2554, 1.4142135
  %v2571 = vmul.f32 %v2555, 1.4142135
  %v2572 = vmul.f32 %v2556, 1.4142135
  %v2573 = vmul.f32 %v2557, 1.4142135
  %v2574 = vmul.f32 %v2558, 1.4142135
  %v2575 = vmul.f32 %v2559, 1.4142135
  %v2576 = vmul.f32 %v2560, 1.4142135
  %v2577 = vmul.f32 %v2561, 1.4142135
  %v2578 = vmul.f32 %v2562, 1.4142135
  %v2579 = vmul.f32 %v2563, 1.4142135
  %v2580 = vmul.f32 %v2564, 1.4142135
  %v2581 = vmul.f32 %v2565, 1.4142135
  %v2582 = vmax.f32 %v2566, -256.0
  %v2583 = vmax.f32 %v2567, -256.0
  %v2584 = vmax.f32 %v2568, -256.0
  %v2585 = vmax.f32 %v2569, -256.0
  %v2586 = vmax.f32 %v2570, -256.0
  %v2587 = vmax.f32 %v2571, -256.0
  %v2588 = vmax.f32 %v2572, -256.0
  %v2589 = vmax.f32 %v2573, -256.0
  %v2590 = vmax.f32 %v2574, -256.0
  %v2591 = vmax.f32 %v2575, -256.0
  %v2592 = vmax.f32 %v2576, -256.0
  %v2593 = vmax.f32 %v2577, -256.0
  %v2594 = vmax.f32 %v2578, -256.0
  %v2595 = vmax.f32 %v2579, -256.0
  %v2596 = vmax.f32 %v2580, -256.0
  %v2597 = vmax.f32 %v2581, -256.0
  %v2598 = vmin.f32 %v2582, 256.0
  %v2599 = vmin.f32 %v2583, 256.0
  %v2600 = vmin.f32 %v2584, 256.0
  %v2601 = vmin.f32 %v2585, 256.0
  %v2602 = vmin.f32 %v2586, 256.0
  %v2603 = vmin.f32 %v2587, 256.0
  %v2604 = vmin.f32 %v2588, 256.0
  %v2605 = vmin.f32 %v2589, 256.0
  %v2606 = vmin.f32 %v2590, 256.0
  %v2607 = vmin.f32 %v2591, 256.0
  %v2608 = vmin.f32 %v2592, 256.0
  %v2609 = vmin.f32 %v2593, 256.0
  %v2610 = vmin.f32 %v2594, 256.0
  %v2611 = vmin.f32 %v2595, 256.0
  %v2612 = vmin.f32 %v2596, 256.0
  %v2613 = vmin.f32 %v2597, 256.0
  %v2614 = vpack.c.bf16 %v2599, %v2598
  %v2615 = vpack.c.bf16 %v2601, %v2600
  %v2616 = vpack.c.bf16 %v2603, %v2602
  %v2617 = vpack.c.bf16 %v2605, %v2604
  %v2618 = vpack.c.bf16 %v2607, %v2606
  %v2619 = vpack.c.bf16 %v2609, %v2608
  %v2620 = vpack.c.bf16 %v2611, %v2610
  %v2621 = vpack.c.bf16 %v2613, %v2612
  %v2630 = vunpack.c.l.b16 %v2614
  %v2631 = vunpack.c.h.b16 %v2614
  %v2632 = vunpack.c.l.b16 %v2615
  %v2633 = vunpack.c.h.b16 %v2615
  %v2634 = vunpack.c.l.b16 %v2616
  %v2635 = vunpack.c.h.b16 %v2616
  %v2636 = vunpack.c.l.b16 %v2617
  %v2637 = vunpack.c.h.b16 %v2617
  %v2638 = vunpack.c.l.b16 %v2618
  %v2639 = vunpack.c.h.b16 %v2618
  %v2640 = vunpack.c.l.b16 %v2619
  %v2641 = vunpack.c.h.b16 %v2619
  %v2642 = vunpack.c.l.b16 %v2620
  %v2643 = vunpack.c.h.b16 %v2620
  %v2644 = vunpack.c.l.b16 %v2621
  %v2645 = vunpack.c.h.b16 %v2621
  %v2646 = vpack.c.b16 %v2630, %v2630
  %v2647 = vpack.c.b16 %v2631, %v2631
  %v2648 = vpack.c.b16 %v2632, %v2632
  %v2649 = vpack.c.b16 %v2633, %v2633
  %v2650 = vpack.c.b16 %v2634, %v2634
  %v2651 = vpack.c.b16 %v2635, %v2635
  %v2652 = vpack.c.b16 %v2636, %v2636
  %v2653 = vpack.c.b16 %v2637, %v2637
  %v2654 = vpack.c.b16 %v2638, %v2638
  %v2655 = vpack.c.b16 %v2639, %v2639
  %v2656 = vpack.c.b16 %v2640, %v2640
  %v2657 = vpack.c.b16 %v2641, %v2641
  %v2658 = vpack.c.b16 %v2642, %v2642
  %v2659 = vpack.c.b16 %v2643, %v2643
  %v2660 = vpack.c.b16 %v2644, %v2644
  %v2661 = vpack.c.b16 %v2645, %v2645
  %2678 = vst [vmem:[%s6] sm:$0xf] %v2646
  %2679 = vst [vmem:[%s6 + $0x4] sm:$0xf] %v2647
  %2680 = vst [vmem:[%s6 + $0x8] sm:$0xf] %v2648
  %2681 = vst [vmem:[%s6 + $0xc] sm:$0xf] %v2649
  %2682 = vst [vmem:[%s6 + $0x10] sm:$0xf] %v2650
  %2683 = vst [vmem:[%s6 + $0x14] sm:$0xf] %v2651
  %2684 = vst [vmem:[%s6 + $0x18] sm:$0xf] %v2652
  %2685 = vst [vmem:[%s6 + $0x1c] sm:$0xf] %v2653
  %2686 = vst [vmem:[%s6 + $0x20] sm:$0xf] %v2654
  %2687 = vst [vmem:[%s6 + $0x24] sm:$0xf] %v2655
  %2688 = vst [vmem:[%s6 + $0x28] sm:$0xf] %v2656
  %2689 = vst [vmem:[%s6 + $0x2c] sm:$0xf] %v2657
  %2690 = vst [vmem:[%s6 + $0x30] sm:$0xf] %v2658
  %2691 = vst [vmem:[%s6 + $0x34] sm:$0xf] %v2659
  %2692 = vst [vmem:[%s6 + $0x38] sm:$0xf] %v2660
  %2693 = vst [vmem:[%s6 + $0x3c] sm:$0xf] %v2661
  // Predicated region
  $region30: #{_lambda_.6} parent=0 // pred_check
    _
  $region31: #{_lambda_.6} parent=0 // pred_check_branch
    %2695 = sbr.rel (0) target = $region33
  $region32: #{_lambda_.6} parent=0 // pred_region
    _
  $region33: #{_lambda_.6} parent=0 // pred_fallthru
    _
  // Predicated region
  $region34: #{_lambda_.6} parent=0 // pred_check
    _
  $region35: #{_lambda_.6} parent=0 // pred_check_branch
    %2697 = sbr.rel (0) target = $region37
  $region36: #{_lambda_.6} parent=0 // pred_region
    _
  $region37: #{_lambda_.6} parent=0 // pred_fallthru
    _

// kernel: _lambda_.7
$region0: #{_lambda_.7}
  #allocation0 [shape = 'u32[]', space=smem, size = 0x4, offset = 0x4, fixed_abs, tag = 'smem constant byte address 0x4 - core index']
  #allocation1 [shape = 'u32[144,128]{1,0:T(1,128)}', space=vmem, size = 0x12000, scoped, tag = 'internal scratch']
  #allocation2 [shape = 'bf16[128,1152]{1,0:T(16,128)(2,1)}', space=vmem, size = 0x48000, scoped, tag = 'scratch operand']
  #allocation3 [shape = 'f32[2,64,128]{2,1,0:T(8,128)}', space=vmem, size = 0x10000, scoped, tag = 'scratch operand']
  %s0 = inlined_call_operand.vmem [shape: bf16[2,64,128], index: 0, kind: input, shape index: {}]
  %s1 = inlined_call_operand.vmem [shape: bf16[1152,128], index: 1, kind: input, shape index: {}]
  %s2 = inlined_call_operand.vmem [shape: f32[128,128], index: 2, kind: input, shape index: {}]
  %s3 = inlined_call_operand.vmem [shape: f32[8,128], index: 3, kind: input, shape index: {}]
  %s4 = inlined_call_operand.vmem [shape: f32[1,128], index: 4, kind: input, shape index: {}, may-alias: {4,8}]
  %s5 = inlined_call_operand.vmem [shape: f32[9,128,1], index: 5, kind: input, shape index: {}]
  %s6 = inlined_call_operand.vmem [shape: bf16[128,128], index: 6, kind: input, shape index: {}]
  %s7 = inlined_call_operand.vmem [shape: f32[8,128], index: 7, kind: input, shape index: {}]
  %s8 = inlined_call_operand.vmem [shape: f32[1,128], index: 8, kind: input, shape index: {}, may-alias: {4,8}]
  %s9 = inlined_call_operand.vmem [shape: f32[2,64,128], index: 9, kind: input, shape index: {}]
  %s10 = inlined_call_operand.hbm [shape: bf16[2,64,128], index: 10, kind: output, shape index: {0}]
  %s11 = inlined_call_operand.hbm [shape: f32[2,64,128], index: 11, kind: output, shape index: {1}]
  %12 = xla_tuple %s10, %s11
  %s13 = sld [smem:[#allocation0]]
  $region66: #{_lambda_.7} parent=0
    _
  %s15 = ssub.s32 1, %s13
  %s16 = scalar_select 0, %s15, %s13
  $region1: #{_lambda_.7} parent=0
    #allocation4 [shape = 'u8[32768]{0}', space=vmem, size = 0x8000, scoped, tag = 'output window, operand 0, single buffered']
    #allocation5 [shape = 's32[1]{0}', space=sflag, size = 0x4, scoped, tag = 'scoped memory for _lambda_.7']
    #allocation6 [shape = 'u8[65536]{0}', space=vmem, size = 0x10000, scoped, tag = 'output window, operand 1, single buffered']
    #allocation7 [shape = 's32[1]{0}', space=sflag, size = 0x4, scoped, tag = 'scoped memory for _lambda_.7']
    %17 = vsyncpa [#allocation5], 0
    %18 = vsyncpa [#allocation7], 0
    // Predicated region
    $region2: #{_lambda_.7} parent=1 // pred_check
      _
    $region3: #{_lambda_.7} parent=1 // pred_check_branch
      %20 = sbr.rel (0) target = $region5
    $region4: #{_lambda_.7} parent=1 // pred_region
      _
    $region5: #{_lambda_.7} parent=1 // pred_fallthru
      _
    // Predicated region
    $region6: #{_lambda_.7} parent=1 // pred_check
      _
    $region7: #{_lambda_.7} parent=1 // pred_check_branch
      %22 = sbr.rel (0) target = $region9
    $region8: #{_lambda_.7} parent=1 // pred_region
      _
    $region9: #{_lambda_.7} parent=1 // pred_fallthru
      _
    // Predicated region
    $region10: #{_lambda_.7} parent=1 // pred_check
      _
    $region11: #{_lambda_.7} parent=1 // pred_check_branch
      %24 = sbr.rel (0) target = $region13
    $region12: #{_lambda_.7} parent=1 // pred_region
      _
    $region13: #{_lambda_.7} parent=1 // pred_fallthru
      _
    // Predicated region
    $region14: #{_lambda_.7} parent=1 // pred_check
      _
    $region15: #{_lambda_.7} parent=1 // pred_check_branch
      %26 = sbr.rel (0) target = $region17
    $region16: #{_lambda_.7} parent=1 // pred_region
      _
    $region17: #{_lambda_.7} parent=1 // pred_fallthru
      _
    // Predicated region
    $region18: #{_lambda_.7} parent=1 // pred_check
      _
    $region19: #{_lambda_.7} parent=1 // pred_check_branch
      %28 = sbr.rel (0) target = $region21
    $region20: #{_lambda_.7} parent=1 // pred_region
      _
    $region21: #{_lambda_.7} parent=1 // pred_fallthru
      _
    // Predicated region
    $region22: #{_lambda_.7} parent=1 // pred_check
      _
    $region23: #{_lambda_.7} parent=1 // pred_check_branch
      %30 = sbr.rel (0) target = $region25
    $region24: #{_lambda_.7} parent=1 // pred_region
      _
    $region25: #{_lambda_.7} parent=1 // pred_fallthru
      _
    // Predicated region
    $region26: #{_lambda_.7} parent=1 // pred_check
      _
    $region27: #{_lambda_.7} parent=1 // pred_check_branch
      %32 = sbr.rel (0) target = $region29
    $region28: #{_lambda_.7} parent=1 // pred_region
      _
    $region29: #{_lambda_.7} parent=1 // pred_fallthru
      _
    // Predicated region
    $region30: #{_lambda_.7} parent=1 // pred_check
      _
    $region31: #{_lambda_.7} parent=1 // pred_check_branch
      %34 = sbr.rel (0) target = $region33
    $region32: #{_lambda_.7} parent=1 // pred_region
      _
    $region33: #{_lambda_.7} parent=1 // pred_fallthru
      _
    // Predicated region
    $region34: #{_lambda_.7} parent=1 // pred_check
      _
    $region35: #{_lambda_.7} parent=1 // pred_check_branch
      %36 = sbr.rel (0) target = $region37
    $region36: #{_lambda_.7} parent=1 // pred_region
      _
    $region37: #{_lambda_.7} parent=1 // pred_fallthru
      _
    // Predicated region
    $region38: #{_lambda_.7} parent=1 // pred_check
      _
    $region39: #{_lambda_.7} parent=1 // pred_check_branch
      %38 = sbr.rel (0) target = $region41
    $region40: #{_lambda_.7} parent=1 // pred_region
      _
    $region41: #{_lambda_.7} parent=1 // pred_fallthru
      _
    %v40 = vld [vmem:[%s3] sm:$0xff]
    %p41 = scmp.eq.s32.totalorder 0, 0
    // Predicated region
    $region42: #{_lambda_.7} parent=1 // pred_check
      %p42 = pneg %p41
    $region43: #{_lambda_.7} parent=1 // pred_check_branch
      %44 = sbr.rel (%p42) target = $region45
    $region44: #{_lambda_.7} parent=1 // pred_region
      %v45 = vld [vmem:[%s0] sm:$0xf]
      %v46 = vld [vmem:[%s0 + $0x4] sm:$0xf]
      %v47 = vld [vmem:[%s0 + $0x8] sm:$0xf]
      %v48 = vld [vmem:[%s0 + $0xc] sm:$0xf]
      %v49 = vld [vmem:[%s0 + $0x10] sm:$0xf]
      %v50 = vld [vmem:[%s0 + $0x14] sm:$0xf]
      %v51 = vld [vmem:[%s0 + $0x18] sm:$0xf]
      %v52 = vld [vmem:[%s0 + $0x1c] sm:$0xf]
      %v53 = vld [vmem:[%s0 + $0x20] sm:$0xf]
      %v54 = vld [vmem:[%s0 + $0x24] sm:$0xf]
      %v55 = vld [vmem:[%s0 + $0x28] sm:$0xf]
      %v56 = vld [vmem:[%s0 + $0x2c] sm:$0xf]
      %v57 = vld [vmem:[%s0 + $0x30] sm:$0xf]
      %v58 = vld [vmem:[%s0 + $0x34] sm:$0xf]
      %v59 = vld [vmem:[%s0 + $0x38] sm:$0xf]
      %v60 = vld [vmem:[%s0 + $0x3c] sm:$0xf]
      %v61 = vunpack.c.l.bf16 %v45
      %v62 = vunpack.c.l.bf16 %v46
      %v63 = vunpack.c.l.bf16 %v47
      %v64 = vunpack.c.l.bf16 %v48
      %v65 = vunpack.c.l.bf16 %v49
      %v66 = vunpack.c.l.bf16 %v50
      %v67 = vunpack.c.l.bf16 %v51
      %v68 = vunpack.c.l.bf16 %v52
      %v69 = vunpack.c.l.bf16 %v53
      %v70 = vunpack.c.l.bf16 %v54
      %v71 = vunpack.c.l.bf16 %v55
      %v72 = vunpack.c.l.bf16 %v56
      %v73 = vunpack.c.l.bf16 %v57
      %v74 = vunpack.c.l.bf16 %v58
      %v75 = vunpack.c.l.bf16 %v59
      %v76 = vunpack.c.l.bf16 %v60
      %v79 = vunpack.c.l.s4 1966171168
      %v80 = vunpack.c.0.s8 %v79
      %v81 = vlaneseq
      %v82 = vshrl.u32 %v81, 7
      %v83 = vsub.s32 %v80, %v82
      %v84 = vrot.slane %v40, %v83
      %v85 = vcombine.high %v84, %v84
      %v87 = vunpack.c.l.s4 1966171168
      %v88 = vunpack.c.0.s8 %v87
      %v89 = vlaneseq
      %v90 = vshrl.u32 %v89, 7
      %v91 = vsub.s32 %v88, %v90
      %v92 = vrot.slane %v84, %v91
      %v94 = vunpack.c.l.s4 1966171168
      %v95 = vunpack.c.0.s8 %v94
      %v96 = vlaneseq
      %v97 = vshrl.u32 %v96, 7
      %v98 = vsub.s32 %v95, %v97
      %v99 = vrot.slane %v85, %v98
      %v100 = vlaneseq
      %v101 = vshrl.u32 %v100, 7
      %v102 = vsub.s32 0, %v101
      %v103 = vrot.slane %v92, %v102
      %v104 = vlaneseq
      %v105 = vshrl.u32 %v104, 7
      %v106 = vsub.s32 0, %v105
      %v107 = vrot.slane %v99, %v106
      %v110 = vmul.f32 %v61, %v103
      %v111 = vmul.f32 %v62, %v103
      %v112 = vmul.f32 %v63, %v103
      %v113 = vmul.f32 %v64, %v103
      %v114 = vmul.f32 %v65, %v103
      %v115 = vmul.f32 %v66, %v103
      %v116 = vmul.f32 %v67, %v103
      %v117 = vmul.f32 %v68, %v103
      %v118 = vmul.f32 %v69, %v107
      %v119 = vmul.f32 %v70, %v107
      %v120 = vmul.f32 %v71, %v107
      %v121 = vmul.f32 %v72, %v107
      %v122 = vmul.f32 %v73, %v107
      %v123 = vmul.f32 %v74, %v107
      %v124 = vmul.f32 %v75, %v107
      %v125 = vmul.f32 %v76, %v107
      %v126 = vrot.slane %v110, 7
      %v127 = vrot.slane %v111, 7
      %v128 = vrot.slane %v112, 7
      %v129 = vrot.slane %v113, 7
      %v130 = vrot.slane %v114, 7
      %v131 = vrot.slane %v115, 7
      %v132 = vrot.slane %v116, 7
      %v133 = vrot.slane %v117, 7
      %v134 = vrot.slane %v118, 7
      %v135 = vrot.slane %v119, 7
      %v136 = vrot.slane %v120, 7
      %v137 = vrot.slane %v121, 7
      %v138 = vrot.slane %v122, 7
      %v139 = vrot.slane %v123, 7
      %v140 = vrot.slane %v124, 7
      %v141 = vrot.slane %v125, 7
      %v142 = vlaneseq
      %v143 = vshrl.u32 %v142, 7
      %vm144 = vcmp.lt.s32.totalorder %v143, 1
      %v145 = vsel %vm144, %v140, %v141
      %v146 = vsel %vm144, %v139, %v140
      %v147 = vsel %vm144, %v138, %v139
      %v148 = vsel %vm144, %v137, %v138
      %v149 = vsel %vm144, %v136, %v137
      %v150 = vsel %vm144, %v135, %v136
      %v151 = vsel %vm144, %v134, %v135
      %v152 = vsel %vm144, %v133, %v134
      %v153 = vsel %vm144, %v132, %v133
      %v154 = vsel %vm144, %v131, %v132
      %v155 = vsel %vm144, %v130, %v131
      %v156 = vsel %vm144, %v129, %v130
      %v157 = vsel %vm144, %v128, %v129
      %v158 = vsel %vm144, %v127, %v128
      %v159 = vsel %vm144, %v126, %v127
      %v160 = vsel %vm144, %v141, %v126
      %v161 = vld [vmem:[%s5] sm:$0xff]
      %v162 = vld [vmem:[%s5 + $0x8] sm:$0xff]
      %v163 = vld [vmem:[%s5 + $0x10] sm:$0xff]
      %v164 = vld [vmem:[%s5 + $0x18] sm:$0xff]
      %v165 = vld [vmem:[%s5 + $0x20] sm:$0xff]
      %v166 = vld [vmem:[%s5 + $0x28] sm:$0xff]
      %v167 = vld [vmem:[%s5 + $0x30] sm:$0xff]
      %v168 = vld [vmem:[%s5 + $0x38] sm:$0xff]
      %v169 = vld [vmem:[%s5 + $0x40] sm:$0xff]
      %v170 = vld [vmem:[%s5 + $0x48] sm:$0xff]
      %v171 = vld [vmem:[%s5 + $0x50] sm:$0xff]
      %v172 = vld [vmem:[%s5 + $0x58] sm:$0xff]
      %v173 = vld [vmem:[%s5 + $0x60] sm:$0xff]
      %v174 = vld [vmem:[%s5 + $0x68] sm:$0xff]
      %v175 = vld [vmem:[%s5 + $0x70] sm:$0xff]
      %v176 = vld [vmem:[%s5 + $0x78] sm:$0xff]
      %178 = vset.pattern.permute.xlu0 0
      %179 = vperm.xlu0 %178, %v161
      %v180 = vpop.permute.xlu0 %179
      %183 = vset.pattern.permute.xlu0 0
      %184 = vperm.xlu0 %183, %v162
      %v185 = vpop.permute.xlu0 %184
      %188 = vset.pattern.permute.xlu0 0
      %189 = vperm.xlu0 %188, %v163
      %v190 = vpop.permute.xlu0 %189
      %193 = vset.pattern.permute.xlu0 0
      %194 = vperm.xlu0 %193, %v164
      %v195 = vpop.permute.xlu0 %194
      %198 = vset.pattern.permute.xlu0 0
      %199 = vperm.xlu0 %198, %v165
      %v200 = vpop.permute.xlu0 %199
      %203 = vset.pattern.permute.xlu0 0
      %204 = vperm.xlu0 %203, %v166
      %v205 = vpop.permute.xlu0 %204
      %208 = vset.pattern.permute.xlu0 0
      %209 = vperm.xlu0 %208, %v167
      %v210 = vpop.permute.xlu0 %209
      %213 = vset.pattern.permute.xlu0 0
      %214 = vperm.xlu0 %213, %v168
      %v215 = vpop.permute.xlu0 %214
      %218 = vset.pattern.permute.xlu0 0
      %219 = vperm.xlu0 %218, %v169
      %v220 = vpop.permute.xlu0 %219
      %223 = vset.pattern.permute.xlu0 0
      %224 = vperm.xlu0 %223, %v170
      %v225 = vpop.permute.xlu0 %224
      %228 = vset.pattern.permute.xlu0 0
      %229 = vperm.xlu0 %228, %v171
      %v230 = vpop.permute.xlu0 %229
      %233 = vset.pattern.permute.xlu0 0
      %234 = vperm.xlu0 %233, %v172
      %v235 = vpop.permute.xlu0 %234
      %238 = vset.pattern.permute.xlu0 0
      %239 = vperm.xlu0 %238, %v173
      %v240 = vpop.permute.xlu0 %239
      %243 = vset.pattern.permute.xlu0 0
      %244 = vperm.xlu0 %243, %v174
      %v245 = vpop.permute.xlu0 %244
      %248 = vset.pattern.permute.xlu0 0
      %249 = vperm.xlu0 %248, %v175
      %v250 = vpop.permute.xlu0 %249
      %253 = vset.pattern.permute.xlu0 0
      %254 = vperm.xlu0 %253, %v176
      %v255 = vpop.permute.xlu0 %254
      %v257 = vmul.f32 %v145, %v180
      %v258 = vmul.f32 %v160, %v185
      %v259 = vmul.f32 %v159, %v190
      %v260 = vmul.f32 %v158, %v195
      %v261 = vmul.f32 %v157, %v200
      %v262 = vmul.f32 %v156, %v205
      %v263 = vmul.f32 %v155, %v210
      %v264 = vmul.f32 %v154, %v215
      %v265 = vmul.f32 %v153, %v220
      %v266 = vmul.f32 %v152, %v225
      %v267 = vmul.f32 %v151, %v230
      %v268 = vmul.f32 %v150, %v235
      %v269 = vmul.f32 %v149, %v240
      %v270 = vmul.f32 %v148, %v245
      %v271 = vmul.f32 %v147, %v250
      %v272 = vmul.f32 %v146, %v255
      %v273 = vpack.c.bf16 %v258, %v257
      %v274 = vpack.c.bf16 %v260, %v259
      %v275 = vpack.c.bf16 %v262, %v261
      %v276 = vpack.c.bf16 %v264, %v263
      %v277 = vpack.c.bf16 %v266, %v265
      %v278 = vpack.c.bf16 %v268, %v267
      %v279 = vpack.c.bf16 %v270, %v269
      %v280 = vpack.c.bf16 %v272, %v271
      %281 = vst [vmem:[#allocation2] sm:$0xff] %v273
      %282 = vst [vmem:[#allocation2 + $0x48] sm:$0xff] %v274
      %283 = vst [vmem:[#allocation2 + $0x90] sm:$0xff] %v275
      %284 = vst [vmem:[#allocation2 + $0xd8] sm:$0xff] %v276
      %285 = vst [vmem:[#allocation2 + $0x120] sm:$0xff] %v277
      %286 = vst [vmem:[#allocation2 + $0x168] sm:$0xff] %v278
      %287 = vst [vmem:[#allocation2 + $0x1b0] sm:$0xff] %v279
      %288 = vst [vmem:[#allocation2 + $0x1f8] sm:$0xff] %v280
      %s289 = scalar_lea.vmem %s5, 128
      %v290 = vld [vmem:[%s289] sm:$0xff]
      %v291 = vld [vmem:[%s289 + $0x8] sm:$0xff]
      %v292 = vld [vmem:[%s289 + $0x10] sm:$0xff]
      %v293 = vld [vmem:[%s289 + $0x18] sm:$0xff]
      %v294 = vld [vmem:[%s289 + $0x20] sm:$0xff]
      %v295 = vld [vmem:[%s289 + $0x28] sm:$0xff]
      %v296 = vld [vmem:[%s289 + $0x30] sm:$0xff]
      %v297 = vld [vmem:[%s289 + $0x38] sm:$0xff]
      %v298 = vld [vmem:[%s289 + $0x40] sm:$0xff]
      %v299 = vld [vmem:[%s289 + $0x48] sm:$0xff]
      %v300 = vld [vmem:[%s289 + $0x50] sm:$0xff]
      %v301 = vld [vmem:[%s289 + $0x58] sm:$0xff]
      %v302 = vld [vmem:[%s289 + $0x60] sm:$0xff]
      %v303 = vld [vmem:[%s289 + $0x68] sm:$0xff]
      %v304 = vld [vmem:[%s289 + $0x70] sm:$0xff]
      %v305 = vld [vmem:[%s289 + $0x78] sm:$0xff]
      %307 = vset.pattern.permute.xlu0 0
      %308 = vperm.xlu0 %307, %v290
      %v309 = vpop.permute.xlu0 %308
      %312 = vset.pattern.permute.xlu0 0
      %313 = vperm.xlu0 %312, %v291
      %v314 = vpop.permute.xlu0 %313
      %317 = vset.pattern.permute.xlu0 0
      %318 = vperm.xlu0 %317, %v292
      %v319 = vpop.permute.xlu0 %318
      %322 = vset.pattern.permute.xlu0 0
      %323 = vperm.xlu0 %322, %v293
      %v324 = vpop.permute.xlu0 %323
      %327 = vset.pattern.permute.xlu0 0
      %328 = vperm.xlu0 %327, %v294
      %v329 = vpop.permute.xlu0 %328
      %332 = vset.pattern.permute.xlu0 0
      %333 = vperm.xlu0 %332, %v295
      %v334 = vpop.permute.xlu0 %333
      %337 = vset.pattern.permute.xlu0 0
      %338 = vperm.xlu0 %337, %v296
      %v339 = vpop.permute.xlu0 %338
      %342 = vset.pattern.permute.xlu0 0
      %343 = vperm.xlu0 %342, %v297
      %v344 = vpop.permute.xlu0 %343
      %347 = vset.pattern.permute.xlu0 0
      %348 = vperm.xlu0 %347, %v298
      %v349 = vpop.permute.xlu0 %348
      %352 = vset.pattern.permute.xlu0 0
      %353 = vperm.xlu0 %352, %v299
      %v354 = vpop.permute.xlu0 %353
      %357 = vset.pattern.permute.xlu0 0
      %358 = vperm.xlu0 %357, %v300
      %v359 = vpop.permute.xlu0 %358
      %362 = vset.pattern.permute.xlu0 0
      %363 = vperm.xlu0 %362, %v301
      %v364 = vpop.permute.xlu0 %363
      %367 = vset.pattern.permute.xlu0 0
      %368 = vperm.xlu0 %367, %v302
      %v369 = vpop.permute.xlu0 %368
      %372 = vset.pattern.permute.xlu0 0
      %373 = vperm.xlu0 %372, %v303
      %v374 = vpop.permute.xlu0 %373
      %377 = vset.pattern.permute.xlu0 0
      %378 = vperm.xlu0 %377, %v304
      %v379 = vpop.permute.xlu0 %378
      %382 = vset.pattern.permute.xlu0 0
      %383 = vperm.xlu0 %382, %v305
      %v384 = vpop.permute.xlu0 %383
      %v386 = vmul.f32 %v125, %v309
      %v387 = vmul.f32 %v110, %v314
      %v388 = vmul.f32 %v111, %v319
      %v389 = vmul.f32 %v112, %v324
      %v390 = vmul.f32 %v113, %v329
      %v391 = vmul.f32 %v114, %v334
      %v392 = vmul.f32 %v115, %v339
      %v393 = vmul.f32 %v116, %v344
      %v394 = vmul.f32 %v117, %v349
      %v395 = vmul.f32 %v118, %v354
      %v396 = vmul.f32 %v119, %v359
      %v397 = vmul.f32 %v120, %v364
      %v398 = vmul.f32 %v121, %v369
      %v399 = vmul.f32 %v122, %v374
      %v400 = vmul.f32 %v123, %v379
      %v401 = vmul.f32 %v124, %v384
      %v402 = vpack.c.bf16 %v387, %v386
      %v403 = vpack.c.bf16 %v389, %v388
      %v404 = vpack.c.bf16 %v391, %v390
      %v405 = vpack.c.bf16 %v393, %v392
      %v406 = vpack.c.bf16 %v395, %v394
      %v407 = vpack.c.bf16 %v397, %v396
      %v408 = vpack.c.bf16 %v399, %v398
      %v409 = vpack.c.bf16 %v401, %v400
      %410 = vst [vmem:[#allocation2 + $0x8] sm:$0xff] %v402
      %411 = vst [vmem:[#allocation2 + $0x50] sm:$0xff] %v403
      %412 = vst [vmem:[#allocation2 + $0x98] sm:$0xff] %v404
      %413 = vst [vmem:[#allocation2 + $0xe0] sm:$0xff] %v405
      %414 = vst [vmem:[#allocation2 + $0x128] sm:$0xff] %v406
      %415 = vst [vmem:[#allocation2 + $0x170] sm:$0xff] %v407
      %416 = vst [vmem:[#allocation2 + $0x1b8] sm:$0xff] %v408
      %417 = vst [vmem:[#allocation2 + $0x200] sm:$0xff] %v409
      %v418 = vrot.slane %v110, 1
      %v419 = vrot.slane %v111, 1
      %v420 = vrot.slane %v112, 1
      %v421 = vrot.slane %v113, 1
      %v422 = vrot.slane %v114, 1
      %v423 = vrot.slane %v115, 1
      %v424 = vrot.slane %v116, 1
      %v425 = vrot.slane %v117, 1
      %v426 = vrot.slane %v118, 1
      %v427 = vrot.slane %v119, 1
      %v428 = vrot.slane %v120, 1
      %v429 = vrot.slane %v121, 1
      %v430 = vrot.slane %v122, 1
      %v431 = vrot.slane %v123, 1
      %v432 = vrot.slane %v124, 1
      %v433 = vrot.slane %v125, 1
      %vm434 = vcmp.lt.s32.totalorder %v143, 7
      %v435 = vsel %vm434, %v432, %v433
      %v436 = vsel %vm434, %v431, %v432
      %v437 = vsel %vm434, %v430, %v431
      %v438 = vsel %vm434, %v429, %v430
      %v439 = vsel %vm434, %v428, %v429
      %v440 = vsel %vm434, %v427, %v428
      %v441 = vsel %vm434, %v426, %v427
      %v442 = vsel %vm434, %v425, %v426
      %v443 = vsel %vm434, %v424, %v425
      %v444 = vsel %vm434, %v423, %v424
      %v445 = vsel %vm434, %v422, %v423
      %v446 = vsel %vm434, %v421, %v422
      %v447 = vsel %vm434, %v420, %v421
      %v448 = vsel %vm434, %v419, %v420
      %v449 = vsel %vm434, %v418, %v419
      %v450 = vsel %vm434, %v433, %v418
      %s451 = scalar_lea.vmem %s5, 256
      %v452 = vld [vmem:[%s451] sm:$0xff]
      %v453 = vld [vmem:[%s451 + $0x8] sm:$0xff]
      %v454 = vld [vmem:[%s451 + $0x10] sm:$0xff]
      %v455 = vld [vmem:[%s451 + $0x18] sm:$0xff]
      %v456 = vld [vmem:[%s451 + $0x20] sm:$0xff]
      %v457 = vld [vmem:[%s451 + $0x28] sm:$0xff]
      %v458 = vld [vmem:[%s451 + $0x30] sm:$0xff]
      %v459 = vld [vmem:[%s451 + $0x38] sm:$0xff]
      %v460 = vld [vmem:[%s451 + $0x40] sm:$0xff]
      %v461 = vld [vmem:[%s451 + $0x48] sm:$0xff]
      %v462 = vld [vmem:[%s451 + $0x50] sm:$0xff]
      %v463 = vld [vmem:[%s451 + $0x58] sm:$0xff]
      %v464 = vld [vmem:[%s451 + $0x60] sm:$0xff]
      %v465 = vld [vmem:[%s451 + $0x68] sm:$0xff]
      %v466 = vld [vmem:[%s451 + $0x70] sm:$0xff]
      %v467 = vld [vmem:[%s451 + $0x78] sm:$0xff]
      %469 = vset.pattern.permute.xlu0 0
      %470 = vperm.xlu0 %469, %v452
      %v471 = vpop.permute.xlu0 %470
      %474 = vset.pattern.permute.xlu0 0
      %475 = vperm.xlu0 %474, %v453
      %v476 = vpop.permute.xlu0 %475
      %479 = vset.pattern.permute.xlu0 0
      %480 = vperm.xlu0 %479, %v454
      %v481 = vpop.permute.xlu0 %480
      %484 = vset.pattern.permute.xlu0 0
      %485 = vperm.xlu0 %484, %v455
      %v486 = vpop.permute.xlu0 %485
      %489 = vset.pattern.permute.xlu0 0
      %490 = vperm.xlu0 %489, %v456
      %v491 = vpop.permute.xlu0 %490
      %494 = vset.pattern.permute.xlu0 0
      %495 = vperm.xlu0 %494, %v457
      %v496 = vpop.permute.xlu0 %495
      %499 = vset.pattern.permute.xlu0 0
      %500 = vperm.xlu0 %499, %v458
      %v501 = vpop.permute.xlu0 %500
      %504 = vset.pattern.permute.xlu0 0
      %505 = vperm.xlu0 %504, %v459
      %v506 = vpop.permute.xlu0 %505
      %509 = vset.pattern.permute.xlu0 0
      %510 = vperm.xlu0 %509, %v460
      %v511 = vpop.permute.xlu0 %510
      %514 = vset.pattern.permute.xlu0 0
      %515 = vperm.xlu0 %514, %v461
      %v516 = vpop.permute.xlu0 %515
      %519 = vset.pattern.permute.xlu0 0
      %520 = vperm.xlu0 %519, %v462
      %v521 = vpop.permute.xlu0 %520
      %524 = vset.pattern.permute.xlu0 0
      %525 = vperm.xlu0 %524, %v463
      %v526 = vpop.permute.xlu0 %525
      %529 = vset.pattern.permute.xlu0 0
      %530 = vperm.xlu0 %529, %v464
      %v531 = vpop.permute.xlu0 %530
      %534 = vset.pattern.permute.xlu0 0
      %535 = vperm.xlu0 %534, %v465
      %v536 = vpop.permute.xlu0 %535
      %539 = vset.pattern.permute.xlu0 0
      %540 = vperm.xlu0 %539, %v466
      %v541 = vpop.permute.xlu0 %540
      %544 = vset.pattern.permute.xlu0 0
      %545 = vperm.xlu0 %544, %v467
      %v546 = vpop.permute.xlu0 %545
      %v548 = vmul.f32 %v450, %v471
      %v549 = vmul.f32 %v449, %v476
      %v550 = vmul.f32 %v448, %v481
      %v551 = vmul.f32 %v447, %v486
      %v552 = vmul.f32 %v446, %v491
      %v553 = vmul.f32 %v445, %v496
      %v554 = vmul.f32 %v444, %v501
      %v555 = vmul.f32 %v443, %v506
      %v556 = vmul.f32 %v442, %v511
      %v557 = vmul.f32 %v441, %v516
      %v558 = vmul.f32 %v440, %v521
      %v559 = vmul.f32 %v439, %v526
      %v560 = vmul.f32 %v438, %v531
      %v561 = vmul.f32 %v437, %v536
      %v562 = vmul.f32 %v436, %v541
      %v563 = vmul.f32 %v435, %v546
      %v564 = vpack.c.bf16 %v549, %v548
      %v565 = vpack.c.bf16 %v551, %v550
      %v566 = vpack.c.bf16 %v553, %v552
      %v567 = vpack.c.bf16 %v555, %v554
      %v568 = vpack.c.bf16 %v557, %v556
      %v569 = vpack.c.bf16 %v559, %v558
      %v570 = vpack.c.bf16 %v561, %v560
      %v571 = vpack.c.bf16 %v563, %v562
      %572 = vst [vmem:[#allocation2 + $0x10] sm:$0xff] %v564
      %573 = vst [vmem:[#allocation2 + $0x58] sm:$0xff] %v565
      %574 = vst [vmem:[#allocation2 + $0xa0] sm:$0xff] %v566
      %575 = vst [vmem:[#allocation2 + $0xe8] sm:$0xff] %v567
      %576 = vst [vmem:[#allocation2 + $0x130] sm:$0xff] %v568
      %577 = vst [vmem:[#allocation2 + $0x178] sm:$0xff] %v569
      %578 = vst [vmem:[#allocation2 + $0x1c0] sm:$0xff] %v570
      %579 = vst [vmem:[#allocation2 + $0x208] sm:$0xff] %v571
      %s580 = scalar_lea.vmem %s5, 384
      %v581 = vld [vmem:[%s580] sm:$0xff]
      %v582 = vld [vmem:[%s580 + $0x8] sm:$0xff]
      %v583 = vld [vmem:[%s580 + $0x10] sm:$0xff]
      %v584 = vld [vmem:[%s580 + $0x18] sm:$0xff]
      %v585 = vld [vmem:[%s580 + $0x20] sm:$0xff]
      %v586 = vld [vmem:[%s580 + $0x28] sm:$0xff]
      %v587 = vld [vmem:[%s580 + $0x30] sm:$0xff]
      %v588 = vld [vmem:[%s580 + $0x38] sm:$0xff]
      %v589 = vld [vmem:[%s580 + $0x40] sm:$0xff]
      %v590 = vld [vmem:[%s580 + $0x48] sm:$0xff]
      %v591 = vld [vmem:[%s580 + $0x50] sm:$0xff]
      %v592 = vld [vmem:[%s580 + $0x58] sm:$0xff]
      %v593 = vld [vmem:[%s580 + $0x60] sm:$0xff]
      %v594 = vld [vmem:[%s580 + $0x68] sm:$0xff]
      %v595 = vld [vmem:[%s580 + $0x70] sm:$0xff]
      %v596 = vld [vmem:[%s580 + $0x78] sm:$0xff]
      %598 = vset.pattern.permute.xlu0 0
      %599 = vperm.xlu0 %598, %v581
      %v600 = vpop.permute.xlu0 %599
      %603 = vset.pattern.permute.xlu0 0
      %604 = vperm.xlu0 %603, %v582
      %v605 = vpop.permute.xlu0 %604
      %608 = vset.pattern.permute.xlu0 0
      %609 = vperm.xlu0 %608, %v583
      %v610 = vpop.permute.xlu0 %609
      %613 = vset.pattern.permute.xlu0 0
      %614 = vperm.xlu0 %613, %v584
      %v615 = vpop.permute.xlu0 %614
      %618 = vset.pattern.permute.xlu0 0
      %619 = vperm.xlu0 %618, %v585
      %v620 = vpop.permute.xlu0 %619
      %623 = vset.pattern.permute.xlu0 0
      %624 = vperm.xlu0 %623, %v586
      %v625 = vpop.permute.xlu0 %624
      %628 = vset.pattern.permute.xlu0 0
      %629 = vperm.xlu0 %628, %v587
      %v630 = vpop.permute.xlu0 %629
      %633 = vset.pattern.permute.xlu0 0
      %634 = vperm.xlu0 %633, %v588
      %v635 = vpop.permute.xlu0 %634
      %638 = vset.pattern.permute.xlu0 0
      %639 = vperm.xlu0 %638, %v589
      %v640 = vpop.permute.xlu0 %639
      %643 = vset.pattern.permute.xlu0 0
      %644 = vperm.xlu0 %643, %v590
      %v645 = vpop.permute.xlu0 %644
      %648 = vset.pattern.permute.xlu0 0
      %649 = vperm.xlu0 %648, %v591
      %v650 = vpop.permute.xlu0 %649
      %653 = vset.pattern.permute.xlu0 0
      %654 = vperm.xlu0 %653, %v592
      %v655 = vpop.permute.xlu0 %654
      %658 = vset.pattern.permute.xlu0 0
      %659 = vperm.xlu0 %658, %v593
      %v660 = vpop.permute.xlu0 %659
      %663 = vset.pattern.permute.xlu0 0
      %664 = vperm.xlu0 %663, %v594
      %v665 = vpop.permute.xlu0 %664
      %668 = vset.pattern.permute.xlu0 0
      %669 = vperm.xlu0 %668, %v595
      %v670 = vpop.permute.xlu0 %669
      %673 = vset.pattern.permute.xlu0 0
      %674 = vperm.xlu0 %673, %v596
      %v675 = vpop.permute.xlu0 %674
      %v677 = vmul.f32 %v160, %v600
      %v678 = vmul.f32 %v159, %v605
      %v679 = vmul.f32 %v158, %v610
      %v680 = vmul.f32 %v157, %v615
      %v681 = vmul.f32 %v156, %v620
      %v682 = vmul.f32 %v155, %v625
      %v683 = vmul.f32 %v154, %v630
      %v684 = vmul.f32 %v153, %v635
      %v685 = vmul.f32 %v152, %v640
      %v686 = vmul.f32 %v151, %v645
      %v687 = vmul.f32 %v150, %v650
      %v688 = vmul.f32 %v149, %v655
      %v689 = vmul.f32 %v148, %v660
      %v690 = vmul.f32 %v147, %v665
      %v691 = vmul.f32 %v146, %v670
      %v692 = vmul.f32 %v145, %v675
      %v693 = vpack.c.bf16 %v678, %v677
      %v694 = vpack.c.bf16 %v680, %v679
      %v695 = vpack.c.bf16 %v682, %v681
      %v696 = vpack.c.bf16 %v684, %v683
      %v697 = vpack.c.bf16 %v686, %v685
      %v698 = vpack.c.bf16 %v688, %v687
      %v699 = vpack.c.bf16 %v690, %v689
      %v700 = vpack.c.bf16 %v692, %v691
      %701 = vst [vmem:[#allocation2 + $0x18] sm:$0xff] %v693
      %702 = vst [vmem:[#allocation2 + $0x60] sm:$0xff] %v694
      %703 = vst [vmem:[#allocation2 + $0xa8] sm:$0xff] %v695
      %704 = vst [vmem:[#allocation2 + $0xf0] sm:$0xff] %v696
      %705 = vst [vmem:[#allocation2 + $0x138] sm:$0xff] %v697
      %706 = vst [vmem:[#allocation2 + $0x180] sm:$0xff] %v698
      %707 = vst [vmem:[#allocation2 + $0x1c8] sm:$0xff] %v699
      %708 = vst [vmem:[#allocation2 + $0x210] sm:$0xff] %v700
      %v709 = vpack.c.bf16 %v111, %v110
      %v710 = vpack.c.bf16 %v113, %v112
      %v711 = vpack.c.bf16 %v115, %v114
      %v712 = vpack.c.bf16 %v117, %v116
      %v713 = vpack.c.bf16 %v119, %v118
      %v714 = vpack.c.bf16 %v121, %v120
      %v715 = vpack.c.bf16 %v123, %v122
      %v716 = vpack.c.bf16 %v125, %v124
      %717 = vst [vmem:[#allocation2 + $0x20] sm:$0xff] %v709
      %718 = vst [vmem:[#allocation2 + $0x68] sm:$0xff] %v710
      %719 = vst [vmem:[#allocation2 + $0xb0] sm:$0xff] %v711
      %720 = vst [vmem:[#allocation2 + $0xf8] sm:$0xff] %v712
      %721 = vst [vmem:[#allocation2 + $0x140] sm:$0xff] %v713
      %722 = vst [vmem:[#allocation2 + $0x188] sm:$0xff] %v714
      %723 = vst [vmem:[#allocation2 + $0x1d0] sm:$0xff] %v715
      %724 = vst [vmem:[#allocation2 + $0x218] sm:$0xff] %v716
      %s725 = scalar_lea.vmem %s5, 640
      %v726 = vld [vmem:[%s725] sm:$0xff]
      %v727 = vld [vmem:[%s725 + $0x8] sm:$0xff]
      %v728 = vld [vmem:[%s725 + $0x10] sm:$0xff]
      %v729 = vld [vmem:[%s725 + $0x18] sm:$0xff]
      %v730 = vld [vmem:[%s725 + $0x20] sm:$0xff]
      %v731 = vld [vmem:[%s725 + $0x28] sm:$0xff]
      %v732 = vld [vmem:[%s725 + $0x30] sm:$0xff]
      %v733 = vld [vmem:[%s725 + $0x38] sm:$0xff]
      %v734 = vld [vmem:[%s725 + $0x40] sm:$0xff]
      %v735 = vld [vmem:[%s725 + $0x48] sm:$0xff]
      %v736 = vld [vmem:[%s725 + $0x50] sm:$0xff]
      %v737 = vld [vmem:[%s725 + $0x58] sm:$0xff]
      %v738 = vld [vmem:[%s725 + $0x60] sm:$0xff]
      %v739 = vld [vmem:[%s725 + $0x68] sm:$0xff]
      %v740 = vld [vmem:[%s725 + $0x70] sm:$0xff]
      %v741 = vld [vmem:[%s725 + $0x78] sm:$0xff]
      %743 = vset.pattern.permute.xlu0 0
      %744 = vperm.xlu0 %743, %v726
      %v745 = vpop.permute.xlu0 %744
      %748 = vset.pattern.permute.xlu0 0
      %749 = vperm.xlu0 %748, %v727
      %v750 = vpop.permute.xlu0 %749
      %753 = vset.pattern.permute.xlu0 0
      %754 = vperm.xlu0 %753, %v728
      %v755 = vpop.permute.xlu0 %754
      %758 = vset.pattern.permute.xlu0 0
      %759 = vperm.xlu0 %758, %v729
      %v760 = vpop.permute.xlu0 %759
      %763 = vset.pattern.permute.xlu0 0
      %764 = vperm.xlu0 %763, %v730
      %v765 = vpop.permute.xlu0 %764
      %768 = vset.pattern.permute.xlu0 0
      %769 = vperm.xlu0 %768, %v731
      %v770 = vpop.permute.xlu0 %769
      %773 = vset.pattern.permute.xlu0 0
      %774 = vperm.xlu0 %773, %v732
      %v775 = vpop.permute.xlu0 %774
      %778 = vset.pattern.permute.xlu0 0
      %779 = vperm.xlu0 %778, %v733
      %v780 = vpop.permute.xlu0 %779
      %783 = vset.pattern.permute.xlu0 0
      %784 = vperm.xlu0 %783, %v734
      %v785 = vpop.permute.xlu0 %784
      %788 = vset.pattern.permute.xlu0 0
      %789 = vperm.xlu0 %788, %v735
      %v790 = vpop.permute.xlu0 %789
      %793 = vset.pattern.permute.xlu0 0
      %794 = vperm.xlu0 %793, %v736
      %v795 = vpop.permute.xlu0 %794
      %798 = vset.pattern.permute.xlu0 0
      %799 = vperm.xlu0 %798, %v737
      %v800 = vpop.permute.xlu0 %799
      %803 = vset.pattern.permute.xlu0 0
      %804 = vperm.xlu0 %803, %v738
      %v805 = vpop.permute.xlu0 %804
      %808 = vset.pattern.permute.xlu0 0
      %809 = vperm.xlu0 %808, %v739
      %v810 = vpop.permute.xlu0 %809
      %813 = vset.pattern.permute.xlu0 0
      %814 = vperm.xlu0 %813, %v740
      %v815 = vpop.permute.xlu0 %814
      %818 = vset.pattern.permute.xlu0 0
      %819 = vperm.xlu0 %818, %v741
      %v820 = vpop.permute.xlu0 %819
      %v822 = vmul.f32 %v449, %v745
      %v823 = vmul.f32 %v448, %v750
      %v824 = vmul.f32 %v447, %v755
      %v825 = vmul.f32 %v446, %v760
      %v826 = vmul.f32 %v445, %v765
      %v827 = vmul.f32 %v444, %v770
      %v828 = vmul.f32 %v443, %v775
      %v829 = vmul.f32 %v442, %v780
      %v830 = vmul.f32 %v441, %v785
      %v831 = vmul.f32 %v440, %v790
      %v832 = vmul.f32 %v439, %v795
      %v833 = vmul.f32 %v438, %v800
      %v834 = vmul.f32 %v437, %v805
      %v835 = vmul.f32 %v436, %v810
      %v836 = vmul.f32 %v435, %v815
      %v837 = vmul.f32 %v450, %v820
      %v838 = vpack.c.bf16 %v823, %v822
      %v839 = vpack.c.bf16 %v825, %v824
      %v840 = vpack.c.bf16 %v827, %v826
      %v841 = vpack.c.bf16 %v829, %v828
      %v842 = vpack.c.bf16 %v831, %v830
      %v843 = vpack.c.bf16 %v833, %v832
      %v844 = vpack.c.bf16 %v835, %v834
      %v845 = vpack.c.bf16 %v837, %v836
      %846 = vst [vmem:[#allocation2 + $0x28] sm:$0xff] %v838
      %847 = vst [vmem:[#allocation2 + $0x70] sm:$0xff] %v839
      %848 = vst [vmem:[#allocation2 + $0xb8] sm:$0xff] %v840
      %849 = vst [vmem:[#allocation2 + $0x100] sm:$0xff] %v841
      %850 = vst [vmem:[#allocation2 + $0x148] sm:$0xff] %v842
      %851 = vst [vmem:[#allocation2 + $0x190] sm:$0xff] %v843
      %852 = vst [vmem:[#allocation2 + $0x1d8] sm:$0xff] %v844
      %853 = vst [vmem:[#allocation2 + $0x220] sm:$0xff] %v845
      %s854 = scalar_lea.vmem %s5, 768
      %v855 = vld [vmem:[%s854] sm:$0xff]
      %v856 = vld [vmem:[%s854 + $0x8] sm:$0xff]
      %v857 = vld [vmem:[%s854 + $0x10] sm:$0xff]
      %v858 = vld [vmem:[%s854 + $0x18] sm:$0xff]
      %v859 = vld [vmem:[%s854 + $0x20] sm:$0xff]
      %v860 = vld [vmem:[%s854 + $0x28] sm:$0xff]
      %v861 = vld [vmem:[%s854 + $0x30] sm:$0xff]
      %v862 = vld [vmem:[%s854 + $0x38] sm:$0xff]
      %v863 = vld [vmem:[%s854 + $0x40] sm:$0xff]
      %v864 = vld [vmem:[%s854 + $0x48] sm:$0xff]
      %v865 = vld [vmem:[%s854 + $0x50] sm:$0xff]
      %v866 = vld [vmem:[%s854 + $0x58] sm:$0xff]
      %v867 = vld [vmem:[%s854 + $0x60] sm:$0xff]
      %v868 = vld [vmem:[%s854 + $0x68] sm:$0xff]
      %v869 = vld [vmem:[%s854 + $0x70] sm:$0xff]
      %v870 = vld [vmem:[%s854 + $0x78] sm:$0xff]
      %872 = vset.pattern.permute.xlu0 0
      %873 = vperm.xlu0 %872, %v855
      %v874 = vpop.permute.xlu0 %873
      %877 = vset.pattern.permute.xlu0 0
      %878 = vperm.xlu0 %877, %v856
      %v879 = vpop.permute.xlu0 %878
      %882 = vset.pattern.permute.xlu0 0
      %883 = vperm.xlu0 %882, %v857
      %v884 = vpop.permute.xlu0 %883
      %887 = vset.pattern.permute.xlu0 0
      %888 = vperm.xlu0 %887, %v858
      %v889 = vpop.permute.xlu0 %888
      %892 = vset.pattern.permute.xlu0 0
      %893 = vperm.xlu0 %892, %v859
      %v894 = vpop.permute.xlu0 %893
      %897 = vset.pattern.permute.xlu0 0
      %898 = vperm.xlu0 %897, %v860
      %v899 = vpop.permute.xlu0 %898
      %902 = vset.pattern.permute.xlu0 0
      %903 = vperm.xlu0 %902, %v861
      %v904 = vpop.permute.xlu0 %903
      %907 = vset.pattern.permute.xlu0 0
      %908 = vperm.xlu0 %907, %v862
      %v909 = vpop.permute.xlu0 %908
      %912 = vset.pattern.permute.xlu0 0
      %913 = vperm.xlu0 %912, %v863
      %v914 = vpop.permute.xlu0 %913
      %917 = vset.pattern.permute.xlu0 0
      %918 = vperm.xlu0 %917, %v864
      %v919 = vpop.permute.xlu0 %918
      %922 = vset.pattern.permute.xlu0 0
      %923 = vperm.xlu0 %922, %v865
      %v924 = vpop.permute.xlu0 %923
      %927 = vset.pattern.permute.xlu0 0
      %928 = vperm.xlu0 %927, %v866
      %v929 = vpop.permute.xlu0 %928
      %932 = vset.pattern.permute.xlu0 0
      %933 = vperm.xlu0 %932, %v867
      %v934 = vpop.permute.xlu0 %933
      %937 = vset.pattern.permute.xlu0 0
      %938 = vperm.xlu0 %937, %v868
      %v939 = vpop.permute.xlu0 %938
      %942 = vset.pattern.permute.xlu0 0
      %943 = vperm.xlu0 %942, %v869
      %v944 = vpop.permute.xlu0 %943
      %947 = vset.pattern.permute.xlu0 0
      %948 = vperm.xlu0 %947, %v870
      %v949 = vpop.permute.xlu0 %948
      %v951 = vmul.f32 %v159, %v874
      %v952 = vmul.f32 %v158, %v879
      %v953 = vmul.f32 %v157, %v884
      %v954 = vmul.f32 %v156, %v889
      %v955 = vmul.f32 %v155, %v894
      %v956 = vmul.f32 %v154, %v899
      %v957 = vmul.f32 %v153, %v904
      %v958 = vmul.f32 %v152, %v909
      %v959 = vmul.f32 %v151, %v914
      %v960 = vmul.f32 %v150, %v919
      %v961 = vmul.f32 %v149, %v924
      %v962 = vmul.f32 %v148, %v929
      %v963 = vmul.f32 %v147, %v934
      %v964 = vmul.f32 %v146, %v939
      %v965 = vmul.f32 %v145, %v944
      %v966 = vmul.f32 %v160, %v949
      %v967 = vpack.c.bf16 %v952, %v951
      %v968 = vpack.c.bf16 %v954, %v953
      %v969 = vpack.c.bf16 %v956, %v955
      %v970 = vpack.c.bf16 %v958, %v957
      %v971 = vpack.c.bf16 %v960, %v959
      %v972 = vpack.c.bf16 %v962, %v961
      %v973 = vpack.c.bf16 %v964, %v963
      %v974 = vpack.c.bf16 %v966, %v965
      %975 = vst [vmem:[#allocation2 + $0x30] sm:$0xff] %v967
      %976 = vst [vmem:[#allocation2 + $0x78] sm:$0xff] %v968
      %977 = vst [vmem:[#allocation2 + $0xc0] sm:$0xff] %v969
      %978 = vst [vmem:[#allocation2 + $0x108] sm:$0xff] %v970
      %979 = vst [vmem:[#allocation2 + $0x150] sm:$0xff] %v971
      %980 = vst [vmem:[#allocation2 + $0x198] sm:$0xff] %v972
      %981 = vst [vmem:[#allocation2 + $0x1e0] sm:$0xff] %v973
      %982 = vst [vmem:[#allocation2 + $0x228] sm:$0xff] %v974
      %s983 = scalar_lea.vmem %s5, 896
      %v984 = vld [vmem:[%s983] sm:$0xff]
      %v985 = vld [vmem:[%s983 + $0x8] sm:$0xff]
      %v986 = vld [vmem:[%s983 + $0x10] sm:$0xff]
      %v987 = vld [vmem:[%s983 + $0x18] sm:$0xff]
      %v988 = vld [vmem:[%s983 + $0x20] sm:$0xff]
      %v989 = vld [vmem:[%s983 + $0x28] sm:$0xff]
      %v990 = vld [vmem:[%s983 + $0x30] sm:$0xff]
      %v991 = vld [vmem:[%s983 + $0x38] sm:$0xff]
      %v992 = vld [vmem:[%s983 + $0x40] sm:$0xff]
      %v993 = vld [vmem:[%s983 + $0x48] sm:$0xff]
      %v994 = vld [vmem:[%s983 + $0x50] sm:$0xff]
      %v995 = vld [vmem:[%s983 + $0x58] sm:$0xff]
      %v996 = vld [vmem:[%s983 + $0x60] sm:$0xff]
      %v997 = vld [vmem:[%s983 + $0x68] sm:$0xff]
      %v998 = vld [vmem:[%s983 + $0x70] sm:$0xff]
      %v999 = vld [vmem:[%s983 + $0x78] sm:$0xff]
      %1001 = vset.pattern.permute.xlu0 0
      %1002 = vperm.xlu0 %1001, %v984
      %v1003 = vpop.permute.xlu0 %1002
      %1006 = vset.pattern.permute.xlu0 0
      %1007 = vperm.xlu0 %1006, %v985
      %v1008 = vpop.permute.xlu0 %1007
      %1011 = vset.pattern.permute.xlu0 0
      %1012 = vperm.xlu0 %1011, %v986
      %v1013 = vpop.permute.xlu0 %1012
      %1016 = vset.pattern.permute.xlu0 0
      %1017 = vperm.xlu0 %1016, %v987
      %v1018 = vpop.permute.xlu0 %1017
      %1021 = vset.pattern.permute.xlu0 0
      %1022 = vperm.xlu0 %1021, %v988
      %v1023 = vpop.permute.xlu0 %1022
      %1026 = vset.pattern.permute.xlu0 0
      %1027 = vperm.xlu0 %1026, %v989
      %v1028 = vpop.permute.xlu0 %1027
      %1031 = vset.pattern.permute.xlu0 0
      %1032 = vperm.xlu0 %1031, %v990
      %v1033 = vpop.permute.xlu0 %1032
      %1036 = vset.pattern.permute.xlu0 0
      %1037 = vperm.xlu0 %1036, %v991
      %v1038 = vpop.permute.xlu0 %1037
      %1041 = vset.pattern.permute.xlu0 0
      %1042 = vperm.xlu0 %1041, %v992
      %v1043 = vpop.permute.xlu0 %1042
      %1046 = vset.pattern.permute.xlu0 0
      %1047 = vperm.xlu0 %1046, %v993
      %v1048 = vpop.permute.xlu0 %1047
      %1051 = vset.pattern.permute.xlu0 0
      %1052 = vperm.xlu0 %1051, %v994
      %v1053 = vpop.permute.xlu0 %1052
      %1056 = vset.pattern.permute.xlu0 0
      %1057 = vperm.xlu0 %1056, %v995
      %v1058 = vpop.permute.xlu0 %1057
      %1061 = vset.pattern.permute.xlu0 0
      %1062 = vperm.xlu0 %1061, %v996
      %v1063 = vpop.permute.xlu0 %1062
      %1066 = vset.pattern.permute.xlu0 0
      %1067 = vperm.xlu0 %1066, %v997
      %v1068 = vpop.permute.xlu0 %1067
      %1071 = vset.pattern.permute.xlu0 0
      %1072 = vperm.xlu0 %1071, %v998
      %v1073 = vpop.permute.xlu0 %1072
      %1076 = vset.pattern.permute.xlu0 0
      %1077 = vperm.xlu0 %1076, %v999
      %v1078 = vpop.permute.xlu0 %1077
      %v1080 = vmul.f32 %v111, %v1003
      %v1081 = vmul.f32 %v112, %v1008
      %v1082 = vmul.f32 %v113, %v1013
      %v1083 = vmul.f32 %v114, %v1018
      %v1084 = vmul.f32 %v115, %v1023
      %v1085 = vmul.f32 %v116, %v1028
      %v1086 = vmul.f32 %v117, %v1033
      %v1087 = vmul.f32 %v118, %v1038
      %v1088 = vmul.f32 %v119, %v1043
      %v1089 = vmul.f32 %v120, %v1048
      %v1090 = vmul.f32 %v121, %v1053
      %v1091 = vmul.f32 %v122, %v1058
      %v1092 = vmul.f32 %v123, %v1063
      %v1093 = vmul.f32 %v124, %v1068
      %v1094 = vmul.f32 %v125, %v1073
      %v1095 = vmul.f32 %v110, %v1078
      %v1096 = vpack.c.bf16 %v1081, %v1080
      %v1097 = vpack.c.bf16 %v1083, %v1082
      %v1098 = vpack.c.bf16 %v1085, %v1084
      %v1099 = vpack.c.bf16 %v1087, %v1086
      %v1100 = vpack.c.bf16 %v1089, %v1088
      %v1101 = vpack.c.bf16 %v1091, %v1090
      %v1102 = vpack.c.bf16 %v1093, %v1092
      %v1103 = vpack.c.bf16 %v1095, %v1094
      %1104 = vst [vmem:[#allocation2 + $0x38] sm:$0xff] %v1096
      %1105 = vst [vmem:[#allocation2 + $0x80] sm:$0xff] %v1097
      %1106 = vst [vmem:[#allocation2 + $0xc8] sm:$0xff] %v1098
      %1107 = vst [vmem:[#allocation2 + $0x110] sm:$0xff] %v1099
      %1108 = vst [vmem:[#allocation2 + $0x158] sm:$0xff] %v1100
      %1109 = vst [vmem:[#allocation2 + $0x1a0] sm:$0xff] %v1101
      %1110 = vst [vmem:[#allocation2 + $0x1e8] sm:$0xff] %v1102
      %1111 = vst [vmem:[#allocation2 + $0x230] sm:$0xff] %v1103
      %s1112 = scalar_lea.vmem %s5, 1024
      %v1113 = vld [vmem:[%s1112] sm:$0xff]
      %v1114 = vld [vmem:[%s1112 + $0x8] sm:$0xff]
      %v1115 = vld [vmem:[%s1112 + $0x10] sm:$0xff]
      %v1116 = vld [vmem:[%s1112 + $0x18] sm:$0xff]
      %v1117 = vld [vmem:[%s1112 + $0x20] sm:$0xff]
      %v1118 = vld [vmem:[%s1112 + $0x28] sm:$0xff]
      %v1119 = vld [vmem:[%s1112 + $0x30] sm:$0xff]
      %v1120 = vld [vmem:[%s1112 + $0x38] sm:$0xff]
      %v1121 = vld [vmem:[%s1112 + $0x40] sm:$0xff]
      %v1122 = vld [vmem:[%s1112 + $0x48] sm:$0xff]
      %v1123 = vld [vmem:[%s1112 + $0x50] sm:$0xff]
      %v1124 = vld [vmem:[%s1112 + $0x58] sm:$0xff]
      %v1125 = vld [vmem:[%s1112 + $0x60] sm:$0xff]
      %v1126 = vld [vmem:[%s1112 + $0x68] sm:$0xff]
      %v1127 = vld [vmem:[%s1112 + $0x70] sm:$0xff]
      %v1128 = vld [vmem:[%s1112 + $0x78] sm:$0xff]
      %1130 = vset.pattern.permute.xlu0 0
      %1131 = vperm.xlu0 %1130, %v1113
      %v1132 = vpop.permute.xlu0 %1131
      %1135 = vset.pattern.permute.xlu0 0
      %1136 = vperm.xlu0 %1135, %v1114
      %v1137 = vpop.permute.xlu0 %1136
      %1140 = vset.pattern.permute.xlu0 0
      %1141 = vperm.xlu0 %1140, %v1115
      %v1142 = vpop.permute.xlu0 %1141
      %1145 = vset.pattern.permute.xlu0 0
      %1146 = vperm.xlu0 %1145, %v1116
      %v1147 = vpop.permute.xlu0 %1146
      %1150 = vset.pattern.permute.xlu0 0
      %1151 = vperm.xlu0 %1150, %v1117
      %v1152 = vpop.permute.xlu0 %1151
      %1155 = vset.pattern.permute.xlu0 0
      %1156 = vperm.xlu0 %1155, %v1118
      %v1157 = vpop.permute.xlu0 %1156
      %1160 = vset.pattern.permute.xlu0 0
      %1161 = vperm.xlu0 %1160, %v1119
      %v1162 = vpop.permute.xlu0 %1161
      %1165 = vset.pattern.permute.xlu0 0
      %1166 = vperm.xlu0 %1165, %v1120
      %v1167 = vpop.permute.xlu0 %1166
      %1170 = vset.pattern.permute.xlu0 0
      %1171 = vperm.xlu0 %1170, %v1121
      %v1172 = vpop.permute.xlu0 %1171
      %1175 = vset.pattern.permute.xlu0 0
      %1176 = vperm.xlu0 %1175, %v1122
      %v1177 = vpop.permute.xlu0 %1176
      %1180 = vset.pattern.permute.xlu0 0
      %1181 = vperm.xlu0 %1180, %v1123
      %v1182 = vpop.permute.xlu0 %1181
      %1185 = vset.pattern.permute.xlu0 0
      %1186 = vperm.xlu0 %1185, %v1124
      %v1187 = vpop.permute.xlu0 %1186
      %1190 = vset.pattern.permute.xlu0 0
      %1191 = vperm.xlu0 %1190, %v1125
      %v1192 = vpop.permute.xlu0 %1191
      %1195 = vset.pattern.permute.xlu0 0
      %1196 = vperm.xlu0 %1195, %v1126
      %v1197 = vpop.permute.xlu0 %1196
      %1200 = vset.pattern.permute.xlu0 0
      %1201 = vperm.xlu0 %1200, %v1127
      %v1202 = vpop.permute.xlu0 %1201
      %1205 = vset.pattern.permute.xlu0 0
      %1206 = vperm.xlu0 %1205, %v1128
      %v1207 = vpop.permute.xlu0 %1206
      %v1209 = vmul.f32 %v448, %v1132
      %v1210 = vmul.f32 %v447, %v1137
      %v1211 = vmul.f32 %v446, %v1142
      %v1212 = vmul.f32 %v445, %v1147
      %v1213 = vmul.f32 %v444, %v1152
      %v1214 = vmul.f32 %v443, %v1157
      %v1215 = vmul.f32 %v442, %v1162
      %v1216 = vmul.f32 %v441, %v1167
      %v1217 = vmul.f32 %v440, %v1172
      %v1218 = vmul.f32 %v439, %v1177
      %v1219 = vmul.f32 %v438, %v1182
      %v1220 = vmul.f32 %v437, %v1187
      %v1221 = vmul.f32 %v436, %v1192
      %v1222 = vmul.f32 %v435, %v1197
      %v1223 = vmul.f32 %v450, %v1202
      %v1224 = vmul.f32 %v449, %v1207
      %v1225 = vpack.c.bf16 %v1210, %v1209
      %v1226 = vpack.c.bf16 %v1212, %v1211
      %v1227 = vpack.c.bf16 %v1214, %v1213
      %v1228 = vpack.c.bf16 %v1216, %v1215
      %v1229 = vpack.c.bf16 %v1218, %v1217
      %v1230 = vpack.c.bf16 %v1220, %v1219
      %v1231 = vpack.c.bf16 %v1222, %v1221
      %v1232 = vpack.c.bf16 %v1224, %v1223
      %1233 = vst [vmem:[#allocation2 + $0x40] sm:$0xff] %v1225
      %1234 = vst [vmem:[#allocation2 + $0x88] sm:$0xff] %v1226
      %1235 = vst [vmem:[#allocation2 + $0xd0] sm:$0xff] %v1227
      %1236 = vst [vmem:[#allocation2 + $0x118] sm:$0xff] %v1228
      %1237 = vst [vmem:[#allocation2 + $0x160] sm:$0xff] %v1229
      %1238 = vst [vmem:[#allocation2 + $0x1a8] sm:$0xff] %v1230
      %1239 = vst [vmem:[#allocation2 + $0x1f0] sm:$0xff] %v1231
      %1240 = vst [vmem:[#allocation2 + $0x238] sm:$0xff] %v1232
      %1241 = vst [vmem:[#allocation3] sm:$0xff] 0.0
      %1242 = vst [vmem:[#allocation3 + $0x8] sm:$0xff] 0.0
      %1243 = vst [vmem:[#allocation3 + $0x10] sm:$0xff] 0.0
      %1244 = vst [vmem:[#allocation3 + $0x18] sm:$0xff] 0.0
      %1245 = vst [vmem:[#allocation3 + $0x20] sm:$0xff] 0.0
      %1246 = vst [vmem:[#allocation3 + $0x28] sm:$0xff] 0.0
      %1247 = vst [vmem:[#allocation3 + $0x30] sm:$0xff] 0.0
      %1248 = vst [vmem:[#allocation3 + $0x38] sm:$0xff] 0.0
      %1249 = vst [vmem:[#allocation3 + $0x40] sm:$0xff] 0.0
      %1250 = vst [vmem:[#allocation3 + $0x48] sm:$0xff] 0.0
      %1251 = vst [vmem:[#allocation3 + $0x50] sm:$0xff] 0.0
      %1252 = vst [vmem:[#allocation3 + $0x58] sm:$0xff] 0.0
      %1253 = vst [vmem:[#allocation3 + $0x60] sm:$0xff] 0.0
      %1254 = vst [vmem:[#allocation3 + $0x68] sm:$0xff] 0.0
      %1255 = vst [vmem:[#allocation3 + $0x70] sm:$0xff] 0.0
      %1256 = vst [vmem:[#allocation3 + $0x78] sm:$0xff] 0.0
    $region45: #{_lambda_.7} parent=1 // pred_fallthru
      _
    %v1257 = vmul.f32 %v40, %v40
    %v1258 = vld [vmem:[%s2] sm:$0xff]
    %v1259 = vld [vmem:[%s2 + $0x8] sm:$0xff]
    %v1260 = vld [vmem:[%s2 + $0x10] sm:$0xff]
    %v1261 = vld [vmem:[%s2 + $0x18] sm:$0xff]
    %v1262 = vld [vmem:[%s2 + $0x20] sm:$0xff]
    %v1263 = vld [vmem:[%s2 + $0x28] sm:$0xff]
    %v1264 = vld [vmem:[%s2 + $0x30] sm:$0xff]
    %v1265 = vld [vmem:[%s2 + $0x38] sm:$0xff]
    %v1266 = vld [vmem:[%s2 + $0x40] sm:$0xff]
    %v1267 = vld [vmem:[%s2 + $0x48] sm:$0xff]
    %v1268 = vld [vmem:[%s2 + $0x50] sm:$0xff]
    %v1269 = vld [vmem:[%s2 + $0x58] sm:$0xff]
    %v1270 = vld [vmem:[%s2 + $0x60] sm:$0xff]
    %v1271 = vld [vmem:[%s2 + $0x68] sm:$0xff]
    %v1272 = vld [vmem:[%s2 + $0x70] sm:$0xff]
    %v1273 = vld [vmem:[%s2 + $0x78] sm:$0xff]
    %1274 = vmatprep.subr.mxu0 0.0
    %1275 = vmatpush1.msra.mxu0 %v1258
    %1276 = vmatprep.subr.mxu0 0.0
    %1277 = vmatpush1.msra.mxu0 %v1259
    %1278 = vmatprep.subr.mxu0 0.0
    %1279 = vmatpush1.msra.mxu0 %v1260
    %1280 = vmatprep.subr.mxu0 0.0
    %1281 = vmatpush1.msra.mxu0 %v1261
    %1282 = vmatprep.subr.mxu0 0.0
    %1283 = vmatpush1.msra.mxu0 %v1262
    %1284 = vmatprep.subr.mxu0 0.0
    %1285 = vmatpush1.msra.mxu0 %v1263
    %1286 = vmatprep.subr.mxu0 0.0
    %1287 = vmatpush1.msra.mxu0 %v1264
    %1288 = vmatprep.subr.mxu0 0.0
    %1289 = vmatpush1.msra.mxu0 %v1265
    %1290 = vmatprep.subr.mxu0 0.0
    %1291 = vmatpush1.msra.mxu0 %v1266
    %1292 = vmatprep.subr.mxu0 0.0
    %1293 = vmatpush1.msra.mxu0 %v1267
    %1294 = vmatprep.subr.mxu0 0.0
    %1295 = vmatpush1.msra.mxu0 %v1268
    %1296 = vmatprep.subr.mxu0 0.0
    %1297 = vmatpush1.msra.mxu0 %v1269
    %1298 = vmatprep.subr.mxu0 0.0
    %1299 = vmatpush1.msra.mxu0 %v1270
    %1300 = vmatprep.subr.mxu0 0.0
    %1301 = vmatpush1.msra.mxu0 %v1271
    %1302 = vmatprep.subr.mxu0 0.0
    %1303 = vmatpush1.msra.mxu0 %v1272
    %1304 = vmatprep.subr.mxu0 0.0
    %1305 = vmatpush1.msra.mxu0 %v1273
    %1306 = vmatprep.subr.mxu0 0.0
    %1307 = vmatpush1.msra.mxu0 0.0
    %1308 = vmatprep.subr.mxu0 0.0
    %1309 = vmatpush1.msra.mxu0 0.0
    %1310 = vmatprep.subr.mxu0 0.0
    %1311 = vmatpush1.msra.mxu0 0.0
    %1312 = vmatprep.subr.mxu0 0.0
    %1313 = vmatpush1.msra.mxu0 0.0
    %1314 = vmatprep.subr.mxu0 0.0
    %1315 = vmatpush1.msra.mxu0 0.0
    %1316 = vmatprep.subr.mxu0 0.0
    %1317 = vmatpush1.msra.mxu0 0.0
    %1318 = vmatprep.subr.mxu0 0.0
    %1319 = vmatpush1.msra.mxu0 0.0
    %1320 = vmatprep.subr.mxu0 0.0
    %1321 = vmatpush1.msra.mxu0 0.0
    %1322 = vmatprep.subr.mxu0 0.0
    %1323 = vmatpush1.msra.mxu0 0.0
    %1324 = vmatprep.subr.mxu0 0.0
    %1325 = vmatpush1.msra.mxu0 0.0
    %1326 = vmatprep.subr.mxu0 0.0
    %1327 = vmatpush1.msra.mxu0 0.0
    %1328 = vmatprep.subr.mxu0 0.0
    %1329 = vmatpush1.msra.mxu0 0.0
    %1330 = vmatprep.subr.mxu0 0.0
    %1331 = vmatpush1.msra.mxu0 0.0
    %1332 = vmatprep.subr.mxu0 0.0
    %1333 = vmatpush1.msra.mxu0 0.0
    %1334 = vmatprep.subr.mxu0 0.0
    %1335 = vmatpush1.msra.mxu0 0.0
    %1336 = vmatprep.subr.mxu0 0.0
    %1337 = vmatpush1.msra.mxu0 0.0
    %1338 = vmatprep.mubr.f32.mxu0 0.0
    %1339 = vmatmul.mubr.f32.gmra.mrb[0].mxu0 %v1257
    %v1340 = vpop.f32.mrb[0].mxu0
    %v1341 = vadd.f32 1e-08, %v1340
    %v1342 = vpop.f32.mrb[0].mxu0
    %1343 = vdwg.mxu0
    %v1344 = vrsqrt.pop %v1341
    %v1345 = vld [vmem:[#allocation2] sm:$0xff]
    %v1346 = vld [vmem:[#allocation2 + $0x8] sm:$0xff]
    %v1347 = vld [vmem:[#allocation2 + $0x10] sm:$0xff]
    %v1348 = vld [vmem:[#allocation2 + $0x18] sm:$0xff]
    %v1349 = vld [vmem:[#allocation2 + $0x20] sm:$0xff]
    %v1350 = vld [vmem:[#allocation2 + $0x28] sm:$0xff]
    %v1351 = vld [vmem:[#allocation2 + $0x30] sm:$0xff]
    %v1352 = vld [vmem:[#allocation2 + $0x38] sm:$0xff]
    %v1353 = vld [vmem:[#allocation2 + $0x40] sm:$0xff]
    %v1354 = vld [vmem:[#allocation2 + $0x48] sm:$0xff]
    %v1355 = vld [vmem:[#allocation2 + $0x50] sm:$0xff]
    %v1356 = vld [vmem:[#allocation2 + $0x58] sm:$0xff]
    %v1357 = vld [vmem:[#allocation2 + $0x60] sm:$0xff]
    %v1358 = vld [vmem:[#allocation2 + $0x68] sm:$0xff]
    %v1359 = vld [vmem:[#allocation2 + $0x70] sm:$0xff]
    %v1360 = vld [vmem:[#allocation2 + $0x78] sm:$0xff]
    %v1361 = vld [vmem:[#allocation2 + $0x80] sm:$0xff]
    %v1362 = vld [vmem:[#allocation2 + $0x88] sm:$0xff]
    %v1363 = vld [vmem:[#allocation2 + $0x90] sm:$0xff]
    %v1364 = vld [vmem:[#allocation2 + $0x98] sm:$0xff]
    %v1365 = vld [vmem:[#allocation2 + $0xa0] sm:$0xff]
    %v1366 = vld [vmem:[#allocation2 + $0xa8] sm:$0xff]
    %v1367 = vld [vmem:[#allocation2 + $0xb0] sm:$0xff]
    %v1368 = vld [vmem:[#allocation2 + $0xb8] sm:$0xff]
    %v1369 = vld [vmem:[#allocation2 + $0xc0] sm:$0xff]
    %v1370 = vld [vmem:[#allocation2 + $0xc8] sm:$0xff]
    %v1371 = vld [vmem:[#allocation2 + $0xd0] sm:$0xff]
    %v1372 = vld [vmem:[#allocation2 + $0xd8] sm:$0xff]
    %v1373 = vld [vmem:[#allocation2 + $0xe0] sm:$0xff]
    %v1374 = vld [vmem:[#allocation2 + $0xe8] sm:$0xff]
    %v1375 = vld [vmem:[#allocation2 + $0xf0] sm:$0xff]
    %v1376 = vld [vmem:[#allocation2 + $0xf8] sm:$0xff]
    %v1377 = vld [vmem:[#allocation2 + $0x100] sm:$0xff]
    %v1378 = vld [vmem:[#allocation2 + $0x108] sm:$0xff]
    %v1379 = vld [vmem:[#allocation2 + $0x110] sm:$0xff]
    %v1380 = vld [vmem:[#allocation2 + $0x118] sm:$0xff]
    %v1381 = vld [vmem:[#allocation2 + $0x120] sm:$0xff]
    %v1382 = vld [vmem:[#allocation2 + $0x128] sm:$0xff]
    %v1383 = vld [vmem:[#allocation2 + $0x130] sm:$0xff]
    %v1384 = vld [vmem:[#allocation2 + $0x138] sm:$0xff]
    %v1385 = vld [vmem:[#allocation2 + $0x140] sm:$0xff]
    %v1386 = vld [vmem:[#allocation2 + $0x148] sm:$0xff]
    %v1387 = vld [vmem:[#allocation2 + $0x150] sm:$0xff]
    %v1388 = vld [vmem:[#allocation2 + $0x158] sm:$0xff]
    %v1389 = vld [vmem:[#allocation2 + $0x160] sm:$0xff]
    %v1390 = vld [vmem:[#allocation2 + $0x168] sm:$0xff]
    %v1391 = vld [vmem:[#allocation2 + $0x170] sm:$0xff]
    %v1392 = vld [vmem:[#allocation2 + $0x178] sm:$0xff]
    %v1393 = vld [vmem:[#allocation2 + $0x180] sm:$0xff]
    %v1394 = vld [vmem:[#allocation2 + $0x188] sm:$0xff]
    %v1395 = vld [vmem:[#allocation2 + $0x190] sm:$0xff]
    %v1396 = vld [vmem:[#allocation2 + $0x198] sm:$0xff]
    %v1397 = vld [vmem:[#allocation2 + $0x1a0] sm:$0xff]
    %v1398 = vld [vmem:[#allocation2 + $0x1a8] sm:$0xff]
    %v1399 = vld [vmem:[#allocation2 + $0x1b0] sm:$0xff]
    %v1400 = vld [vmem:[#allocation2 + $0x1b8] sm:$0xff]
    %v1401 = vld [vmem:[#allocation2 + $0x1c0] sm:$0xff]
    %v1402 = vld [vmem:[#allocation2 + $0x1c8] sm:$0xff]
    %v1403 = vld [vmem:[#allocation2 + $0x1d0] sm:$0xff]
    %v1404 = vld [vmem:[#allocation2 + $0x1d8] sm:$0xff]
    %v1405 = vld [vmem:[#allocation2 + $0x1e0] sm:$0xff]
    %v1406 = vld [vmem:[#allocation2 + $0x1e8] sm:$0xff]
    %v1407 = vld [vmem:[#allocation2 + $0x1f0] sm:$0xff]
    %v1408 = vld [vmem:[#allocation2 + $0x1f8] sm:$0xff]
    %v1409 = vld [vmem:[#allocation2 + $0x200] sm:$0xff]
    %v1410 = vld [vmem:[#allocation2 + $0x208] sm:$0xff]
    %v1411 = vld [vmem:[#allocation2 + $0x210] sm:$0xff]
    %v1412 = vld [vmem:[#allocation2 + $0x218] sm:$0xff]
    %v1413 = vld [vmem:[#allocation2 + $0x220] sm:$0xff]
    %v1414 = vld [vmem:[#allocation2 + $0x228] sm:$0xff]
    %v1415 = vld [vmem:[#allocation2 + $0x230] sm:$0xff]
    %v1416 = vld [vmem:[#allocation2 + $0x238] sm:$0xff]
    %v1417 = vld [vmem:[%s1] sm:$0xf]
    %v1418 = vld [vmem:[%s1 + $0x4] sm:$0xf]
    %v1419 = vld [vmem:[%s1 + $0x8] sm:$0xf]
    %v1420 = vld [vmem:[%s1 + $0xc] sm:$0xf]
    %v1421 = vld [vmem:[%s1 + $0x10] sm:$0xf]
    %v1422 = vld [vmem:[%s1 + $0x14] sm:$0xf]
    %v1423 = vld [vmem:[%s1 + $0x18] sm:$0xf]
    %v1424 = vld [vmem:[%s1 + $0x1c] sm:$0xf]
    %v1425 = vld [vmem:[%s1 + $0x20] sm:$0xf]
    %v1426 = vld [vmem:[%s1 + $0x24] sm:$0xf]
    %v1427 = vld [vmem:[%s1 + $0x28] sm:$0xf]
    %v1428 = vld [vmem:[%s1 + $0x2c] sm:$0xf]
    %v1429 = vld [vmem:[%s1 + $0x30] sm:$0xf]
    %v1430 = vld [vmem:[%s1 + $0x34] sm:$0xf]
    %v1431 = vld [vmem:[%s1 + $0x38] sm:$0xf]
    %v1432 = vld [vmem:[%s1 + $0x3c] sm:$0xf]
    %v1433 = vld [vmem:[%s1 + $0x40] sm:$0xf]
    %v1434 = vld [vmem:[%s1 + $0x44] sm:$0xf]
    %v1435 = vld [vmem:[%s1 + $0x48] sm:$0xf]
    %v1436 = vld [vmem:[%s1 + $0x4c] sm:$0xf]
    %v1437 = vld [vmem:[%s1 + $0x50] sm:$0xf]
    %v1438 = vld [vmem:[%s1 + $0x54] sm:$0xf]
    %v1439 = vld [vmem:[%s1 + $0x58] sm:$0xf]
    %v1440 = vld [vmem:[%s1 + $0x5c] sm:$0xf]
    %v1441 = vld [vmem:[%s1 + $0x60] sm:$0xf]
    %v1442 = vld [vmem:[%s1 + $0x64] sm:$0xf]
    %v1443 = vld [vmem:[%s1 + $0x68] sm:$0xf]
    %v1444 = vld [vmem:[%s1 + $0x6c] sm:$0xf]
    %v1445 = vld [vmem:[%s1 + $0x70] sm:$0xf]
    %v1446 = vld [vmem:[%s1 + $0x74] sm:$0xf]
    %v1447 = vld [vmem:[%s1 + $0x78] sm:$0xf]
    %v1448 = vld [vmem:[%s1 + $0x7c] sm:$0xf]
    %v1449 = vld [vmem:[%s1 + $0x80] sm:$0xf]
    %v1450 = vld [vmem:[%s1 + $0x84] sm:$0xf]
    %v1451 = vld [vmem:[%s1 + $0x88] sm:$0xf]
    %v1452 = vld [vmem:[%s1 + $0x8c] sm:$0xf]
    %v1453 = vld [vmem:[%s1 + $0x90] sm:$0xf]
    %v1454 = vld [vmem:[%s1 + $0x94] sm:$0xf]
    %v1455 = vld [vmem:[%s1 + $0x98] sm:$0xf]
    %v1456 = vld [vmem:[%s1 + $0x9c] sm:$0xf]
    %v1457 = vld [vmem:[%s1 + $0xa0] sm:$0xf]
    %v1458 = vld [vmem:[%s1 + $0xa4] sm:$0xf]
    %v1459 = vld [vmem:[%s1 + $0xa8] sm:$0xf]
    %v1460 = vld [vmem:[%s1 + $0xac] sm:$0xf]
    %v1461 = vld [vmem:[%s1 + $0xb0] sm:$0xf]
    %v1462 = vld [vmem:[%s1 + $0xb4] sm:$0xf]
    %v1463 = vld [vmem:[%s1 + $0xb8] sm:$0xf]
    %v1464 = vld [vmem:[%s1 + $0xbc] sm:$0xf]
    %v1465 = vld [vmem:[%s1 + $0xc0] sm:$0xf]
    %v1466 = vld [vmem:[%s1 + $0xc4] sm:$0xf]
    %v1467 = vld [vmem:[%s1 + $0xc8] sm:$0xf]
    %v1468 = vld [vmem:[%s1 + $0xcc] sm:$0xf]
    %v1469 = vld [vmem:[%s1 + $0xd0] sm:$0xf]
    %v1470 = vld [vmem:[%s1 + $0xd4] sm:$0xf]
    %v1471 = vld [vmem:[%s1 + $0xd8] sm:$0xf]
    %v1472 = vld [vmem:[%s1 + $0xdc] sm:$0xf]
    %v1473 = vld [vmem:[%s1 + $0xe0] sm:$0xf]
    %v1474 = vld [vmem:[%s1 + $0xe4] sm:$0xf]
    %v1475 = vld [vmem:[%s1 + $0xe8] sm:$0xf]
    %v1476 = vld [vmem:[%s1 + $0xec] sm:$0xf]
    %v1477 = vld [vmem:[%s1 + $0xf0] sm:$0xf]
    %v1478 = vld [vmem:[%s1 + $0xf4] sm:$0xf]
    %v1479 = vld [vmem:[%s1 + $0xf8] sm:$0xf]
    %v1480 = vld [vmem:[%s1 + $0xfc] sm:$0xf]
    %v1481 = vld [vmem:[%s1 + $0x100] sm:$0xf]
    %v1482 = vld [vmem:[%s1 + $0x104] sm:$0xf]
    %v1483 = vld [vmem:[%s1 + $0x108] sm:$0xf]
    %v1484 = vld [vmem:[%s1 + $0x10c] sm:$0xf]
    %v1485 = vld [vmem:[%s1 + $0x110] sm:$0xf]
    %v1486 = vld [vmem:[%s1 + $0x114] sm:$0xf]
    %v1487 = vld [vmem:[%s1 + $0x118] sm:$0xf]
    %v1488 = vld [vmem:[%s1 + $0x11c] sm:$0xf]
    %v1489 = vld [vmem:[%s1 + $0x120] sm:$0xf]
    %v1490 = vld [vmem:[%s1 + $0x124] sm:$0xf]
    %v1491 = vld [vmem:[%s1 + $0x128] sm:$0xf]
    %v1492 = vld [vmem:[%s1 + $0x12c] sm:$0xf]
    %v1493 = vld [vmem:[%s1 + $0x130] sm:$0xf]
    %v1494 = vld [vmem:[%s1 + $0x134] sm:$0xf]
    %v1495 = vld [vmem:[%s1 + $0x138] sm:$0xf]
    %v1496 = vld [vmem:[%s1 + $0x13c] sm:$0xf]
    %v1497 = vld [vmem:[%s1 + $0x140] sm:$0xf]
    %v1498 = vld [vmem:[%s1 + $0x144] sm:$0xf]
    %v1499 = vld [vmem:[%s1 + $0x148] sm:$0xf]
    %v1500 = vld [vmem:[%s1 + $0x14c] sm:$0xf]
    %v1501 = vld [vmem:[%s1 + $0x150] sm:$0xf]
    %v1502 = vld [vmem:[%s1 + $0x154] sm:$0xf]
    %v1503 = vld [vmem:[%s1 + $0x158] sm:$0xf]
    %v1504 = vld [vmem:[%s1 + $0x15c] sm:$0xf]
    %v1505 = vld [vmem:[%s1 + $0x160] sm:$0xf]
    %v1506 = vld [vmem:[%s1 + $0x164] sm:$0xf]
    %v1507 = vld [vmem:[%s1 + $0x168] sm:$0xf]
    %v1508 = vld [vmem:[%s1 + $0x16c] sm:$0xf]
    %v1509 = vld [vmem:[%s1 + $0x170] sm:$0xf]
    %v1510 = vld [vmem:[%s1 + $0x174] sm:$0xf]
    %v1511 = vld [vmem:[%s1 + $0x178] sm:$0xf]
    %v1512 = vld [vmem:[%s1 + $0x17c] sm:$0xf]
    %v1513 = vld [vmem:[%s1 + $0x180] sm:$0xf]
    %v1514 = vld [vmem:[%s1 + $0x184] sm:$0xf]
    %v1515 = vld [vmem:[%s1 + $0x188] sm:$0xf]
    %v1516 = vld [vmem:[%s1 + $0x18c] sm:$0xf]
    %v1517 = vld [vmem:[%s1 + $0x190] sm:$0xf]
    %v1518 = vld [vmem:[%s1 + $0x194] sm:$0xf]
    %v1519 = vld [vmem:[%s1 + $0x198] sm:$0xf]
    %v1520 = vld [vmem:[%s1 + $0x19c] sm:$0xf]
    %v1521 = vld [vmem:[%s1 + $0x1a0] sm:$0xf]
    %v1522 = vld [vmem:[%s1 + $0x1a4] sm:$0xf]
    %v1523 = vld [vmem:[%s1 + $0x1a8] sm:$0xf]
    %v1524 = vld [vmem:[%s1 + $0x1ac] sm:$0xf]
    %v1525 = vld [vmem:[%s1 + $0x1b0] sm:$0xf]
    %v1526 = vld [vmem:[%s1 + $0x1b4] sm:$0xf]
    %v1527 = vld [vmem:[%s1 + $0x1b8] sm:$0xf]
    %v1528 = vld [vmem:[%s1 + $0x1bc] sm:$0xf]
    %v1529 = vld [vmem:[%s1 + $0x1c0] sm:$0xf]
    %v1530 = vld [vmem:[%s1 + $0x1c4] sm:$0xf]
    %v1531 = vld [vmem:[%s1 + $0x1c8] sm:$0xf]
    %v1532 = vld [vmem:[%s1 + $0x1cc] sm:$0xf]
    %v1533 = vld [vmem:[%s1 + $0x1d0] sm:$0xf]
    %v1534 = vld [vmem:[%s1 + $0x1d4] sm:$0xf]
    %v1535 = vld [vmem:[%s1 + $0x1d8] sm:$0xf]
    %v1536 = vld [vmem:[%s1 + $0x1dc] sm:$0xf]
    %v1537 = vld [vmem:[%s1 + $0x1e0] sm:$0xf]
    %v1538 = vld [vmem:[%s1 + $0x1e4] sm:$0xf]
    %v1539 = vld [vmem:[%s1 + $0x1e8] sm:$0xf]
    %v1540 = vld [vmem:[%s1 + $0x1ec] sm:$0xf]
    %v1541 = vld [vmem:[%s1 + $0x1f0] sm:$0xf]
    %v1542 = vld [vmem:[%s1 + $0x1f4] sm:$0xf]
    %v1543 = vld [vmem:[%s1 + $0x1f8] sm:$0xf]
    %v1544 = vld [vmem:[%s1 + $0x1fc] sm:$0xf]
    %v1545 = vld [vmem:[%s1 + $0x200] sm:$0xf]
    %v1546 = vld [vmem:[%s1 + $0x204] sm:$0xf]
    %v1547 = vld [vmem:[%s1 + $0x208] sm:$0xf]
    %v1548 = vld [vmem:[%s1 + $0x20c] sm:$0xf]
    %v1549 = vld [vmem:[%s1 + $0x210] sm:$0xf]
    %v1550 = vld [vmem:[%s1 + $0x214] sm:$0xf]
    %v1551 = vld [vmem:[%s1 + $0x218] sm:$0xf]
    %v1552 = vld [vmem:[%s1 + $0x21c] sm:$0xf]
    %v1553 = vld [vmem:[%s1 + $0x220] sm:$0xf]
    %v1554 = vld [vmem:[%s1 + $0x224] sm:$0xf]
    %v1555 = vld [vmem:[%s1 + $0x228] sm:$0xf]
    %v1556 = vld [vmem:[%s1 + $0x22c] sm:$0xf]
    %v1557 = vld [vmem:[%s1 + $0x230] sm:$0xf]
    %v1558 = vld [vmem:[%s1 + $0x234] sm:$0xf]
    %v1559 = vld [vmem:[%s1 + $0x238] sm:$0xf]
    %v1560 = vld [vmem:[%s1 + $0x23c] sm:$0xf]
    %v1705 = vunpack.c.l.b16 %v1417
    %v1706 = vunpack.c.l.b16 %v1418
    %v1707 = vunpack.c.l.b16 %v1419
    %v1708 = vunpack.c.l.b16 %v1420
    %v1709 = vunpack.c.l.b16 %v1421
    %v1710 = vunpack.c.l.b16 %v1422
    %v1711 = vunpack.c.l.b16 %v1423
    %v1712 = vunpack.c.l.b16 %v1424
    %v1713 = vunpack.c.l.b16 %v1425
    %v1714 = vunpack.c.l.b16 %v1426
    %v1715 = vunpack.c.l.b16 %v1427
    %v1716 = vunpack.c.l.b16 %v1428
    %v1717 = vunpack.c.l.b16 %v1429
    %v1718 = vunpack.c.l.b16 %v1430
    %v1719 = vunpack.c.l.b16 %v1431
    %v1720 = vunpack.c.l.b16 %v1432
    %v1721 = vunpack.c.l.b16 %v1433
    %v1722 = vunpack.c.l.b16 %v1434
    %v1723 = vunpack.c.l.b16 %v1435
    %v1724 = vunpack.c.l.b16 %v1436
    %v1725 = vunpack.c.l.b16 %v1437
    %v1726 = vunpack.c.l.b16 %v1438
    %v1727 = vunpack.c.l.b16 %v1439
    %v1728 = vunpack.c.l.b16 %v1440
    %v1729 = vunpack.c.l.b16 %v1441
    %v1730 = vunpack.c.l.b16 %v1442
    %v1731 = vunpack.c.l.b16 %v1443
    %v1732 = vunpack.c.l.b16 %v1444
    %v1733 = vunpack.c.l.b16 %v1445
    %v1734 = vunpack.c.l.b16 %v1446
    %v1735 = vunpack.c.l.b16 %v1447
    %v1736 = vunpack.c.l.b16 %v1448
    %v1737 = vunpack.c.l.b16 %v1449
    %v1738 = vunpack.c.l.b16 %v1450
    %v1739 = vunpack.c.l.b16 %v1451
    %v1740 = vunpack.c.l.b16 %v1452
    %v1741 = vunpack.c.l.b16 %v1453
    %v1742 = vunpack.c.l.b16 %v1454
    %v1743 = vunpack.c.l.b16 %v1455
    %v1744 = vunpack.c.l.b16 %v1456
    %v1745 = vunpack.c.l.b16 %v1457
    %v1746 = vunpack.c.l.b16 %v1458
    %v1747 = vunpack.c.l.b16 %v1459
    %v1748 = vunpack.c.l.b16 %v1460
    %v1749 = vunpack.c.l.b16 %v1461
    %v1750 = vunpack.c.l.b16 %v1462
    %v1751 = vunpack.c.l.b16 %v1463
    %v1752 = vunpack.c.l.b16 %v1464
    %v1753 = vunpack.c.l.b16 %v1465
    %v1754 = vunpack.c.l.b16 %v1466
    %v1755 = vunpack.c.l.b16 %v1467
    %v1756 = vunpack.c.l.b16 %v1468
    %v1757 = vunpack.c.l.b16 %v1469
    %v1758 = vunpack.c.l.b16 %v1470
    %v1759 = vunpack.c.l.b16 %v1471
    %v1760 = vunpack.c.l.b16 %v1472
    %v1761 = vunpack.c.l.b16 %v1473
    %v1762 = vunpack.c.l.b16 %v1474
    %v1763 = vunpack.c.l.b16 %v1475
    %v1764 = vunpack.c.l.b16 %v1476
    %v1765 = vunpack.c.l.b16 %v1477
    %v1766 = vunpack.c.l.b16 %v1478
    %v1767 = vunpack.c.l.b16 %v1479
    %v1768 = vunpack.c.l.b16 %v1480
    %v1769 = vunpack.c.l.b16 %v1481
    %v1770 = vunpack.c.l.b16 %v1482
    %v1771 = vunpack.c.l.b16 %v1483
    %v1772 = vunpack.c.l.b16 %v1484
    %v1773 = vunpack.c.l.b16 %v1485
    %v1774 = vunpack.c.l.b16 %v1486
    %v1775 = vunpack.c.l.b16 %v1487
    %v1776 = vunpack.c.l.b16 %v1488
    %v1777 = vunpack.c.l.b16 %v1489
    %v1778 = vunpack.c.l.b16 %v1490
    %v1779 = vunpack.c.l.b16 %v1491
    %v1780 = vunpack.c.l.b16 %v1492
    %v1781 = vunpack.c.l.b16 %v1493
    %v1782 = vunpack.c.l.b16 %v1494
    %v1783 = vunpack.c.l.b16 %v1495
    %v1784 = vunpack.c.l.b16 %v1496
    %v1785 = vunpack.c.l.b16 %v1497
    %v1786 = vunpack.c.l.b16 %v1498
    %v1787 = vunpack.c.l.b16 %v1499
    %v1788 = vunpack.c.l.b16 %v1500
    %v1789 = vunpack.c.l.b16 %v1501
    %v1790 = vunpack.c.l.b16 %v1502
    %v1791 = vunpack.c.l.b16 %v1503
    %v1792 = vunpack.c.l.b16 %v1504
    %v1793 = vunpack.c.l.b16 %v1505
    %v1794 = vunpack.c.l.b16 %v1506
    %v1795 = vunpack.c.l.b16 %v1507
    %v1796 = vunpack.c.l.b16 %v1508
    %v1797 = vunpack.c.l.b16 %v1509
    %v1798 = vunpack.c.l.b16 %v1510
    %v1799 = vunpack.c.l.b16 %v1511
    %v1800 = vunpack.c.l.b16 %v1512
    %v1801 = vunpack.c.l.b16 %v1513
    %v1802 = vunpack.c.l.b16 %v1514
    %v1803 = vunpack.c.l.b16 %v1515
    %v1804 = vunpack.c.l.b16 %v1516
    %v1805 = vunpack.c.l.b16 %v1517
    %v1806 = vunpack.c.l.b16 %v1518
    %v1807 = vunpack.c.l.b16 %v1519
    %v1808 = vunpack.c.l.b16 %v1520
    %v1809 = vunpack.c.l.b16 %v1521
    %v1810 = vunpack.c.l.b16 %v1522
    %v1811 = vunpack.c.l.b16 %v1523
    %v1812 = vunpack.c.l.b16 %v1524
    %v1813 = vunpack.c.l.b16 %v1525
    %v1814 = vunpack.c.l.b16 %v1526
    %v1815 = vunpack.c.l.b16 %v1527
    %v1816 = vunpack.c.l.b16 %v1528
    %v1817 = vunpack.c.l.b16 %v1529
    %v1818 = vunpack.c.l.b16 %v1530
    %v1819 = vunpack.c.l.b16 %v1531
    %v1820 = vunpack.c.l.b16 %v1532
    %v1821 = vunpack.c.l.b16 %v1533
    %v1822 = vunpack.c.l.b16 %v1534
    %v1823 = vunpack.c.l.b16 %v1535
    %v1824 = vunpack.c.l.b16 %v1536
    %v1825 = vunpack.c.l.b16 %v1537
    %v1826 = vunpack.c.l.b16 %v1538
    %v1827 = vunpack.c.l.b16 %v1539
    %v1828 = vunpack.c.l.b16 %v1540
    %v1829 = vunpack.c.l.b16 %v1541
    %v1830 = vunpack.c.l.b16 %v1542
    %v1831 = vunpack.c.l.b16 %v1543
    %v1832 = vunpack.c.l.b16 %v1544
    %v1833 = vunpack.c.l.b16 %v1545
    %v1834 = vunpack.c.l.b16 %v1546
    %v1835 = vunpack.c.l.b16 %v1547
    %v1836 = vunpack.c.l.b16 %v1548
    %v1837 = vunpack.c.l.b16 %v1549
    %v1838 = vunpack.c.l.b16 %v1550
    %v1839 = vunpack.c.l.b16 %v1551
    %v1840 = vunpack.c.l.b16 %v1552
    %v1841 = vunpack.c.l.b16 %v1553
    %v1842 = vunpack.c.l.b16 %v1554
    %v1843 = vunpack.c.l.b16 %v1555
    %v1844 = vunpack.c.l.b16 %v1556
    %v1845 = vunpack.c.l.b16 %v1557
    %v1846 = vunpack.c.l.b16 %v1558
    %v1847 = vunpack.c.l.b16 %v1559
    %v1848 = vunpack.c.l.b16 %v1560
    %v1849 = vpack.c.b16 %v1706, %v1705
    %v1850 = vpack.c.b16 %v1708, %v1707
    %v1851 = vpack.c.b16 %v1710, %v1709
    %v1852 = vpack.c.b16 %v1712, %v1711
    %v1853 = vpack.c.b16 %v1714, %v1713
    %v1854 = vpack.c.b16 %v1716, %v1715
    %v1855 = vpack.c.b16 %v1718, %v1717
    %v1856 = vpack.c.b16 %v1720, %v1719
    %v1857 = vpack.c.b16 %v1722, %v1721
    %v1858 = vpack.c.b16 %v1724, %v1723
    %v1859 = vpack.c.b16 %v1726, %v1725
    %v1860 = vpack.c.b16 %v1728, %v1727
    %v1861 = vpack.c.b16 %v1730, %v1729
    %v1862 = vpack.c.b16 %v1732, %v1731
    %v1863 = vpack.c.b16 %v1734, %v1733
    %v1864 = vpack.c.b16 %v1736, %v1735
    %v1865 = vpack.c.b16 %v1738, %v1737
    %v1866 = vpack.c.b16 %v1740, %v1739
    %v1867 = vpack.c.b16 %v1742, %v1741
    %v1868 = vpack.c.b16 %v1744, %v1743
    %v1869 = vpack.c.b16 %v1746, %v1745
    %v1870 = vpack.c.b16 %v1748, %v1747
    %v1871 = vpack.c.b16 %v1750, %v1749
    %v1872 = vpack.c.b16 %v1752, %v1751
    %v1873 = vpack.c.b16 %v1754, %v1753
    %v1874 = vpack.c.b16 %v1756, %v1755
    %v1875 = vpack.c.b16 %v1758, %v1757
    %v1876 = vpack.c.b16 %v1760, %v1759
    %v1877 = vpack.c.b16 %v1762, %v1761
    %v1878 = vpack.c.b16 %v1764, %v1763
    %v1879 = vpack.c.b16 %v1766, %v1765
    %v1880 = vpack.c.b16 %v1768, %v1767
    %v1881 = vpack.c.b16 %v1770, %v1769
    %v1882 = vpack.c.b16 %v1772, %v1771
    %v1883 = vpack.c.b16 %v1774, %v1773
    %v1884 = vpack.c.b16 %v1776, %v1775
    %v1885 = vpack.c.b16 %v1778, %v1777
    %v1886 = vpack.c.b16 %v1780, %v1779
    %v1887 = vpack.c.b16 %v1782, %v1781
    %v1888 = vpack.c.b16 %v1784, %v1783
    %v1889 = vpack.c.b16 %v1786, %v1785
    %v1890 = vpack.c.b16 %v1788, %v1787
    %v1891 = vpack.c.b16 %v1790, %v1789
    %v1892 = vpack.c.b16 %v1792, %v1791
    %v1893 = vpack.c.b16 %v1794, %v1793
    %v1894 = vpack.c.b16 %v1796, %v1795
    %v1895 = vpack.c.b16 %v1798, %v1797
    %v1896 = vpack.c.b16 %v1800, %v1799
    %v1897 = vpack.c.b16 %v1802, %v1801
    %v1898 = vpack.c.b16 %v1804, %v1803
    %v1899 = vpack.c.b16 %v1806, %v1805
    %v1900 = vpack.c.b16 %v1808, %v1807
    %v1901 = vpack.c.b16 %v1810, %v1809
    %v1902 = vpack.c.b16 %v1812, %v1811
    %v1903 = vpack.c.b16 %v1814, %v1813
    %v1904 = vpack.c.b16 %v1816, %v1815
    %v1905 = vpack.c.b16 %v1818, %v1817
    %v1906 = vpack.c.b16 %v1820, %v1819
    %v1907 = vpack.c.b16 %v1822, %v1821
    %v1908 = vpack.c.b16 %v1824, %v1823
    %v1909 = vpack.c.b16 %v1826, %v1825
    %v1910 = vpack.c.b16 %v1828, %v1827
    %v1911 = vpack.c.b16 %v1830, %v1829
    %v1912 = vpack.c.b16 %v1832, %v1831
    %v1913 = vpack.c.b16 %v1834, %v1833
    %v1914 = vpack.c.b16 %v1836, %v1835
    %v1915 = vpack.c.b16 %v1838, %v1837
    %v1916 = vpack.c.b16 %v1840, %v1839
    %v1917 = vpack.c.b16 %v1842, %v1841
    %v1918 = vpack.c.b16 %v1844, %v1843
    %v1919 = vpack.c.b16 %v1846, %v1845
    %v1920 = vpack.c.b16 %v1848, %v1847
    %1993 = vmatprep.subr.bf16.mxu0 0
    %1994 = vmatpush1.bf16.msra.mxu0 %v1849
    %1995 = vmatprep.subr.bf16.mxu0 0
    %1996 = vmatpush1.bf16.msra.mxu0 %v1850
    %1997 = vmatprep.subr.bf16.mxu0 0
    %1998 = vmatpush1.bf16.msra.mxu0 %v1851
    %1999 = vmatprep.subr.bf16.mxu0 0
    %2000 = vmatpush1.bf16.msra.mxu0 %v1852
    %2001 = vmatprep.subr.bf16.mxu0 0
    %2002 = vmatpush1.bf16.msra.mxu0 %v1853
    %2003 = vmatprep.subr.bf16.mxu0 0
    %2004 = vmatpush1.bf16.msra.mxu0 %v1854
    %2005 = vmatprep.subr.bf16.mxu0 0
    %2006 = vmatpush1.bf16.msra.mxu0 %v1855
    %2007 = vmatprep.subr.bf16.mxu0 0
    %2008 = vmatpush1.bf16.msra.mxu0 %v1856
    %2009 = vmatprep.subr.bf16.mxu0 0
    %2010 = vmatpush1.bf16.msra.mxu0 %v1857
    %2011 = vmatprep.subr.bf16.mxu0 0
    %2012 = vmatpush1.bf16.msra.mxu0 %v1858
    %2013 = vmatprep.subr.bf16.mxu0 0
    %2014 = vmatpush1.bf16.msra.mxu0 %v1859
    %2015 = vmatprep.subr.bf16.mxu0 0
    %2016 = vmatpush1.bf16.msra.mxu0 %v1860
    %2017 = vmatprep.subr.bf16.mxu0 0
    %2018 = vmatpush1.bf16.msra.mxu0 %v1861
    %2019 = vmatprep.subr.bf16.mxu0 0
    %2020 = vmatpush1.bf16.msra.mxu0 %v1862
    %2021 = vmatprep.subr.bf16.mxu0 0
    %2022 = vmatpush1.bf16.msra.mxu0 %v1863
    %2023 = vmatprep.subr.bf16.mxu0 0
    %2024 = vmatpush1.bf16.msra.mxu0 %v1864
    %2025 = vmatprep.mubr.bf16.mxu0 %v1346
    %2026 = vmatmul.mubr.bf16.gmra.mrb[0].mxu0 %v1345
    %v2027 = vpop.f32.mrb[0].mxu0
    %v2028 = vadd.f32 0.0, %v2027
    %v2029 = vpop.f32.mrb[0].mxu0
    %v2030 = vpop.f32.mrb[0].mxu0
    %v2031 = vadd.f32 0.0, %v2030
    %v2032 = vpop.f32.mrb[0].mxu0
    %2033 = vmatprep.mubr.bf16.mxu0 %v1355
    %2034 = vmatmul.mubr.bf16.gmra.mrb[0].mxu0 %v1354
    %v2035 = vpop.f32.mrb[0].mxu0
    %v2036 = vadd.f32 0.0, %v2035
    %v2037 = vpop.f32.mrb[0].mxu0
    %v2038 = vpop.f32.mrb[0].mxu0
    %v2039 = vadd.f32 0.0, %v2038
    %v2040 = vpop.f32.mrb[0].mxu0
    %2041 = vmatprep.mubr.bf16.mxu0 %v1364
    %2042 = vmatmul.mubr.bf16.gmra.mrb[0].mxu0 %v1363
    %v2043 = vpop.f32.mrb[0].mxu0
    %v2044 = vadd.f32 0.0, %v2043
    %v2045 = vpop.f32.mrb[0].mxu0
    %v2046 = vpop.f32.mrb[0].mxu0
    %v2047 = vadd.f32 0.0, %v2046
    %v2048 = vpop.f32.mrb[0].mxu0
    %2049 = vmatprep.mubr.bf16.mxu0 %v1373
    %2050 = vmatmul.mubr.bf16.gmra.mrb[0].mxu0 %v1372
    %v2051 = vpop.f32.mrb[0].mxu0
    %v2052 = vadd.f32 0.0, %v2051
    %v2053 = vpop.f32.mrb[0].mxu0
    %v2054 = vpop.f32.mrb[0].mxu0
    %v2055 = vadd.f32 0.0, %v2054
    %v2056 = vpop.f32.mrb[0].mxu0
    %2057 = vmatprep.mubr.bf16.mxu0 %v1382
    %2058 = vmatmul.mubr.bf16.gmra.mrb[0].mxu0 %v1381
    %v2059 = vpop.f32.mrb[0].mxu0
    %v2060 = vadd.f32 0.0, %v2059
    %v2061 = vpop.f32.mrb[0].mxu0
    %v2062 = vpop.f32.mrb[0].mxu0
    %v2063 = vadd.f32 0.0, %v2062
    %v2064 = vpop.f32.mrb[0].mxu0
    %2065 = vmatprep.mubr.bf16.mxu0 %v1391
    %2066 = vmatmul.mubr.bf16.gmra.mrb[0].mxu0 %v1390
    %v2067 = vpop.f32.mrb[0].mxu0
    %v2068 = vadd.f32 0.0, %v2067
    %v2069 = vpop.f32.mrb[0].mxu0
    %v2070 = vpop.f32.mrb[0].mxu0
    %v2071 = vadd.f32 0.0, %v2070
    %v2072 = vpop.f32.mrb[0].mxu0
    %2073 = vmatprep.mubr.bf16.mxu0 %v1400
    %2074 = vmatmul.mubr.bf16.gmra.mrb[0].mxu0 %v1399
    %v2075 = vpop.f32.mrb[0].mxu0
    %v2076 = vadd.f32 0.0, %v2075
    %v2077 = vpop.f32.mrb[0].mxu0
    %v2078 = vpop.f32.mrb[0].mxu0
    %v2079 = vadd.f32 0.0, %v2078
    %v2080 = vpop.f32.mrb[0].mxu0
    %2081 = vmatprep.mubr.bf16.mxu0 %v1409
    %2082 = vmatmul.mubr.bf16.gmra.mrb[0].mxu0 %v1408
    %v2083 = vpop.f32.mrb[0].mxu0
    %v2084 = vadd.f32 0.0, %v2083
    %v2085 = vpop.f32.mrb[0].mxu0
    %v2086 = vpop.f32.mrb[0].mxu0
    %v2087 = vadd.f32 0.0, %v2086
    %v2088 = vpop.f32.mrb[0].mxu0
    %2089 = vdwg.mxu0
    %2090 = vmatprep.subr.bf16.mxu0 0
    %2091 = vmatpush1.bf16.msra.mxu0 %v1865
    %2092 = vmatprep.subr.bf16.mxu0 0
    %2093 = vmatpush1.bf16.msra.mxu0 %v1866
    %2094 = vmatprep.subr.bf16.mxu0 0
    %2095 = vmatpush1.bf16.msra.mxu0 %v1867
    %2096 = vmatprep.subr.bf16.mxu0 0
    %2097 = vmatpush1.bf16.msra.mxu0 %v1868
    %2098 = vmatprep.subr.bf16.mxu0 0
    %2099 = vmatpush1.bf16.msra.mxu0 %v1869
    %2100 = vmatprep.subr.bf16.mxu0 0
    %2101 = vmatpush1.bf16.msra.mxu0 %v1870
    %2102 = vmatprep.subr.bf16.mxu0 0
    %2103 = vmatpush1.bf16.msra.mxu0 %v1871
    %2104 = vmatprep.subr.bf16.mxu0 0
    %2105 = vmatpush1.bf16.msra.mxu0 %v1872
    %2106 = vmatprep.subr.bf16.mxu0 0
    %2107 = vmatpush1.bf16.msra.mxu0 %v1873
    %2108 = vmatprep.subr.bf16.mxu0 0
    %2109 = vmatpush1.bf16.msra.mxu0 %v1874
    %2110 = vmatprep.subr.bf16.mxu0 0
    %2111 = vmatpush1.bf16.msra.mxu0 %v1875
    %2112 = vmatprep.subr.bf16.mxu0 0
    %2113 = vmatpush1.bf16.msra.mxu0 %v1876
    %2114 = vmatprep.subr.bf16.mxu0 0
    %2115 = vmatpush1.bf16.msra.mxu0 %v1877
    %2116 = vmatprep.subr.bf16.mxu0 0
    %2117 = vmatpush1.bf16.msra.mxu0 %v1878
    %2118 = vmatprep.subr.bf16.mxu0 0
    %2119 = vmatpush1.bf16.msra.mxu0 %v1879
    %2120 = vmatprep.subr.bf16.mxu0 0
    %2121 = vmatpush1.bf16.msra.mxu0 %v1880
    %2122 = vmatprep.mubr.bf16.mxu0 %v1348
    %2123 = vmatmul.mubr.bf16.gmra.mrb[0].mxu0 %v1347
    %v2124 = vpop.f32.mrb[0].mxu0
    %v2125 = vadd.f32 %v2028, %v2124
    %v2126 = vpop.f32.mrb[0].mxu0
    %v2127 = vpop.f32.mrb[0].mxu0
    %v2128 = vadd.f32 %v2031, %v2127
    %v2129 = vpop.f32.mrb[0].mxu0
    %2130 = vmatprep.mubr.bf16.mxu0 %v1357
    %2131 = vmatmul.mubr.bf16.gmra.mrb[0].mxu0 %v1356
    %v2132 = vpop.f32.mrb[0].mxu0
    %v2133 = vadd.f32 %v2036, %v2132
    %v2134 = vpop.f32.mrb[0].mxu0
    %v2135 = vpop.f32.mrb[0].mxu0
    %v2136 = vadd.f32 %v2039, %v2135
    %v2137 = vpop.f32.mrb[0].mxu0
    %2138 = vmatprep.mubr.bf16.mxu0 %v1366
    %2139 = vmatmul.mubr.bf16.gmra.mrb[0].mxu0 %v1365
    %v2140 = vpop.f32.mrb[0].mxu0
    %v2141 = vadd.f32 %v2044, %v2140
    %v2142 = vpop.f32.mrb[0].mxu0
    %v2143 = vpop.f32.mrb[0].mxu0
    %v2144 = vadd.f32 %v2047, %v2143
    %v2145 = vpop.f32.mrb[0].mxu0
    %2146 = vmatprep.mubr.bf16.mxu0 %v1375
    %2147 = vmatmul.mubr.bf16.gmra.mrb[0].mxu0 %v1374
    %v2148 = vpop.f32.mrb[0].mxu0
    %v2149 = vadd.f32 %v2052, %v2148
    %v2150 = vpop.f32.mrb[0].mxu0
    %v2151 = vpop.f32.mrb[0].mxu0
    %v2152 = vadd.f32 %v2055, %v2151
    %v2153 = vpop.f32.mrb[0].mxu0
    %2154 = vmatprep.mubr.bf16.mxu0 %v1384
    %2155 = vmatmul.mubr.bf16.gmra.mrb[0].mxu0 %v1383
    %v2156 = vpop.f32.mrb[0].mxu0
    %v2157 = vadd.f32 %v2060, %v2156
    %v2158 = vpop.f32.mrb[0].mxu0
    %v2159 = vpop.f32.mrb[0].mxu0
    %v2160 = vadd.f32 %v2063, %v2159
    %v2161 = vpop.f32.mrb[0].mxu0
    %2162 = vmatprep.mubr.bf16.mxu0 %v1393
    %2163 = vmatmul.mubr.bf16.gmra.mrb[0].mxu0 %v1392
    %v2164 = vpop.f32.mrb[0].mxu0
    %v2165 = vadd.f32 %v2068, %v2164
    %v2166 = vpop.f32.mrb[0].mxu0
    %v2167 = vpop.f32.mrb[0].mxu0
    %v2168 = vadd.f32 %v2071, %v2167
    %v2169 = vpop.f32.mrb[0].mxu0
    %2170 = vmatprep.mubr.bf16.mxu0 %v1402
    %2171 = vmatmul.mubr.bf16.gmra.mrb[0].mxu0 %v1401
    %v2172 = vpop.f32.mrb[0].mxu0
    %v2173 = vadd.f32 %v2076, %v2172
    %v2174 = vpop.f32.mrb[0].mxu0
    %v2175 = vpop.f32.mrb[0].mxu0
    %v2176 = vadd.f32 %v2079, %v2175
    %v2177 = vpop.f32.mrb[0].mxu0
    %2178 = vmatprep.mubr.bf16.mxu0 %v1411
    %2179 = vmatmul.mubr.bf16.gmra.mrb[0].mxu0 %v1410
    %v2180 = vpop.f32.mrb[0].mxu0
    %v2181 = vadd.f32 %v2084, %v2180
    %v2182 = vpop.f32.mrb[0].mxu0
    %v2183 = vpop.f32.mrb[0].mxu0
    %v2184 = vadd.f32 %v2087, %v2183
    %v2185 = vpop.f32.mrb[0].mxu0
    %2186 = vdwg.mxu0
    %2187 = vmatprep.subr.bf16.mxu0 0
    %2188 = vmatpush1.bf16.msra.mxu0 %v1881
    %2189 = vmatprep.subr.bf16.mxu0 0
    %2190 = vmatpush1.bf16.msra.mxu0 %v1882
    %2191 = vmatprep.subr.bf16.mxu0 0
    %2192 = vmatpush1.bf16.msra.mxu0 %v1883
    %2193 = vmatprep.subr.bf16.mxu0 0
    %2194 = vmatpush1.bf16.msra.mxu0 %v1884
    %2195 = vmatprep.subr.bf16.mxu0 0
    %2196 = vmatpush1.bf16.msra.mxu0 %v1885
    %2197 = vmatprep.subr.bf16.mxu0 0
    %2198 = vmatpush1.bf16.msra.mxu0 %v1886
    %2199 = vmatprep.subr.bf16.mxu0 0
    %2200 = vmatpush1.bf16.msra.mxu0 %v1887
    %2201 = vmatprep.subr.bf16.mxu0 0
    %2202 = vmatpush1.bf16.msra.mxu0 %v1888
    %2203 = vmatprep.subr.bf16.mxu0 0
    %2204 = vmatpush1.bf16.msra.mxu0 %v1889
    %2205 = vmatprep.subr.bf16.mxu0 0
    %2206 = vmatpush1.bf16.msra.mxu0 %v1890
    %2207 = vmatprep.subr.bf16.mxu0 0
    %2208 = vmatpush1.bf16.msra.mxu0 %v1891
    %2209 = vmatprep.subr.bf16.mxu0 0
    %2210 = vmatpush1.bf16.msra.mxu0 %v1892
    %2211 = vmatprep.subr.bf16.mxu0 0
    %2212 = vmatpush1.bf16.msra.mxu0 %v1893
    %2213 = vmatprep.subr.bf16.mxu0 0
    %2214 = vmatpush1.bf16.msra.mxu0 %v1894
    %2215 = vmatprep.subr.bf16.mxu0 0
    %2216 = vmatpush1.bf16.msra.mxu0 %v1895
    %2217 = vmatprep.subr.bf16.mxu0 0
    %2218 = vmatpush1.bf16.msra.mxu0 %v1896
    %2219 = vmatprep.mubr.bf16.mxu0 %v1350
    %2220 = vmatmul.mubr.bf16.gmra.mrb[0].mxu0 %v1349
    %v2221 = vpop.f32.mrb[0].mxu0
    %v2222 = vadd.f32 %v2125, %v2221
    %v2223 = vpop.f32.mrb[0].mxu0
    %v2224 = vpop.f32.mrb[0].mxu0
    %v2225 = vadd.f32 %v2128, %v2224
    %v2226 = vpop.f32.mrb[0].mxu0
    %2227 = vmatprep.mubr.bf16.mxu0 %v1359
    %2228 = vmatmul.mubr.bf16.gmra.mrb[0].mxu0 %v1358
    %v2229 = vpop.f32.mrb[0].mxu0
    %v2230 = vadd.f32 %v2133, %v2229
    %v2231 = vpop.f32.mrb[0].mxu0
    %v2232 = vpop.f32.mrb[0].mxu0
    %v2233 = vadd.f32 %v2136, %v2232
    %v2234 = vpop.f32.mrb[0].mxu0
    %2235 = vmatprep.mubr.bf16.mxu0 %v1368
    %2236 = vmatmul.mubr.bf16.gmra.mrb[0].mxu0 %v1367
    %v2237 = vpop.f32.mrb[0].mxu0
    %v2238 = vadd.f32 %v2141, %v2237
    %v2239 = vpop.f32.mrb[0].mxu0
    %v2240 = vpop.f32.mrb[0].mxu0
    %v2241 = vadd.f32 %v2144, %v2240
    %v2242 = vpop.f32.mrb[0].mxu0
    %2243 = vmatprep.mubr.bf16.mxu0 %v1377
    %2244 = vmatmul.mubr.bf16.gmra.mrb[0].mxu0 %v1376
    %v2245 = vpop.f32.mrb[0].mxu0
    %v2246 = vadd.f32 %v2149, %v2245
    %v2247 = vpop.f32.mrb[0].mxu0
    %v2248 = vpop.f32.mrb[0].mxu0
    %v2249 = vadd.f32 %v2152, %v2248
    %v2250 = vpop.f32.mrb[0].mxu0
    %2251 = vmatprep.mubr.bf16.mxu0 %v1386
    %2252 = vmatmul.mubr.bf16.gmra.mrb[0].mxu0 %v1385
    %v2253 = vpop.f32.mrb[0].mxu0
    %v2254 = vadd.f32 %v2157, %v2253
    %v2255 = vpop.f32.mrb[0].mxu0
    %v2256 = vpop.f32.mrb[0].mxu0
    %v2257 = vadd.f32 %v2160, %v2256
    %v2258 = vpop.f32.mrb[0].mxu0
    %2259 = vmatprep.mubr.bf16.mxu0 %v1395
    %2260 = vmatmul.mubr.bf16.gmra.mrb[0].mxu0 %v1394
    %v2261 = vpop.f32.mrb[0].mxu0
    %v2262 = vadd.f32 %v2165, %v2261
    %v2263 = vpop.f32.mrb[0].mxu0
    %v2264 = vpop.f32.mrb[0].mxu0
    %v2265 = vadd.f32 %v2168, %v2264
    %v2266 = vpop.f32.mrb[0].mxu0
    %2267 = vmatprep.mubr.bf16.mxu0 %v1404
    %2268 = vmatmul.mubr.bf16.gmra.mrb[0].mxu0 %v1403
    %v2269 = vpop.f32.mrb[0].mxu0
    %v2270 = vadd.f32 %v2173, %v2269
    %v2271 = vpop.f32.mrb[0].mxu0
    %v2272 = vpop.f32.mrb[0].mxu0
    %v2273 = vadd.f32 %v2176, %v2272
    %v2274 = vpop.f32.mrb[0].mxu0
    %2275 = vmatprep.mubr.bf16.mxu0 %v1413
    %2276 = vmatmul.mubr.bf16.gmra.mrb[0].mxu0 %v1412
    %v2277 = vpop.f32.mrb[0].mxu0
    %v2278 = vadd.f32 %v2181, %v2277
    %v2279 = vpop.f32.mrb[0].mxu0
    %v2280 = vpop.f32.mrb[0].mxu0
    %v2281 = vadd.f32 %v2184, %v2280
    %v2282 = vpop.f32.mrb[0].mxu0
    %2283 = vdwg.mxu0
    %2284 = vmatprep.subr.bf16.mxu0 0
    %2285 = vmatpush1.bf16.msra.mxu0 %v1897
    %2286 = vmatprep.subr.bf16.mxu0 0
    %2287 = vmatpush1.bf16.msra.mxu0 %v1898
    %2288 = vmatprep.subr.bf16.mxu0 0
    %2289 = vmatpush1.bf16.msra.mxu0 %v1899
    %2290 = vmatprep.subr.bf16.mxu0 0
    %2291 = vmatpush1.bf16.msra.mxu0 %v1900
    %2292 = vmatprep.subr.bf16.mxu0 0
    %2293 = vmatpush1.bf16.msra.mxu0 %v1901
    %2294 = vmatprep.subr.bf16.mxu0 0
    %2295 = vmatpush1.bf16.msra.mxu0 %v1902
    %2296 = vmatprep.subr.bf16.mxu0 0
    %2297 = vmatpush1.bf16.msra.mxu0 %v1903
    %2298 = vmatprep.subr.bf16.mxu0 0
    %2299 = vmatpush1.bf16.msra.mxu0 %v1904
    %2300 = vmatprep.subr.bf16.mxu0 0
    %2301 = vmatpush1.bf16.msra.mxu0 %v1905
    %2302 = vmatprep.subr.bf16.mxu0 0
    %2303 = vmatpush1.bf16.msra.mxu0 %v1906
    %2304 = vmatprep.subr.bf16.mxu0 0
    %2305 = vmatpush1.bf16.msra.mxu0 %v1907
    %2306 = vmatprep.subr.bf16.mxu0 0
    %2307 = vmatpush1.bf16.msra.mxu0 %v1908
    %2308 = vmatprep.subr.bf16.mxu0 0
    %2309 = vmatpush1.bf16.msra.mxu0 %v1909
    %2310 = vmatprep.subr.bf16.mxu0 0
    %2311 = vmatpush1.bf16.msra.mxu0 %v1910
    %2312 = vmatprep.subr.bf16.mxu0 0
    %2313 = vmatpush1.bf16.msra.mxu0 %v1911
    %2314 = vmatprep.subr.bf16.mxu0 0
    %2315 = vmatpush1.bf16.msra.mxu0 %v1912
    %2316 = vmatprep.mubr.bf16.mxu0 %v1352
    %2317 = vmatmul.mubr.bf16.gmra.mrb[0].mxu0 %v1351
    %v2318 = vpop.f32.mrb[0].mxu0
    %v2319 = vadd.f32 %v2222, %v2318
    %v2320 = vpop.f32.mrb[0].mxu0
    %v2321 = vpop.f32.mrb[0].mxu0
    %v2322 = vadd.f32 %v2225, %v2321
    %v2323 = vpop.f32.mrb[0].mxu0
    %2324 = vmatprep.mubr.bf16.mxu0 %v1361
    %2325 = vmatmul.mubr.bf16.gmra.mrb[0].mxu0 %v1360
    %v2326 = vpop.f32.mrb[0].mxu0
    %v2327 = vadd.f32 %v2230, %v2326
    %v2328 = vpop.f32.mrb[0].mxu0
    %v2329 = vpop.f32.mrb[0].mxu0
    %v2330 = vadd.f32 %v2233, %v2329
    %v2331 = vpop.f32.mrb[0].mxu0
    %2332 = vmatprep.mubr.bf16.mxu0 %v1370
    %2333 = vmatmul.mubr.bf16.gmra.mrb[0].mxu0 %v1369
    %v2334 = vpop.f32.mrb[0].mxu0
    %v2335 = vadd.f32 %v2238, %v2334
    %v2336 = vpop.f32.mrb[0].mxu0
    %v2337 = vpop.f32.mrb[0].mxu0
    %v2338 = vadd.f32 %v2241, %v2337
    %v2339 = vpop.f32.mrb[0].mxu0
    %2340 = vmatprep.mubr.bf16.mxu0 %v1379
    %2341 = vmatmul.mubr.bf16.gmra.mrb[0].mxu0 %v1378
    %v2342 = vpop.f32.mrb[0].mxu0
    %v2343 = vadd.f32 %v2246, %v2342
    %v2344 = vpop.f32.mrb[0].mxu0
    %v2345 = vpop.f32.mrb[0].mxu0
    %v2346 = vadd.f32 %v2249, %v2345
    %v2347 = vpop.f32.mrb[0].mxu0
    %2348 = vmatprep.mubr.bf16.mxu0 %v1388
    %2349 = vmatmul.mubr.bf16.gmra.mrb[0].mxu0 %v1387
    %v2350 = vpop.f32.mrb[0].mxu0
    %v2351 = vadd.f32 %v2254, %v2350
    %v2352 = vpop.f32.mrb[0].mxu0
    %v2353 = vpop.f32.mrb[0].mxu0
    %v2354 = vadd.f32 %v2257, %v2353
    %v2355 = vpop.f32.mrb[0].mxu0
    %2356 = vmatprep.mubr.bf16.mxu0 %v1397
    %2357 = vmatmul.mubr.bf16.gmra.mrb[0].mxu0 %v1396
    %v2358 = vpop.f32.mrb[0].mxu0
    %v2359 = vadd.f32 %v2262, %v2358
    %v2360 = vpop.f32.mrb[0].mxu0
    %v2361 = vpop.f32.mrb[0].mxu0
    %v2362 = vadd.f32 %v2265, %v2361
    %v2363 = vpop.f32.mrb[0].mxu0
    %2364 = vmatprep.mubr.bf16.mxu0 %v1406
    %2365 = vmatmul.mubr.bf16.gmra.mrb[0].mxu0 %v1405
    %v2366 = vpop.f32.mrb[0].mxu0
    %v2367 = vadd.f32 %v2270, %v2366
    %v2368 = vpop.f32.mrb[0].mxu0
    %v2369 = vpop.f32.mrb[0].mxu0
    %v2370 = vadd.f32 %v2273, %v2369
    %v2371 = vpop.f32.mrb[0].mxu0
    %2372 = vmatprep.mubr.bf16.mxu0 %v1415
    %2373 = vmatmul.mubr.bf16.gmra.mrb[0].mxu0 %v1414
    %v2374 = vpop.f32.mrb[0].mxu0
    %v2375 = vadd.f32 %v2278, %v2374
    %v2376 = vpop.f32.mrb[0].mxu0
    %v2377 = vpop.f32.mrb[0].mxu0
    %v2378 = vadd.f32 %v2281, %v2377
    %v2379 = vpop.f32.mrb[0].mxu0
    %2380 = vdwg.mxu0
    %2381 = vmatprep.subr.bf16.mxu0 0
    %2382 = vmatpush1.bf16.msra.mxu0 %v1913
    %2383 = vmatprep.subr.bf16.mxu0 0
    %2384 = vmatpush1.bf16.msra.mxu0 %v1914
    %2385 = vmatprep.subr.bf16.mxu0 0
    %2386 = vmatpush1.bf16.msra.mxu0 %v1915
    %2387 = vmatprep.subr.bf16.mxu0 0
    %2388 = vmatpush1.bf16.msra.mxu0 %v1916
    %2389 = vmatprep.subr.bf16.mxu0 0
    %2390 = vmatpush1.bf16.msra.mxu0 %v1917
    %2391 = vmatprep.subr.bf16.mxu0 0
    %2392 = vmatpush1.bf16.msra.mxu0 %v1918
    %2393 = vmatprep.subr.bf16.mxu0 0
    %2394 = vmatpush1.bf16.msra.mxu0 %v1919
    %2395 = vmatprep.subr.bf16.mxu0 0
    %2396 = vmatpush1.bf16.msra.mxu0 %v1920
    %2397 = vmatprep.subr.bf16.mxu0 0
    %2398 = vmatpush1.bf16.msra.mxu0 0
    %2399 = vmatprep.subr.bf16.mxu0 0
    %2400 = vmatpush1.bf16.msra.mxu0 0
    %2401 = vmatprep.subr.bf16.mxu0 0
    %2402 = vmatpush1.bf16.msra.mxu0 0
    %2403 = vmatprep.subr.bf16.mxu0 0
    %2404 = vmatpush1.bf16.msra.mxu0 0
    %2405 = vmatprep.subr.bf16.mxu0 0
    %2406 = vmatpush1.bf16.msra.mxu0 0
    %2407 = vmatprep.subr.bf16.mxu0 0
    %2408 = vmatpush1.bf16.msra.mxu0 0
    %2409 = vmatprep.subr.bf16.mxu0 0
    %2410 = vmatpush1.bf16.msra.mxu0 0
    %2411 = vmatprep.subr.bf16.mxu0 0
    %2412 = vmatpush1.bf16.msra.mxu0 0
    %2413 = vmatprep.mubr.bf16.mxu0 0
    %2414 = vmatmul.mubr.bf16.gmra.mrb[0].mxu0 %v1353
    %v2415 = vpop.f32.mrb[0].mxu0
    %v2416 = vadd.f32 %v2319, %v2415
    %v2417 = vpop.f32.mrb[0].mxu0
    %v2418 = vpop.f32.mrb[0].mxu0
    %v2419 = vadd.f32 %v2322, %v2418
    %v2420 = vpop.f32.mrb[0].mxu0
    %2421 = vmatprep.mubr.bf16.mxu0 0
    %2422 = vmatmul.mubr.bf16.gmra.mrb[0].mxu0 %v1362
    %v2423 = vpop.f32.mrb[0].mxu0
    %v2424 = vadd.f32 %v2327, %v2423
    %v2425 = vpop.f32.mrb[0].mxu0
    %v2426 = vpop.f32.mrb[0].mxu0
    %v2427 = vadd.f32 %v2330, %v2426
    %v2428 = vpop.f32.mrb[0].mxu0
    %2429 = vmatprep.mubr.bf16.mxu0 0
    %2430 = vmatmul.mubr.bf16.gmra.mrb[0].mxu0 %v1371
    %v2431 = vpop.f32.mrb[0].mxu0
    %v2432 = vadd.f32 %v2335, %v2431
    %v2433 = vpop.f32.mrb[0].mxu0
    %v2434 = vpop.f32.mrb[0].mxu0
    %v2435 = vadd.f32 %v2338, %v2434
    %v2436 = vpop.f32.mrb[0].mxu0
    %2437 = vmatprep.mubr.bf16.mxu0 0
    %2438 = vmatmul.mubr.bf16.gmra.mrb[0].mxu0 %v1380
    %v2439 = vpop.f32.mrb[0].mxu0
    %v2440 = vadd.f32 %v2343, %v2439
    %v2441 = vpop.f32.mrb[0].mxu0
    %v2442 = vpop.f32.mrb[0].mxu0
    %v2443 = vadd.f32 %v2346, %v2442
    %v2444 = vpop.f32.mrb[0].mxu0
    %2445 = vmatprep.mubr.bf16.mxu0 0
    %2446 = vmatmul.mubr.bf16.gmra.mrb[0].mxu0 %v1389
    %v2447 = vpop.f32.mrb[0].mxu0
    %v2448 = vadd.f32 %v2351, %v2447
    %v2449 = vpop.f32.mrb[0].mxu0
    %v2450 = vpop.f32.mrb[0].mxu0
    %v2451 = vadd.f32 %v2354, %v2450
    %v2452 = vpop.f32.mrb[0].mxu0
    %2453 = vmatprep.mubr.bf16.mxu0 0
    %2454 = vmatmul.mubr.bf16.gmra.mrb[0].mxu0 %v1398
    %v2455 = vpop.f32.mrb[0].mxu0
    %v2456 = vadd.f32 %v2359, %v2455
    %v2457 = vpop.f32.mrb[0].mxu0
    %v2458 = vpop.f32.mrb[0].mxu0
    %v2459 = vadd.f32 %v2362, %v2458
    %v2460 = vpop.f32.mrb[0].mxu0
    %2461 = vmatprep.mubr.bf16.mxu0 0
    %2462 = vmatmul.mubr.bf16.gmra.mrb[0].mxu0 %v1407
    %v2463 = vpop.f32.mrb[0].mxu0
    %v2464 = vadd.f32 %v2367, %v2463
    %v2465 = vpop.f32.mrb[0].mxu0
    %v2466 = vpop.f32.mrb[0].mxu0
    %v2467 = vadd.f32 %v2370, %v2466
    %v2468 = vpop.f32.mrb[0].mxu0
    %2469 = vmatprep.mubr.bf16.mxu0 0
    %2470 = vmatmul.mubr.bf16.gmra.mrb[0].mxu0 %v1416
    %v2471 = vpop.f32.mrb[0].mxu0
    %v2472 = vadd.f32 %v2375, %v2471
    %v2473 = vpop.f32.mrb[0].mxu0
    %v2474 = vpop.f32.mrb[0].mxu0
    %v2475 = vadd.f32 %v2378, %v2474
    %v2476 = vpop.f32.mrb[0].mxu0
    %2477 = vdwg.mxu0
    %v2480 = vunpack.c.l.s4 1966171168
    %v2481 = vunpack.c.0.s8 %v2480
    %v2482 = vlaneseq
    %v2483 = vshrl.u32 %v2482, 7
    %v2484 = vsub.s32 %v2481, %v2483
    %v2485 = vrot.slane %v1344, %v2484
    %v2486 = vcombine.high %v2485, %v2485
    %v2488 = vunpack.c.l.s4 1966171168
    %v2489 = vunpack.c.0.s8 %v2488
    %v2490 = vlaneseq
    %v2491 = vshrl.u32 %v2490, 7
    %v2492 = vsub.s32 %v2489, %v2491
    %v2493 = vrot.slane %v2485, %v2492
    %v2495 = vunpack.c.l.s4 1966171168
    %v2496 = vunpack.c.0.s8 %v2495
    %v2497 = vlaneseq
    %v2498 = vshrl.u32 %v2497, 7
    %v2499 = vsub.s32 %v2496, %v2498
    %v2500 = vrot.slane %v2486, %v2499
    %v2501 = vlaneseq
    %v2502 = vshrl.u32 %v2501, 7
    %v2503 = vsub.s32 0, %v2502
    %v2504 = vrot.slane %v2493, %v2503
    %v2505 = vlaneseq
    %v2506 = vshrl.u32 %v2505, 7
    %v2507 = vsub.s32 0, %v2506
    %v2508 = vrot.slane %v2500, %v2507
    %v2511 = vmul.f32 %v2416, %v2504
    %v2512 = vmul.f32 %v2419, %v2504
    %v2513 = vmul.f32 %v2424, %v2504
    %v2514 = vmul.f32 %v2427, %v2504
    %v2515 = vmul.f32 %v2432, %v2504
    %v2516 = vmul.f32 %v2435, %v2504
    %v2517 = vmul.f32 %v2440, %v2504
    %v2518 = vmul.f32 %v2443, %v2504
    %v2519 = vmul.f32 %v2448, %v2508
    %v2520 = vmul.f32 %v2451, %v2508
    %v2521 = vmul.f32 %v2456, %v2508
    %v2522 = vmul.f32 %v2459, %v2508
    %v2523 = vmul.f32 %v2464, %v2508
    %v2524 = vmul.f32 %v2467, %v2508
    %v2525 = vmul.f32 %v2472, %v2508
    %v2526 = vmul.f32 %v2475, %v2508
    %v2527 = vld [vmem:[%s4] sm:$0x1]
    %v2529 = vlaneseq
    %v2530 = vshrl.u32 %v2529, 7
    %v2531 = vsub.s32 0, %v2530
    %v2532 = vrot.slane %v2527, %v2531
    %v2534 = vadd.f32 %v2511, %v2532
    %v2535 = vadd.f32 %v2512, %v2532
    %v2536 = vadd.f32 %v2513, %v2532
    %v2537 = vadd.f32 %v2514, %v2532
    %v2538 = vadd.f32 %v2515, %v2532
    %v2539 = vadd.f32 %v2516, %v2532
    %v2540 = vadd.f32 %v2517, %v2532
    %v2541 = vadd.f32 %v2518, %v2532
    %v2542 = vadd.f32 %v2519, %v2532
    %v2543 = vadd.f32 %v2520, %v2532
    %v2544 = vadd.f32 %v2521, %v2532
    %v2545 = vadd.f32 %v2522, %v2532
    %v2546 = vadd.f32 %v2523, %v2532
    %v2547 = vadd.f32 %v2524, %v2532
    %v2548 = vadd.f32 %v2525, %v2532
    %v2549 = vadd.f32 %v2526, %v2532
    %vm2550 = vcmp.ge.f32.partialorder %v2534, 0.0
    %vm2551 = vcmp.ge.f32.partialorder %v2535, 0.0
    %vm2552 = vcmp.ge.f32.partialorder %v2536, 0.0
    %vm2553 = vcmp.ge.f32.partialorder %v2537, 0.0
    %vm2554 = vcmp.ge.f32.partialorder %v2538, 0.0
    %vm2555 = vcmp.ge.f32.partialorder %v2539, 0.0
    %vm2556 = vcmp.ge.f32.partialorder %v2540, 0.0
    %vm2557 = vcmp.ge.f32.partialorder %v2541, 0.0
    %vm2558 = vcmp.ge.f32.partialorder %v2542, 0.0
    %vm2559 = vcmp.ge.f32.partialorder %v2543, 0.0
    %vm2560 = vcmp.ge.f32.partialorder %v2544, 0.0
    %vm2561 = vcmp.ge.f32.partialorder %v2545, 0.0
    %vm2562 = vcmp.ge.f32.partialorder %v2546, 0.0
    %vm2563 = vcmp.ge.f32.partialorder %v2547, 0.0
    %vm2564 = vcmp.ge.f32.partialorder %v2548, 0.0
    %vm2565 = vcmp.ge.f32.partialorder %v2549, 0.0
    %v2566 = vmul.f32 %v2534, 0.2
    %v2567 = vmul.f32 %v2535, 0.2
    %v2568 = vmul.f32 %v2536, 0.2
    %v2569 = vmul.f32 %v2537, 0.2
    %v2570 = vmul.f32 %v2538, 0.2
    %v2571 = vmul.f32 %v2539, 0.2
    %v2572 = vmul.f32 %v2540, 0.2
    %v2573 = vmul.f32 %v2541, 0.2
    %v2574 = vmul.f32 %v2542, 0.2
    %v2575 = vmul.f32 %v2543, 0.2
    %v2576 = vmul.f32 %v2544, 0.2
    %v2577 = vmul.f32 %v2545, 0.2
    %v2578 = vmul.f32 %v2546, 0.2
    %v2579 = vmul.f32 %v2547, 0.2
    %v2580 = vmul.f32 %v2548, 0.2
    %v2581 = vmul.f32 %v2549, 0.2
    %v2582 = vsel %vm2550, %v2534, %v2566
    %v2583 = vsel %vm2551, %v2535, %v2567
    %v2584 = vsel %vm2552, %v2536, %v2568
    %v2585 = vsel %vm2553, %v2537, %v2569
    %v2586 = vsel %vm2554, %v2538, %v2570
    %v2587 = vsel %vm2555, %v2539, %v2571
    %v2588 = vsel %vm2556, %v2540, %v2572
    %v2589 = vsel %vm2557, %v2541, %v2573
    %v2590 = vsel %vm2558, %v2542, %v2574
    %v2591 = vsel %vm2559, %v2543, %v2575
    %v2592 = vsel %vm2560, %v2544, %v2576
    %v2593 = vsel %vm2561, %v2545, %v2577
    %v2594 = vsel %vm2562, %v2546, %v2578
    %v2595 = vsel %vm2563, %v2547, %v2579
    %v2596 = vsel %vm2564, %v2548, %v2580
    %v2597 = vsel %vm2565, %v2549, %v2581
    %v2598 = vmul.f32 %v2582, 1.4142135
    %v2599 = vmul.f32 %v2583, 1.4142135
    %v2600 = vmul.f32 %v2584, 1.4142135
    %v2601 = vmul.f32 %v2585, 1.4142135
    %v2602 = vmul.f32 %v2586, 1.4142135
    %v2603 = vmul.f32 %v2587, 1.4142135
    %v2604 = vmul.f32 %v2588, 1.4142135
    %v2605 = vmul.f32 %v2589, 1.4142135
    %v2606 = vmul.f32 %v2590, 1.4142135
    %v2607 = vmul.f32 %v2591, 1.4142135
    %v2608 = vmul.f32 %v2592, 1.4142135
    %v2609 = vmul.f32 %v2593, 1.4142135
    %v2610 = vmul.f32 %v2594, 1.4142135
    %v2611 = vmul.f32 %v2595, 1.4142135
    %v2612 = vmul.f32 %v2596, 1.4142135
    %v2613 = vmul.f32 %v2597, 1.4142135
    %v2614 = vmax.f32 %v2598, -256.0
    %v2615 = vmax.f32 %v2599, -256.0
    %v2616 = vmax.f32 %v2600, -256.0
    %v2617 = vmax.f32 %v2601, -256.0
    %v2618 = vmax.f32 %v2602, -256.0
    %v2619 = vmax.f32 %v2603, -256.0
    %v2620 = vmax.f32 %v2604, -256.0
    %v2621 = vmax.f32 %v2605, -256.0
    %v2622 = vmax.f32 %v2606, -256.0
    %v2623 = vmax.f32 %v2607, -256.0
    %v2624 = vmax.f32 %v2608, -256.0
    %v2625 = vmax.f32 %v2609, -256.0
    %v2626 = vmax.f32 %v2610, -256.0
    %v2627 = vmax.f32 %v2611, -256.0
    %v2628 = vmax.f32 %v2612, -256.0
    %v2629 = vmax.f32 %v2613, -256.0
    %v2630 = vmin.f32 %v2614, 256.0
    %v2631 = vmin.f32 %v2615, 256.0
    %v2632 = vmin.f32 %v2616, 256.0
    %v2633 = vmin.f32 %v2617, 256.0
    %v2634 = vmin.f32 %v2618, 256.0
    %v2635 = vmin.f32 %v2619, 256.0
    %v2636 = vmin.f32 %v2620, 256.0
    %v2637 = vmin.f32 %v2621, 256.0
    %v2638 = vmin.f32 %v2622, 256.0
    %v2639 = vmin.f32 %v2623, 256.0
    %v2640 = vmin.f32 %v2624, 256.0
    %v2641 = vmin.f32 %v2625, 256.0
    %v2642 = vmin.f32 %v2626, 256.0
    %v2643 = vmin.f32 %v2627, 256.0
    %v2644 = vmin.f32 %v2628, 256.0
    %v2645 = vmin.f32 %v2629, 256.0
    %v2646 = vpack.c.bf16 %v2631, %v2630
    %v2647 = vpack.c.bf16 %v2633, %v2632
    %v2648 = vpack.c.bf16 %v2635, %v2634
    %v2649 = vpack.c.bf16 %v2637, %v2636
    %v2650 = vpack.c.bf16 %v2639, %v2638
    %v2651 = vpack.c.bf16 %v2641, %v2640
    %v2652 = vpack.c.bf16 %v2643, %v2642
    %v2653 = vpack.c.bf16 %v2645, %v2644
    %v2662 = vunpack.c.l.b16 %v2646
    %v2663 = vunpack.c.h.b16 %v2646
    %v2664 = vunpack.c.l.b16 %v2647
    %v2665 = vunpack.c.h.b16 %v2647
    %v2666 = vunpack.c.l.b16 %v2648
    %v2667 = vunpack.c.h.b16 %v2648
    %v2668 = vunpack.c.l.b16 %v2649
    %v2669 = vunpack.c.h.b16 %v2649
    %v2670 = vunpack.c.l.b16 %v2650
    %v2671 = vunpack.c.h.b16 %v2650
    %v2672 = vunpack.c.l.b16 %v2651
    %v2673 = vunpack.c.h.b16 %v2651
    %v2674 = vunpack.c.l.b16 %v2652
    %v2675 = vunpack.c.h.b16 %v2652
    %v2676 = vunpack.c.l.b16 %v2653
    %v2677 = vunpack.c.h.b16 %v2653
    %v2678 = vpack.c.b16 %v2662, %v2662
    %v2679 = vpack.c.b16 %v2663, %v2663
    %v2680 = vpack.c.b16 %v2664, %v2664
    %v2681 = vpack.c.b16 %v2665, %v2665
    %v2682 = vpack.c.b16 %v2666, %v2666
    %v2683 = vpack.c.b16 %v2667, %v2667
    %v2684 = vpack.c.b16 %v2668, %v2668
    %v2685 = vpack.c.b16 %v2669, %v2669
    %v2686 = vpack.c.b16 %v2670, %v2670
    %v2687 = vpack.c.b16 %v2671, %v2671
    %v2688 = vpack.c.b16 %v2672, %v2672
    %v2689 = vpack.c.b16 %v2673, %v2673
    %v2690 = vpack.c.b16 %v2674, %v2674
    %v2691 = vpack.c.b16 %v2675, %v2675
    %v2692 = vpack.c.b16 %v2676, %v2676
    %v2693 = vpack.c.b16 %v2677, %v2677
    %2710 = vst [vmem:[#allocation4] sm:$0xf] %v2678
    %2711 = vst [vmem:[#allocation4 + $0x4] sm:$0xf] %v2679
    %2712 = vst [vmem:[#allocation4 + $0x8] sm:$0xf] %v2680
    %2713 = vst [vmem:[#allocation4 + $0xc] sm:$0xf] %v2681
    %2714 = vst [vmem:[#allocation4 + $0x10] sm:$0xf] %v2682
    %2715 = vst [vmem:[#allocation4 + $0x14] sm:$0xf] %v2683
    %2716 = vst [vmem:[#allocation4 + $0x18] sm:$0xf] %v2684
    %2717 = vst [vmem:[#allocation4 + $0x1c] sm:$0xf] %v2685
    %2718 = vst [vmem:[#allocation4 + $0x20] sm:$0xf] %v2686
    %2719 = vst [vmem:[#allocation4 + $0x24] sm:$0xf] %v2687
    %2720 = vst [vmem:[#allocation4 + $0x28] sm:$0xf] %v2688
    %2721 = vst [vmem:[#allocation4 + $0x2c] sm:$0xf] %v2689
    %2722 = vst [vmem:[#allocation4 + $0x30] sm:$0xf] %v2690
    %2723 = vst [vmem:[#allocation4 + $0x34] sm:$0xf] %v2691
    %2724 = vst [vmem:[#allocation4 + $0x38] sm:$0xf] %v2692
    %2725 = vst [vmem:[#allocation4 + $0x3c] sm:$0xf] %v2693
    %v2726 = vld [vmem:[%s7] sm:$0xff]
    %v2729 = vunpack.c.l.s4 1966171168
    %v2730 = vunpack.c.0.s8 %v2729
    %v2731 = vlaneseq
    %v2732 = vshrl.u32 %v2731, 7
    %v2733 = vsub.s32 %v2730, %v2732
    %v2734 = vrot.slane %v2726, %v2733
    %v2735 = vcombine.high %v2734, %v2734
    %v2737 = vunpack.c.l.s4 1966171168
    %v2738 = vunpack.c.0.s8 %v2737
    %v2739 = vlaneseq
    %v2740 = vshrl.u32 %v2739, 7
    %v2741 = vsub.s32 %v2738, %v2740
    %v2742 = vrot.slane %v2734, %v2741
    %v2744 = vunpack.c.l.s4 1966171168
    %v2745 = vunpack.c.0.s8 %v2744
    %v2746 = vlaneseq
    %v2747 = vshrl.u32 %v2746, 7
    %v2748 = vsub.s32 %v2745, %v2747
    %v2749 = vrot.slane %v2735, %v2748
    %v2750 = vlaneseq
    %v2751 = vshrl.u32 %v2750, 7
    %v2752 = vsub.s32 0, %v2751
    %v2753 = vrot.slane %v2742, %v2752
    %v2754 = vlaneseq
    %v2755 = vshrl.u32 %v2754, 7
    %v2756 = vsub.s32 0, %v2755
    %v2757 = vrot.slane %v2749, %v2756
    %v2760 = vmul.f32 %v2630, %v2753
    %v2761 = vmul.f32 %v2631, %v2753
    %v2762 = vmul.f32 %v2632, %v2753
    %v2763 = vmul.f32 %v2633, %v2753
    %v2764 = vmul.f32 %v2634, %v2753
    %v2765 = vmul.f32 %v2635, %v2753
    %v2766 = vmul.f32 %v2636, %v2753
    %v2767 = vmul.f32 %v2637, %v2753
    %v2768 = vmul.f32 %v2638, %v2757
    %v2769 = vmul.f32 %v2639, %v2757
    %v2770 = vmul.f32 %v2640, %v2757
    %v2771 = vmul.f32 %v2641, %v2757
    %v2772 = vmul.f32 %v2642, %v2757
    %v2773 = vmul.f32 %v2643, %v2757
    %v2774 = vmul.f32 %v2644, %v2757
    %v2775 = vmul.f32 %v2645, %v2757
    %v2776 = vpack.c.bf16 %v2761, %v2760
    %v2777 = vpack.c.bf16 %v2763, %v2762
    %v2778 = vpack.c.bf16 %v2765, %v2764
    %v2779 = vpack.c.bf16 %v2767, %v2766
    %v2780 = vpack.c.bf16 %v2769, %v2768
    %v2781 = vpack.c.bf16 %v2771, %v2770
    %v2782 = vpack.c.bf16 %v2773, %v2772
    %v2783 = vpack.c.bf16 %v2775, %v2774
    %v2784 = vld [vmem:[#allocation3] sm:$0xff]
    %v2785 = vld [vmem:[#allocation3 + $0x8] sm:$0xff]
    %v2786 = vld [vmem:[#allocation3 + $0x10] sm:$0xff]
    %v2787 = vld [vmem:[#allocation3 + $0x18] sm:$0xff]
    %v2788 = vld [vmem:[#allocation3 + $0x20] sm:$0xff]
    %v2789 = vld [vmem:[#allocation3 + $0x28] sm:$0xff]
    %v2790 = vld [vmem:[#allocation3 + $0x30] sm:$0xff]
    %v2791 = vld [vmem:[#allocation3 + $0x38] sm:$0xff]
    %v2792 = vld [vmem:[#allocation3 + $0x40] sm:$0xff]
    %v2793 = vld [vmem:[#allocation3 + $0x48] sm:$0xff]
    %v2794 = vld [vmem:[#allocation3 + $0x50] sm:$0xff]
    %v2795 = vld [vmem:[#allocation3 + $0x58] sm:$0xff]
    %v2796 = vld [vmem:[#allocation3 + $0x60] sm:$0xff]
    %v2797 = vld [vmem:[#allocation3 + $0x68] sm:$0xff]
    %v2798 = vld [vmem:[#allocation3 + $0x70] sm:$0xff]
    %v2799 = vld [vmem:[#allocation3 + $0x78] sm:$0xff]
    %v2800 = vld [vmem:[%s6] sm:$0xf]
    %v2801 = vld [vmem:[%s6 + $0x4] sm:$0xf]
    %v2802 = vld [vmem:[%s6 + $0x8] sm:$0xf]
    %v2803 = vld [vmem:[%s6 + $0xc] sm:$0xf]
    %v2804 = vld [vmem:[%s6 + $0x10] sm:$0xf]
    %v2805 = vld [vmem:[%s6 + $0x14] sm:$0xf]
    %v2806 = vld [vmem:[%s6 + $0x18] sm:$0xf]
    %v2807 = vld [vmem:[%s6 + $0x1c] sm:$0xf]
    %v2808 = vld [vmem:[%s6 + $0x20] sm:$0xf]
    %v2809 = vld [vmem:[%s6 + $0x24] sm:$0xf]
    %v2810 = vld [vmem:[%s6 + $0x28] sm:$0xf]
    %v2811 = vld [vmem:[%s6 + $0x2c] sm:$0xf]
    %v2812 = vld [vmem:[%s6 + $0x30] sm:$0xf]
    %v2813 = vld [vmem:[%s6 + $0x34] sm:$0xf]
    %v2814 = vld [vmem:[%s6 + $0x38] sm:$0xf]
    %v2815 = vld [vmem:[%s6 + $0x3c] sm:$0xf]
    %v2832 = vunpack.c.l.b16 %v2800
    %v2833 = vunpack.c.l.b16 %v2801
    %v2834 = vunpack.c.l.b16 %v2802
    %v2835 = vunpack.c.l.b16 %v2803
    %v2836 = vunpack.c.l.b16 %v2804
    %v2837 = vunpack.c.l.b16 %v2805
    %v2838 = vunpack.c.l.b16 %v2806
    %v2839 = vunpack.c.l.b16 %v2807
    %v2840 = vunpack.c.l.b16 %v2808
    %v2841 = vunpack.c.l.b16 %v2809
    %v2842 = vunpack.c.l.b16 %v2810
    %v2843 = vunpack.c.l.b16 %v2811
    %v2844 = vunpack.c.l.b16 %v2812
    %v2845 = vunpack.c.l.b16 %v2813
    %v2846 = vunpack.c.l.b16 %v2814
    %v2847 = vunpack.c.l.b16 %v2815
    %v2848 = vpack.c.b16 %v2833, %v2832
    %v2849 = vpack.c.b16 %v2835, %v2834
    %v2850 = vpack.c.b16 %v2837, %v2836
    %v2851 = vpack.c.b16 %v2839, %v2838
    %v2852 = vpack.c.b16 %v2841, %v2840
    %v2853 = vpack.c.b16 %v2843, %v2842
    %v2854 = vpack.c.b16 %v2845, %v2844
    %v2855 = vpack.c.b16 %v2847, %v2846
    %2864 = vmatprep.subr.bf16.mxu0 0
    %2865 = vmatpush1.bf16.msra.mxu0 %v2848
    %2866 = vmatprep.subr.bf16.mxu0 0
    %2867 = vmatpush1.bf16.msra.mxu0 %v2849
    %2868 = vmatprep.subr.bf16.mxu0 0
    %2869 = vmatpush1.bf16.msra.mxu0 %v2850
    %2870 = vmatprep.subr.bf16.mxu0 0
    %2871 = vmatpush1.bf16.msra.mxu0 %v2851
    %2872 = vmatprep.subr.bf16.mxu0 0
    %2873 = vmatpush1.bf16.msra.mxu0 %v2852
    %2874 = vmatprep.subr.bf16.mxu0 0
    %2875 = vmatpush1.bf16.msra.mxu0 %v2853
    %2876 = vmatprep.subr.bf16.mxu0 0
    %2877 = vmatpush1.bf16.msra.mxu0 %v2854
    %2878 = vmatprep.subr.bf16.mxu0 0
    %2879 = vmatpush1.bf16.msra.mxu0 %v2855
    %2880 = vmatprep.subr.bf16.mxu0 0
    %2881 = vmatpush1.bf16.msra.mxu0 0
    %2882 = vmatprep.subr.bf16.mxu0 0
    %2883 = vmatpush1.bf16.msra.mxu0 0
    %2884 = vmatprep.subr.bf16.mxu0 0
    %2885 = vmatpush1.bf16.msra.mxu0 0
    %2886 = vmatprep.subr.bf16.mxu0 0
    %2887 = vmatpush1.bf16.msra.mxu0 0
    %2888 = vmatprep.subr.bf16.mxu0 0
    %2889 = vmatpush1.bf16.msra.mxu0 0
    %2890 = vmatprep.subr.bf16.mxu0 0
    %2891 = vmatpush1.bf16.msra.mxu0 0
    %2892 = vmatprep.subr.bf16.mxu0 0
    %2893 = vmatpush1.bf16.msra.mxu0 0
    %2894 = vmatprep.subr.bf16.mxu0 0
    %2895 = vmatpush1.bf16.msra.mxu0 0
    %2896 = vmatprep.mubr.bf16.mxu0 0
    %2897 = vmatmul.mubr.bf16.gmra.mrb[0].mxu0 %v2776
    %v2898 = vpop.f32.mrb[0].mxu0
    %v2899 = vadd.f32 0.0, %v2898
    %v2900 = vpop.f32.mrb[0].mxu0
    %v2901 = vpop.f32.mrb[0].mxu0
    %v2902 = vadd.f32 0.0, %v2901
    %v2903 = vpop.f32.mrb[0].mxu0
    %2904 = vmatprep.mubr.bf16.mxu0 0
    %2905 = vmatmul.mubr.bf16.gmra.mrb[0].mxu0 %v2777
    %v2906 = vpop.f32.mrb[0].mxu0
    %v2907 = vadd.f32 0.0, %v2906
    %v2908 = vpop.f32.mrb[0].mxu0
    %v2909 = vpop.f32.mrb[0].mxu0
    %v2910 = vadd.f32 0.0, %v2909
    %v2911 = vpop.f32.mrb[0].mxu0
    %2912 = vmatprep.mubr.bf16.mxu0 0
    %2913 = vmatmul.mubr.bf16.gmra.mrb[0].mxu0 %v2778
    %v2914 = vpop.f32.mrb[0].mxu0
    %v2915 = vadd.f32 0.0, %v2914
    %v2916 = vpop.f32.mrb[0].mxu0
    %v2917 = vpop.f32.mrb[0].mxu0
    %v2918 = vadd.f32 0.0, %v2917
    %v2919 = vpop.f32.mrb[0].mxu0
    %2920 = vmatprep.mubr.bf16.mxu0 0
    %2921 = vmatmul.mubr.bf16.gmra.mrb[0].mxu0 %v2779
    %v2922 = vpop.f32.mrb[0].mxu0
    %v2923 = vadd.f32 0.0, %v2922
    %v2924 = vpop.f32.mrb[0].mxu0
    %v2925 = vpop.f32.mrb[0].mxu0
    %v2926 = vadd.f32 0.0, %v2925
    %v2927 = vpop.f32.mrb[0].mxu0
    %2928 = vmatprep.mubr.bf16.mxu0 0
    %2929 = vmatmul.mubr.bf16.gmra.mrb[0].mxu0 %v2780
    %v2930 = vpop.f32.mrb[0].mxu0
    %v2931 = vadd.f32 0.0, %v2930
    %v2932 = vpop.f32.mrb[0].mxu0
    %v2933 = vpop.f32.mrb[0].mxu0
    %v2934 = vadd.f32 0.0, %v2933
    %v2935 = vpop.f32.mrb[0].mxu0
    %2936 = vmatprep.mubr.bf16.mxu0 0
    %2937 = vmatmul.mubr.bf16.gmra.mrb[0].mxu0 %v2781
    %v2938 = vpop.f32.mrb[0].mxu0
    %v2939 = vadd.f32 0.0, %v2938
    %v2940 = vpop.f32.mrb[0].mxu0
    %v2941 = vpop.f32.mrb[0].mxu0
    %v2942 = vadd.f32 0.0, %v2941
    %v2943 = vpop.f32.mrb[0].mxu0
    %2944 = vmatprep.mubr.bf16.mxu0 0
    %2945 = vmatmul.mubr.bf16.gmra.mrb[0].mxu0 %v2782
    %v2946 = vpop.f32.mrb[0].mxu0
    %v2947 = vadd.f32 0.0, %v2946
    %v2948 = vpop.f32.mrb[0].mxu0
    %v2949 = vpop.f32.mrb[0].mxu0
    %v2950 = vadd.f32 0.0, %v2949
    %v2951 = vpop.f32.mrb[0].mxu0
    %2952 = vmatprep.mubr.bf16.mxu0 0
    %2953 = vmatmul.mubr.bf16.gmra.mrb[0].mxu0 %v2783
    %v2954 = vpop.f32.mrb[0].mxu0
    %v2955 = vadd.f32 0.0, %v2954
    %v2956 = vpop.f32.mrb[0].mxu0
    %v2957 = vpop.f32.mrb[0].mxu0
    %v2958 = vadd.f32 0.0, %v2957
    %v2959 = vpop.f32.mrb[0].mxu0
    %2960 = vdwg.mxu0
    %v2961 = vadd.f32 %v2784, %v2899
    %v2962 = vadd.f32 %v2785, %v2902
    %v2963 = vadd.f32 %v2786, %v2907
    %v2964 = vadd.f32 %v2787, %v2910
    %v2965 = vadd.f32 %v2788, %v2915
    %v2966 = vadd.f32 %v2789, %v2918
    %v2967 = vadd.f32 %v2790, %v2923
    %v2968 = vadd.f32 %v2791, %v2926
    %v2969 = vadd.f32 %v2792, %v2931
    %v2970 = vadd.f32 %v2793, %v2934
    %v2971 = vadd.f32 %v2794, %v2939
    %v2972 = vadd.f32 %v2795, %v2942
    %v2973 = vadd.f32 %v2796, %v2947
    %v2974 = vadd.f32 %v2797, %v2950
    %v2975 = vadd.f32 %v2798, %v2955
    %v2976 = vadd.f32 %v2799, %v2958
    %2977 = vst [vmem:[#allocation3] sm:$0xff] %v2961
    %2978 = vst [vmem:[#allocation3 + $0x8] sm:$0xff] %v2962
    %2979 = vst [vmem:[#allocation3 + $0x10] sm:$0xff] %v2963
    %2980 = vst [vmem:[#allocation3 + $0x18] sm:$0xff] %v2964
    %2981 = vst [vmem:[#allocation3 + $0x20] sm:$0xff] %v2965
    %2982 = vst [vmem:[#allocation3 + $0x28] sm:$0xff] %v2966
    %2983 = vst [vmem:[#allocation3 + $0x30] sm:$0xff] %v2967
    %2984 = vst [vmem:[#allocation3 + $0x38] sm:$0xff] %v2968
    %2985 = vst [vmem:[#allocation3 + $0x40] sm:$0xff] %v2969
    %2986 = vst [vmem:[#allocation3 + $0x48] sm:$0xff] %v2970
    %2987 = vst [vmem:[#allocation3 + $0x50] sm:$0xff] %v2971
    %2988 = vst [vmem:[#allocation3 + $0x58] sm:$0xff] %v2972
    %2989 = vst [vmem:[#allocation3 + $0x60] sm:$0xff] %v2973
    %2990 = vst [vmem:[#allocation3 + $0x68] sm:$0xff] %v2974
    %2991 = vst [vmem:[#allocation3 + $0x70] sm:$0xff] %v2975
    %2992 = vst [vmem:[#allocation3 + $0x78] sm:$0xff] %v2976
    // Predicated region
    $region46: #{_lambda_.7} parent=1 // pred_check
      %p2993 = pneg %p41
    $region47: #{_lambda_.7} parent=1 // pred_check_branch
      %2995 = sbr.rel (%p2993) target = $region49
    $region48: #{_lambda_.7} parent=1 // pred_region
      %v2996 = vld [vmem:[#allocation3] sm:$0xff]
      %v2997 = vld [vmem:[#allocation3 + $0x8] sm:$0xff]
      %v2998 = vld [vmem:[#allocation3 + $0x10] sm:$0xff]
      %v2999 = vld [vmem:[#allocation3 + $0x18] sm:$0xff]
      %v3000 = vld [vmem:[#allocation3 + $0x20] sm:$0xff]
      %v3001 = vld [vmem:[#allocation3 + $0x28] sm:$0xff]
      %v3002 = vld [vmem:[#allocation3 + $0x30] sm:$0xff]
      %v3003 = vld [vmem:[#allocation3 + $0x38] sm:$0xff]
      %v3004 = vld [vmem:[#allocation3 + $0x40] sm:$0xff]
      %v3005 = vld [vmem:[#allocation3 + $0x48] sm:$0xff]
      %v3006 = vld [vmem:[#allocation3 + $0x50] sm:$0xff]
      %v3007 = vld [vmem:[#allocation3 + $0x58] sm:$0xff]
      %v3008 = vld [vmem:[#allocation3 + $0x60] sm:$0xff]
      %v3009 = vld [vmem:[#allocation3 + $0x68] sm:$0xff]
      %v3010 = vld [vmem:[#allocation3 + $0x70] sm:$0xff]
      %v3011 = vld [vmem:[#allocation3 + $0x78] sm:$0xff]
      %v3012 = vld [vmem:[%s8] sm:$0x1]
      %v3014 = vlaneseq
      %v3015 = vshrl.u32 %v3014, 7
      %v3016 = vsub.s32 0, %v3015
      %v3017 = vrot.slane %v3012, %v3016
      %v3019 = vadd.f32 %v2996, %v3017
      %v3020 = vadd.f32 %v2997, %v3017
      %v3021 = vadd.f32 %v2998, %v3017
      %v3022 = vadd.f32 %v2999, %v3017
      %v3023 = vadd.f32 %v3000, %v3017
      %v3024 = vadd.f32 %v3001, %v3017
      %v3025 = vadd.f32 %v3002, %v3017
      %v3026 = vadd.f32 %v3003, %v3017
      %v3027 = vadd.f32 %v3004, %v3017
      %v3028 = vadd.f32 %v3005, %v3017
      %v3029 = vadd.f32 %v3006, %v3017
      %v3030 = vadd.f32 %v3007, %v3017
      %v3031 = vadd.f32 %v3008, %v3017
      %v3032 = vadd.f32 %v3009, %v3017
      %v3033 = vadd.f32 %v3010, %v3017
      %v3034 = vadd.f32 %v3011, %v3017
      %v3035 = vmax.f32 %v3019, -256.0
      %v3036 = vmax.f32 %v3020, -256.0
      %v3037 = vmax.f32 %v3021, -256.0
      %v3038 = vmax.f32 %v3022, -256.0
      %v3039 = vmax.f32 %v3023, -256.0
      %v3040 = vmax.f32 %v3024, -256.0
      %v3041 = vmax.f32 %v3025, -256.0
      %v3042 = vmax.f32 %v3026, -256.0
      %v3043 = vmax.f32 %v3027, -256.0
      %v3044 = vmax.f32 %v3028, -256.0
      %v3045 = vmax.f32 %v3029, -256.0
      %v3046 = vmax.f32 %v3030, -256.0
      %v3047 = vmax.f32 %v3031, -256.0
      %v3048 = vmax.f32 %v3032, -256.0
      %v3049 = vmax.f32 %v3033, -256.0
      %v3050 = vmax.f32 %v3034, -256.0
      %v3051 = vmin.f32 %v3035, 256.0
      %v3052 = vmin.f32 %v3036, 256.0
      %v3053 = vmin.f32 %v3037, 256.0
      %v3054 = vmin.f32 %v3038, 256.0
      %v3055 = vmin.f32 %v3039, 256.0
      %v3056 = vmin.f32 %v3040, 256.0
      %v3057 = vmin.f32 %v3041, 256.0
      %v3058 = vmin.f32 %v3042, 256.0
      %v3059 = vmin.f32 %v3043, 256.0
      %v3060 = vmin.f32 %v3044, 256.0
      %v3061 = vmin.f32 %v3045, 256.0
      %v3062 = vmin.f32 %v3046, 256.0
      %v3063 = vmin.f32 %v3047, 256.0
      %v3064 = vmin.f32 %v3048, 256.0
      %v3065 = vmin.f32 %v3049, 256.0
      %v3066 = vmin.f32 %v3050, 256.0
      %v3067 = vld [vmem:[%s9] sm:$0xff]
      %v3068 = vld [vmem:[%s9 + $0x8] sm:$0xff]
      %v3069 = vld [vmem:[%s9 + $0x10] sm:$0xff]
      %v3070 = vld [vmem:[%s9 + $0x18] sm:$0xff]
      %v3071 = vld [vmem:[%s9 + $0x20] sm:$0xff]
      %v3072 = vld [vmem:[%s9 + $0x28] sm:$0xff]
      %v3073 = vld [vmem:[%s9 + $0x30] sm:$0xff]
      %v3074 = vld [vmem:[%s9 + $0x38] sm:$0xff]
      %v3075 = vld [vmem:[%s9 + $0x40] sm:$0xff]
      %v3076 = vld [vmem:[%s9 + $0x48] sm:$0xff]
      %v3077 = vld [vmem:[%s9 + $0x50] sm:$0xff]
      %v3078 = vld [vmem:[%s9 + $0x58] sm:$0xff]
      %v3079 = vld [vmem:[%s9 + $0x60] sm:$0xff]
      %v3080 = vld [vmem:[%s9 + $0x68] sm:$0xff]
      %v3081 = vld [vmem:[%s9 + $0x70] sm:$0xff]
      %v3082 = vld [vmem:[%s9 + $0x78] sm:$0xff]
      %v3083 = vadd.f32 %v3051, %v3067
      %v3084 = vadd.f32 %v3052, %v3068
      %v3085 = vadd.f32 %v3053, %v3069
      %v3086 = vadd.f32 %v3054, %v3070
      %v3087 = vadd.f32 %v3055, %v3071
      %v3088 = vadd.f32 %v3056, %v3072
      %v3089 = vadd.f32 %v3057, %v3073
      %v3090 = vadd.f32 %v3058, %v3074
      %v3091 = vadd.f32 %v3059, %v3075
      %v3092 = vadd.f32 %v3060, %v3076
      %v3093 = vadd.f32 %v3061, %v3077
      %v3094 = vadd.f32 %v3062, %v3078
      %v3095 = vadd.f32 %v3063, %v3079
      %v3096 = vadd.f32 %v3064, %v3080
      %v3097 = vadd.f32 %v3065, %v3081
      %v3098 = vadd.f32 %v3066, %v3082
      %3099 = vst [vmem:[#allocation6] sm:$0xff] %v3083
      %3100 = vst [vmem:[#allocation6 + $0x8] sm:$0xff] %v3084
      %3101 = vst [vmem:[#allocation6 + $0x10] sm:$0xff] %v3085
      %3102 = vst [vmem:[#allocation6 + $0x18] sm:$0xff] %v3086
      %3103 = vst [vmem:[#allocation6 + $0x20] sm:$0xff] %v3087
      %3104 = vst [vmem:[#allocation6 + $0x28] sm:$0xff] %v3088
      %3105 = vst [vmem:[#allocation6 + $0x30] sm:$0xff] %v3089
      %3106 = vst [vmem:[#allocation6 + $0x38] sm:$0xff] %v3090
      %3107 = vst [vmem:[#allocation6 + $0x40] sm:$0xff] %v3091
      %3108 = vst [vmem:[#allocation6 + $0x48] sm:$0xff] %v3092
      %3109 = vst [vmem:[#allocation6 + $0x50] sm:$0xff] %v3093
      %3110 = vst [vmem:[#allocation6 + $0x58] sm:$0xff] %v3094
      %3111 = vst [vmem:[#allocation6 + $0x60] sm:$0xff] %v3095
      %3112 = vst [vmem:[#allocation6 + $0x68] sm:$0xff] %v3096
      %3113 = vst [vmem:[#allocation6 + $0x70] sm:$0xff] %v3097
      %3114 = vst [vmem:[#allocation6 + $0x78] sm:$0xff] %v3098
    $region49: #{_lambda_.7} parent=1 // pred_fallthru
      _
    // Predicated region
    $region50: #{_lambda_.7} parent=1 // pred_check
      _
    $region51: #{_lambda_.7} parent=1 // pred_check_branch
      %3116 = sbr.rel (0) target = $region53
    $region52: #{_lambda_.7} parent=1 // pred_region
      %s3118 = ssub.s32 1024, 1024
      %3119 = vsyncadd [#allocation5], %s3118
      %s3120 = sshll.u32 [#allocation4], 4
      %s3121 = int_to_ptr.vmem [resolvable:$true] %s3120
      %3126 = dma.vmem_to_hbm [thread:$0]  %s3121, 1024, %s10, [#allocation5], 64, 64, 4
    $region53: #{_lambda_.7} parent=1 // pred_fallthru
      _
    // Predicated region
    $region54: #{_lambda_.7} parent=1 // pred_check
      _
    $region55: #{_lambda_.7} parent=1 // pred_check_branch
      %3128 = sbr.rel (0) target = $region57
    $region56: #{_lambda_.7} parent=1 // pred_region
      %s3130 = ssub.s32 2048, 2048
      %3131 = vsyncadd [#allocation7], %s3130
      %s3132 = sshll.u32 [#allocation6], 4
      %s3133 = int_to_ptr.vmem [resolvable:$true] %s3132
      %3138 = dma.vmem_to_hbm [thread:$0]  %s3133, 2048, %s11, [#allocation7], 128, 128, 8
    $region57: #{_lambda_.7} parent=1 // pred_fallthru
      _
    // Predicated region
    $region58: #{_lambda_.7} parent=1 // pred_check
      _
    $region59: #{_lambda_.7} parent=1 // pred_check_branch
      %3140 = sbr.rel (0) target = $region61
    $region60: #{_lambda_.7} parent=1 // pred_region
      %3141 = dma.done [#allocation5], 1024
    $region61: #{_lambda_.7} parent=1 // pred_fallthru
      _
    // Predicated region
    $region62: #{_lambda_.7} parent=1 // pred_check
      _
    $region63: #{_lambda_.7} parent=1 // pred_check_branch
      %3143 = sbr.rel (0) target = $region65
    $region64: #{_lambda_.7} parent=1 // pred_region
      %3144 = dma.done [#allocation7], 2048
    $region65: #{_lambda_.7} parent=1 // pred_fallthru
      _
    %3145 = vsyncpa [#allocation5], 1
    %3146 = vsyncpa [#allocation7], 1

</llo_original>
